<compile_context>
chip_gen: v7x
topology: tpu7x:2x2x1
jax: 0.10.0
libtpu: 0.0.40
codegen_flags: <defaults>
</compile_context>

<pallas_src>
import jax
import jax.numpy as jnp
from jax.experimental import pallas as pl
from jax.experimental.pallas import tpu as pltpu

SEQ_LEN = 51          # fixed by fc1 = Linear(128 * 51, 128) in the PyTorch module
C_IN = 2
C1 = 64               # conv1 out channels
C2 = 128              # conv2 out channels
HID = 128             # fc1 out features
N_PAD = 128           # fc2 output padded 51 -> 128 lanes (sliced in the wrapper)
TB = 16               # batch tile (sublane group; bf16 tile height); batch padded up
LP = SEQ_LEN + 2      # L with one zero row on each side (Conv1d padding=1)


def _fused_kernel(x_ref, w1_ref, b1_ref, w2_ref, b2_ref,
                  wf1_ref, bf1_ref, wf2_ref, bf2_ref,
                  out_ref, act1_ref, act2_ref):
    """Whole CNNPredictor forward for one batch tile.

    x_ref   : (LP*TB, C_IN)      bf16  rows l-major: row = (l+1)*TB + b, with TB
                                       zero rows at l = -1 and l = SEQ_LEN.
    w1_ref  : (3, C_IN, C1)      bf16  w1[j] = torch_conv1_w[:, :, j].T
    w2_ref  : (3, C1, C2)        bf16
    wf1_ref : (SEQ_LEN, C2, HID) bf16  wf1[l, c, n] = torch_fc1_w[n, c*51 + l]
    wf2_ref : (HID, N_PAD)       bf16  torch_fc2_w.T, zero-padded to 128 cols
    b*_ref  : (1, N) f32 biases
    out_ref : (TB, N_PAD) f32
    act1_ref, act2_ref : bf16 VMEM scratch for conv activations.
    """
    tb = out_ref.shape[0]
    n_rows = SEQ_LEN * tb

    # ---------------- conv1 + ReLU: 3 shifted matmuls over padded L ----------
    acc = jnp.dot(x_ref[0:n_rows, :], w1_ref[0],
                  preferred_element_type=jnp.float32)
    acc = acc + jnp.dot(x_ref[tb:tb + n_rows, :], w1_ref[1],
                        preferred_element_type=jnp.float32)
    acc = acc + jnp.dot(x_ref[2 * tb:2 * tb + n_rows, :], w1_ref[2],
                        preferred_element_type=jnp.float32)
    a1 = jnp.maximum(acc + b1_ref[...], 0.0)                  # (n_rows, C1) f32

    # Stash conv1 output with one zero "L row" (= tb sublanes) on each side so
    # conv2's three taps are plain static slices of the scratch.
    act1_ref[0:tb, :] = jnp.zeros((tb, C1), act1_ref.dtype)
    act1_ref[tb + n_rows:2 * tb + n_rows, :] = jnp.zeros((tb, C1), act1_ref.dtype)
    act1_ref[tb:tb + n_rows, :] = a1.astype(act1_ref.dtype)

    # ---------------- conv2 + ReLU -------------------------------------------
    acc = jnp.dot(act1_ref[0:n_rows, :], w2_ref[0],
                  preferred_element_type=jnp.float32)
    acc = acc + jnp.dot(act1_ref[tb:tb + n_rows, :], w2_ref[1],
                        preferred_element_type=jnp.float32)
    acc = acc + jnp.dot(act1_ref[2 * tb:2 * tb + n_rows, :], w2_ref[2],
                        preferred_element_type=jnp.float32)
    a2 = jnp.maximum(acc + b2_ref[...], 0.0)                  # (n_rows, C2) f32
    act2_ref[...] = a2.astype(act2_ref.dtype)

    # ---------------- fc1 + ReLU ----------------------------------------------
    # torch flattens NCL channel-major (flat index = c*51 + l).  With the weight
    # pre-permuted to (l, c, n), fc1 is a sum over l of (tb, C2) @ (C2, HID),
    # which keeps the activation in its lane-dense layout (no sublane->lane
    # flatten).  Static unroll (51 steps) so the scheduler sees the whole chain.
    acc_fc = jnp.zeros((tb, HID), jnp.float32)
    for l in range(SEQ_LEN):
        a_l = act2_ref[l * tb:(l + 1) * tb, :]                # (tb, C2) bf16
        acc_fc = acc_fc + jnp.dot(a_l, wf1_ref[l],
                                  preferred_element_type=jnp.float32)
    h = jnp.maximum(acc_fc + bf1_ref[...], 0.0)               # (tb, HID) f32

    # ---------------- fc2 (lane-padded to 128 outputs) ------------------------
    out = jnp.dot(h.astype(jnp.bfloat16), wf2_ref[...],
                  preferred_element_type=jnp.float32)
    out_ref[...] = (out + bf2_ref[...]).astype(out_ref.dtype)


def prepare_params(params):
    """One-time (outside jit) repack of PyTorch-layout weights for the kernel."""
    w1 = jnp.transpose(params["w_conv1"], (2, 1, 0)).astype(jnp.bfloat16)  # (3, 2, 64)
    w2 = jnp.transpose(params["w_conv2"], (2, 1, 0)).astype(jnp.bfloat16)  # (3, 64, 128)
    # fc1 weight (128, 128*51), flat index c*51 + l  ->  (l, c, n)
    wf1 = params["w_fc1"].reshape(HID, C2, SEQ_LEN)
    wf1 = jnp.transpose(wf1, (2, 1, 0)).astype(jnp.bfloat16)               # (51, 128, 128)
    # fc2 weight (51, 128) -> transposed and lane-padded to 128 output columns
    wf2 = jnp.zeros((HID, N_PAD), jnp.float32)
    wf2 = wf2.at[:, :SEQ_LEN].set(params["w_fc2"].T).astype(jnp.bfloat16)  # (128, 128)
    bf2 = jnp.zeros((N_PAD,), jnp.float32).at[:SEQ_LEN].set(params["b_fc2"])
    return {
        "w1": w1, "b1": params["b_conv1"].reshape(1, C1).astype(jnp.float32),
        "w2": w2, "b2": params["b_conv2"].reshape(1, C2).astype(jnp.float32),
        "wf1": wf1, "bf1": params["b_fc1"].reshape(1, HID).astype(jnp.float32),
        "wf2": wf2, "bf2": bf2.reshape(1, N_PAD),
    }


def cnn_predictor_forward(prepared, x):
    """x: (B, 51, 2) float32 -> (B, 51, 1) float32 via one fused Pallas kernel."""
    B = x.shape[0]
    nt = (B + TB - 1) // TB
    b_pad = nt * TB

    # Lay x out l-major per batch tile: (nt, LP*TB, C_IN) with zero rows for the
    # conv padding positions l = -1 and l = SEQ_LEN.  (Few-KB glue; all heavy
    # data stays inside the kernel.)
    xp = jnp.pad(x, ((0, b_pad - B), (1, 1), (0, 0)))          # (b_pad, LP, 2)
    xp = xp.reshape(nt, TB, LP, C_IN)
    xp = jnp.transpose(xp, (0, 2, 1, 3)).reshape(nt, LP * TB, C_IN)
    xp = xp.astype(jnp.bfloat16)

    out = pl.pallas_call(
        _fused_kernel,
        out_shape=jax.ShapeDtypeStruct((nt, TB, N_PAD), jnp.float32),
        grid=(nt,),
        in_specs=[
            pl.BlockSpec((None, LP * TB, C_IN), lambda i: (i, 0, 0)),
            pl.BlockSpec((3, C_IN, C1), lambda i: (0, 0, 0)),
            pl.BlockSpec((1, C1), lambda i: (0, 0)),
            pl.BlockSpec((3, C1, C2), lambda i: (0, 0, 0)),
            pl.BlockSpec((1, C2), lambda i: (0, 0)),
            pl.BlockSpec((SEQ_LEN, C2, HID), lambda i: (0, 0, 0)),
            pl.BlockSpec((1, HID), lambda i: (0, 0)),
            pl.BlockSpec((HID, N_PAD), lambda i: (0, 0)),
            pl.BlockSpec((1, N_PAD), lambda i: (0, 0)),
        ],
        out_specs=pl.BlockSpec((None, TB, N_PAD), lambda i: (i, 0, 0)),
        scratch_shapes=[
            pltpu.VMEM((LP * TB, C1), jnp.bfloat16),       # conv1 acts (+pad rows)
            pltpu.VMEM((SEQ_LEN * TB, C2), jnp.bfloat16),  # conv2 acts
        ],
        compiler_params=pltpu.CompilerParams(
            dimension_semantics=("parallel",),
        ),
    )(xp, prepared["w1"], prepared["b1"], prepared["w2"], prepared["b2"],
      prepared["wf1"], prepared["bf1"], prepared["wf2"], prepared["bf2"])

    out = out.reshape(b_pad, N_PAD)[:B, :SEQ_LEN]
    return out.reshape(B, SEQ_LEN, 1)


def init_params(key):
    """Deterministic synthetic parameters with the PyTorch module's shapes."""
    ks = jax.random.split(key, 8)

    def u(k, shape, fan_in):
        bound = 1.0 / jnp.sqrt(fan_in)
        return jax.random.uniform(k, shape, jnp.float32, -bound, bound)

    return {
        "w_conv1": u(ks[0], (C1, C_IN, 3), C_IN * 3),
        "b_conv1": u(ks[1], (C1,), C_IN * 3),
        "w_conv2": u(ks[2], (C2, C1, 3), C1 * 3),
        "b_conv2": u(ks[3], (C2,), C1 * 3),
        "w_fc1":   u(ks[4], (HID, C2 * SEQ_LEN), C2 * SEQ_LEN),
        "b_fc1":   u(ks[5], (HID,), C2 * SEQ_LEN),
        "w_fc2":   u(ks[6], (SEQ_LEN, HID), HID),
        "b_fc2":   u(ks[7], (SEQ_LEN,), HID),
    }


if __name__ == "__main__":
    key = jax.random.PRNGKey(0)
    pkey, xkey = jax.random.split(key)
    params = init_params(pkey)
    prepared = prepare_params(params)      # one-time weight repack, outside jit

    B = 2                                  # seq length must be 51 (fc1 hard-codes 128*51)
    x = jax.random.normal(xkey, (B, SEQ_LEN, C_IN), dtype=jnp.float32)

    fwd = jax.jit(cnn_predictor_forward)
    out = jax.block_until_ready(fwd(prepared, x))

    assert out.shape == (B, SEQ_LEN, 1), out.shape
    assert out.dtype == jnp.float32
    assert bool(jnp.all(jnp.isfinite(out)))
    print("KERNEL_OK")
</pallas_src>

<mosaic_0001>
module attributes {stable_mosaic.version = 11 : i64} {
  func.func @_fused_kernel(%arg0: i32, %arg1: memref<1x848x2xbf16, #tpu.memory_space<vmem>>, %arg2: memref<3x2x64xbf16, #tpu.memory_space<vmem>>, %arg3: memref<1x64xf32, #tpu.memory_space<vmem>>, %arg4: memref<3x64x128xbf16, #tpu.memory_space<vmem>>, %arg5: memref<1x128xf32, #tpu.memory_space<vmem>>, %arg6: memref<51x128x128xbf16, #tpu.memory_space<vmem>>, %arg7: memref<1x128xf32, #tpu.memory_space<vmem>>, %arg8: memref<128x128xbf16, #tpu.memory_space<vmem>>, %arg9: memref<1x128xf32, #tpu.memory_space<vmem>>, %arg10: memref<1x16x128xf32, #tpu.memory_space<vmem>>, %arg11: memref<848x64xbf16, #tpu.memory_space<vmem>>, %arg12: memref<816x128xbf16, #tpu.memory_space<vmem>>) attributes {dimension_semantics = [#tpu.dimension_semantics<parallel>], iteration_bounds = array<i64: 1>, scalar_prefetch = 0 : i64, scratch_operands = 2 : i64, tpu.core_type = #tpu.core_type<tc>, window_params = [{transform_indices = @transform_0, window_bounds = array<i64: 1, 848, 2>}, {pipeline_mode = #tpu.pipeline_mode<synchronous>, transform_indices = @transform_1, window_bounds = array<i64: 3, 2, 64>}, {pipeline_mode = #tpu.pipeline_mode<synchronous>, transform_indices = @transform_2, window_bounds = array<i64: 1, 64>}, {pipeline_mode = #tpu.pipeline_mode<synchronous>, transform_indices = @transform_3, window_bounds = array<i64: 3, 64, 128>}, {pipeline_mode = #tpu.pipeline_mode<synchronous>, transform_indices = @transform_4, window_bounds = array<i64: 1, 128>}, {pipeline_mode = #tpu.pipeline_mode<synchronous>, transform_indices = @transform_5, window_bounds = array<i64: 51, 128, 128>}, {pipeline_mode = #tpu.pipeline_mode<synchronous>, transform_indices = @transform_6, window_bounds = array<i64: 1, 128>}, {pipeline_mode = #tpu.pipeline_mode<synchronous>, transform_indices = @transform_7, window_bounds = array<i64: 128, 128>}, {pipeline_mode = #tpu.pipeline_mode<synchronous>, transform_indices = @transform_8, window_bounds = array<i64: 1, 128>}, {transform_indices = @transform_9, window_bounds = array<i64: 1, 16, 128>}]} {
    %c0 = arith.constant 0 : index
    %c0_0 = arith.constant 0 : index
    %c0_1 = arith.constant 0 : index
    %0 = vector.load %arg1[%c0, %c0_0, %c0_1] : memref<1x848x2xbf16, #tpu.memory_space<vmem>>, vector<1x816x2xbf16>
    %1 = vector.shape_cast %0 : vector<1x816x2xbf16> to vector<816x2xbf16>
    %c0_2 = arith.constant 0 : index
    %c0_3 = arith.constant 0 : index
    %c0_4 = arith.constant 0 : index
    %2 = vector.load %arg2[%c0_2, %c0_3, %c0_4] : memref<3x2x64xbf16, #tpu.memory_space<vmem>>, vector<1x2x64xbf16>
    %3 = vector.shape_cast %2 : vector<1x2x64xbf16> to vector<2x64xbf16>
    %cst = arith.constant dense<0.000000e+00> : vector<816x64xf32>
    %4 = tpu.matmul %1, %3, %cst {dimension_numbers = #tpu.dot_dimension_numbers<[1], [0], [0], [1], [0, 0, 1, 1], [], []>} : vector<816x2xbf16>, vector<2x64xbf16>, vector<816x64xf32> -> vector<816x64xf32>
    %c0_5 = arith.constant 0 : index
    %c16 = arith.constant 16 : index
    %c0_6 = arith.constant 0 : index
    %5 = vector.load %arg1[%c0_5, %c16, %c0_6] : memref<1x848x2xbf16, #tpu.memory_space<vmem>>, vector<1x816x2xbf16>
    %6 = vector.shape_cast %5 : vector<1x816x2xbf16> to vector<816x2xbf16>
    %c1 = arith.constant 1 : index
    %c0_7 = arith.constant 0 : index
    %c0_8 = arith.constant 0 : index
    %7 = vector.load %arg2[%c1, %c0_7, %c0_8] : memref<3x2x64xbf16, #tpu.memory_space<vmem>>, vector<1x2x64xbf16>
    %8 = vector.shape_cast %7 : vector<1x2x64xbf16> to vector<2x64xbf16>
    %cst_9 = arith.constant dense<0.000000e+00> : vector<816x64xf32>
    %9 = tpu.matmul %6, %8, %cst_9 {dimension_numbers = #tpu.dot_dimension_numbers<[1], [0], [0], [1], [0, 0, 1, 1], [], []>} : vector<816x2xbf16>, vector<2x64xbf16>, vector<816x64xf32> -> vector<816x64xf32>
    %10 = arith.addf %4, %9 : vector<816x64xf32>
    %c0_10 = arith.constant 0 : index
    %c32 = arith.constant 32 : index
    %c0_11 = arith.constant 0 : index
    %11 = vector.load %arg1[%c0_10, %c32, %c0_11] : memref<1x848x2xbf16, #tpu.memory_space<vmem>>, vector<1x816x2xbf16>
    %12 = vector.shape_cast %11 : vector<1x816x2xbf16> to vector<816x2xbf16>
    %c2 = arith.constant 2 : index
    %c0_12 = arith.constant 0 : index
    %c0_13 = arith.constant 0 : index
    %13 = vector.load %arg2[%c2, %c0_12, %c0_13] : memref<3x2x64xbf16, #tpu.memory_space<vmem>>, vector<1x2x64xbf16>
    %14 = vector.shape_cast %13 : vector<1x2x64xbf16> to vector<2x64xbf16>
    %cst_14 = arith.constant dense<0.000000e+00> : vector<816x64xf32>
    %15 = tpu.matmul %12, %14, %cst_14 {dimension_numbers = #tpu.dot_dimension_numbers<[1], [0], [0], [1], [0, 0, 1, 1], [], []>} : vector<816x2xbf16>, vector<2x64xbf16>, vector<816x64xf32> -> vector<816x64xf32>
    %16 = arith.addf %10, %15 : vector<816x64xf32>
    %c0_15 = arith.constant 0 : index
    %c0_16 = arith.constant 0 : index
    %17 = vector.load %arg3[%c0_15, %c0_16] : memref<1x64xf32, #tpu.memory_space<vmem>>, vector<1x64xf32>
    %18 = vector.broadcast %17 : vector<1x64xf32> to vector<816x64xf32>
    %19 = arith.addf %16, %18 : vector<816x64xf32>
    %cst_17 = arith.constant 0.000000e+00 : f32
    %20 = vector.broadcast %cst_17 : f32 to vector<816x64xf32>
    %21 = arith.maximumf %19, %20 : vector<816x64xf32>
    %cst_18 = arith.constant 0.000000e+00 : bf16
    %22 = vector.broadcast %cst_18 : bf16 to vector<16x64xbf16>
    %c0_19 = arith.constant 0 : index
    %c0_20 = arith.constant 0 : index
    %23 = vector.load %arg11[%c0_19, %c0_20] : memref<848x64xbf16, #tpu.memory_space<vmem>>, vector<16x64xbf16>
    tpu.vector_store %arg11[%c0_19, %c0_20], %22 {strides = array<i32>} : memref<848x64xbf16, #tpu.memory_space<vmem>>, vector<16x64xbf16>,
    %cst_21 = arith.constant 0.000000e+00 : bf16
    %24 = vector.broadcast %cst_21 : bf16 to vector<16x64xbf16>
    %c832 = arith.constant 832 : index
    %c0_22 = arith.constant 0 : index
    %25 = vector.load %arg11[%c832, %c0_22] : memref<848x64xbf16, #tpu.memory_space<vmem>>, vector<16x64xbf16>
    tpu.vector_store %arg11[%c832, %c0_22], %24 {strides = array<i32>} : memref<848x64xbf16, #tpu.memory_space<vmem>>, vector<16x64xbf16>,
    %26 = arith.truncf %21 : vector<816x64xf32> to vector<816x64xbf16>
    %c16_23 = arith.constant 16 : index
    %c0_24 = arith.constant 0 : index
    %27 = vector.load %arg11[%c16_23, %c0_24] : memref<848x64xbf16, #tpu.memory_space<vmem>>, vector<816x64xbf16>
    tpu.vector_store %arg11[%c16_23, %c0_24], %26 {strides = array<i32>} : memref<848x64xbf16, #tpu.memory_space<vmem>>, vector<816x64xbf16>,
    %c0_25 = arith.constant 0 : index
    %c0_26 = arith.constant 0 : index
    %28 = vector.load %arg11[%c0_25, %c0_26] : memref<848x64xbf16, #tpu.memory_space<vmem>>, vector<816x64xbf16>
    %c0_27 = arith.constant 0 : index
    %c0_28 = arith.constant 0 : index
    %c0_29 = arith.constant 0 : index
    %29 = vector.load %arg4[%c0_27, %c0_28, %c0_29] : memref<3x64x128xbf16, #tpu.memory_space<vmem>>, vector<1x64x128xbf16>
    %30 = vector.shape_cast %29 : vector<1x64x128xbf16> to vector<64x128xbf16>
    %cst_30 = arith.constant dense<0.000000e+00> : vector<816x128xf32>
    %31 = tpu.matmul %28, %30, %cst_30 {dimension_numbers = #tpu.dot_dimension_numbers<[1], [0], [0], [1], [0, 0, 1, 1], [], []>} : vector<816x64xbf16>, vector<64x128xbf16>, vector<816x128xf32> -> vector<816x128xf32>
    %c16_31 = arith.constant 16 : index
    %c0_32 = arith.constant 0 : index
    %32 = vector.load %arg11[%c16_31, %c0_32] : memref<848x64xbf16, #tpu.memory_space<vmem>>, vector<816x64xbf16>
    %c1_33 = arith.constant 1 : index
    %c0_34 = arith.constant 0 : index
    %c0_35 = arith.constant 0 : index
    %33 = vector.load %arg4[%c1_33, %c0_34, %c0_35] : memref<3x64x128xbf16, #tpu.memory_space<vmem>>, vector<1x64x128xbf16>
    %34 = vector.shape_cast %33 : vector<1x64x128xbf16> to vector<64x128xbf16>
    %cst_36 = arith.constant dense<0.000000e+00> : vector<816x128xf32>
    %35 = tpu.matmul %32, %34, %cst_36 {dimension_numbers = #tpu.dot_dimension_numbers<[1], [0], [0], [1], [0, 0, 1, 1], [], []>} : vector<816x64xbf16>, vector<64x128xbf16>, vector<816x128xf32> -> vector<816x128xf32>
    %36 = arith.addf %31, %35 : vector<816x128xf32>
    %c32_37 = arith.constant 32 : index
    %c0_38 = arith.constant 0 : index
    %37 = vector.load %arg11[%c32_37, %c0_38] : memref<848x64xbf16, #tpu.memory_space<vmem>>, vector<816x64xbf16>
    %c2_39 = arith.constant 2 : index
    %c0_40 = arith.constant 0 : index
    %c0_41 = arith.constant 0 : index
    %38 = vector.load %arg4[%c2_39, %c0_40, %c0_41] : memref<3x64x128xbf16, #tpu.memory_space<vmem>>, vector<1x64x128xbf16>
    %39 = vector.shape_cast %38 : vector<1x64x128xbf16> to vector<64x128xbf16>
    %cst_42 = arith.constant dense<0.000000e+00> : vector<816x128xf32>
    %40 = tpu.matmul %37, %39, %cst_42 {dimension_numbers = #tpu.dot_dimension_numbers<[1], [0], [0], [1], [0, 0, 1, 1], [], []>} : vector<816x64xbf16>, vector<64x128xbf16>, vector<816x128xf32> -> vector<816x128xf32>
    %41 = arith.addf %36, %40 : vector<816x128xf32>
    %c0_43 = arith.constant 0 : index
    %c0_44 = arith.constant 0 : index
    %42 = vector.load %arg5[%c0_43, %c0_44] : memref<1x128xf32, #tpu.memory_space<vmem>>, vector<1x128xf32>
    %43 = vector.broadcast %42 : vector<1x128xf32> to vector<816x128xf32>
    %44 = arith.addf %41, %43 : vector<816x128xf32>
    %cst_45 = arith.constant 0.000000e+00 : f32
    %45 = vector.broadcast %cst_45 : f32 to vector<816x128xf32>
    %46 = arith.maximumf %44, %45 : vector<816x128xf32>
    %47 = arith.truncf %46 : vector<816x128xf32> to vector<816x128xbf16>
    %c0_46 = arith.constant 0 : index
    %c0_47 = arith.constant 0 : index
    %48 = vector.load %arg12[%c0_46, %c0_47] : memref<816x128xbf16, #tpu.memory_space<vmem>>, vector<816x128xbf16>
    tpu.vector_store %arg12[%c0_46, %c0_47], %47 {strides = array<i32>} : memref<816x128xbf16, #tpu.memory_space<vmem>>, vector<816x128xbf16>,
    %cst_48 = arith.constant 0.000000e+00 : f32
    %49 = vector.broadcast %cst_48 : f32 to vector<16x128xf32>
    %c0_49 = arith.constant 0 : index
    %c0_50 = arith.constant 0 : index
    %50 = vector.load %arg12[%c0_49, %c0_50] : memref<816x128xbf16, #tpu.memory_space<vmem>>, vector<16x128xbf16>
    %c0_51 = arith.constant 0 : index
    %c0_52 = arith.constant 0 : index
    %c0_53 = arith.constant 0 : index
    %51 = vector.load %arg6[%c0_51, %c0_52, %c0_53] : memref<51x128x128xbf16, #tpu.memory_space<vmem>>, vector<1x128x128xbf16>
    %52 = vector.shape_cast %51 : vector<1x128x128xbf16> to vector<128x128xbf16>
    %cst_54 = arith.constant dense<0.000000e+00> : vector<16x128xf32>
    %53 = tpu.matmul %50, %52, %cst_54 {dimension_numbers = #tpu.dot_dimension_numbers<[1], [0], [0], [1], [0, 0, 1, 1], [], []>} : vector<16x128xbf16>, vector<128x128xbf16>, vector<16x128xf32> -> vector<16x128xf32>
    %54 = arith.addf %49, %53 : vector<16x128xf32>
    %c16_55 = arith.constant 16 : index
    %c0_56 = arith.constant 0 : index
    %55 = vector.load %arg12[%c16_55, %c0_56] : memref<816x128xbf16, #tpu.memory_space<vmem>>, vector<16x128xbf16>
    %c1_57 = arith.constant 1 : index
    %c0_58 = arith.constant 0 : index
    %c0_59 = arith.constant 0 : index
    %56 = vector.load %arg6[%c1_57, %c0_58, %c0_59] : memref<51x128x128xbf16, #tpu.memory_space<vmem>>, vector<1x128x128xbf16>
    %57 = vector.shape_cast %56 : vector<1x128x128xbf16> to vector<128x128xbf16>
    %cst_60 = arith.constant dense<0.000000e+00> : vector<16x128xf32>
    %58 = tpu.matmul %55, %57, %cst_60 {dimension_numbers = #tpu.dot_dimension_numbers<[1], [0], [0], [1], [0, 0, 1, 1], [], []>} : vector<16x128xbf16>, vector<128x128xbf16>, vector<16x128xf32> -> vector<16x128xf32>
    %59 = arith.addf %54, %58 : vector<16x128xf32>
    %c32_61 = arith.constant 32 : index
    %c0_62 = arith.constant 0 : index
    %60 = vector.load %arg12[%c32_61, %c0_62] : memref<816x128xbf16, #tpu.memory_space<vmem>>, vector<16x128xbf16>
    %c2_63 = arith.constant 2 : index
    %c0_64 = arith.constant 0 : index
    %c0_65 = arith.constant 0 : index
    %61 = vector.load %arg6[%c2_63, %c0_64, %c0_65] : memref<51x128x128xbf16, #tpu.memory_space<vmem>>, vector<1x128x128xbf16>
    %62 = vector.shape_cast %61 : vector<1x128x128xbf16> to vector<128x128xbf16>
    %cst_66 = arith.constant dense<0.000000e+00> : vector<16x128xf32>
    %63 = tpu.matmul %60, %62, %cst_66 {dimension_numbers = #tpu.dot_dimension_numbers<[1], [0], [0], [1], [0, 0, 1, 1], [], []>} : vector<16x128xbf16>, vector<128x128xbf16>, vector<16x128xf32> -> vector<16x128xf32>
    %64 = arith.addf %59, %63 : vector<16x128xf32>
    %c48 = arith.constant 48 : index
    %c0_67 = arith.constant 0 : index
    %65 = vector.load %arg12[%c48, %c0_67] : memref<816x128xbf16, #tpu.memory_space<vmem>>, vector<16x128xbf16>
    %c3 = arith.constant 3 : index
    %c0_68 = arith.constant 0 : index
    %c0_69 = arith.constant 0 : index
    %66 = vector.load %arg6[%c3, %c0_68, %c0_69] : memref<51x128x128xbf16, #tpu.memory_space<vmem>>, vector<1x128x128xbf16>
    %67 = vector.shape_cast %66 : vector<1x128x128xbf16> to vector<128x128xbf16>
    %cst_70 = arith.constant dense<0.000000e+00> : vector<16x128xf32>
    %68 = tpu.matmul %65, %67, %cst_70 {dimension_numbers = #tpu.dot_dimension_numbers<[1], [0], [0], [1], [0, 0, 1, 1], [], []>} : vector<16x128xbf16>, vector<128x128xbf16>, vector<16x128xf32> -> vector<16x128xf32>
    %69 = arith.addf %64, %68 : vector<16x128xf32>
    %c64 = arith.constant 64 : index
    %c0_71 = arith.constant 0 : index
    %70 = vector.load %arg12[%c64, %c0_71] : memref<816x128xbf16, #tpu.memory_space<vmem>>, vector<16x128xbf16>
    %c4 = arith.constant 4 : index
    %c0_72 = arith.constant 0 : index
    %c0_73 = arith.constant 0 : index
    %71 = vector.load %arg6[%c4, %c0_72, %c0_73] : memref<51x128x128xbf16, #tpu.memory_space<vmem>>, vector<1x128x128xbf16>
    %72 = vector.shape_cast %71 : vector<1x128x128xbf16> to vector<128x128xbf16>
    %cst_74 = arith.constant dense<0.000000e+00> : vector<16x128xf32>
    %73 = tpu.matmul %70, %72, %cst_74 {dimension_numbers = #tpu.dot_dimension_numbers<[1], [0], [0], [1], [0, 0, 1, 1], [], []>} : vector<16x128xbf16>, vector<128x128xbf16>, vector<16x128xf32> -> vector<16x128xf32>
    %74 = arith.addf %69, %73 : vector<16x128xf32>
    %c80 = arith.constant 80 : index
    %c0_75 = arith.constant 0 : index
    %75 = vector.load %arg12[%c80, %c0_75] : memref<816x128xbf16, #tpu.memory_space<vmem>>, vector<16x128xbf16>
    %c5 = arith.constant 5 : index
    %c0_76 = arith.constant 0 : index
    %c0_77 = arith.constant 0 : index
    %76 = vector.load %arg6[%c5, %c0_76, %c0_77] : memref<51x128x128xbf16, #tpu.memory_space<vmem>>, vector<1x128x128xbf16>
    %77 = vector.shape_cast %76 : vector<1x128x128xbf16> to vector<128x128xbf16>
    %cst_78 = arith.constant dense<0.000000e+00> : vector<16x128xf32>
    %78 = tpu.matmul %75, %77, %cst_78 {dimension_numbers = #tpu.dot_dimension_numbers<[1], [0], [0], [1], [0, 0, 1, 1], [], []>} : vector<16x128xbf16>, vector<128x128xbf16>, vector<16x128xf32> -> vector<16x128xf32>
    %79 = arith.addf %74, %78 : vector<16x128xf32>
    %c96 = arith.constant 96 : index
    %c0_79 = arith.constant 0 : index
    %80 = vector.load %arg12[%c96, %c0_79] : memref<816x128xbf16, #tpu.memory_space<vmem>>, vector<16x128xbf16>
    %c6 = arith.constant 6 : index
    %c0_80 = arith.constant 0 : index
    %c0_81 = arith.constant 0 : index
    %81 = vector.load %arg6[%c6, %c0_80, %c0_81] : memref<51x128x128xbf16, #tpu.memory_space<vmem>>, vector<1x128x128xbf16>
    %82 = vector.shape_cast %81 : vector<1x128x128xbf16> to vector<128x128xbf16>
    %cst_82 = arith.constant dense<0.000000e+00> : vector<16x128xf32>
    %83 = tpu.matmul %80, %82, %cst_82 {dimension_numbers = #tpu.dot_dimension_numbers<[1], [0], [0], [1], [0, 0, 1, 1], [], []>} : vector<16x128xbf16>, vector<128x128xbf16>, vector<16x128xf32> -> vector<16x128xf32>
    %84 = arith.addf %79, %83 : vector<16x128xf32>
    %c112 = arith.constant 112 : index
    %c0_83 = arith.constant 0 : index
    %85 = vector.load %arg12[%c112, %c0_83] : memref<816x128xbf16, #tpu.memory_space<vmem>>, vector<16x128xbf16>
    %c7 = arith.constant 7 : index
    %c0_84 = arith.constant 0 : index
    %c0_85 = arith.constant 0 : index
    %86 = vector.load %arg6[%c7, %c0_84, %c0_85] : memref<51x128x128xbf16, #tpu.memory_space<vmem>>, vector<1x128x128xbf16>
    %87 = vector.shape_cast %86 : vector<1x128x128xbf16> to vector<128x128xbf16>
    %cst_86 = arith.constant dense<0.000000e+00> : vector<16x128xf32>
    %88 = tpu.matmul %85, %87, %cst_86 {dimension_numbers = #tpu.dot_dimension_numbers<[1], [0], [0], [1], [0, 0, 1, 1], [], []>} : vector<16x128xbf16>, vector<128x128xbf16>, vector<16x128xf32> -> vector<16x128xf32>
    %89 = arith.addf %84, %88 : vector<16x128xf32>
    %c128 = arith.constant 128 : index
    %c0_87 = arith.constant 0 : index
    %90 = vector.load %arg12[%c128, %c0_87] : memref<816x128xbf16, #tpu.memory_space<vmem>>, vector<16x128xbf16>
    %c8 = arith.constant 8 : index
    %c0_88 = arith.constant 0 : index
    %c0_89 = arith.constant 0 : index
    %91 = vector.load %arg6[%c8, %c0_88, %c0_89] : memref<51x128x128xbf16, #tpu.memory_space<vmem>>, vector<1x128x128xbf16>
    %92 = vector.shape_cast %91 : vector<1x128x128xbf16> to vector<128x128xbf16>
    %cst_90 = arith.constant dense<0.000000e+00> : vector<16x128xf32>
    %93 = tpu.matmul %90, %92, %cst_90 {dimension_numbers = #tpu.dot_dimension_numbers<[1], [0], [0], [1], [0, 0, 1, 1], [], []>} : vector<16x128xbf16>, vector<128x128xbf16>, vector<16x128xf32> -> vector<16x128xf32>
    %94 = arith.addf %89, %93 : vector<16x128xf32>
    %c144 = arith.constant 144 : index
    %c0_91 = arith.constant 0 : index
    %95 = vector.load %arg12[%c144, %c0_91] : memref<816x128xbf16, #tpu.memory_space<vmem>>, vector<16x128xbf16>
    %c9 = arith.constant 9 : index
    %c0_92 = arith.constant 0 : index
    %c0_93 = arith.constant 0 : index
    %96 = vector.load %arg6[%c9, %c0_92, %c0_93] : memref<51x128x128xbf16, #tpu.memory_space<vmem>>, vector<1x128x128xbf16>
    %97 = vector.shape_cast %96 : vector<1x128x128xbf16> to vector<128x128xbf16>
    %cst_94 = arith.constant dense<0.000000e+00> : vector<16x128xf32>
    %98 = tpu.matmul %95, %97, %cst_94 {dimension_numbers = #tpu.dot_dimension_numbers<[1], [0], [0], [1], [0, 0, 1, 1], [], []>} : vector<16x128xbf16>, vector<128x128xbf16>, vector<16x128xf32> -> vector<16x128xf32>
    %99 = arith.addf %94, %98 : vector<16x128xf32>
    %c160 = arith.constant 160 : index
    %c0_95 = arith.constant 0 : index
    %100 = vector.load %arg12[%c160, %c0_95] : memref<816x128xbf16, #tpu.memory_space<vmem>>, vector<16x128xbf16>
    %c10 = arith.constant 10 : index
    %c0_96 = arith.constant 0 : index
    %c0_97 = arith.constant 0 : index
    %101 = vector.load %arg6[%c10, %c0_96, %c0_97] : memref<51x128x128xbf16, #tpu.memory_space<vmem>>, vector<1x128x128xbf16>
    %102 = vector.shape_cast %101 : vector<1x128x128xbf16> to vector<128x128xbf16>
    %cst_98 = arith.constant dense<0.000000e+00> : vector<16x128xf32>
    %103 = tpu.matmul %100, %102, %cst_98 {dimension_numbers = #tpu.dot_dimension_numbers<[1], [0], [0], [1], [0, 0, 1, 1], [], []>} : vector<16x128xbf16>, vector<128x128xbf16>, vector<16x128xf32> -> vector<16x128xf32>
    %104 = arith.addf %99, %103 : vector<16x128xf32>
    %c176 = arith.constant 176 : index
    %c0_99 = arith.constant 0 : index
    %105 = vector.load %arg12[%c176, %c0_99] : memref<816x128xbf16, #tpu.memory_space<vmem>>, vector<16x128xbf16>
    %c11 = arith.constant 11 : index
    %c0_100 = arith.constant 0 : index
    %c0_101 = arith.constant 0 : index
    %106 = vector.load %arg6[%c11, %c0_100, %c0_101] : memref<51x128x128xbf16, #tpu.memory_space<vmem>>, vector<1x128x128xbf16>
    %107 = vector.shape_cast %106 : vector<1x128x128xbf16> to vector<128x128xbf16>
    %cst_102 = arith.constant dense<0.000000e+00> : vector<16x128xf32>
    %108 = tpu.matmul %105, %107, %cst_102 {dimension_numbers = #tpu.dot_dimension_numbers<[1], [0], [0], [1], [0, 0, 1, 1], [], []>} : vector<16x128xbf16>, vector<128x128xbf16>, vector<16x128xf32> -> vector<16x128xf32>
    %109 = arith.addf %104, %108 : vector<16x128xf32>
    %c192 = arith.constant 192 : index
    %c0_103 = arith.constant 0 : index
    %110 = vector.load %arg12[%c192, %c0_103] : memref<816x128xbf16, #tpu.memory_space<vmem>>, vector<16x128xbf16>
    %c12 = arith.constant 12 : index
    %c0_104 = arith.constant 0 : index
    %c0_105 = arith.constant 0 : index
    %111 = vector.load %arg6[%c12, %c0_104, %c0_105] : memref<51x128x128xbf16, #tpu.memory_space<vmem>>, vector<1x128x128xbf16>
    %112 = vector.shape_cast %111 : vector<1x128x128xbf16> to vector<128x128xbf16>
    %cst_106 = arith.constant dense<0.000000e+00> : vector<16x128xf32>
    %113 = tpu.matmul %110, %112, %cst_106 {dimension_numbers = #tpu.dot_dimension_numbers<[1], [0], [0], [1], [0, 0, 1, 1], [], []>} : vector<16x128xbf16>, vector<128x128xbf16>, vector<16x128xf32> -> vector<16x128xf32>
    %114 = arith.addf %109, %113 : vector<16x128xf32>
    %c208 = arith.constant 208 : index
    %c0_107 = arith.constant 0 : index
    %115 = vector.load %arg12[%c208, %c0_107] : memref<816x128xbf16, #tpu.memory_space<vmem>>, vector<16x128xbf16>
    %c13 = arith.constant 13 : index
    %c0_108 = arith.constant 0 : index
    %c0_109 = arith.constant 0 : index
    %116 = vector.load %arg6[%c13, %c0_108, %c0_109] : memref<51x128x128xbf16, #tpu.memory_space<vmem>>, vector<1x128x128xbf16>
    %117 = vector.shape_cast %116 : vector<1x128x128xbf16> to vector<128x128xbf16>
    %cst_110 = arith.constant dense<0.000000e+00> : vector<16x128xf32>
    %118 = tpu.matmul %115, %117, %cst_110 {dimension_numbers = #tpu.dot_dimension_numbers<[1], [0], [0], [1], [0, 0, 1, 1], [], []>} : vector<16x128xbf16>, vector<128x128xbf16>, vector<16x128xf32> -> vector<16x128xf32>
    %119 = arith.addf %114, %118 : vector<16x128xf32>
    %c224 = arith.constant 224 : index
    %c0_111 = arith.constant 0 : index
    %120 = vector.load %arg12[%c224, %c0_111] : memref<816x128xbf16, #tpu.memory_space<vmem>>, vector<16x128xbf16>
    %c14 = arith.constant 14 : index
    %c0_112 = arith.constant 0 : index
    %c0_113 = arith.constant 0 : index
    %121 = vector.load %arg6[%c14, %c0_112, %c0_113] : memref<51x128x128xbf16, #tpu.memory_space<vmem>>, vector<1x128x128xbf16>
    %122 = vector.shape_cast %121 : vector<1x128x128xbf16> to vector<128x128xbf16>
    %cst_114 = arith.constant dense<0.000000e+00> : vector<16x128xf32>
    %123 = tpu.matmul %120, %122, %cst_114 {dimension_numbers = #tpu.dot_dimension_numbers<[1], [0], [0], [1], [0, 0, 1, 1], [], []>} : vector<16x128xbf16>, vector<128x128xbf16>, vector<16x128xf32> -> vector<16x128xf32>
    %124 = arith.addf %119, %123 : vector<16x128xf32>
    %c240 = arith.constant 240 : index
    %c0_115 = arith.constant 0 : index
    %125 = vector.load %arg12[%c240, %c0_115] : memref<816x128xbf16, #tpu.memory_space<vmem>>, vector<16x128xbf16>
    %c15 = arith.constant 15 : index
    %c0_116 = arith.constant 0 : index
    %c0_117 = arith.constant 0 : index
    %126 = vector.load %arg6[%c15, %c0_116, %c0_117] : memref<51x128x128xbf16, #tpu.memory_space<vmem>>, vector<1x128x128xbf16>
    %127 = vector.shape_cast %126 : vector<1x128x128xbf16> to vector<128x128xbf16>
    %cst_118 = arith.constant dense<0.000000e+00> : vector<16x128xf32>
    %128 = tpu.matmul %125, %127, %cst_118 {dimension_numbers = #tpu.dot_dimension_numbers<[1], [0], [0], [1], [0, 0, 1, 1], [], []>} : vector<16x128xbf16>, vector<128x128xbf16>, vector<16x128xf32> -> vector<16x128xf32>
    %129 = arith.addf %124, %128 : vector<16x128xf32>
    %c256 = arith.constant 256 : index
    %c0_119 = arith.constant 0 : index
    %130 = vector.load %arg12[%c256, %c0_119] : memref<816x128xbf16, #tpu.memory_space<vmem>>, vector<16x128xbf16>
    %c16_120 = arith.constant 16 : index
    %c0_121 = arith.constant 0 : index
    %c0_122 = arith.constant 0 : index
    %131 = vector.load %arg6[%c16_120, %c0_121, %c0_122] : memref<51x128x128xbf16, #tpu.memory_space<vmem>>, vector<1x128x128xbf16>
    %132 = vector.shape_cast %131 : vector<1x128x128xbf16> to vector<128x128xbf16>
    %cst_123 = arith.constant dense<0.000000e+00> : vector<16x128xf32>
    %133 = tpu.matmul %130, %132, %cst_123 {dimension_numbers = #tpu.dot_dimension_numbers<[1], [0], [0], [1], [0, 0, 1, 1], [], []>} : vector<16x128xbf16>, vector<128x128xbf16>, vector<16x128xf32> -> vector<16x128xf32>
    %134 = arith.addf %129, %133 : vector<16x128xf32>
    %c272 = arith.constant 272 : index
    %c0_124 = arith.constant 0 : index
    %135 = vector.load %arg12[%c272, %c0_124] : memref<816x128xbf16, #tpu.memory_space<vmem>>, vector<16x128xbf16>
    %c17 = arith.constant 17 : index
    %c0_125 = arith.constant 0 : index
    %c0_126 = arith.constant 0 : index
    %136 = vector.load %arg6[%c17, %c0_125, %c0_126] : memref<51x128x128xbf16, #tpu.memory_space<vmem>>, vector<1x128x128xbf16>
    %137 = vector.shape_cast %136 : vector<1x128x128xbf16> to vector<128x128xbf16>
    %cst_127 = arith.constant dense<0.000000e+00> : vector<16x128xf32>
    %138 = tpu.matmul %135, %137, %cst_127 {dimension_numbers = #tpu.dot_dimension_numbers<[1], [0], [0], [1], [0, 0, 1, 1], [], []>} : vector<16x128xbf16>, vector<128x128xbf16>, vector<16x128xf32> -> vector<16x128xf32>
    %139 = arith.addf %134, %138 : vector<16x128xf32>
    %c288 = arith.constant 288 : index
    %c0_128 = arith.constant 0 : index
    %140 = vector.load %arg12[%c288, %c0_128] : memref<816x128xbf16, #tpu.memory_space<vmem>>, vector<16x128xbf16>
    %c18 = arith.constant 18 : index
    %c0_129 = arith.constant 0 : index
    %c0_130 = arith.constant 0 : index
    %141 = vector.load %arg6[%c18, %c0_129, %c0_130] : memref<51x128x128xbf16, #tpu.memory_space<vmem>>, vector<1x128x128xbf16>
    %142 = vector.shape_cast %141 : vector<1x128x128xbf16> to vector<128x128xbf16>
    %cst_131 = arith.constant dense<0.000000e+00> : vector<16x128xf32>
    %143 = tpu.matmul %140, %142, %cst_131 {dimension_numbers = #tpu.dot_dimension_numbers<[1], [0], [0], [1], [0, 0, 1, 1], [], []>} : vector<16x128xbf16>, vector<128x128xbf16>, vector<16x128xf32> -> vector<16x128xf32>
    %144 = arith.addf %139, %143 : vector<16x128xf32>
    %c304 = arith.constant 304 : index
    %c0_132 = arith.constant 0 : index
    %145 = vector.load %arg12[%c304, %c0_132] : memref<816x128xbf16, #tpu.memory_space<vmem>>, vector<16x128xbf16>
    %c19 = arith.constant 19 : index
    %c0_133 = arith.constant 0 : index
    %c0_134 = arith.constant 0 : index
    %146 = vector.load %arg6[%c19, %c0_133, %c0_134] : memref<51x128x128xbf16, #tpu.memory_space<vmem>>, vector<1x128x128xbf16>
    %147 = vector.shape_cast %146 : vector<1x128x128xbf16> to vector<128x128xbf16>
    %cst_135 = arith.constant dense<0.000000e+00> : vector<16x128xf32>
    %148 = tpu.matmul %145, %147, %cst_135 {dimension_numbers = #tpu.dot_dimension_numbers<[1], [0], [0], [1], [0, 0, 1, 1], [], []>} : vector<16x128xbf16>, vector<128x128xbf16>, vector<16x128xf32> -> vector<16x128xf32>
    %149 = arith.addf %144, %148 : vector<16x128xf32>
    %c320 = arith.constant 320 : index
    %c0_136 = arith.constant 0 : index
    %150 = vector.load %arg12[%c320, %c0_136] : memref<816x128xbf16, #tpu.memory_space<vmem>>, vector<16x128xbf16>
    %c20 = arith.constant 20 : index
    %c0_137 = arith.constant 0 : index
    %c0_138 = arith.constant 0 : index
    %151 = vector.load %arg6[%c20, %c0_137, %c0_138] : memref<51x128x128xbf16, #tpu.memory_space<vmem>>, vector<1x128x128xbf16>
    %152 = vector.shape_cast %151 : vector<1x128x128xbf16> to vector<128x128xbf16>
    %cst_139 = arith.constant dense<0.000000e+00> : vector<16x128xf32>
    %153 = tpu.matmul %150, %152, %cst_139 {dimension_numbers = #tpu.dot_dimension_numbers<[1], [0], [0], [1], [0, 0, 1, 1], [], []>} : vector<16x128xbf16>, vector<128x128xbf16>, vector<16x128xf32> -> vector<16x128xf32>
    %154 = arith.addf %149, %153 : vector<16x128xf32>
    %c336 = arith.constant 336 : index
    %c0_140 = arith.constant 0 : index
    %155 = vector.load %arg12[%c336, %c0_140] : memref<816x128xbf16, #tpu.memory_space<vmem>>, vector<16x128xbf16>
    %c21 = arith.constant 21 : index
    %c0_141 = arith.constant 0 : index
    %c0_142 = arith.constant 0 : index
    %156 = vector.load %arg6[%c21, %c0_141, %c0_142] : memref<51x128x128xbf16, #tpu.memory_space<vmem>>, vector<1x128x128xbf16>
    %157 = vector.shape_cast %156 : vector<1x128x128xbf16> to vector<128x128xbf16>
    %cst_143 = arith.constant dense<0.000000e+00> : vector<16x128xf32>
    %158 = tpu.matmul %155, %157, %cst_143 {dimension_numbers = #tpu.dot_dimension_numbers<[1], [0], [0], [1], [0, 0, 1, 1], [], []>} : vector<16x128xbf16>, vector<128x128xbf16>, vector<16x128xf32> -> vector<16x128xf32>
    %159 = arith.addf %154, %158 : vector<16x128xf32>
    %c352 = arith.constant 352 : index
    %c0_144 = arith.constant 0 : index
    %160 = vector.load %arg12[%c352, %c0_144] : memref<816x128xbf16, #tpu.memory_space<vmem>>, vector<16x128xbf16>
    %c22 = arith.constant 22 : index
    %c0_145 = arith.constant 0 : index
    %c0_146 = arith.constant 0 : index
    %161 = vector.load %arg6[%c22, %c0_145, %c0_146] : memref<51x128x128xbf16, #tpu.memory_space<vmem>>, vector<1x128x128xbf16>
    %162 = vector.shape_cast %161 : vector<1x128x128xbf16> to vector<128x128xbf16>
    %cst_147 = arith.constant dense<0.000000e+00> : vector<16x128xf32>
    %163 = tpu.matmul %160, %162, %cst_147 {dimension_numbers = #tpu.dot_dimension_numbers<[1], [0], [0], [1], [0, 0, 1, 1], [], []>} : vector<16x128xbf16>, vector<128x128xbf16>, vector<16x128xf32> -> vector<16x128xf32>
    %164 = arith.addf %159, %163 : vector<16x128xf32>
    %c368 = arith.constant 368 : index
    %c0_148 = arith.constant 0 : index
    %165 = vector.load %arg12[%c368, %c0_148] : memref<816x128xbf16, #tpu.memory_space<vmem>>, vector<16x128xbf16>
    %c23 = arith.constant 23 : index
    %c0_149 = arith.constant 0 : index
    %c0_150 = arith.constant 0 : index
    %166 = vector.load %arg6[%c23, %c0_149, %c0_150] : memref<51x128x128xbf16, #tpu.memory_space<vmem>>, vector<1x128x128xbf16>
    %167 = vector.shape_cast %166 : vector<1x128x128xbf16> to vector<128x128xbf16>
    %cst_151 = arith.constant dense<0.000000e+00> : vector<16x128xf32>
    %168 = tpu.matmul %165, %167, %cst_151 {dimension_numbers = #tpu.dot_dimension_numbers<[1], [0], [0], [1], [0, 0, 1, 1], [], []>} : vector<16x128xbf16>, vector<128x128xbf16>, vector<16x128xf32> -> vector<16x128xf32>
    %169 = arith.addf %164, %168 : vector<16x128xf32>
    %c384 = arith.constant 384 : index
    %c0_152 = arith.constant 0 : index
    %170 = vector.load %arg12[%c384, %c0_152] : memref<816x128xbf16, #tpu.memory_space<vmem>>, vector<16x128xbf16>
    %c24 = arith.constant 24 : index
    %c0_153 = arith.constant 0 : index
    %c0_154 = arith.constant 0 : index
    %171 = vector.load %arg6[%c24, %c0_153, %c0_154] : memref<51x128x128xbf16, #tpu.memory_space<vmem>>, vector<1x128x128xbf16>
    %172 = vector.shape_cast %171 : vector<1x128x128xbf16> to vector<128x128xbf16>
    %cst_155 = arith.constant dense<0.000000e+00> : vector<16x128xf32>
    %173 = tpu.matmul %170, %172, %cst_155 {dimension_numbers = #tpu.dot_dimension_numbers<[1], [0], [0], [1], [0, 0, 1, 1], [], []>} : vector<16x128xbf16>, vector<128x128xbf16>, vector<16x128xf32> -> vector<16x128xf32>
    %174 = arith.addf %169, %173 : vector<16x128xf32>
    %c400 = arith.constant 400 : index
    %c0_156 = arith.constant 0 : index
    %175 = vector.load %arg12[%c400, %c0_156] : memref<816x128xbf16, #tpu.memory_space<vmem>>, vector<16x128xbf16>
    %c25 = arith.constant 25 : index
    %c0_157 = arith.constant 0 : index
    %c0_158 = arith.constant 0 : index
    %176 = vector.load %arg6[%c25, %c0_157, %c0_158] : memref<51x128x128xbf16, #tpu.memory_space<vmem>>, vector<1x128x128xbf16>
    %177 = vector.shape_cast %176 : vector<1x128x128xbf16> to vector<128x128xbf16>
    %cst_159 = arith.constant dense<0.000000e+00> : vector<16x128xf32>
    %178 = tpu.matmul %175, %177, %cst_159 {dimension_numbers = #tpu.dot_dimension_numbers<[1], [0], [0], [1], [0, 0, 1, 1], [], []>} : vector<16x128xbf16>, vector<128x128xbf16>, vector<16x128xf32> -> vector<16x128xf32>
    %179 = arith.addf %174, %178 : vector<16x128xf32>
    %c416 = arith.constant 416 : index
    %c0_160 = arith.constant 0 : index
    %180 = vector.load %arg12[%c416, %c0_160] : memref<816x128xbf16, #tpu.memory_space<vmem>>, vector<16x128xbf16>
    %c26 = arith.constant 26 : index
    %c0_161 = arith.constant 0 : index
    %c0_162 = arith.constant 0 : index
    %181 = vector.load %arg6[%c26, %c0_161, %c0_162] : memref<51x128x128xbf16, #tpu.memory_space<vmem>>, vector<1x128x128xbf16>
    %182 = vector.shape_cast %181 : vector<1x128x128xbf16> to vector<128x128xbf16>
    %cst_163 = arith.constant dense<0.000000e+00> : vector<16x128xf32>
    %183 = tpu.matmul %180, %182, %cst_163 {dimension_numbers = #tpu.dot_dimension_numbers<[1], [0], [0], [1], [0, 0, 1, 1], [], []>} : vector<16x128xbf16>, vector<128x128xbf16>, vector<16x128xf32> -> vector<16x128xf32>
    %184 = arith.addf %179, %183 : vector<16x128xf32>
    %c432 = arith.constant 432 : index
    %c0_164 = arith.constant 0 : index
    %185 = vector.load %arg12[%c432, %c0_164] : memref<816x128xbf16, #tpu.memory_space<vmem>>, vector<16x128xbf16>
    %c27 = arith.constant 27 : index
    %c0_165 = arith.constant 0 : index
    %c0_166 = arith.constant 0 : index
    %186 = vector.load %arg6[%c27, %c0_165, %c0_166] : memref<51x128x128xbf16, #tpu.memory_space<vmem>>, vector<1x128x128xbf16>
    %187 = vector.shape_cast %186 : vector<1x128x128xbf16> to vector<128x128xbf16>
    %cst_167 = arith.constant dense<0.000000e+00> : vector<16x128xf32>
    %188 = tpu.matmul %185, %187, %cst_167 {dimension_numbers = #tpu.dot_dimension_numbers<[1], [0], [0], [1], [0, 0, 1, 1], [], []>} : vector<16x128xbf16>, vector<128x128xbf16>, vector<16x128xf32> -> vector<16x128xf32>
    %189 = arith.addf %184, %188 : vector<16x128xf32>
    %c448 = arith.constant 448 : index
    %c0_168 = arith.constant 0 : index
    %190 = vector.load %arg12[%c448, %c0_168] : memref<816x128xbf16, #tpu.memory_space<vmem>>, vector<16x128xbf16>
    %c28 = arith.constant 28 : index
    %c0_169 = arith.constant 0 : index
    %c0_170 = arith.constant 0 : index
    %191 = vector.load %arg6[%c28, %c0_169, %c0_170] : memref<51x128x128xbf16, #tpu.memory_space<vmem>>, vector<1x128x128xbf16>
    %192 = vector.shape_cast %191 : vector<1x128x128xbf16> to vector<128x128xbf16>
    %cst_171 = arith.constant dense<0.000000e+00> : vector<16x128xf32>
    %193 = tpu.matmul %190, %192, %cst_171 {dimension_numbers = #tpu.dot_dimension_numbers<[1], [0], [0], [1], [0, 0, 1, 1], [], []>} : vector<16x128xbf16>, vector<128x128xbf16>, vector<16x128xf32> -> vector<16x128xf32>
    %194 = arith.addf %189, %193 : vector<16x128xf32>
    %c464 = arith.constant 464 : index
    %c0_172 = arith.constant 0 : index
    %195 = vector.load %arg12[%c464, %c0_172] : memref<816x128xbf16, #tpu.memory_space<vmem>>, vector<16x128xbf16>
    %c29 = arith.constant 29 : index
    %c0_173 = arith.constant 0 : index
    %c0_174 = arith.constant 0 : index
    %196 = vector.load %arg6[%c29, %c0_173, %c0_174] : memref<51x128x128xbf16, #tpu.memory_space<vmem>>, vector<1x128x128xbf16>
    %197 = vector.shape_cast %196 : vector<1x128x128xbf16> to vector<128x128xbf16>
    %cst_175 = arith.constant dense<0.000000e+00> : vector<16x128xf32>
    %198 = tpu.matmul %195, %197, %cst_175 {dimension_numbers = #tpu.dot_dimension_numbers<[1], [0], [0], [1], [0, 0, 1, 1], [], []>} : vector<16x128xbf16>, vector<128x128xbf16>, vector<16x128xf32> -> vector<16x128xf32>
    %199 = arith.addf %194, %198 : vector<16x128xf32>
    %c480 = arith.constant 480 : index
    %c0_176 = arith.constant 0 : index
    %200 = vector.load %arg12[%c480, %c0_176] : memref<816x128xbf16, #tpu.memory_space<vmem>>, vector<16x128xbf16>
    %c30 = arith.constant 30 : index
    %c0_177 = arith.constant 0 : index
    %c0_178 = arith.constant 0 : index
    %201 = vector.load %arg6[%c30, %c0_177, %c0_178] : memref<51x128x128xbf16, #tpu.memory_space<vmem>>, vector<1x128x128xbf16>
    %202 = vector.shape_cast %201 : vector<1x128x128xbf16> to vector<128x128xbf16>
    %cst_179 = arith.constant dense<0.000000e+00> : vector<16x128xf32>
    %203 = tpu.matmul %200, %202, %cst_179 {dimension_numbers = #tpu.dot_dimension_numbers<[1], [0], [0], [1], [0, 0, 1, 1], [], []>} : vector<16x128xbf16>, vector<128x128xbf16>, vector<16x128xf32> -> vector<16x128xf32>
    %204 = arith.addf %199, %203 : vector<16x128xf32>
    %c496 = arith.constant 496 : index
    %c0_180 = arith.constant 0 : index
    %205 = vector.load %arg12[%c496, %c0_180] : memref<816x128xbf16, #tpu.memory_space<vmem>>, vector<16x128xbf16>
    %c31 = arith.constant 31 : index
    %c0_181 = arith.constant 0 : index
    %c0_182 = arith.constant 0 : index
    %206 = vector.load %arg6[%c31, %c0_181, %c0_182] : memref<51x128x128xbf16, #tpu.memory_space<vmem>>, vector<1x128x128xbf16>
    %207 = vector.shape_cast %206 : vector<1x128x128xbf16> to vector<128x128xbf16>
    %cst_183 = arith.constant dense<0.000000e+00> : vector<16x128xf32>
    %208 = tpu.matmul %205, %207, %cst_183 {dimension_numbers = #tpu.dot_dimension_numbers<[1], [0], [0], [1], [0, 0, 1, 1], [], []>} : vector<16x128xbf16>, vector<128x128xbf16>, vector<16x128xf32> -> vector<16x128xf32>
    %209 = arith.addf %204, %208 : vector<16x128xf32>
    %c512 = arith.constant 512 : index
    %c0_184 = arith.constant 0 : index
    %210 = vector.load %arg12[%c512, %c0_184] : memref<816x128xbf16, #tpu.memory_space<vmem>>, vector<16x128xbf16>
    %c32_185 = arith.constant 32 : index
    %c0_186 = arith.constant 0 : index
    %c0_187 = arith.constant 0 : index
    %211 = vector.load %arg6[%c32_185, %c0_186, %c0_187] : memref<51x128x128xbf16, #tpu.memory_space<vmem>>, vector<1x128x128xbf16>
    %212 = vector.shape_cast %211 : vector<1x128x128xbf16> to vector<128x128xbf16>
    %cst_188 = arith.constant dense<0.000000e+00> : vector<16x128xf32>
    %213 = tpu.matmul %210, %212, %cst_188 {dimension_numbers = #tpu.dot_dimension_numbers<[1], [0], [0], [1], [0, 0, 1, 1], [], []>} : vector<16x128xbf16>, vector<128x128xbf16>, vector<16x128xf32> -> vector<16x128xf32>
    %214 = arith.addf %209, %213 : vector<16x128xf32>
    %c528 = arith.constant 528 : index
    %c0_189 = arith.constant 0 : index
    %215 = vector.load %arg12[%c528, %c0_189] : memref<816x128xbf16, #tpu.memory_space<vmem>>, vector<16x128xbf16>
    %c33 = arith.constant 33 : index
    %c0_190 = arith.constant 0 : index
    %c0_191 = arith.constant 0 : index
    %216 = vector.load %arg6[%c33, %c0_190, %c0_191] : memref<51x128x128xbf16, #tpu.memory_space<vmem>>, vector<1x128x128xbf16>
    %217 = vector.shape_cast %216 : vector<1x128x128xbf16> to vector<128x128xbf16>
    %cst_192 = arith.constant dense<0.000000e+00> : vector<16x128xf32>
    %218 = tpu.matmul %215, %217, %cst_192 {dimension_numbers = #tpu.dot_dimension_numbers<[1], [0], [0], [1], [0, 0, 1, 1], [], []>} : vector<16x128xbf16>, vector<128x128xbf16>, vector<16x128xf32> -> vector<16x128xf32>
    %219 = arith.addf %214, %218 : vector<16x128xf32>
    %c544 = arith.constant 544 : index
    %c0_193 = arith.constant 0 : index
    %220 = vector.load %arg12[%c544, %c0_193] : memref<816x128xbf16, #tpu.memory_space<vmem>>, vector<16x128xbf16>
    %c34 = arith.constant 34 : index
    %c0_194 = arith.constant 0 : index
    %c0_195 = arith.constant 0 : index
    %221 = vector.load %arg6[%c34, %c0_194, %c0_195] : memref<51x128x128xbf16, #tpu.memory_space<vmem>>, vector<1x128x128xbf16>
    %222 = vector.shape_cast %221 : vector<1x128x128xbf16> to vector<128x128xbf16>
    %cst_196 = arith.constant dense<0.000000e+00> : vector<16x128xf32>
    %223 = tpu.matmul %220, %222, %cst_196 {dimension_numbers = #tpu.dot_dimension_numbers<[1], [0], [0], [1], [0, 0, 1, 1], [], []>} : vector<16x128xbf16>, vector<128x128xbf16>, vector<16x128xf32> -> vector<16x128xf32>
    %224 = arith.addf %219, %223 : vector<16x128xf32>
    %c560 = arith.constant 560 : index
    %c0_197 = arith.constant 0 : index
    %225 = vector.load %arg12[%c560, %c0_197] : memref<816x128xbf16, #tpu.memory_space<vmem>>, vector<16x128xbf16>
    %c35 = arith.constant 35 : index
    %c0_198 = arith.constant 0 : index
    %c0_199 = arith.constant 0 : index
    %226 = vector.load %arg6[%c35, %c0_198, %c0_199] : memref<51x128x128xbf16, #tpu.memory_space<vmem>>, vector<1x128x128xbf16>
    %227 = vector.shape_cast %226 : vector<1x128x128xbf16> to vector<128x128xbf16>
    %cst_200 = arith.constant dense<0.000000e+00> : vector<16x128xf32>
    %228 = tpu.matmul %225, %227, %cst_200 {dimension_numbers = #tpu.dot_dimension_numbers<[1], [0], [0], [1], [0, 0, 1, 1], [], []>} : vector<16x128xbf16>, vector<128x128xbf16>, vector<16x128xf32> -> vector<16x128xf32>
    %229 = arith.addf %224, %228 : vector<16x128xf32>
    %c576 = arith.constant 576 : index
    %c0_201 = arith.constant 0 : index
    %230 = vector.load %arg12[%c576, %c0_201] : memref<816x128xbf16, #tpu.memory_space<vmem>>, vector<16x128xbf16>
    %c36 = arith.constant 36 : index
    %c0_202 = arith.constant 0 : index
    %c0_203 = arith.constant 0 : index
    %231 = vector.load %arg6[%c36, %c0_202, %c0_203] : memref<51x128x128xbf16, #tpu.memory_space<vmem>>, vector<1x128x128xbf16>
    %232 = vector.shape_cast %231 : vector<1x128x128xbf16> to vector<128x128xbf16>
    %cst_204 = arith.constant dense<0.000000e+00> : vector<16x128xf32>
    %233 = tpu.matmul %230, %232, %cst_204 {dimension_numbers = #tpu.dot_dimension_numbers<[1], [0], [0], [1], [0, 0, 1, 1], [], []>} : vector<16x128xbf16>, vector<128x128xbf16>, vector<16x128xf32> -> vector<16x128xf32>
    %234 = arith.addf %229, %233 : vector<16x128xf32>
    %c592 = arith.constant 592 : index
    %c0_205 = arith.constant 0 : index
    %235 = vector.load %arg12[%c592, %c0_205] : memref<816x128xbf16, #tpu.memory_space<vmem>>, vector<16x128xbf16>
    %c37 = arith.constant 37 : index
    %c0_206 = arith.constant 0 : index
    %c0_207 = arith.constant 0 : index
    %236 = vector.load %arg6[%c37, %c0_206, %c0_207] : memref<51x128x128xbf16, #tpu.memory_space<vmem>>, vector<1x128x128xbf16>
    %237 = vector.shape_cast %236 : vector<1x128x128xbf16> to vector<128x128xbf16>
    %cst_208 = arith.constant dense<0.000000e+00> : vector<16x128xf32>
    %238 = tpu.matmul %235, %237, %cst_208 {dimension_numbers = #tpu.dot_dimension_numbers<[1], [0], [0], [1], [0, 0, 1, 1], [], []>} : vector<16x128xbf16>, vector<128x128xbf16>, vector<16x128xf32> -> vector<16x128xf32>
    %239 = arith.addf %234, %238 : vector<16x128xf32>
    %c608 = arith.constant 608 : index
    %c0_209 = arith.constant 0 : index
    %240 = vector.load %arg12[%c608, %c0_209] : memref<816x128xbf16, #tpu.memory_space<vmem>>, vector<16x128xbf16>
    %c38 = arith.constant 38 : index
    %c0_210 = arith.constant 0 : index
    %c0_211 = arith.constant 0 : index
    %241 = vector.load %arg6[%c38, %c0_210, %c0_211] : memref<51x128x128xbf16, #tpu.memory_space<vmem>>, vector<1x128x128xbf16>
    %242 = vector.shape_cast %241 : vector<1x128x128xbf16> to vector<128x128xbf16>
    %cst_212 = arith.constant dense<0.000000e+00> : vector<16x128xf32>
    %243 = tpu.matmul %240, %242, %cst_212 {dimension_numbers = #tpu.dot_dimension_numbers<[1], [0], [0], [1], [0, 0, 1, 1], [], []>} : vector<16x128xbf16>, vector<128x128xbf16>, vector<16x128xf32> -> vector<16x128xf32>
    %244 = arith.addf %239, %243 : vector<16x128xf32>
    %c624 = arith.constant 624 : index
    %c0_213 = arith.constant 0 : index
    %245 = vector.load %arg12[%c624, %c0_213] : memref<816x128xbf16, #tpu.memory_space<vmem>>, vector<16x128xbf16>
    %c39 = arith.constant 39 : index
    %c0_214 = arith.constant 0 : index
    %c0_215 = arith.constant 0 : index
    %246 = vector.load %arg6[%c39, %c0_214, %c0_215] : memref<51x128x128xbf16, #tpu.memory_space<vmem>>, vector<1x128x128xbf16>
    %247 = vector.shape_cast %246 : vector<1x128x128xbf16> to vector<128x128xbf16>
    %cst_216 = arith.constant dense<0.000000e+00> : vector<16x128xf32>
    %248 = tpu.matmul %245, %247, %cst_216 {dimension_numbers = #tpu.dot_dimension_numbers<[1], [0], [0], [1], [0, 0, 1, 1], [], []>} : vector<16x128xbf16>, vector<128x128xbf16>, vector<16x128xf32> -> vector<16x128xf32>
    %249 = arith.addf %244, %248 : vector<16x128xf32>
    %c640 = arith.constant 640 : index
    %c0_217 = arith.constant 0 : index
    %250 = vector.load %arg12[%c640, %c0_217] : memref<816x128xbf16, #tpu.memory_space<vmem>>, vector<16x128xbf16>
    %c40 = arith.constant 40 : index
    %c0_218 = arith.constant 0 : index
    %c0_219 = arith.constant 0 : index
    %251 = vector.load %arg6[%c40, %c0_218, %c0_219] : memref<51x128x128xbf16, #tpu.memory_space<vmem>>, vector<1x128x128xbf16>
    %252 = vector.shape_cast %251 : vector<1x128x128xbf16> to vector<128x128xbf16>
    %cst_220 = arith.constant dense<0.000000e+00> : vector<16x128xf32>
    %253 = tpu.matmul %250, %252, %cst_220 {dimension_numbers = #tpu.dot_dimension_numbers<[1], [0], [0], [1], [0, 0, 1, 1], [], []>} : vector<16x128xbf16>, vector<128x128xbf16>, vector<16x128xf32> -> vector<16x128xf32>
    %254 = arith.addf %249, %253 : vector<16x128xf32>
    %c656 = arith.constant 656 : index
    %c0_221 = arith.constant 0 : index
    %255 = vector.load %arg12[%c656, %c0_221] : memref<816x128xbf16, #tpu.memory_space<vmem>>, vector<16x128xbf16>
    %c41 = arith.constant 41 : index
    %c0_222 = arith.constant 0 : index
    %c0_223 = arith.constant 0 : index
    %256 = vector.load %arg6[%c41, %c0_222, %c0_223] : memref<51x128x128xbf16, #tpu.memory_space<vmem>>, vector<1x128x128xbf16>
    %257 = vector.shape_cast %256 : vector<1x128x128xbf16> to vector<128x128xbf16>
    %cst_224 = arith.constant dense<0.000000e+00> : vector<16x128xf32>
    %258 = tpu.matmul %255, %257, %cst_224 {dimension_numbers = #tpu.dot_dimension_numbers<[1], [0], [0], [1], [0, 0, 1, 1], [], []>} : vector<16x128xbf16>, vector<128x128xbf16>, vector<16x128xf32> -> vector<16x128xf32>
    %259 = arith.addf %254, %258 : vector<16x128xf32>
    %c672 = arith.constant 672 : index
    %c0_225 = arith.constant 0 : index
    %260 = vector.load %arg12[%c672, %c0_225] : memref<816x128xbf16, #tpu.memory_space<vmem>>, vector<16x128xbf16>
    %c42 = arith.constant 42 : index
    %c0_226 = arith.constant 0 : index
    %c0_227 = arith.constant 0 : index
    %261 = vector.load %arg6[%c42, %c0_226, %c0_227] : memref<51x128x128xbf16, #tpu.memory_space<vmem>>, vector<1x128x128xbf16>
    %262 = vector.shape_cast %261 : vector<1x128x128xbf16> to vector<128x128xbf16>
    %cst_228 = arith.constant dense<0.000000e+00> : vector<16x128xf32>
    %263 = tpu.matmul %260, %262, %cst_228 {dimension_numbers = #tpu.dot_dimension_numbers<[1], [0], [0], [1], [0, 0, 1, 1], [], []>} : vector<16x128xbf16>, vector<128x128xbf16>, vector<16x128xf32> -> vector<16x128xf32>
    %264 = arith.addf %259, %263 : vector<16x128xf32>
    %c688 = arith.constant 688 : index
    %c0_229 = arith.constant 0 : index
    %265 = vector.load %arg12[%c688, %c0_229] : memref<816x128xbf16, #tpu.memory_space<vmem>>, vector<16x128xbf16>
    %c43 = arith.constant 43 : index
    %c0_230 = arith.constant 0 : index
    %c0_231 = arith.constant 0 : index
    %266 = vector.load %arg6[%c43, %c0_230, %c0_231] : memref<51x128x128xbf16, #tpu.memory_space<vmem>>, vector<1x128x128xbf16>
    %267 = vector.shape_cast %266 : vector<1x128x128xbf16> to vector<128x128xbf16>
    %cst_232 = arith.constant dense<0.000000e+00> : vector<16x128xf32>
    %268 = tpu.matmul %265, %267, %cst_232 {dimension_numbers = #tpu.dot_dimension_numbers<[1], [0], [0], [1], [0, 0, 1, 1], [], []>} : vector<16x128xbf16>, vector<128x128xbf16>, vector<16x128xf32> -> vector<16x128xf32>
    %269 = arith.addf %264, %268 : vector<16x128xf32>
    %c704 = arith.constant 704 : index
    %c0_233 = arith.constant 0 : index
    %270 = vector.load %arg12[%c704, %c0_233] : memref<816x128xbf16, #tpu.memory_space<vmem>>, vector<16x128xbf16>
    %c44 = arith.constant 44 : index
    %c0_234 = arith.constant 0 : index
    %c0_235 = arith.constant 0 : index
    %271 = vector.load %arg6[%c44, %c0_234, %c0_235] : memref<51x128x128xbf16, #tpu.memory_space<vmem>>, vector<1x128x128xbf16>
    %272 = vector.shape_cast %271 : vector<1x128x128xbf16> to vector<128x128xbf16>
    %cst_236 = arith.constant dense<0.000000e+00> : vector<16x128xf32>
    %273 = tpu.matmul %270, %272, %cst_236 {dimension_numbers = #tpu.dot_dimension_numbers<[1], [0], [0], [1], [0, 0, 1, 1], [], []>} : vector<16x128xbf16>, vector<128x128xbf16>, vector<16x128xf32> -> vector<16x128xf32>
    %274 = arith.addf %269, %273 : vector<16x128xf32>
    %c720 = arith.constant 720 : index
    %c0_237 = arith.constant 0 : index
    %275 = vector.load %arg12[%c720, %c0_237] : memref<816x128xbf16, #tpu.memory_space<vmem>>, vector<16x128xbf16>
    %c45 = arith.constant 45 : index
    %c0_238 = arith.constant 0 : index
    %c0_239 = arith.constant 0 : index
    %276 = vector.load %arg6[%c45, %c0_238, %c0_239] : memref<51x128x128xbf16, #tpu.memory_space<vmem>>, vector<1x128x128xbf16>
    %277 = vector.shape_cast %276 : vector<1x128x128xbf16> to vector<128x128xbf16>
    %cst_240 = arith.constant dense<0.000000e+00> : vector<16x128xf32>
    %278 = tpu.matmul %275, %277, %cst_240 {dimension_numbers = #tpu.dot_dimension_numbers<[1], [0], [0], [1], [0, 0, 1, 1], [], []>} : vector<16x128xbf16>, vector<128x128xbf16>, vector<16x128xf32> -> vector<16x128xf32>
    %279 = arith.addf %274, %278 : vector<16x128xf32>
    %c736 = arith.constant 736 : index
    %c0_241 = arith.constant 0 : index
    %280 = vector.load %arg12[%c736, %c0_241] : memref<816x128xbf16, #tpu.memory_space<vmem>>, vector<16x128xbf16>
    %c46 = arith.constant 46 : index
    %c0_242 = arith.constant 0 : index
    %c0_243 = arith.constant 0 : index
    %281 = vector.load %arg6[%c46, %c0_242, %c0_243] : memref<51x128x128xbf16, #tpu.memory_space<vmem>>, vector<1x128x128xbf16>
    %282 = vector.shape_cast %281 : vector<1x128x128xbf16> to vector<128x128xbf16>
    %cst_244 = arith.constant dense<0.000000e+00> : vector<16x128xf32>
    %283 = tpu.matmul %280, %282, %cst_244 {dimension_numbers = #tpu.dot_dimension_numbers<[1], [0], [0], [1], [0, 0, 1, 1], [], []>} : vector<16x128xbf16>, vector<128x128xbf16>, vector<16x128xf32> -> vector<16x128xf32>
    %284 = arith.addf %279, %283 : vector<16x128xf32>
    %c752 = arith.constant 752 : index
    %c0_245 = arith.constant 0 : index
    %285 = vector.load %arg12[%c752, %c0_245] : memref<816x128xbf16, #tpu.memory_space<vmem>>, vector<16x128xbf16>
    %c47 = arith.constant 47 : index
    %c0_246 = arith.constant 0 : index
    %c0_247 = arith.constant 0 : index
    %286 = vector.load %arg6[%c47, %c0_246, %c0_247] : memref<51x128x128xbf16, #tpu.memory_space<vmem>>, vector<1x128x128xbf16>
    %287 = vector.shape_cast %286 : vector<1x128x128xbf16> to vector<128x128xbf16>
    %cst_248 = arith.constant dense<0.000000e+00> : vector<16x128xf32>
    %288 = tpu.matmul %285, %287, %cst_248 {dimension_numbers = #tpu.dot_dimension_numbers<[1], [0], [0], [1], [0, 0, 1, 1], [], []>} : vector<16x128xbf16>, vector<128x128xbf16>, vector<16x128xf32> -> vector<16x128xf32>
    %289 = arith.addf %284, %288 : vector<16x128xf32>
    %c768 = arith.constant 768 : index
    %c0_249 = arith.constant 0 : index
    %290 = vector.load %arg12[%c768, %c0_249] : memref<816x128xbf16, #tpu.memory_space<vmem>>, vector<16x128xbf16>
    %c48_250 = arith.constant 48 : index
    %c0_251 = arith.constant 0 : index
    %c0_252 = arith.constant 0 : index
    %291 = vector.load %arg6[%c48_250, %c0_251, %c0_252] : memref<51x128x128xbf16, #tpu.memory_space<vmem>>, vector<1x128x128xbf16>
    %292 = vector.shape_cast %291 : vector<1x128x128xbf16> to vector<128x128xbf16>
    %cst_253 = arith.constant dense<0.000000e+00> : vector<16x128xf32>
    %293 = tpu.matmul %290, %292, %cst_253 {dimension_numbers = #tpu.dot_dimension_numbers<[1], [0], [0], [1], [0, 0, 1, 1], [], []>} : vector<16x128xbf16>, vector<128x128xbf16>, vector<16x128xf32> -> vector<16x128xf32>
    %294 = arith.addf %289, %293 : vector<16x128xf32>
    %c784 = arith.constant 784 : index
    %c0_254 = arith.constant 0 : index
    %295 = vector.load %arg12[%c784, %c0_254] : memref<816x128xbf16, #tpu.memory_space<vmem>>, vector<16x128xbf16>
    %c49 = arith.constant 49 : index
    %c0_255 = arith.constant 0 : index
    %c0_256 = arith.constant 0 : index
    %296 = vector.load %arg6[%c49, %c0_255, %c0_256] : memref<51x128x128xbf16, #tpu.memory_space<vmem>>, vector<1x128x128xbf16>
    %297 = vector.shape_cast %296 : vector<1x128x128xbf16> to vector<128x128xbf16>
    %cst_257 = arith.constant dense<0.000000e+00> : vector<16x128xf32>
    %298 = tpu.matmul %295, %297, %cst_257 {dimension_numbers = #tpu.dot_dimension_numbers<[1], [0], [0], [1], [0, 0, 1, 1], [], []>} : vector<16x128xbf16>, vector<128x128xbf16>, vector<16x128xf32> -> vector<16x128xf32>
    %299 = arith.addf %294, %298 : vector<16x128xf32>
    %c800 = arith.constant 800 : index
    %c0_258 = arith.constant 0 : index
    %300 = vector.load %arg12[%c800, %c0_258] : memref<816x128xbf16, #tpu.memory_space<vmem>>, vector<16x128xbf16>
    %c50 = arith.constant 50 : index
    %c0_259 = arith.constant 0 : index
    %c0_260 = arith.constant 0 : index
    %301 = vector.load %arg6[%c50, %c0_259, %c0_260] : memref<51x128x128xbf16, #tpu.memory_space<vmem>>, vector<1x128x128xbf16>
    %302 = vector.shape_cast %301 : vector<1x128x128xbf16> to vector<128x128xbf16>
    %cst_261 = arith.constant dense<0.000000e+00> : vector<16x128xf32>
    %303 = tpu.matmul %300, %302, %cst_261 {dimension_numbers = #tpu.dot_dimension_numbers<[1], [0], [0], [1], [0, 0, 1, 1], [], []>} : vector<16x128xbf16>, vector<128x128xbf16>, vector<16x128xf32> -> vector<16x128xf32>
    %304 = arith.addf %299, %303 : vector<16x128xf32>
    %c0_262 = arith.constant 0 : index
    %c0_263 = arith.constant 0 : index
    %305 = vector.load %arg7[%c0_262, %c0_263] : memref<1x128xf32, #tpu.memory_space<vmem>>, vector<1x128xf32>
    %306 = vector.broadcast %305 : vector<1x128xf32> to vector<16x128xf32>
    %307 = arith.addf %304, %306 : vector<16x128xf32>
    %cst_264 = arith.constant 0.000000e+00 : f32
    %308 = vector.broadcast %cst_264 : f32 to vector<16x128xf32>
    %309 = arith.maximumf %307, %308 : vector<16x128xf32>
    %310 = arith.truncf %309 : vector<16x128xf32> to vector<16x128xbf16>
    %c0_265 = arith.constant 0 : index
    %c0_266 = arith.constant 0 : index
    %311 = vector.load %arg8[%c0_265, %c0_266] : memref<128x128xbf16, #tpu.memory_space<vmem>>, vector<128x128xbf16>
    %cst_267 = arith.constant dense<0.000000e+00> : vector<16x128xf32>
    %312 = tpu.matmul %310, %311, %cst_267 {dimension_numbers = #tpu.dot_dimension_numbers<[1], [0], [0], [1], [0, 0, 1, 1], [], []>} : vector<16x128xbf16>, vector<128x128xbf16>, vector<16x128xf32> -> vector<16x128xf32>
    %c0_268 = arith.constant 0 : index
    %c0_269 = arith.constant 0 : index
    %313 = vector.load %arg9[%c0_268, %c0_269] : memref<1x128xf32, #tpu.memory_space<vmem>>, vector<1x128xf32>
    %314 = vector.broadcast %313 : vector<1x128xf32> to vector<16x128xf32>
    %315 = arith.addf %312, %314 : vector<16x128xf32>
    %c0_270 = arith.constant 0 : index
    %c0_271 = arith.constant 0 : index
    %c0_272 = arith.constant 0 : index
    %316 = vector.load %arg10[%c0_270, %c0_271, %c0_272] : memref<1x16x128xf32, #tpu.memory_space<vmem>>, vector<1x16x128xf32>
    %317 = vector.shape_cast %316 : vector<1x16x128xf32> to vector<16x128xf32>
    %318 = vector.shape_cast %315 : vector<16x128xf32> to vector<1x16x128xf32>
    tpu.vector_store %arg10[%c0_270, %c0_271, %c0_272], %318 {strides = array<i32>} : memref<1x16x128xf32, #tpu.memory_space<vmem>>, vector<1x16x128xf32>,
    return
  }
  func.func @transform_0(%arg0: i32) -> (i32, i32, i32) {
    %c0_i32 = arith.constant 0 : i32
    %c0_i32_0 = arith.constant 0 : i32
    %c0_i32_1 = arith.constant 0 : i32
    return %arg0, %c0_i32, %c0_i32_0 : i32, i32, i32
  }
  func.func @transform_1(%arg0: i32) -> (i32, i32, i32) {
    %c0_i32 = arith.constant 0 : i32
    %c0_i32_0 = arith.constant 0 : i32
    %c0_i32_1 = arith.constant 0 : i32
    %c0_i32_2 = arith.constant 0 : i32
    return %c0_i32, %c0_i32_0, %c0_i32_1 : i32, i32, i32
  }
  func.func @transform_2(%arg0: i32) -> (i32, i32) {
    %c0_i32 = arith.constant 0 : i32
    %c0_i32_0 = arith.constant 0 : i32
    %c0_i32_1 = arith.constant 0 : i32
    return %c0_i32, %c0_i32_0 : i32, i32
  }
  func.func @transform_3(%arg0: i32) -> (i32, i32, i32) {
    %c0_i32 = arith.constant 0 : i32
    %c0_i32_0 = arith.constant 0 : i32
    %c0_i32_1 = arith.constant 0 : i32
    %c0_i32_2 = arith.constant 0 : i32
    return %c0_i32, %c0_i32_0, %c0_i32_1 : i32, i32, i32
  }
  func.func @transform_4(%arg0: i32) -> (i32, i32) {
    %c0_i32 = arith.constant 0 : i32
    %c0_i32_0 = arith.constant 0 : i32
    %c0_i32_1 = arith.constant 0 : i32
    return %c0_i32, %c0_i32_0 : i32, i32
  }
  func.func @transform_5(%arg0: i32) -> (i32, i32, i32) {
    %c0_i32 = arith.constant 0 : i32
    %c0_i32_0 = arith.constant 0 : i32
    %c0_i32_1 = arith.constant 0 : i32
    %c0_i32_2 = arith.constant 0 : i32
    return %c0_i32, %c0_i32_0, %c0_i32_1 : i32, i32, i32
  }
  func.func @transform_6(%arg0: i32) -> (i32, i32) {
    %c0_i32 = arith.constant 0 : i32
    %c0_i32_0 = arith.constant 0 : i32
    %c0_i32_1 = arith.constant 0 : i32
    return %c0_i32, %c0_i32_0 : i32, i32
  }
  func.func @transform_7(%arg0: i32) -> (i32, i32) {
    %c0_i32 = arith.constant 0 : i32
    %c0_i32_0 = arith.constant 0 : i32
    %c0_i32_1 = arith.constant 0 : i32
    return %c0_i32, %c0_i32_0 : i32, i32
  }
  func.func @transform_8(%arg0: i32) -> (i32, i32) {
    %c0_i32 = arith.constant 0 : i32
    %c0_i32_0 = arith.constant 0 : i32
    %c0_i32_1 = arith.constant 0 : i32
    return %c0_i32, %c0_i32_0 : i32, i32
  }
  func.func @transform_9(%arg0: i32) -> (i32, i32, i32) {
    %c0_i32 = arith.constant 0 : i32
    %c0_i32_0 = arith.constant 0 : i32
    %c0_i32_1 = arith.constant 0 : i32
    return %arg0, %c0_i32, %c0_i32_0 : i32, i32, i32
  }
}

</mosaic_0001>

<llo_original>
// kernel: cnn_predictor_forward.1
$region0: #{cnn_predictor_forward.1}
  #allocation0 [shape = 'u32[]', space=smem, size = 0x4, offset = 0x4, fixed_abs, tag = 'smem constant byte address 0x4 - core index']
  #allocation1 [shape = 'u32[144,128]{1,0:T(1,128)}', space=vmem, size = 0x12000, scoped, tag = 'internal scratch']
  #allocation2 [shape = 'bf16[848,64]{1,0:T(16,128)(2,1)}', space=vmem, size = 0x35000, scoped, tag = 'scratch operand']
  #allocation3 [shape = 'bf16[816,128]{1,0:T(16,128)(2,1)}', space=vmem, size = 0x33000, scoped, tag = 'scratch operand']
  %s0 = inlined_call_operand.vmem [shape: bf16[1,848,2], index: 0, kind: input, shape index: {}]
  %s1 = inlined_call_operand.hbm [shape: bf16[3,2,64], index: 1, kind: input, shape index: {}]
  %s2 = inlined_call_operand.hbm [shape: f32[1,64], index: 2, kind: input, shape index: {}]
  %s3 = inlined_call_operand.hbm [shape: bf16[3,64,128], index: 3, kind: input, shape index: {}]
  %s4 = inlined_call_operand.hbm [shape: f32[1,128], index: 4, kind: input, shape index: {}]
  %s5 = inlined_call_operand.hbm [shape: bf16[51,128,128], index: 5, kind: input, shape index: {}]
  %s6 = inlined_call_operand.hbm [shape: f32[1,128], index: 6, kind: input, shape index: {}]
  %s7 = inlined_call_operand.hbm [shape: bf16[128,128], index: 7, kind: input, shape index: {}]
  %s8 = inlined_call_operand.hbm [shape: f32[1,128], index: 8, kind: input, shape index: {}]
  %s9 = inlined_call_operand.vmem [shape: f32[1,16,128], index: 9, kind: output, shape index: {}]
  %s10 = sld [smem:[#allocation0]]
  $region78: #{cnn_predictor_forward.1} parent=0
    _
  %s12 = ssub.s32 1, %s10
  %s13 = scalar_select 0, %s12, %s10
  $region1: #{cnn_predictor_forward.1} parent=0
    #allocation4 [shape = 'u8[1536]{0}', space=vmem, size = 0x800, scoped, tag = 'input window, operand 1, single buffered']
    #allocation5 [shape = 's32[1]{0}', space=sflag, size = 0x4, scoped, tag = 'scoped memory for cnn_predictor_forward.1']
    #allocation6 [shape = 'u8[512]{0}', space=vmem, size = 0x400, scoped, tag = 'input window, operand 2, single buffered']
    #allocation7 [shape = 's32[1]{0}', space=sflag, size = 0x4, scoped, tag = 'scoped memory for cnn_predictor_forward.1']
    #allocation8 [shape = 'u8[49152]{0}', space=vmem, size = 0xc000, scoped, tag = 'input window, operand 3, single buffered']
    #allocation9 [shape = 'u8[512]{0}', space=vmem, size = 0x400, scoped, tag = 'input window, operand 4, single buffered']
    #allocation10 [shape = 's32[1]{0}', space=sflag, size = 0x4, scoped, tag = 'scoped memory for cnn_predictor_forward.1']
    #allocation11 [shape = 'u8[1671168]{0}', space=vmem, size = 0x198000, scoped, tag = 'input window, operand 5, single buffered']
    #allocation12 [shape = 'u8[512]{0}', space=vmem, size = 0x400, scoped, tag = 'input window, operand 6, single buffered']
    #allocation13 [shape = 's32[1]{0}', space=sflag, size = 0x4, scoped, tag = 'scoped memory for cnn_predictor_forward.1']
    #allocation14 [shape = 'u8[32768]{0}', space=vmem, size = 0x8000, scoped, tag = 'input window, operand 7, single buffered']
    #allocation15 [shape = 'u8[512]{0}', space=vmem, size = 0x400, scoped, tag = 'input window, operand 8, single buffered']
    #allocation16 [shape = 's32[1]{0}', space=sflag, size = 0x4, scoped, tag = 'scoped memory for cnn_predictor_forward.1']
    %14 = vsyncpa [#allocation5], 0
    %15 = vsyncpa [#allocation7], 0
    %16 = vsyncpa [#allocation10], 0
    %17 = vsyncpa [#allocation13], 0
    %18 = vsyncpa [#allocation16], 0
    // Predicated region
    $region2: #{cnn_predictor_forward.1} parent=1 // pred_check
      _
    $region3: #{cnn_predictor_forward.1} parent=1 // pred_check_branch
      %20 = sbr.rel (0) target = $region5
    $region4: #{cnn_predictor_forward.1} parent=1 // pred_region
      _
    $region5: #{cnn_predictor_forward.1} parent=1 // pred_fallthru
      _
    // Predicated region
    $region6: #{cnn_predictor_forward.1} parent=1 // pred_check
      _
    $region7: #{cnn_predictor_forward.1} parent=1 // pred_check_branch
      %22 = sbr.rel (0) target = $region9
    $region8: #{cnn_predictor_forward.1} parent=1 // pred_region
      %s24 = ssub.s32 48, 48
      %25 = vsyncadd [#allocation5], %s24
      %s26 = sshll.u32 [#allocation4], 4
      %s27 = int_to_ptr.vmem [resolvable:$true] %s26
      %32 = dma.hbm_to_vmem [thread:$0]  %s1, 48, %s27, [#allocation5], 16, 16, 1
    $region9: #{cnn_predictor_forward.1} parent=1 // pred_fallthru
      _
    // Predicated region
    $region10: #{cnn_predictor_forward.1} parent=1 // pred_check
      _
    $region11: #{cnn_predictor_forward.1} parent=1 // pred_check_branch
      %34 = sbr.rel (0) target = $region13
    $region12: #{cnn_predictor_forward.1} parent=1 // pred_region
      %s36 = ssub.s32 16, 16
      %37 = vsyncadd [#allocation7], %s36
      %s39 = sshll.u32 [#allocation6], 4
      %s40 = int_to_ptr.vmem [resolvable:$true] %s39
      %42 = dma.hbm_to_vmem [thread:$0]  %s2, 16, %s40, [#allocation7]
    $region13: #{cnn_predictor_forward.1} parent=1 // pred_fallthru
      _
    // Predicated region
    $region14: #{cnn_predictor_forward.1} parent=1 // pred_check
      _
    $region15: #{cnn_predictor_forward.1} parent=1 // pred_check_branch
      %44 = sbr.rel (0) target = $region17
    $region16: #{cnn_predictor_forward.1} parent=1 // pred_region
      %s46 = ssub.s32 1536, 1536
      %47 = vsyncadd [#allocation7], %s46
      %s48 = sshll.u32 [#allocation8], 4
      %s49 = int_to_ptr.vmem [resolvable:$true] %s48
      %54 = dma.hbm_to_vmem [thread:$0]  %s3, 1536, %s49, [#allocation7], 64, 64, 4
    $region17: #{cnn_predictor_forward.1} parent=1 // pred_fallthru
      _
    // Predicated region
    $region18: #{cnn_predictor_forward.1} parent=1 // pred_check
      _
    $region19: #{cnn_predictor_forward.1} parent=1 // pred_check_branch
      %56 = sbr.rel (0) target = $region21
    $region20: #{cnn_predictor_forward.1} parent=1 // pred_region
      %s58 = ssub.s32 16, 16
      %59 = vsyncadd [#allocation10], %s58
      %s61 = sshll.u32 [#allocation9], 4
      %s62 = int_to_ptr.vmem [resolvable:$true] %s61
      %64 = dma.hbm_to_vmem [thread:$0]  %s4, 16, %s62, [#allocation10]
    $region21: #{cnn_predictor_forward.1} parent=1 // pred_fallthru
      _
    // Predicated region
    $region22: #{cnn_predictor_forward.1} parent=1 // pred_check
      _
    $region23: #{cnn_predictor_forward.1} parent=1 // pred_check_branch
      %66 = sbr.rel (0) target = $region25
    $region24: #{cnn_predictor_forward.1} parent=1 // pred_region
      %s68 = ssub.s32 52224, 52224
      %69 = vsyncadd [#allocation10], %s68
      %s70 = sshll.u32 [#allocation11], 4
      %s71 = int_to_ptr.vmem [resolvable:$true] %s70
      %76 = dma.hbm_to_vmem [thread:$0]  %s5, 52224, %s71, [#allocation10], 64, 64, 4
    $region25: #{cnn_predictor_forward.1} parent=1 // pred_fallthru
      _
    // Predicated region
    $region26: #{cnn_predictor_forward.1} parent=1 // pred_check
      _
    $region27: #{cnn_predictor_forward.1} parent=1 // pred_check_branch
      %78 = sbr.rel (0) target = $region29
    $region28: #{cnn_predictor_forward.1} parent=1 // pred_region
      %s80 = ssub.s32 16, 16
      %81 = vsyncadd [#allocation13], %s80
      %s83 = sshll.u32 [#allocation12], 4
      %s84 = int_to_ptr.vmem [resolvable:$true] %s83
      %86 = dma.hbm_to_vmem [thread:$0]  %s6, 16, %s84, [#allocation13]
    $region29: #{cnn_predictor_forward.1} parent=1 // pred_fallthru
      _
    // Predicated region
    $region30: #{cnn_predictor_forward.1} parent=1 // pred_check
      _
    $region31: #{cnn_predictor_forward.1} parent=1 // pred_check_branch
      %88 = sbr.rel (0) target = $region33
    $region32: #{cnn_predictor_forward.1} parent=1 // pred_region
      %s90 = ssub.s32 1024, 1024
      %91 = vsyncadd [#allocation13], %s90
      %s92 = sshll.u32 [#allocation14], 4
      %s93 = int_to_ptr.vmem [resolvable:$true] %s92
      %98 = dma.hbm_to_vmem [thread:$0]  %s7, 1024, %s93, [#allocation13], 64, 64, 4
    $region33: #{cnn_predictor_forward.1} parent=1 // pred_fallthru
      _
    // Predicated region
    $region34: #{cnn_predictor_forward.1} parent=1 // pred_check
      _
    $region35: #{cnn_predictor_forward.1} parent=1 // pred_check_branch
      %100 = sbr.rel (0) target = $region37
    $region36: #{cnn_predictor_forward.1} parent=1 // pred_region
      %s102 = ssub.s32 16, 16
      %103 = vsyncadd [#allocation16], %s102
      %s105 = sshll.u32 [#allocation15], 4
      %s106 = int_to_ptr.vmem [resolvable:$true] %s105
      %108 = dma.hbm_to_vmem [thread:$0]  %s8, 16, %s106, [#allocation16]
    $region37: #{cnn_predictor_forward.1} parent=1 // pred_fallthru
      _
    // Predicated region
    $region38: #{cnn_predictor_forward.1} parent=1 // pred_check
      _
    $region39: #{cnn_predictor_forward.1} parent=1 // pred_check_branch
      %110 = sbr.rel (0) target = $region41
    $region40: #{cnn_predictor_forward.1} parent=1 // pred_region
      %111 = dma.done [#allocation5], 48
    $region41: #{cnn_predictor_forward.1} parent=1 // pred_fallthru
      _
    // Predicated region
    $region42: #{cnn_predictor_forward.1} parent=1 // pred_check
      _
    $region43: #{cnn_predictor_forward.1} parent=1 // pred_check_branch
      %113 = sbr.rel (0) target = $region45
    $region44: #{cnn_predictor_forward.1} parent=1 // pred_region
      %114 = dma.done [#allocation7], 16
    $region45: #{cnn_predictor_forward.1} parent=1 // pred_fallthru
      _
    // Predicated region
    $region46: #{cnn_predictor_forward.1} parent=1 // pred_check
      _
    $region47: #{cnn_predictor_forward.1} parent=1 // pred_check_branch
      %116 = sbr.rel (0) target = $region49
    $region48: #{cnn_predictor_forward.1} parent=1 // pred_region
      %117 = dma.done [#allocation7], 1536
    $region49: #{cnn_predictor_forward.1} parent=1 // pred_fallthru
      _
    // Predicated region
    $region50: #{cnn_predictor_forward.1} parent=1 // pred_check
      _
    $region51: #{cnn_predictor_forward.1} parent=1 // pred_check_branch
      %119 = sbr.rel (0) target = $region53
    $region52: #{cnn_predictor_forward.1} parent=1 // pred_region
      %120 = dma.done [#allocation10], 16
    $region53: #{cnn_predictor_forward.1} parent=1 // pred_fallthru
      _
    // Predicated region
    $region54: #{cnn_predictor_forward.1} parent=1 // pred_check
      _
    $region55: #{cnn_predictor_forward.1} parent=1 // pred_check_branch
      %122 = sbr.rel (0) target = $region57
    $region56: #{cnn_predictor_forward.1} parent=1 // pred_region
      %123 = dma.done [#allocation10], 52224
    $region57: #{cnn_predictor_forward.1} parent=1 // pred_fallthru
      _
    // Predicated region
    $region58: #{cnn_predictor_forward.1} parent=1 // pred_check
      _
    $region59: #{cnn_predictor_forward.1} parent=1 // pred_check_branch
      %125 = sbr.rel (0) target = $region61
    $region60: #{cnn_predictor_forward.1} parent=1 // pred_region
      %126 = dma.done [#allocation13], 16
    $region61: #{cnn_predictor_forward.1} parent=1 // pred_fallthru
      _
    // Predicated region
    $region62: #{cnn_predictor_forward.1} parent=1 // pred_check
      _
    $region63: #{cnn_predictor_forward.1} parent=1 // pred_check_branch
      %128 = sbr.rel (0) target = $region65
    $region64: #{cnn_predictor_forward.1} parent=1 // pred_region
      %129 = dma.done [#allocation13], 1024
    $region65: #{cnn_predictor_forward.1} parent=1 // pred_fallthru
      _
    // Predicated region
    $region66: #{cnn_predictor_forward.1} parent=1 // pred_check
      _
    $region67: #{cnn_predictor_forward.1} parent=1 // pred_check_branch
      %131 = sbr.rel (0) target = $region69
    $region68: #{cnn_predictor_forward.1} parent=1 // pred_region
      %132 = dma.done [#allocation16], 16
    $region69: #{cnn_predictor_forward.1} parent=1 // pred_fallthru
      _
    %v134 = vld [vmem:[%s0] sm:$0xf]
    %v135 = vld [vmem:[%s0 + $0x4] sm:$0xf]
    %v136 = vld [vmem:[%s0 + $0x8] sm:$0xf]
    %v137 = vld [vmem:[%s0 + $0xc] sm:$0xf]
    %v138 = vld [vmem:[%s0 + $0x10] sm:$0xf]
    %v139 = vld [vmem:[%s0 + $0x14] sm:$0xf]
    %v140 = vld [vmem:[%s0 + $0x18] sm:$0xf]
    %v141 = vld [vmem:[%s0 + $0x1c] sm:$0xf]
    %v142 = vld [vmem:[%s0 + $0x20] sm:$0xf]
    %v143 = vld [vmem:[%s0 + $0x24] sm:$0xf]
    %v144 = vld [vmem:[%s0 + $0x28] sm:$0xf]
    %v145 = vld [vmem:[%s0 + $0x2c] sm:$0xf]
    %v146 = vld [vmem:[%s0 + $0x30] sm:$0xf]
    %v147 = vld [vmem:[%s0 + $0x34] sm:$0xf]
    %v148 = vld [vmem:[%s0 + $0x38] sm:$0xf]
    %v149 = vld [vmem:[%s0 + $0x3c] sm:$0xf]
    %v150 = vld [vmem:[%s0 + $0x40] sm:$0xf]
    %v151 = vld [vmem:[%s0 + $0x44] sm:$0xf]
    %v152 = vld [vmem:[%s0 + $0x48] sm:$0xf]
    %v153 = vld [vmem:[%s0 + $0x4c] sm:$0xf]
    %v154 = vld [vmem:[%s0 + $0x50] sm:$0xf]
    %v155 = vld [vmem:[%s0 + $0x54] sm:$0xf]
    %v156 = vld [vmem:[%s0 + $0x58] sm:$0xf]
    %v157 = vld [vmem:[%s0 + $0x5c] sm:$0xf]
    %v158 = vld [vmem:[%s0 + $0x60] sm:$0xf]
    %v159 = vld [vmem:[%s0 + $0x64] sm:$0xf]
    %v160 = vld [vmem:[%s0 + $0x68] sm:$0xf]
    %v161 = vld [vmem:[%s0 + $0x6c] sm:$0xf]
    %v162 = vld [vmem:[%s0 + $0x70] sm:$0xf]
    %v163 = vld [vmem:[%s0 + $0x74] sm:$0xf]
    %v164 = vld [vmem:[%s0 + $0x78] sm:$0xf]
    %v165 = vld [vmem:[%s0 + $0x7c] sm:$0xf]
    %v166 = vld [vmem:[%s0 + $0x80] sm:$0xf]
    %v167 = vld [vmem:[%s0 + $0x84] sm:$0xf]
    %v168 = vld [vmem:[%s0 + $0x88] sm:$0xf]
    %v169 = vld [vmem:[%s0 + $0x8c] sm:$0xf]
    %v170 = vld [vmem:[%s0 + $0x90] sm:$0xf]
    %v171 = vld [vmem:[%s0 + $0x94] sm:$0xf]
    %v172 = vld [vmem:[%s0 + $0x98] sm:$0xf]
    %v173 = vld [vmem:[%s0 + $0x9c] sm:$0xf]
    %v174 = vld [vmem:[%s0 + $0xa0] sm:$0xf]
    %v175 = vld [vmem:[%s0 + $0xa4] sm:$0xf]
    %v176 = vld [vmem:[%s0 + $0xa8] sm:$0xf]
    %v177 = vld [vmem:[%s0 + $0xac] sm:$0xf]
    %v178 = vld [vmem:[%s0 + $0xb0] sm:$0xf]
    %v179 = vld [vmem:[%s0 + $0xb4] sm:$0xf]
    %v180 = vld [vmem:[%s0 + $0xb8] sm:$0xf]
    %v181 = vld [vmem:[%s0 + $0xbc] sm:$0xf]
    %v182 = vld [vmem:[%s0 + $0xc0] sm:$0xf]
    %v183 = vld [vmem:[%s0 + $0xc4] sm:$0xf]
    %v184 = vld [vmem:[%s0 + $0xc8] sm:$0xf]
    %v185 = vld [vmem:[%s0 + $0xcc] sm:$0xf]
    %v186 = vld [vmem:[%s0 + $0xd0] sm:$0xf]
    %v187 = vld [vmem:[%s0 + $0xd4] sm:$0xf]
    %v188 = vld [vmem:[%s0 + $0xd8] sm:$0xf]
    %v189 = vld [vmem:[%s0 + $0xdc] sm:$0xf]
    %v190 = vld [vmem:[%s0 + $0xe0] sm:$0xf]
    %v191 = vld [vmem:[%s0 + $0xe4] sm:$0xf]
    %v192 = vld [vmem:[%s0 + $0xe8] sm:$0xf]
    %v193 = vld [vmem:[%s0 + $0xec] sm:$0xf]
    %v194 = vld [vmem:[%s0 + $0xf0] sm:$0xf]
    %v195 = vld [vmem:[%s0 + $0xf4] sm:$0xf]
    %v196 = vld [vmem:[%s0 + $0xf8] sm:$0xf]
    %v197 = vld [vmem:[%s0 + $0xfc] sm:$0xf]
    %v198 = vld [vmem:[%s0 + $0x100] sm:$0xf]
    %v199 = vld [vmem:[%s0 + $0x104] sm:$0xf]
    %v200 = vld [vmem:[%s0 + $0x108] sm:$0xf]
    %v201 = vld [vmem:[%s0 + $0x10c] sm:$0xf]
    %v202 = vld [vmem:[%s0 + $0x110] sm:$0xf]
    %v203 = vld [vmem:[%s0 + $0x114] sm:$0xf]
    %v204 = vld [vmem:[%s0 + $0x118] sm:$0xf]
    %v205 = vld [vmem:[%s0 + $0x11c] sm:$0xf]
    %v206 = vld [vmem:[%s0 + $0x120] sm:$0xf]
    %v207 = vld [vmem:[%s0 + $0x124] sm:$0xf]
    %v208 = vld [vmem:[%s0 + $0x128] sm:$0xf]
    %v209 = vld [vmem:[%s0 + $0x12c] sm:$0xf]
    %v210 = vld [vmem:[%s0 + $0x130] sm:$0xf]
    %v211 = vld [vmem:[%s0 + $0x134] sm:$0xf]
    %v212 = vld [vmem:[%s0 + $0x138] sm:$0xf]
    %v213 = vld [vmem:[%s0 + $0x13c] sm:$0xf]
    %v214 = vld [vmem:[%s0 + $0x140] sm:$0xf]
    %v215 = vld [vmem:[%s0 + $0x144] sm:$0xf]
    %v216 = vld [vmem:[%s0 + $0x148] sm:$0xf]
    %v217 = vld [vmem:[%s0 + $0x14c] sm:$0xf]
    %v218 = vld [vmem:[%s0 + $0x150] sm:$0xf]
    %v219 = vld [vmem:[%s0 + $0x154] sm:$0xf]
    %v220 = vld [vmem:[%s0 + $0x158] sm:$0xf]
    %v221 = vld [vmem:[%s0 + $0x15c] sm:$0xf]
    %v222 = vld [vmem:[%s0 + $0x160] sm:$0xf]
    %v223 = vld [vmem:[%s0 + $0x164] sm:$0xf]
    %v224 = vld [vmem:[%s0 + $0x168] sm:$0xf]
    %v225 = vld [vmem:[%s0 + $0x16c] sm:$0xf]
    %v226 = vld [vmem:[%s0 + $0x170] sm:$0xf]
    %v227 = vld [vmem:[%s0 + $0x174] sm:$0xf]
    %v228 = vld [vmem:[%s0 + $0x178] sm:$0xf]
    %v229 = vld [vmem:[%s0 + $0x17c] sm:$0xf]
    %v230 = vld [vmem:[%s0 + $0x180] sm:$0xf]
    %v231 = vld [vmem:[%s0 + $0x184] sm:$0xf]
    %v232 = vld [vmem:[%s0 + $0x188] sm:$0xf]
    %v233 = vld [vmem:[%s0 + $0x18c] sm:$0xf]
    %v234 = vld [vmem:[%s0 + $0x190] sm:$0xf]
    %v235 = vld [vmem:[%s0 + $0x194] sm:$0xf]
    %v236 = vld [vmem:[#allocation4] sm:$0x1]
    %v237 = vld [vmem:[%s0 + $0x198] sm:$0xf]
    %v238 = vld [vmem:[%s0 + $0x19c] sm:$0xf]
    %s239 = scalar_lea.vmem [#allocation4], 1
    %v240 = vld [vmem:[%s239] sm:$0x1]
    %v343 = vunpack.c.l.b16 %v136
    %v344 = vunpack.c.l.b16 %v137
    %v345 = vunpack.c.l.b16 %v138
    %v346 = vunpack.c.l.b16 %v139
    %v347 = vunpack.c.l.b16 %v140
    %v348 = vunpack.c.l.b16 %v141
    %v349 = vunpack.c.l.b16 %v142
    %v350 = vunpack.c.l.b16 %v143
    %v351 = vunpack.c.l.b16 %v144
    %v352 = vunpack.c.l.b16 %v145
    %v353 = vunpack.c.l.b16 %v146
    %v354 = vunpack.c.l.b16 %v147
    %v355 = vunpack.c.l.b16 %v148
    %v356 = vunpack.c.l.b16 %v149
    %v357 = vunpack.c.l.b16 %v150
    %v358 = vunpack.c.l.b16 %v151
    %v359 = vunpack.c.l.b16 %v152
    %v360 = vunpack.c.l.b16 %v153
    %v361 = vunpack.c.l.b16 %v154
    %v362 = vunpack.c.l.b16 %v155
    %v363 = vunpack.c.l.b16 %v156
    %v364 = vunpack.c.l.b16 %v157
    %v365 = vunpack.c.l.b16 %v158
    %v366 = vunpack.c.l.b16 %v159
    %v367 = vunpack.c.l.b16 %v160
    %v368 = vunpack.c.l.b16 %v161
    %v369 = vunpack.c.l.b16 %v162
    %v370 = vunpack.c.l.b16 %v163
    %v371 = vunpack.c.l.b16 %v164
    %v372 = vunpack.c.l.b16 %v165
    %v373 = vunpack.c.l.b16 %v166
    %v374 = vunpack.c.l.b16 %v167
    %v375 = vunpack.c.l.b16 %v168
    %v376 = vunpack.c.l.b16 %v169
    %v377 = vunpack.c.l.b16 %v170
    %v378 = vunpack.c.l.b16 %v171
    %v379 = vunpack.c.l.b16 %v172
    %v380 = vunpack.c.l.b16 %v173
    %v381 = vunpack.c.l.b16 %v174
    %v382 = vunpack.c.l.b16 %v175
    %v383 = vunpack.c.l.b16 %v176
    %v384 = vunpack.c.l.b16 %v177
    %v385 = vunpack.c.l.b16 %v178
    %v386 = vunpack.c.l.b16 %v179
    %v387 = vunpack.c.l.b16 %v180
    %v388 = vunpack.c.l.b16 %v181
    %v389 = vunpack.c.l.b16 %v182
    %v390 = vunpack.c.l.b16 %v183
    %v391 = vunpack.c.l.b16 %v184
    %v392 = vunpack.c.l.b16 %v185
    %v393 = vunpack.c.l.b16 %v186
    %v394 = vunpack.c.l.b16 %v187
    %v395 = vunpack.c.l.b16 %v188
    %v396 = vunpack.c.l.b16 %v189
    %v397 = vunpack.c.l.b16 %v190
    %v398 = vunpack.c.l.b16 %v191
    %v399 = vunpack.c.l.b16 %v192
    %v400 = vunpack.c.l.b16 %v193
    %v401 = vunpack.c.l.b16 %v194
    %v402 = vunpack.c.l.b16 %v195
    %v403 = vunpack.c.l.b16 %v196
    %v404 = vunpack.c.l.b16 %v197
    %v405 = vunpack.c.l.b16 %v198
    %v406 = vunpack.c.l.b16 %v199
    %v407 = vunpack.c.l.b16 %v200
    %v408 = vunpack.c.l.b16 %v201
    %v409 = vunpack.c.l.b16 %v202
    %v410 = vunpack.c.l.b16 %v203
    %v411 = vunpack.c.l.b16 %v204
    %v412 = vunpack.c.l.b16 %v205
    %v413 = vunpack.c.l.b16 %v206
    %v414 = vunpack.c.l.b16 %v207
    %v415 = vunpack.c.l.b16 %v208
    %v416 = vunpack.c.l.b16 %v209
    %v417 = vunpack.c.l.b16 %v210
    %v418 = vunpack.c.l.b16 %v211
    %v419 = vunpack.c.l.b16 %v212
    %v420 = vunpack.c.l.b16 %v213
    %v421 = vunpack.c.l.b16 %v214
    %v422 = vunpack.c.l.b16 %v215
    %v423 = vunpack.c.l.b16 %v216
    %v424 = vunpack.c.l.b16 %v217
    %v425 = vunpack.c.l.b16 %v218
    %v426 = vunpack.c.l.b16 %v219
    %v427 = vunpack.c.l.b16 %v220
    %v428 = vunpack.c.l.b16 %v221
    %v429 = vunpack.c.l.b16 %v222
    %v430 = vunpack.c.l.b16 %v223
    %v431 = vunpack.c.l.b16 %v224
    %v432 = vunpack.c.l.b16 %v225
    %v433 = vunpack.c.l.b16 %v226
    %v434 = vunpack.c.l.b16 %v227
    %v435 = vunpack.c.l.b16 %v228
    %v436 = vunpack.c.l.b16 %v229
    %v437 = vunpack.c.l.b16 %v230
    %v438 = vunpack.c.l.b16 %v231
    %v439 = vunpack.c.l.b16 %v232
    %v440 = vunpack.c.l.b16 %v233
    %v441 = vunpack.c.l.b16 %v234
    %v442 = vunpack.c.l.b16 %v235
    %v443 = vunpack.c.l.b16 %v237
    %v444 = vunpack.c.l.b16 %v238
    %v445 = vpack.c.b16 %v344, %v343
    %v446 = vpack.c.b16 %v346, %v345
    %v447 = vpack.c.b16 %v348, %v347
    %v448 = vpack.c.b16 %v350, %v349
    %v449 = vpack.c.b16 %v352, %v351
    %v450 = vpack.c.b16 %v354, %v353
    %v451 = vpack.c.b16 %v356, %v355
    %v452 = vpack.c.b16 %v358, %v357
    %v453 = vpack.c.b16 %v360, %v359
    %v454 = vpack.c.b16 %v362, %v361
    %v455 = vpack.c.b16 %v364, %v363
    %v456 = vpack.c.b16 %v366, %v365
    %v457 = vpack.c.b16 %v368, %v367
    %v458 = vpack.c.b16 %v370, %v369
    %v459 = vpack.c.b16 %v372, %v371
    %v460 = vpack.c.b16 %v374, %v373
    %v461 = vpack.c.b16 %v376, %v375
    %v462 = vpack.c.b16 %v378, %v377
    %v463 = vpack.c.b16 %v380, %v379
    %v464 = vpack.c.b16 %v382, %v381
    %v465 = vpack.c.b16 %v384, %v383
    %v466 = vpack.c.b16 %v386, %v385
    %v467 = vpack.c.b16 %v388, %v387
    %v468 = vpack.c.b16 %v390, %v389
    %v469 = vpack.c.b16 %v392, %v391
    %v470 = vpack.c.b16 %v394, %v393
    %v471 = vpack.c.b16 %v396, %v395
    %v472 = vpack.c.b16 %v398, %v397
    %v473 = vpack.c.b16 %v400, %v399
    %v474 = vpack.c.b16 %v402, %v401
    %v475 = vpack.c.b16 %v404, %v403
    %v476 = vpack.c.b16 %v406, %v405
    %v477 = vpack.c.b16 %v408, %v407
    %v478 = vpack.c.b16 %v410, %v409
    %v479 = vpack.c.b16 %v412, %v411
    %v480 = vpack.c.b16 %v414, %v413
    %v481 = vpack.c.b16 %v416, %v415
    %v482 = vpack.c.b16 %v418, %v417
    %v483 = vpack.c.b16 %v420, %v419
    %v484 = vpack.c.b16 %v422, %v421
    %v485 = vpack.c.b16 %v424, %v423
    %v486 = vpack.c.b16 %v426, %v425
    %v487 = vpack.c.b16 %v428, %v427
    %v488 = vpack.c.b16 %v430, %v429
    %v489 = vpack.c.b16 %v432, %v431
    %v490 = vpack.c.b16 %v434, %v433
    %v491 = vpack.c.b16 %v436, %v435
    %v492 = vpack.c.b16 %v438, %v437
    %v493 = vpack.c.b16 %v440, %v439
    %v494 = vpack.c.b16 %v442, %v441
    %v495 = vpack.c.b16 %v444, %v443
    %vm496 = vcmask 15360
    %v498 = vsel %vm496, %v445, 0
    %v501 = vsel %vm496, %v446, 0
    %v504 = vsel %vm496, %v447, 0
    %v507 = vsel %vm496, %v448, 0
    %v510 = vsel %vm496, %v449, 0
    %v513 = vsel %vm496, %v450, 0
    %v516 = vsel %vm496, %v451, 0
    %v519 = vsel %vm496, %v452, 0
    %v522 = vsel %vm496, %v453, 0
    %v525 = vsel %vm496, %v454, 0
    %v528 = vsel %vm496, %v455, 0
    %v531 = vsel %vm496, %v456, 0
    %v534 = vsel %vm496, %v457, 0
    %v537 = vsel %vm496, %v458, 0
    %v540 = vsel %vm496, %v459, 0
    %v543 = vsel %vm496, %v460, 0
    %v546 = vsel %vm496, %v461, 0
    %v549 = vsel %vm496, %v462, 0
    %v552 = vsel %vm496, %v463, 0
    %v555 = vsel %vm496, %v464, 0
    %v558 = vsel %vm496, %v465, 0
    %v561 = vsel %vm496, %v466, 0
    %v564 = vsel %vm496, %v467, 0
    %v567 = vsel %vm496, %v468, 0
    %v570 = vsel %vm496, %v469, 0
    %v573 = vsel %vm496, %v470, 0
    %v576 = vsel %vm496, %v471, 0
    %v579 = vsel %vm496, %v472, 0
    %v582 = vsel %vm496, %v473, 0
    %v585 = vsel %vm496, %v474, 0
    %v588 = vsel %vm496, %v475, 0
    %v591 = vsel %vm496, %v476, 0
    %v594 = vsel %vm496, %v477, 0
    %v597 = vsel %vm496, %v478, 0
    %v600 = vsel %vm496, %v479, 0
    %v603 = vsel %vm496, %v480, 0
    %v606 = vsel %vm496, %v481, 0
    %v609 = vsel %vm496, %v482, 0
    %v612 = vsel %vm496, %v483, 0
    %v615 = vsel %vm496, %v484, 0
    %v618 = vsel %vm496, %v485, 0
    %v621 = vsel %vm496, %v486, 0
    %v624 = vsel %vm496, %v487, 0
    %v627 = vsel %vm496, %v488, 0
    %v630 = vsel %vm496, %v489, 0
    %v633 = vsel %vm496, %v490, 0
    %v636 = vsel %vm496, %v491, 0
    %v639 = vsel %vm496, %v492, 0
    %v642 = vsel %vm496, %v493, 0
    %v645 = vsel %vm496, %v494, 0
    %v648 = vsel %vm496, %v495, 0
    %vm650 = vcmask 1040384
    %v652 = vsel %vm650, %v240, 0
    %654 = vmatprep.subr.bf16.mxu0 0
    %655 = vmatpush1.bf16.msra.mxu0 %v652
    %656 = vmatprep.subr.bf16.mxu0 0
    %657 = vmatpush1.bf16.msra.mxu0 0
    %658 = vmatprep.subr.bf16.mxu0 0
    %659 = vmatpush1.bf16.msra.mxu0 0
    %660 = vmatprep.subr.bf16.mxu0 0
    %661 = vmatpush1.bf16.msra.mxu0 0
    %662 = vmatprep.subr.bf16.mxu0 0
    %663 = vmatpush1.bf16.msra.mxu0 0
    %664 = vmatprep.subr.bf16.mxu0 0
    %665 = vmatpush1.bf16.msra.mxu0 0
    %666 = vmatprep.subr.bf16.mxu0 0
    %667 = vmatpush1.bf16.msra.mxu0 0
    %668 = vmatprep.subr.bf16.mxu0 0
    %669 = vmatpush1.bf16.msra.mxu0 0
    %670 = vmatprep.subr.bf16.mxu0 0
    %671 = vmatpush1.bf16.msra.mxu0 0
    %672 = vmatprep.subr.bf16.mxu0 0
    %673 = vmatpush1.bf16.msra.mxu0 0
    %674 = vmatprep.subr.bf16.mxu0 0
    %675 = vmatpush1.bf16.msra.mxu0 0
    %676 = vmatprep.subr.bf16.mxu0 0
    %677 = vmatpush1.bf16.msra.mxu0 0
    %678 = vmatprep.subr.bf16.mxu0 0
    %679 = vmatpush1.bf16.msra.mxu0 0
    %680 = vmatprep.subr.bf16.mxu0 0
    %681 = vmatpush1.bf16.msra.mxu0 0
    %682 = vmatprep.subr.bf16.mxu0 0
    %683 = vmatpush1.bf16.msra.mxu0 0
    %684 = vmatprep.subr.bf16.mxu0 0
    %685 = vmatpush1.bf16.msra.mxu0 0
    %686 = vmatprep.mubr.bf16.mxu0 0
    %687 = vmatmul.mubr.bf16.gmra.mrb[0].mxu0 %v498
    %v688 = vpop.f32.mrb[0].mxu0
    %v689 = vadd.f32 0.0, %v688
    %v690 = vpop.f32.mrb[0].mxu0
    %v691 = vpop.f32.mrb[0].mxu0
    %v692 = vadd.f32 0.0, %v691
    %v693 = vpop.f32.mrb[0].mxu0
    %694 = vmatprep.mubr.bf16.mxu0 0
    %695 = vmatmul.mubr.bf16.gmra.mrb[0].mxu0 %v501
    %v696 = vpop.f32.mrb[0].mxu0
    %v697 = vadd.f32 0.0, %v696
    %v698 = vpop.f32.mrb[0].mxu0
    %v699 = vpop.f32.mrb[0].mxu0
    %v700 = vadd.f32 0.0, %v699
    %v701 = vpop.f32.mrb[0].mxu0
    %702 = vmatprep.mubr.bf16.mxu0 0
    %703 = vmatmul.mubr.bf16.gmra.mrb[0].mxu0 %v504
    %v704 = vpop.f32.mrb[0].mxu0
    %v705 = vadd.f32 0.0, %v704
    %v706 = vpop.f32.mrb[0].mxu0
    %v707 = vpop.f32.mrb[0].mxu0
    %v708 = vadd.f32 0.0, %v707
    %v709 = vpop.f32.mrb[0].mxu0
    %710 = vmatprep.mubr.bf16.mxu0 0
    %711 = vmatmul.mubr.bf16.gmra.mrb[0].mxu0 %v507
    %v712 = vpop.f32.mrb[0].mxu0
    %v713 = vadd.f32 0.0, %v712
    %v714 = vpop.f32.mrb[0].mxu0
    %v715 = vpop.f32.mrb[0].mxu0
    %v716 = vadd.f32 0.0, %v715
    %v717 = vpop.f32.mrb[0].mxu0
    %718 = vmatprep.mubr.bf16.mxu0 0
    %719 = vmatmul.mubr.bf16.gmra.mrb[0].mxu0 %v510
    %v720 = vpop.f32.mrb[0].mxu0
    %v721 = vadd.f32 0.0, %v720
    %v722 = vpop.f32.mrb[0].mxu0
    %v723 = vpop.f32.mrb[0].mxu0
    %v724 = vadd.f32 0.0, %v723
    %v725 = vpop.f32.mrb[0].mxu0
    %726 = vmatprep.mubr.bf16.mxu0 0
    %727 = vmatmul.mubr.bf16.gmra.mrb[0].mxu0 %v513
    %v728 = vpop.f32.mrb[0].mxu0
    %v729 = vadd.f32 0.0, %v728
    %v730 = vpop.f32.mrb[0].mxu0
    %v731 = vpop.f32.mrb[0].mxu0
    %v732 = vadd.f32 0.0, %v731
    %v733 = vpop.f32.mrb[0].mxu0
    %734 = vmatprep.mubr.bf16.mxu0 0
    %735 = vmatmul.mubr.bf16.gmra.mrb[0].mxu0 %v516
    %v736 = vpop.f32.mrb[0].mxu0
    %v737 = vadd.f32 0.0, %v736
    %v738 = vpop.f32.mrb[0].mxu0
    %v739 = vpop.f32.mrb[0].mxu0
    %v740 = vadd.f32 0.0, %v739
    %v741 = vpop.f32.mrb[0].mxu0
    %742 = vmatprep.mubr.bf16.mxu0 0
    %743 = vmatmul.mubr.bf16.gmra.mrb[0].mxu0 %v519
    %v744 = vpop.f32.mrb[0].mxu0
    %v745 = vadd.f32 0.0, %v744
    %v746 = vpop.f32.mrb[0].mxu0
    %v747 = vpop.f32.mrb[0].mxu0
    %v748 = vadd.f32 0.0, %v747
    %v749 = vpop.f32.mrb[0].mxu0
    %750 = vmatprep.mubr.bf16.mxu0 0
    %751 = vmatmul.mubr.bf16.gmra.mrb[0].mxu0 %v522
    %v752 = vpop.f32.mrb[0].mxu0
    %v753 = vadd.f32 0.0, %v752
    %v754 = vpop.f32.mrb[0].mxu0
    %v755 = vpop.f32.mrb[0].mxu0
    %v756 = vadd.f32 0.0, %v755
    %v757 = vpop.f32.mrb[0].mxu0
    %758 = vmatprep.mubr.bf16.mxu0 0
    %759 = vmatmul.mubr.bf16.gmra.mrb[0].mxu0 %v525
    %v760 = vpop.f32.mrb[0].mxu0
    %v761 = vadd.f32 0.0, %v760
    %v762 = vpop.f32.mrb[0].mxu0
    %v763 = vpop.f32.mrb[0].mxu0
    %v764 = vadd.f32 0.0, %v763
    %v765 = vpop.f32.mrb[0].mxu0
    %766 = vmatprep.mubr.bf16.mxu0 0
    %767 = vmatmul.mubr.bf16.gmra.mrb[0].mxu0 %v528
    %v768 = vpop.f32.mrb[0].mxu0
    %v769 = vadd.f32 0.0, %v768
    %v770 = vpop.f32.mrb[0].mxu0
    %v771 = vpop.f32.mrb[0].mxu0
    %v772 = vadd.f32 0.0, %v771
    %v773 = vpop.f32.mrb[0].mxu0
    %774 = vmatprep.mubr.bf16.mxu0 0
    %775 = vmatmul.mubr.bf16.gmra.mrb[0].mxu0 %v531
    %v776 = vpop.f32.mrb[0].mxu0
    %v777 = vadd.f32 0.0, %v776
    %v778 = vpop.f32.mrb[0].mxu0
    %v779 = vpop.f32.mrb[0].mxu0
    %v780 = vadd.f32 0.0, %v779
    %v781 = vpop.f32.mrb[0].mxu0
    %782 = vmatprep.mubr.bf16.mxu0 0
    %783 = vmatmul.mubr.bf16.gmra.mrb[0].mxu0 %v534
    %v784 = vpop.f32.mrb[0].mxu0
    %v785 = vadd.f32 0.0, %v784
    %v786 = vpop.f32.mrb[0].mxu0
    %v787 = vpop.f32.mrb[0].mxu0
    %v788 = vadd.f32 0.0, %v787
    %v789 = vpop.f32.mrb[0].mxu0
    %790 = vmatprep.mubr.bf16.mxu0 0
    %791 = vmatmul.mubr.bf16.gmra.mrb[0].mxu0 %v537
    %v792 = vpop.f32.mrb[0].mxu0
    %v793 = vadd.f32 0.0, %v792
    %v794 = vpop.f32.mrb[0].mxu0
    %v795 = vpop.f32.mrb[0].mxu0
    %v796 = vadd.f32 0.0, %v795
    %v797 = vpop.f32.mrb[0].mxu0
    %798 = vmatprep.mubr.bf16.mxu0 0
    %799 = vmatmul.mubr.bf16.gmra.mrb[0].mxu0 %v540
    %v800 = vpop.f32.mrb[0].mxu0
    %v801 = vadd.f32 0.0, %v800
    %v802 = vpop.f32.mrb[0].mxu0
    %v803 = vpop.f32.mrb[0].mxu0
    %v804 = vadd.f32 0.0, %v803
    %v805 = vpop.f32.mrb[0].mxu0
    %806 = vmatprep.mubr.bf16.mxu0 0
    %807 = vmatmul.mubr.bf16.gmra.mrb[0].mxu0 %v543
    %v808 = vpop.f32.mrb[0].mxu0
    %v809 = vadd.f32 0.0, %v808
    %v810 = vpop.f32.mrb[0].mxu0
    %v811 = vpop.f32.mrb[0].mxu0
    %v812 = vadd.f32 0.0, %v811
    %v813 = vpop.f32.mrb[0].mxu0
    %814 = vmatprep.mubr.bf16.mxu0 0
    %815 = vmatmul.mubr.bf16.gmra.mrb[0].mxu0 %v546
    %v816 = vpop.f32.mrb[0].mxu0
    %v817 = vadd.f32 0.0, %v816
    %v818 = vpop.f32.mrb[0].mxu0
    %v819 = vpop.f32.mrb[0].mxu0
    %v820 = vadd.f32 0.0, %v819
    %v821 = vpop.f32.mrb[0].mxu0
    %822 = vmatprep.mubr.bf16.mxu0 0
    %823 = vmatmul.mubr.bf16.gmra.mrb[0].mxu0 %v549
    %v824 = vpop.f32.mrb[0].mxu0
    %v825 = vadd.f32 0.0, %v824
    %v826 = vpop.f32.mrb[0].mxu0
    %v827 = vpop.f32.mrb[0].mxu0
    %v828 = vadd.f32 0.0, %v827
    %v829 = vpop.f32.mrb[0].mxu0
    %830 = vmatprep.mubr.bf16.mxu0 0
    %831 = vmatmul.mubr.bf16.gmra.mrb[0].mxu0 %v552
    %v832 = vpop.f32.mrb[0].mxu0
    %v833 = vadd.f32 0.0, %v832
    %v834 = vpop.f32.mrb[0].mxu0
    %v835 = vpop.f32.mrb[0].mxu0
    %v836 = vadd.f32 0.0, %v835
    %v837 = vpop.f32.mrb[0].mxu0
    %838 = vmatprep.mubr.bf16.mxu0 0
    %839 = vmatmul.mubr.bf16.gmra.mrb[0].mxu0 %v555
    %v840 = vpop.f32.mrb[0].mxu0
    %v841 = vadd.f32 0.0, %v840
    %v842 = vpop.f32.mrb[0].mxu0
    %v843 = vpop.f32.mrb[0].mxu0
    %v844 = vadd.f32 0.0, %v843
    %v845 = vpop.f32.mrb[0].mxu0
    %846 = vmatprep.mubr.bf16.mxu0 0
    %847 = vmatmul.mubr.bf16.gmra.mrb[0].mxu0 %v558
    %v848 = vpop.f32.mrb[0].mxu0
    %v849 = vadd.f32 0.0, %v848
    %v850 = vpop.f32.mrb[0].mxu0
    %v851 = vpop.f32.mrb[0].mxu0
    %v852 = vadd.f32 0.0, %v851
    %v853 = vpop.f32.mrb[0].mxu0
    %854 = vmatprep.mubr.bf16.mxu0 0
    %855 = vmatmul.mubr.bf16.gmra.mrb[0].mxu0 %v561
    %v856 = vpop.f32.mrb[0].mxu0
    %v857 = vadd.f32 0.0, %v856
    %v858 = vpop.f32.mrb[0].mxu0
    %v859 = vpop.f32.mrb[0].mxu0
    %v860 = vadd.f32 0.0, %v859
    %v861 = vpop.f32.mrb[0].mxu0
    %862 = vmatprep.mubr.bf16.mxu0 0
    %863 = vmatmul.mubr.bf16.gmra.mrb[0].mxu0 %v564
    %v864 = vpop.f32.mrb[0].mxu0
    %v865 = vadd.f32 0.0, %v864
    %v866 = vpop.f32.mrb[0].mxu0
    %v867 = vpop.f32.mrb[0].mxu0
    %v868 = vadd.f32 0.0, %v867
    %v869 = vpop.f32.mrb[0].mxu0
    %870 = vmatprep.mubr.bf16.mxu0 0
    %871 = vmatmul.mubr.bf16.gmra.mrb[0].mxu0 %v567
    %v872 = vpop.f32.mrb[0].mxu0
    %v873 = vadd.f32 0.0, %v872
    %v874 = vpop.f32.mrb[0].mxu0
    %v875 = vpop.f32.mrb[0].mxu0
    %v876 = vadd.f32 0.0, %v875
    %v877 = vpop.f32.mrb[0].mxu0
    %878 = vmatprep.mubr.bf16.mxu0 0
    %879 = vmatmul.mubr.bf16.gmra.mrb[0].mxu0 %v570
    %v880 = vpop.f32.mrb[0].mxu0
    %v881 = vadd.f32 0.0, %v880
    %v882 = vpop.f32.mrb[0].mxu0
    %v883 = vpop.f32.mrb[0].mxu0
    %v884 = vadd.f32 0.0, %v883
    %v885 = vpop.f32.mrb[0].mxu0
    %886 = vmatprep.mubr.bf16.mxu0 0
    %887 = vmatmul.mubr.bf16.gmra.mrb[0].mxu0 %v573
    %v888 = vpop.f32.mrb[0].mxu0
    %v889 = vadd.f32 0.0, %v888
    %v890 = vpop.f32.mrb[0].mxu0
    %v891 = vpop.f32.mrb[0].mxu0
    %v892 = vadd.f32 0.0, %v891
    %v893 = vpop.f32.mrb[0].mxu0
    %894 = vmatprep.mubr.bf16.mxu0 0
    %895 = vmatmul.mubr.bf16.gmra.mrb[0].mxu0 %v576
    %v896 = vpop.f32.mrb[0].mxu0
    %v897 = vadd.f32 0.0, %v896
    %v898 = vpop.f32.mrb[0].mxu0
    %v899 = vpop.f32.mrb[0].mxu0
    %v900 = vadd.f32 0.0, %v899
    %v901 = vpop.f32.mrb[0].mxu0
    %902 = vmatprep.mubr.bf16.mxu0 0
    %903 = vmatmul.mubr.bf16.gmra.mrb[0].mxu0 %v579
    %v904 = vpop.f32.mrb[0].mxu0
    %v905 = vadd.f32 0.0, %v904
    %v906 = vpop.f32.mrb[0].mxu0
    %v907 = vpop.f32.mrb[0].mxu0
    %v908 = vadd.f32 0.0, %v907
    %v909 = vpop.f32.mrb[0].mxu0
    %910 = vmatprep.mubr.bf16.mxu0 0
    %911 = vmatmul.mubr.bf16.gmra.mrb[0].mxu0 %v582
    %v912 = vpop.f32.mrb[0].mxu0
    %v913 = vadd.f32 0.0, %v912
    %v914 = vpop.f32.mrb[0].mxu0
    %v915 = vpop.f32.mrb[0].mxu0
    %v916 = vadd.f32 0.0, %v915
    %v917 = vpop.f32.mrb[0].mxu0
    %918 = vmatprep.mubr.bf16.mxu0 0
    %919 = vmatmul.mubr.bf16.gmra.mrb[0].mxu0 %v585
    %v920 = vpop.f32.mrb[0].mxu0
    %v921 = vadd.f32 0.0, %v920
    %v922 = vpop.f32.mrb[0].mxu0
    %v923 = vpop.f32.mrb[0].mxu0
    %v924 = vadd.f32 0.0, %v923
    %v925 = vpop.f32.mrb[0].mxu0
    %926 = vmatprep.mubr.bf16.mxu0 0
    %927 = vmatmul.mubr.bf16.gmra.mrb[0].mxu0 %v588
    %v928 = vpop.f32.mrb[0].mxu0
    %v929 = vadd.f32 0.0, %v928
    %v930 = vpop.f32.mrb[0].mxu0
    %v931 = vpop.f32.mrb[0].mxu0
    %v932 = vadd.f32 0.0, %v931
    %v933 = vpop.f32.mrb[0].mxu0
    %934 = vmatprep.mubr.bf16.mxu0 0
    %935 = vmatmul.mubr.bf16.gmra.mrb[0].mxu0 %v591
    %v936 = vpop.f32.mrb[0].mxu0
    %v937 = vadd.f32 0.0, %v936
    %v938 = vpop.f32.mrb[0].mxu0
    %v939 = vpop.f32.mrb[0].mxu0
    %v940 = vadd.f32 0.0, %v939
    %v941 = vpop.f32.mrb[0].mxu0
    %942 = vmatprep.mubr.bf16.mxu0 0
    %943 = vmatmul.mubr.bf16.gmra.mrb[0].mxu0 %v594
    %v944 = vpop.f32.mrb[0].mxu0
    %v945 = vadd.f32 0.0, %v944
    %v946 = vpop.f32.mrb[0].mxu0
    %v947 = vpop.f32.mrb[0].mxu0
    %v948 = vadd.f32 0.0, %v947
    %v949 = vpop.f32.mrb[0].mxu0
    %950 = vmatprep.mubr.bf16.mxu0 0
    %951 = vmatmul.mubr.bf16.gmra.mrb[0].mxu0 %v597
    %v952 = vpop.f32.mrb[0].mxu0
    %v953 = vadd.f32 0.0, %v952
    %v954 = vpop.f32.mrb[0].mxu0
    %v955 = vpop.f32.mrb[0].mxu0
    %v956 = vadd.f32 0.0, %v955
    %v957 = vpop.f32.mrb[0].mxu0
    %958 = vmatprep.mubr.bf16.mxu0 0
    %959 = vmatmul.mubr.bf16.gmra.mrb[0].mxu0 %v600
    %v960 = vpop.f32.mrb[0].mxu0
    %v961 = vadd.f32 0.0, %v960
    %v962 = vpop.f32.mrb[0].mxu0
    %v963 = vpop.f32.mrb[0].mxu0
    %v964 = vadd.f32 0.0, %v963
    %v965 = vpop.f32.mrb[0].mxu0
    %966 = vmatprep.mubr.bf16.mxu0 0
    %967 = vmatmul.mubr.bf16.gmra.mrb[0].mxu0 %v603
    %v968 = vpop.f32.mrb[0].mxu0
    %v969 = vadd.f32 0.0, %v968
    %v970 = vpop.f32.mrb[0].mxu0
    %v971 = vpop.f32.mrb[0].mxu0
    %v972 = vadd.f32 0.0, %v971
    %v973 = vpop.f32.mrb[0].mxu0
    %974 = vmatprep.mubr.bf16.mxu0 0
    %975 = vmatmul.mubr.bf16.gmra.mrb[0].mxu0 %v606
    %v976 = vpop.f32.mrb[0].mxu0
    %v977 = vadd.f32 0.0, %v976
    %v978 = vpop.f32.mrb[0].mxu0
    %v979 = vpop.f32.mrb[0].mxu0
    %v980 = vadd.f32 0.0, %v979
    %v981 = vpop.f32.mrb[0].mxu0
    %982 = vmatprep.mubr.bf16.mxu0 0
    %983 = vmatmul.mubr.bf16.gmra.mrb[0].mxu0 %v609
    %v984 = vpop.f32.mrb[0].mxu0
    %v985 = vadd.f32 0.0, %v984
    %v986 = vpop.f32.mrb[0].mxu0
    %v987 = vpop.f32.mrb[0].mxu0
    %v988 = vadd.f32 0.0, %v987
    %v989 = vpop.f32.mrb[0].mxu0
    %990 = vmatprep.mubr.bf16.mxu0 0
    %991 = vmatmul.mubr.bf16.gmra.mrb[0].mxu0 %v612
    %v992 = vpop.f32.mrb[0].mxu0
    %v993 = vadd.f32 0.0, %v992
    %v994 = vpop.f32.mrb[0].mxu0
    %v995 = vpop.f32.mrb[0].mxu0
    %v996 = vadd.f32 0.0, %v995
    %v997 = vpop.f32.mrb[0].mxu0
    %998 = vmatprep.mubr.bf16.mxu0 0
    %999 = vmatmul.mubr.bf16.gmra.mrb[0].mxu0 %v615
    %v1000 = vpop.f32.mrb[0].mxu0
    %v1001 = vadd.f32 0.0, %v1000
    %v1002 = vpop.f32.mrb[0].mxu0
    %v1003 = vpop.f32.mrb[0].mxu0
    %v1004 = vadd.f32 0.0, %v1003
    %v1005 = vpop.f32.mrb[0].mxu0
    %1006 = vmatprep.mubr.bf16.mxu0 0
    %1007 = vmatmul.mubr.bf16.gmra.mrb[0].mxu0 %v618
    %v1008 = vpop.f32.mrb[0].mxu0
    %v1009 = vadd.f32 0.0, %v1008
    %v1010 = vpop.f32.mrb[0].mxu0
    %v1011 = vpop.f32.mrb[0].mxu0
    %v1012 = vadd.f32 0.0, %v1011
    %v1013 = vpop.f32.mrb[0].mxu0
    %1014 = vmatprep.mubr.bf16.mxu0 0
    %1015 = vmatmul.mubr.bf16.gmra.mrb[0].mxu0 %v621
    %v1016 = vpop.f32.mrb[0].mxu0
    %v1017 = vadd.f32 0.0, %v1016
    %v1018 = vpop.f32.mrb[0].mxu0
    %v1019 = vpop.f32.mrb[0].mxu0
    %v1020 = vadd.f32 0.0, %v1019
    %v1021 = vpop.f32.mrb[0].mxu0
    %1022 = vmatprep.mubr.bf16.mxu0 0
    %1023 = vmatmul.mubr.bf16.gmra.mrb[0].mxu0 %v624
    %v1024 = vpop.f32.mrb[0].mxu0
    %v1025 = vadd.f32 0.0, %v1024
    %v1026 = vpop.f32.mrb[0].mxu0
    %v1027 = vpop.f32.mrb[0].mxu0
    %v1028 = vadd.f32 0.0, %v1027
    %v1029 = vpop.f32.mrb[0].mxu0
    %1030 = vmatprep.mubr.bf16.mxu0 0
    %1031 = vmatmul.mubr.bf16.gmra.mrb[0].mxu0 %v627
    %v1032 = vpop.f32.mrb[0].mxu0
    %v1033 = vadd.f32 0.0, %v1032
    %v1034 = vpop.f32.mrb[0].mxu0
    %v1035 = vpop.f32.mrb[0].mxu0
    %v1036 = vadd.f32 0.0, %v1035
    %v1037 = vpop.f32.mrb[0].mxu0
    %1038 = vmatprep.mubr.bf16.mxu0 0
    %1039 = vmatmul.mubr.bf16.gmra.mrb[0].mxu0 %v630
    %v1040 = vpop.f32.mrb[0].mxu0
    %v1041 = vadd.f32 0.0, %v1040
    %v1042 = vpop.f32.mrb[0].mxu0
    %v1043 = vpop.f32.mrb[0].mxu0
    %v1044 = vadd.f32 0.0, %v1043
    %v1045 = vpop.f32.mrb[0].mxu0
    %1046 = vmatprep.mubr.bf16.mxu0 0
    %1047 = vmatmul.mubr.bf16.gmra.mrb[0].mxu0 %v633
    %v1048 = vpop.f32.mrb[0].mxu0
    %v1049 = vadd.f32 0.0, %v1048
    %v1050 = vpop.f32.mrb[0].mxu0
    %v1051 = vpop.f32.mrb[0].mxu0
    %v1052 = vadd.f32 0.0, %v1051
    %v1053 = vpop.f32.mrb[0].mxu0
    %1054 = vmatprep.mubr.bf16.mxu0 0
    %1055 = vmatmul.mubr.bf16.gmra.mrb[0].mxu0 %v636
    %v1056 = vpop.f32.mrb[0].mxu0
    %v1057 = vadd.f32 0.0, %v1056
    %v1058 = vpop.f32.mrb[0].mxu0
    %v1059 = vpop.f32.mrb[0].mxu0
    %v1060 = vadd.f32 0.0, %v1059
    %v1061 = vpop.f32.mrb[0].mxu0
    %1062 = vmatprep.mubr.bf16.mxu0 0
    %1063 = vmatmul.mubr.bf16.gmra.mrb[0].mxu0 %v639
    %v1064 = vpop.f32.mrb[0].mxu0
    %v1065 = vadd.f32 0.0, %v1064
    %v1066 = vpop.f32.mrb[0].mxu0
    %v1067 = vpop.f32.mrb[0].mxu0
    %v1068 = vadd.f32 0.0, %v1067
    %v1069 = vpop.f32.mrb[0].mxu0
    %1070 = vmatprep.mubr.bf16.mxu0 0
    %1071 = vmatmul.mubr.bf16.gmra.mrb[0].mxu0 %v642
    %v1072 = vpop.f32.mrb[0].mxu0
    %v1073 = vadd.f32 0.0, %v1072
    %v1074 = vpop.f32.mrb[0].mxu0
    %v1075 = vpop.f32.mrb[0].mxu0
    %v1076 = vadd.f32 0.0, %v1075
    %v1077 = vpop.f32.mrb[0].mxu0
    %1078 = vmatprep.mubr.bf16.mxu0 0
    %1079 = vmatmul.mubr.bf16.gmra.mrb[0].mxu0 %v645
    %v1080 = vpop.f32.mrb[0].mxu0
    %v1081 = vadd.f32 0.0, %v1080
    %v1082 = vpop.f32.mrb[0].mxu0
    %v1083 = vpop.f32.mrb[0].mxu0
    %v1084 = vadd.f32 0.0, %v1083
    %v1085 = vpop.f32.mrb[0].mxu0
    %1086 = vmatprep.mubr.bf16.mxu0 0
    %1087 = vmatmul.mubr.bf16.gmra.mrb[0].mxu0 %v648
    %v1088 = vpop.f32.mrb[0].mxu0
    %v1089 = vadd.f32 0.0, %v1088
    %v1090 = vpop.f32.mrb[0].mxu0
    %v1091 = vpop.f32.mrb[0].mxu0
    %v1092 = vadd.f32 0.0, %v1091
    %v1093 = vpop.f32.mrb[0].mxu0
    %1094 = vdwg.mxu0
    %v1097 = vunpack.c.l.b16 %v134
    %v1098 = vunpack.c.l.b16 %v135
    %v1099 = vpack.c.b16 %v1098, %v1097
    %v1101 = vsel %vm496, %v1099, 0
    %v1104 = vsel %vm650, %v236, 0
    %1106 = vmatprep.subr.bf16.mxu0 0
    %1107 = vmatpush1.bf16.msra.mxu0 %v1104
    %1108 = vmatprep.subr.bf16.mxu0 0
    %1109 = vmatpush1.bf16.msra.mxu0 0
    %1110 = vmatprep.subr.bf16.mxu0 0
    %1111 = vmatpush1.bf16.msra.mxu0 0
    %1112 = vmatprep.subr.bf16.mxu0 0
    %1113 = vmatpush1.bf16.msra.mxu0 0
    %1114 = vmatprep.subr.bf16.mxu0 0
    %1115 = vmatpush1.bf16.msra.mxu0 0
    %1116 = vmatprep.subr.bf16.mxu0 0
    %1117 = vmatpush1.bf16.msra.mxu0 0
    %1118 = vmatprep.subr.bf16.mxu0 0
    %1119 = vmatpush1.bf16.msra.mxu0 0
    %1120 = vmatprep.subr.bf16.mxu0 0
    %1121 = vmatpush1.bf16.msra.mxu0 0
    %1122 = vmatprep.subr.bf16.mxu0 0
    %1123 = vmatpush1.bf16.msra.mxu0 0
    %1124 = vmatprep.subr.bf16.mxu0 0
    %1125 = vmatpush1.bf16.msra.mxu0 0
    %1126 = vmatprep.subr.bf16.mxu0 0
    %1127 = vmatpush1.bf16.msra.mxu0 0
    %1128 = vmatprep.subr.bf16.mxu0 0
    %1129 = vmatpush1.bf16.msra.mxu0 0
    %1130 = vmatprep.subr.bf16.mxu0 0
    %1131 = vmatpush1.bf16.msra.mxu0 0
    %1132 = vmatprep.subr.bf16.mxu0 0
    %1133 = vmatpush1.bf16.msra.mxu0 0
    %1134 = vmatprep.subr.bf16.mxu0 0
    %1135 = vmatpush1.bf16.msra.mxu0 0
    %1136 = vmatprep.subr.bf16.mxu0 0
    %1137 = vmatpush1.bf16.msra.mxu0 0
    %1138 = vmatprep.mubr.bf16.mxu0 0
    %1139 = vmatmul.mubr.bf16.gmra.mrb[0].mxu0 %v1101
    %v1140 = vpop.f32.mrb[0].mxu0
    %v1141 = vadd.f32 %v689, %v1140
    %v1142 = vpop.f32.mrb[0].mxu0
    %v1143 = vpop.f32.mrb[0].mxu0
    %v1144 = vadd.f32 %v692, %v1143
    %v1145 = vpop.f32.mrb[0].mxu0
    %1146 = vmatprep.mubr.bf16.mxu0 0
    %1147 = vmatmul.mubr.bf16.gmra.mrb[0].mxu0 %v498
    %v1148 = vpop.f32.mrb[0].mxu0
    %v1149 = vadd.f32 %v697, %v1148
    %v1150 = vpop.f32.mrb[0].mxu0
    %v1151 = vpop.f32.mrb[0].mxu0
    %v1152 = vadd.f32 %v700, %v1151
    %v1153 = vpop.f32.mrb[0].mxu0
    %1154 = vmatprep.mubr.bf16.mxu0 0
    %1155 = vmatmul.mubr.bf16.gmra.mrb[0].mxu0 %v501
    %v1156 = vpop.f32.mrb[0].mxu0
    %v1157 = vadd.f32 %v705, %v1156
    %v1158 = vpop.f32.mrb[0].mxu0
    %v1159 = vpop.f32.mrb[0].mxu0
    %v1160 = vadd.f32 %v708, %v1159
    %v1161 = vpop.f32.mrb[0].mxu0
    %1162 = vmatprep.mubr.bf16.mxu0 0
    %1163 = vmatmul.mubr.bf16.gmra.mrb[0].mxu0 %v504
    %v1164 = vpop.f32.mrb[0].mxu0
    %v1165 = vadd.f32 %v713, %v1164
    %v1166 = vpop.f32.mrb[0].mxu0
    %v1167 = vpop.f32.mrb[0].mxu0
    %v1168 = vadd.f32 %v716, %v1167
    %v1169 = vpop.f32.mrb[0].mxu0
    %1170 = vmatprep.mubr.bf16.mxu0 0
    %1171 = vmatmul.mubr.bf16.gmra.mrb[0].mxu0 %v507
    %v1172 = vpop.f32.mrb[0].mxu0
    %v1173 = vadd.f32 %v721, %v1172
    %v1174 = vpop.f32.mrb[0].mxu0
    %v1175 = vpop.f32.mrb[0].mxu0
    %v1176 = vadd.f32 %v724, %v1175
    %v1177 = vpop.f32.mrb[0].mxu0
    %1178 = vmatprep.mubr.bf16.mxu0 0
    %1179 = vmatmul.mubr.bf16.gmra.mrb[0].mxu0 %v510
    %v1180 = vpop.f32.mrb[0].mxu0
    %v1181 = vadd.f32 %v729, %v1180
    %v1182 = vpop.f32.mrb[0].mxu0
    %v1183 = vpop.f32.mrb[0].mxu0
    %v1184 = vadd.f32 %v732, %v1183
    %v1185 = vpop.f32.mrb[0].mxu0
    %1186 = vmatprep.mubr.bf16.mxu0 0
    %1187 = vmatmul.mubr.bf16.gmra.mrb[0].mxu0 %v513
    %v1188 = vpop.f32.mrb[0].mxu0
    %v1189 = vadd.f32 %v737, %v1188
    %v1190 = vpop.f32.mrb[0].mxu0
    %v1191 = vpop.f32.mrb[0].mxu0
    %v1192 = vadd.f32 %v740, %v1191
    %v1193 = vpop.f32.mrb[0].mxu0
    %1194 = vmatprep.mubr.bf16.mxu0 0
    %1195 = vmatmul.mubr.bf16.gmra.mrb[0].mxu0 %v516
    %v1196 = vpop.f32.mrb[0].mxu0
    %v1197 = vadd.f32 %v745, %v1196
    %v1198 = vpop.f32.mrb[0].mxu0
    %v1199 = vpop.f32.mrb[0].mxu0
    %v1200 = vadd.f32 %v748, %v1199
    %v1201 = vpop.f32.mrb[0].mxu0
    %1202 = vmatprep.mubr.bf16.mxu0 0
    %1203 = vmatmul.mubr.bf16.gmra.mrb[0].mxu0 %v519
    %v1204 = vpop.f32.mrb[0].mxu0
    %v1205 = vadd.f32 %v753, %v1204
    %v1206 = vpop.f32.mrb[0].mxu0
    %v1207 = vpop.f32.mrb[0].mxu0
    %v1208 = vadd.f32 %v756, %v1207
    %v1209 = vpop.f32.mrb[0].mxu0
    %1210 = vmatprep.mubr.bf16.mxu0 0
    %1211 = vmatmul.mubr.bf16.gmra.mrb[0].mxu0 %v522
    %v1212 = vpop.f32.mrb[0].mxu0
    %v1213 = vadd.f32 %v761, %v1212
    %v1214 = vpop.f32.mrb[0].mxu0
    %v1215 = vpop.f32.mrb[0].mxu0
    %v1216 = vadd.f32 %v764, %v1215
    %v1217 = vpop.f32.mrb[0].mxu0
    %1218 = vmatprep.mubr.bf16.mxu0 0
    %1219 = vmatmul.mubr.bf16.gmra.mrb[0].mxu0 %v525
    %v1220 = vpop.f32.mrb[0].mxu0
    %v1221 = vadd.f32 %v769, %v1220
    %v1222 = vpop.f32.mrb[0].mxu0
    %v1223 = vpop.f32.mrb[0].mxu0
    %v1224 = vadd.f32 %v772, %v1223
    %v1225 = vpop.f32.mrb[0].mxu0
    %1226 = vmatprep.mubr.bf16.mxu0 0
    %1227 = vmatmul.mubr.bf16.gmra.mrb[0].mxu0 %v528
    %v1228 = vpop.f32.mrb[0].mxu0
    %v1229 = vadd.f32 %v777, %v1228
    %v1230 = vpop.f32.mrb[0].mxu0
    %v1231 = vpop.f32.mrb[0].mxu0
    %v1232 = vadd.f32 %v780, %v1231
    %v1233 = vpop.f32.mrb[0].mxu0
    %1234 = vmatprep.mubr.bf16.mxu0 0
    %1235 = vmatmul.mubr.bf16.gmra.mrb[0].mxu0 %v531
    %v1236 = vpop.f32.mrb[0].mxu0
    %v1237 = vadd.f32 %v785, %v1236
    %v1238 = vpop.f32.mrb[0].mxu0
    %v1239 = vpop.f32.mrb[0].mxu0
    %v1240 = vadd.f32 %v788, %v1239
    %v1241 = vpop.f32.mrb[0].mxu0
    %1242 = vmatprep.mubr.bf16.mxu0 0
    %1243 = vmatmul.mubr.bf16.gmra.mrb[0].mxu0 %v534
    %v1244 = vpop.f32.mrb[0].mxu0
    %v1245 = vadd.f32 %v793, %v1244
    %v1246 = vpop.f32.mrb[0].mxu0
    %v1247 = vpop.f32.mrb[0].mxu0
    %v1248 = vadd.f32 %v796, %v1247
    %v1249 = vpop.f32.mrb[0].mxu0
    %1250 = vmatprep.mubr.bf16.mxu0 0
    %1251 = vmatmul.mubr.bf16.gmra.mrb[0].mxu0 %v537
    %v1252 = vpop.f32.mrb[0].mxu0
    %v1253 = vadd.f32 %v801, %v1252
    %v1254 = vpop.f32.mrb[0].mxu0
    %v1255 = vpop.f32.mrb[0].mxu0
    %v1256 = vadd.f32 %v804, %v1255
    %v1257 = vpop.f32.mrb[0].mxu0
    %1258 = vmatprep.mubr.bf16.mxu0 0
    %1259 = vmatmul.mubr.bf16.gmra.mrb[0].mxu0 %v540
    %v1260 = vpop.f32.mrb[0].mxu0
    %v1261 = vadd.f32 %v809, %v1260
    %v1262 = vpop.f32.mrb[0].mxu0
    %v1263 = vpop.f32.mrb[0].mxu0
    %v1264 = vadd.f32 %v812, %v1263
    %v1265 = vpop.f32.mrb[0].mxu0
    %1266 = vmatprep.mubr.bf16.mxu0 0
    %1267 = vmatmul.mubr.bf16.gmra.mrb[0].mxu0 %v543
    %v1268 = vpop.f32.mrb[0].mxu0
    %v1269 = vadd.f32 %v817, %v1268
    %v1270 = vpop.f32.mrb[0].mxu0
    %v1271 = vpop.f32.mrb[0].mxu0
    %v1272 = vadd.f32 %v820, %v1271
    %v1273 = vpop.f32.mrb[0].mxu0
    %1274 = vmatprep.mubr.bf16.mxu0 0
    %1275 = vmatmul.mubr.bf16.gmra.mrb[0].mxu0 %v546
    %v1276 = vpop.f32.mrb[0].mxu0
    %v1277 = vadd.f32 %v825, %v1276
    %v1278 = vpop.f32.mrb[0].mxu0
    %v1279 = vpop.f32.mrb[0].mxu0
    %v1280 = vadd.f32 %v828, %v1279
    %v1281 = vpop.f32.mrb[0].mxu0
    %1282 = vmatprep.mubr.bf16.mxu0 0
    %1283 = vmatmul.mubr.bf16.gmra.mrb[0].mxu0 %v549
    %v1284 = vpop.f32.mrb[0].mxu0
    %v1285 = vadd.f32 %v833, %v1284
    %v1286 = vpop.f32.mrb[0].mxu0
    %v1287 = vpop.f32.mrb[0].mxu0
    %v1288 = vadd.f32 %v836, %v1287
    %v1289 = vpop.f32.mrb[0].mxu0
    %1290 = vmatprep.mubr.bf16.mxu0 0
    %1291 = vmatmul.mubr.bf16.gmra.mrb[0].mxu0 %v552
    %v1292 = vpop.f32.mrb[0].mxu0
    %v1293 = vadd.f32 %v841, %v1292
    %v1294 = vpop.f32.mrb[0].mxu0
    %v1295 = vpop.f32.mrb[0].mxu0
    %v1296 = vadd.f32 %v844, %v1295
    %v1297 = vpop.f32.mrb[0].mxu0
    %1298 = vmatprep.mubr.bf16.mxu0 0
    %1299 = vmatmul.mubr.bf16.gmra.mrb[0].mxu0 %v555
    %v1300 = vpop.f32.mrb[0].mxu0
    %v1301 = vadd.f32 %v849, %v1300
    %v1302 = vpop.f32.mrb[0].mxu0
    %v1303 = vpop.f32.mrb[0].mxu0
    %v1304 = vadd.f32 %v852, %v1303
    %v1305 = vpop.f32.mrb[0].mxu0
    %1306 = vmatprep.mubr.bf16.mxu0 0
    %1307 = vmatmul.mubr.bf16.gmra.mrb[0].mxu0 %v558
    %v1308 = vpop.f32.mrb[0].mxu0
    %v1309 = vadd.f32 %v857, %v1308
    %v1310 = vpop.f32.mrb[0].mxu0
    %v1311 = vpop.f32.mrb[0].mxu0
    %v1312 = vadd.f32 %v860, %v1311
    %v1313 = vpop.f32.mrb[0].mxu0
    %1314 = vmatprep.mubr.bf16.mxu0 0
    %1315 = vmatmul.mubr.bf16.gmra.mrb[0].mxu0 %v561
    %v1316 = vpop.f32.mrb[0].mxu0
    %v1317 = vadd.f32 %v865, %v1316
    %v1318 = vpop.f32.mrb[0].mxu0
    %v1319 = vpop.f32.mrb[0].mxu0
    %v1320 = vadd.f32 %v868, %v1319
    %v1321 = vpop.f32.mrb[0].mxu0
    %1322 = vmatprep.mubr.bf16.mxu0 0
    %1323 = vmatmul.mubr.bf16.gmra.mrb[0].mxu0 %v564
    %v1324 = vpop.f32.mrb[0].mxu0
    %v1325 = vadd.f32 %v873, %v1324
    %v1326 = vpop.f32.mrb[0].mxu0
    %v1327 = vpop.f32.mrb[0].mxu0
    %v1328 = vadd.f32 %v876, %v1327
    %v1329 = vpop.f32.mrb[0].mxu0
    %1330 = vmatprep.mubr.bf16.mxu0 0
    %1331 = vmatmul.mubr.bf16.gmra.mrb[0].mxu0 %v567
    %v1332 = vpop.f32.mrb[0].mxu0
    %v1333 = vadd.f32 %v881, %v1332
    %v1334 = vpop.f32.mrb[0].mxu0
    %v1335 = vpop.f32.mrb[0].mxu0
    %v1336 = vadd.f32 %v884, %v1335
    %v1337 = vpop.f32.mrb[0].mxu0
    %1338 = vmatprep.mubr.bf16.mxu0 0
    %1339 = vmatmul.mubr.bf16.gmra.mrb[0].mxu0 %v570
    %v1340 = vpop.f32.mrb[0].mxu0
    %v1341 = vadd.f32 %v889, %v1340
    %v1342 = vpop.f32.mrb[0].mxu0
    %v1343 = vpop.f32.mrb[0].mxu0
    %v1344 = vadd.f32 %v892, %v1343
    %v1345 = vpop.f32.mrb[0].mxu0
    %1346 = vmatprep.mubr.bf16.mxu0 0
    %1347 = vmatmul.mubr.bf16.gmra.mrb[0].mxu0 %v573
    %v1348 = vpop.f32.mrb[0].mxu0
    %v1349 = vadd.f32 %v897, %v1348
    %v1350 = vpop.f32.mrb[0].mxu0
    %v1351 = vpop.f32.mrb[0].mxu0
    %v1352 = vadd.f32 %v900, %v1351
    %v1353 = vpop.f32.mrb[0].mxu0
    %1354 = vmatprep.mubr.bf16.mxu0 0
    %1355 = vmatmul.mubr.bf16.gmra.mrb[0].mxu0 %v576
    %v1356 = vpop.f32.mrb[0].mxu0
    %v1357 = vadd.f32 %v905, %v1356
    %v1358 = vpop.f32.mrb[0].mxu0
    %v1359 = vpop.f32.mrb[0].mxu0
    %v1360 = vadd.f32 %v908, %v1359
    %v1361 = vpop.f32.mrb[0].mxu0
    %1362 = vmatprep.mubr.bf16.mxu0 0
    %1363 = vmatmul.mubr.bf16.gmra.mrb[0].mxu0 %v579
    %v1364 = vpop.f32.mrb[0].mxu0
    %v1365 = vadd.f32 %v913, %v1364
    %v1366 = vpop.f32.mrb[0].mxu0
    %v1367 = vpop.f32.mrb[0].mxu0
    %v1368 = vadd.f32 %v916, %v1367
    %v1369 = vpop.f32.mrb[0].mxu0
    %1370 = vmatprep.mubr.bf16.mxu0 0
    %1371 = vmatmul.mubr.bf16.gmra.mrb[0].mxu0 %v582
    %v1372 = vpop.f32.mrb[0].mxu0
    %v1373 = vadd.f32 %v921, %v1372
    %v1374 = vpop.f32.mrb[0].mxu0
    %v1375 = vpop.f32.mrb[0].mxu0
    %v1376 = vadd.f32 %v924, %v1375
    %v1377 = vpop.f32.mrb[0].mxu0
    %1378 = vmatprep.mubr.bf16.mxu0 0
    %1379 = vmatmul.mubr.bf16.gmra.mrb[0].mxu0 %v585
    %v1380 = vpop.f32.mrb[0].mxu0
    %v1381 = vadd.f32 %v929, %v1380
    %v1382 = vpop.f32.mrb[0].mxu0
    %v1383 = vpop.f32.mrb[0].mxu0
    %v1384 = vadd.f32 %v932, %v1383
    %v1385 = vpop.f32.mrb[0].mxu0
    %1386 = vmatprep.mubr.bf16.mxu0 0
    %1387 = vmatmul.mubr.bf16.gmra.mrb[0].mxu0 %v588
    %v1388 = vpop.f32.mrb[0].mxu0
    %v1389 = vadd.f32 %v937, %v1388
    %v1390 = vpop.f32.mrb[0].mxu0
    %v1391 = vpop.f32.mrb[0].mxu0
    %v1392 = vadd.f32 %v940, %v1391
    %v1393 = vpop.f32.mrb[0].mxu0
    %1394 = vmatprep.mubr.bf16.mxu0 0
    %1395 = vmatmul.mubr.bf16.gmra.mrb[0].mxu0 %v591
    %v1396 = vpop.f32.mrb[0].mxu0
    %v1397 = vadd.f32 %v945, %v1396
    %v1398 = vpop.f32.mrb[0].mxu0
    %v1399 = vpop.f32.mrb[0].mxu0
    %v1400 = vadd.f32 %v948, %v1399
    %v1401 = vpop.f32.mrb[0].mxu0
    %1402 = vmatprep.mubr.bf16.mxu0 0
    %1403 = vmatmul.mubr.bf16.gmra.mrb[0].mxu0 %v594
    %v1404 = vpop.f32.mrb[0].mxu0
    %v1405 = vadd.f32 %v953, %v1404
    %v1406 = vpop.f32.mrb[0].mxu0
    %v1407 = vpop.f32.mrb[0].mxu0
    %v1408 = vadd.f32 %v956, %v1407
    %v1409 = vpop.f32.mrb[0].mxu0
    %1410 = vmatprep.mubr.bf16.mxu0 0
    %1411 = vmatmul.mubr.bf16.gmra.mrb[0].mxu0 %v597
    %v1412 = vpop.f32.mrb[0].mxu0
    %v1413 = vadd.f32 %v961, %v1412
    %v1414 = vpop.f32.mrb[0].mxu0
    %v1415 = vpop.f32.mrb[0].mxu0
    %v1416 = vadd.f32 %v964, %v1415
    %v1417 = vpop.f32.mrb[0].mxu0
    %1418 = vmatprep.mubr.bf16.mxu0 0
    %1419 = vmatmul.mubr.bf16.gmra.mrb[0].mxu0 %v600
    %v1420 = vpop.f32.mrb[0].mxu0
    %v1421 = vadd.f32 %v969, %v1420
    %v1422 = vpop.f32.mrb[0].mxu0
    %v1423 = vpop.f32.mrb[0].mxu0
    %v1424 = vadd.f32 %v972, %v1423
    %v1425 = vpop.f32.mrb[0].mxu0
    %1426 = vmatprep.mubr.bf16.mxu0 0
    %1427 = vmatmul.mubr.bf16.gmra.mrb[0].mxu0 %v603
    %v1428 = vpop.f32.mrb[0].mxu0
    %v1429 = vadd.f32 %v977, %v1428
    %v1430 = vpop.f32.mrb[0].mxu0
    %v1431 = vpop.f32.mrb[0].mxu0
    %v1432 = vadd.f32 %v980, %v1431
    %v1433 = vpop.f32.mrb[0].mxu0
    %1434 = vmatprep.mubr.bf16.mxu0 0
    %1435 = vmatmul.mubr.bf16.gmra.mrb[0].mxu0 %v606
    %v1436 = vpop.f32.mrb[0].mxu0
    %v1437 = vadd.f32 %v985, %v1436
    %v1438 = vpop.f32.mrb[0].mxu0
    %v1439 = vpop.f32.mrb[0].mxu0
    %v1440 = vadd.f32 %v988, %v1439
    %v1441 = vpop.f32.mrb[0].mxu0
    %1442 = vmatprep.mubr.bf16.mxu0 0
    %1443 = vmatmul.mubr.bf16.gmra.mrb[0].mxu0 %v609
    %v1444 = vpop.f32.mrb[0].mxu0
    %v1445 = vadd.f32 %v993, %v1444
    %v1446 = vpop.f32.mrb[0].mxu0
    %v1447 = vpop.f32.mrb[0].mxu0
    %v1448 = vadd.f32 %v996, %v1447
    %v1449 = vpop.f32.mrb[0].mxu0
    %1450 = vmatprep.mubr.bf16.mxu0 0
    %1451 = vmatmul.mubr.bf16.gmra.mrb[0].mxu0 %v612
    %v1452 = vpop.f32.mrb[0].mxu0
    %v1453 = vadd.f32 %v1001, %v1452
    %v1454 = vpop.f32.mrb[0].mxu0
    %v1455 = vpop.f32.mrb[0].mxu0
    %v1456 = vadd.f32 %v1004, %v1455
    %v1457 = vpop.f32.mrb[0].mxu0
    %1458 = vmatprep.mubr.bf16.mxu0 0
    %1459 = vmatmul.mubr.bf16.gmra.mrb[0].mxu0 %v615
    %v1460 = vpop.f32.mrb[0].mxu0
    %v1461 = vadd.f32 %v1009, %v1460
    %v1462 = vpop.f32.mrb[0].mxu0
    %v1463 = vpop.f32.mrb[0].mxu0
    %v1464 = vadd.f32 %v1012, %v1463
    %v1465 = vpop.f32.mrb[0].mxu0
    %1466 = vmatprep.mubr.bf16.mxu0 0
    %1467 = vmatmul.mubr.bf16.gmra.mrb[0].mxu0 %v618
    %v1468 = vpop.f32.mrb[0].mxu0
    %v1469 = vadd.f32 %v1017, %v1468
    %v1470 = vpop.f32.mrb[0].mxu0
    %v1471 = vpop.f32.mrb[0].mxu0
    %v1472 = vadd.f32 %v1020, %v1471
    %v1473 = vpop.f32.mrb[0].mxu0
    %1474 = vmatprep.mubr.bf16.mxu0 0
    %1475 = vmatmul.mubr.bf16.gmra.mrb[0].mxu0 %v621
    %v1476 = vpop.f32.mrb[0].mxu0
    %v1477 = vadd.f32 %v1025, %v1476
    %v1478 = vpop.f32.mrb[0].mxu0
    %v1479 = vpop.f32.mrb[0].mxu0
    %v1480 = vadd.f32 %v1028, %v1479
    %v1481 = vpop.f32.mrb[0].mxu0
    %1482 = vmatprep.mubr.bf16.mxu0 0
    %1483 = vmatmul.mubr.bf16.gmra.mrb[0].mxu0 %v624
    %v1484 = vpop.f32.mrb[0].mxu0
    %v1485 = vadd.f32 %v1033, %v1484
    %v1486 = vpop.f32.mrb[0].mxu0
    %v1487 = vpop.f32.mrb[0].mxu0
    %v1488 = vadd.f32 %v1036, %v1487
    %v1489 = vpop.f32.mrb[0].mxu0
    %1490 = vmatprep.mubr.bf16.mxu0 0
    %1491 = vmatmul.mubr.bf16.gmra.mrb[0].mxu0 %v627
    %v1492 = vpop.f32.mrb[0].mxu0
    %v1493 = vadd.f32 %v1041, %v1492
    %v1494 = vpop.f32.mrb[0].mxu0
    %v1495 = vpop.f32.mrb[0].mxu0
    %v1496 = vadd.f32 %v1044, %v1495
    %v1497 = vpop.f32.mrb[0].mxu0
    %1498 = vmatprep.mubr.bf16.mxu0 0
    %1499 = vmatmul.mubr.bf16.gmra.mrb[0].mxu0 %v630
    %v1500 = vpop.f32.mrb[0].mxu0
    %v1501 = vadd.f32 %v1049, %v1500
    %v1502 = vpop.f32.mrb[0].mxu0
    %v1503 = vpop.f32.mrb[0].mxu0
    %v1504 = vadd.f32 %v1052, %v1503
    %v1505 = vpop.f32.mrb[0].mxu0
    %1506 = vmatprep.mubr.bf16.mxu0 0
    %1507 = vmatmul.mubr.bf16.gmra.mrb[0].mxu0 %v633
    %v1508 = vpop.f32.mrb[0].mxu0
    %v1509 = vadd.f32 %v1057, %v1508
    %v1510 = vpop.f32.mrb[0].mxu0
    %v1511 = vpop.f32.mrb[0].mxu0
    %v1512 = vadd.f32 %v1060, %v1511
    %v1513 = vpop.f32.mrb[0].mxu0
    %1514 = vmatprep.mubr.bf16.mxu0 0
    %1515 = vmatmul.mubr.bf16.gmra.mrb[0].mxu0 %v636
    %v1516 = vpop.f32.mrb[0].mxu0
    %v1517 = vadd.f32 %v1065, %v1516
    %v1518 = vpop.f32.mrb[0].mxu0
    %v1519 = vpop.f32.mrb[0].mxu0
    %v1520 = vadd.f32 %v1068, %v1519
    %v1521 = vpop.f32.mrb[0].mxu0
    %1522 = vmatprep.mubr.bf16.mxu0 0
    %1523 = vmatmul.mubr.bf16.gmra.mrb[0].mxu0 %v639
    %v1524 = vpop.f32.mrb[0].mxu0
    %v1525 = vadd.f32 %v1073, %v1524
    %v1526 = vpop.f32.mrb[0].mxu0
    %v1527 = vpop.f32.mrb[0].mxu0
    %v1528 = vadd.f32 %v1076, %v1527
    %v1529 = vpop.f32.mrb[0].mxu0
    %1530 = vmatprep.mubr.bf16.mxu0 0
    %1531 = vmatmul.mubr.bf16.gmra.mrb[0].mxu0 %v642
    %v1532 = vpop.f32.mrb[0].mxu0
    %v1533 = vadd.f32 %v1081, %v1532
    %v1534 = vpop.f32.mrb[0].mxu0
    %v1535 = vpop.f32.mrb[0].mxu0
    %v1536 = vadd.f32 %v1084, %v1535
    %v1537 = vpop.f32.mrb[0].mxu0
    %1538 = vmatprep.mubr.bf16.mxu0 0
    %1539 = vmatmul.mubr.bf16.gmra.mrb[0].mxu0 %v645
    %v1540 = vpop.f32.mrb[0].mxu0
    %v1541 = vadd.f32 %v1089, %v1540
    %v1542 = vpop.f32.mrb[0].mxu0
    %v1543 = vpop.f32.mrb[0].mxu0
    %v1544 = vadd.f32 %v1092, %v1543
    %v1545 = vpop.f32.mrb[0].mxu0
    %1546 = vdwg.mxu0
    %v1547 = vld [vmem:[%s0 + $0x10] sm:$0xf]
    %v1548 = vld [vmem:[%s0 + $0x14] sm:$0xf]
    %v1549 = vld [vmem:[%s0 + $0x18] sm:$0xf]
    %v1550 = vld [vmem:[%s0 + $0x1c] sm:$0xf]
    %v1551 = vld [vmem:[%s0 + $0x20] sm:$0xf]
    %v1552 = vld [vmem:[%s0 + $0x24] sm:$0xf]
    %v1553 = vld [vmem:[%s0 + $0x28] sm:$0xf]
    %v1554 = vld [vmem:[%s0 + $0x2c] sm:$0xf]
    %v1555 = vld [vmem:[%s0 + $0x30] sm:$0xf]
    %v1556 = vld [vmem:[%s0 + $0x34] sm:$0xf]
    %v1557 = vld [vmem:[%s0 + $0x38] sm:$0xf]
    %v1558 = vld [vmem:[%s0 + $0x3c] sm:$0xf]
    %v1559 = vld [vmem:[%s0 + $0x40] sm:$0xf]
    %v1560 = vld [vmem:[%s0 + $0x44] sm:$0xf]
    %v1561 = vld [vmem:[%s0 + $0x48] sm:$0xf]
    %v1562 = vld [vmem:[%s0 + $0x4c] sm:$0xf]
    %v1563 = vld [vmem:[%s0 + $0x50] sm:$0xf]
    %v1564 = vld [vmem:[%s0 + $0x54] sm:$0xf]
    %v1565 = vld [vmem:[%s0 + $0x58] sm:$0xf]
    %v1566 = vld [vmem:[%s0 + $0x5c] sm:$0xf]
    %v1567 = vld [vmem:[%s0 + $0x60] sm:$0xf]
    %v1568 = vld [vmem:[%s0 + $0x64] sm:$0xf]
    %v1569 = vld [vmem:[%s0 + $0x68] sm:$0xf]
    %v1570 = vld [vmem:[%s0 + $0x6c] sm:$0xf]
    %v1571 = vld [vmem:[%s0 + $0x70] sm:$0xf]
    %v1572 = vld [vmem:[%s0 + $0x74] sm:$0xf]
    %v1573 = vld [vmem:[%s0 + $0x78] sm:$0xf]
    %v1574 = vld [vmem:[%s0 + $0x7c] sm:$0xf]
    %v1575 = vld [vmem:[%s0 + $0x80] sm:$0xf]
    %v1576 = vld [vmem:[%s0 + $0x84] sm:$0xf]
    %v1577 = vld [vmem:[%s0 + $0x88] sm:$0xf]
    %v1578 = vld [vmem:[%s0 + $0x8c] sm:$0xf]
    %v1579 = vld [vmem:[%s0 + $0x90] sm:$0xf]
    %v1580 = vld [vmem:[%s0 + $0x94] sm:$0xf]
    %v1581 = vld [vmem:[%s0 + $0x98] sm:$0xf]
    %v1582 = vld [vmem:[%s0 + $0x9c] sm:$0xf]
    %v1583 = vld [vmem:[%s0 + $0xa0] sm:$0xf]
    %v1584 = vld [vmem:[%s0 + $0xa4] sm:$0xf]
    %v1585 = vld [vmem:[%s0 + $0xa8] sm:$0xf]
    %v1586 = vld [vmem:[%s0 + $0xac] sm:$0xf]
    %v1587 = vld [vmem:[%s0 + $0xb0] sm:$0xf]
    %v1588 = vld [vmem:[%s0 + $0xb4] sm:$0xf]
    %v1589 = vld [vmem:[%s0 + $0xb8] sm:$0xf]
    %v1590 = vld [vmem:[%s0 + $0xbc] sm:$0xf]
    %v1591 = vld [vmem:[%s0 + $0xc0] sm:$0xf]
    %v1592 = vld [vmem:[%s0 + $0xc4] sm:$0xf]
    %v1593 = vld [vmem:[%s0 + $0xc8] sm:$0xf]
    %v1594 = vld [vmem:[%s0 + $0xcc] sm:$0xf]
    %v1595 = vld [vmem:[%s0 + $0xd0] sm:$0xf]
    %v1596 = vld [vmem:[%s0 + $0xd4] sm:$0xf]
    %v1597 = vld [vmem:[%s0 + $0xd8] sm:$0xf]
    %v1598 = vld [vmem:[%s0 + $0xdc] sm:$0xf]
    %v1599 = vld [vmem:[%s0 + $0xe0] sm:$0xf]
    %v1600 = vld [vmem:[%s0 + $0xe4] sm:$0xf]
    %v1601 = vld [vmem:[%s0 + $0xe8] sm:$0xf]
    %v1602 = vld [vmem:[%s0 + $0xec] sm:$0xf]
    %v1603 = vld [vmem:[%s0 + $0xf0] sm:$0xf]
    %v1604 = vld [vmem:[%s0 + $0xf4] sm:$0xf]
    %v1605 = vld [vmem:[%s0 + $0xf8] sm:$0xf]
    %v1606 = vld [vmem:[%s0 + $0xfc] sm:$0xf]
    %v1607 = vld [vmem:[%s0 + $0x100] sm:$0xf]
    %v1608 = vld [vmem:[%s0 + $0x104] sm:$0xf]
    %v1609 = vld [vmem:[%s0 + $0x108] sm:$0xf]
    %v1610 = vld [vmem:[%s0 + $0x10c] sm:$0xf]
    %v1611 = vld [vmem:[%s0 + $0x110] sm:$0xf]
    %v1612 = vld [vmem:[%s0 + $0x114] sm:$0xf]
    %v1613 = vld [vmem:[%s0 + $0x118] sm:$0xf]
    %v1614 = vld [vmem:[%s0 + $0x11c] sm:$0xf]
    %v1615 = vld [vmem:[%s0 + $0x120] sm:$0xf]
    %v1616 = vld [vmem:[%s0 + $0x124] sm:$0xf]
    %v1617 = vld [vmem:[%s0 + $0x128] sm:$0xf]
    %v1618 = vld [vmem:[%s0 + $0x12c] sm:$0xf]
    %v1619 = vld [vmem:[%s0 + $0x130] sm:$0xf]
    %v1620 = vld [vmem:[%s0 + $0x134] sm:$0xf]
    %v1621 = vld [vmem:[%s0 + $0x138] sm:$0xf]
    %v1622 = vld [vmem:[%s0 + $0x13c] sm:$0xf]
    %v1623 = vld [vmem:[%s0 + $0x140] sm:$0xf]
    %v1624 = vld [vmem:[%s0 + $0x144] sm:$0xf]
    %v1625 = vld [vmem:[%s0 + $0x148] sm:$0xf]
    %v1626 = vld [vmem:[%s0 + $0x14c] sm:$0xf]
    %v1627 = vld [vmem:[%s0 + $0x150] sm:$0xf]
    %v1628 = vld [vmem:[%s0 + $0x154] sm:$0xf]
    %v1629 = vld [vmem:[%s0 + $0x158] sm:$0xf]
    %v1630 = vld [vmem:[%s0 + $0x15c] sm:$0xf]
    %v1631 = vld [vmem:[%s0 + $0x160] sm:$0xf]
    %v1632 = vld [vmem:[%s0 + $0x164] sm:$0xf]
    %v1633 = vld [vmem:[%s0 + $0x168] sm:$0xf]
    %v1634 = vld [vmem:[%s0 + $0x16c] sm:$0xf]
    %v1635 = vld [vmem:[%s0 + $0x170] sm:$0xf]
    %v1636 = vld [vmem:[%s0 + $0x174] sm:$0xf]
    %v1637 = vld [vmem:[%s0 + $0x178] sm:$0xf]
    %v1638 = vld [vmem:[%s0 + $0x17c] sm:$0xf]
    %v1639 = vld [vmem:[%s0 + $0x180] sm:$0xf]
    %v1640 = vld [vmem:[%s0 + $0x184] sm:$0xf]
    %v1641 = vld [vmem:[%s0 + $0x188] sm:$0xf]
    %v1642 = vld [vmem:[%s0 + $0x18c] sm:$0xf]
    %v1643 = vld [vmem:[%s0 + $0x190] sm:$0xf]
    %v1644 = vld [vmem:[%s0 + $0x194] sm:$0xf]
    %v1645 = vld [vmem:[%s0 + $0x198] sm:$0xf]
    %v1646 = vld [vmem:[%s0 + $0x19c] sm:$0xf]
    %v1647 = vld [vmem:[%s0 + $0x1a0] sm:$0xf]
    %v1648 = vld [vmem:[%s0 + $0x1a4] sm:$0xf]
    %s1649 = scalar_lea.vmem [#allocation4], 2
    %v1650 = vld [vmem:[%s1649] sm:$0x1]
    %v1753 = vunpack.c.l.b16 %v1547
    %v1754 = vunpack.c.l.b16 %v1548
    %v1755 = vunpack.c.l.b16 %v1549
    %v1756 = vunpack.c.l.b16 %v1550
    %v1757 = vunpack.c.l.b16 %v1551
    %v1758 = vunpack.c.l.b16 %v1552
    %v1759 = vunpack.c.l.b16 %v1553
    %v1760 = vunpack.c.l.b16 %v1554
    %v1761 = vunpack.c.l.b16 %v1555
    %v1762 = vunpack.c.l.b16 %v1556
    %v1763 = vunpack.c.l.b16 %v1557
    %v1764 = vunpack.c.l.b16 %v1558
    %v1765 = vunpack.c.l.b16 %v1559
    %v1766 = vunpack.c.l.b16 %v1560
    %v1767 = vunpack.c.l.b16 %v1561
    %v1768 = vunpack.c.l.b16 %v1562
    %v1769 = vunpack.c.l.b16 %v1563
    %v1770 = vunpack.c.l.b16 %v1564
    %v1771 = vunpack.c.l.b16 %v1565
    %v1772 = vunpack.c.l.b16 %v1566
    %v1773 = vunpack.c.l.b16 %v1567
    %v1774 = vunpack.c.l.b16 %v1568
    %v1775 = vunpack.c.l.b16 %v1569
    %v1776 = vunpack.c.l.b16 %v1570
    %v1777 = vunpack.c.l.b16 %v1571
    %v1778 = vunpack.c.l.b16 %v1572
    %v1779 = vunpack.c.l.b16 %v1573
    %v1780 = vunpack.c.l.b16 %v1574
    %v1781 = vunpack.c.l.b16 %v1575
    %v1782 = vunpack.c.l.b16 %v1576
    %v1783 = vunpack.c.l.b16 %v1577
    %v1784 = vunpack.c.l.b16 %v1578
    %v1785 = vunpack.c.l.b16 %v1579
    %v1786 = vunpack.c.l.b16 %v1580
    %v1787 = vunpack.c.l.b16 %v1581
    %v1788 = vunpack.c.l.b16 %v1582
    %v1789 = vunpack.c.l.b16 %v1583
    %v1790 = vunpack.c.l.b16 %v1584
    %v1791 = vunpack.c.l.b16 %v1585
    %v1792 = vunpack.c.l.b16 %v1586
    %v1793 = vunpack.c.l.b16 %v1587
    %v1794 = vunpack.c.l.b16 %v1588
    %v1795 = vunpack.c.l.b16 %v1589
    %v1796 = vunpack.c.l.b16 %v1590
    %v1797 = vunpack.c.l.b16 %v1591
    %v1798 = vunpack.c.l.b16 %v1592
    %v1799 = vunpack.c.l.b16 %v1593
    %v1800 = vunpack.c.l.b16 %v1594
    %v1801 = vunpack.c.l.b16 %v1595
    %v1802 = vunpack.c.l.b16 %v1596
    %v1803 = vunpack.c.l.b16 %v1597
    %v1804 = vunpack.c.l.b16 %v1598
    %v1805 = vunpack.c.l.b16 %v1599
    %v1806 = vunpack.c.l.b16 %v1600
    %v1807 = vunpack.c.l.b16 %v1601
    %v1808 = vunpack.c.l.b16 %v1602
    %v1809 = vunpack.c.l.b16 %v1603
    %v1810 = vunpack.c.l.b16 %v1604
    %v1811 = vunpack.c.l.b16 %v1605
    %v1812 = vunpack.c.l.b16 %v1606
    %v1813 = vunpack.c.l.b16 %v1607
    %v1814 = vunpack.c.l.b16 %v1608
    %v1815 = vunpack.c.l.b16 %v1609
    %v1816 = vunpack.c.l.b16 %v1610
    %v1817 = vunpack.c.l.b16 %v1611
    %v1818 = vunpack.c.l.b16 %v1612
    %v1819 = vunpack.c.l.b16 %v1613
    %v1820 = vunpack.c.l.b16 %v1614
    %v1821 = vunpack.c.l.b16 %v1615
    %v1822 = vunpack.c.l.b16 %v1616
    %v1823 = vunpack.c.l.b16 %v1617
    %v1824 = vunpack.c.l.b16 %v1618
    %v1825 = vunpack.c.l.b16 %v1619
    %v1826 = vunpack.c.l.b16 %v1620
    %v1827 = vunpack.c.l.b16 %v1621
    %v1828 = vunpack.c.l.b16 %v1622
    %v1829 = vunpack.c.l.b16 %v1623
    %v1830 = vunpack.c.l.b16 %v1624
    %v1831 = vunpack.c.l.b16 %v1625
    %v1832 = vunpack.c.l.b16 %v1626
    %v1833 = vunpack.c.l.b16 %v1627
    %v1834 = vunpack.c.l.b16 %v1628
    %v1835 = vunpack.c.l.b16 %v1629
    %v1836 = vunpack.c.l.b16 %v1630
    %v1837 = vunpack.c.l.b16 %v1631
    %v1838 = vunpack.c.l.b16 %v1632
    %v1839 = vunpack.c.l.b16 %v1633
    %v1840 = vunpack.c.l.b16 %v1634
    %v1841 = vunpack.c.l.b16 %v1635
    %v1842 = vunpack.c.l.b16 %v1636
    %v1843 = vunpack.c.l.b16 %v1637
    %v1844 = vunpack.c.l.b16 %v1638
    %v1845 = vunpack.c.l.b16 %v1639
    %v1846 = vunpack.c.l.b16 %v1640
    %v1847 = vunpack.c.l.b16 %v1641
    %v1848 = vunpack.c.l.b16 %v1642
    %v1849 = vunpack.c.l.b16 %v1643
    %v1850 = vunpack.c.l.b16 %v1644
    %v1851 = vunpack.c.l.b16 %v1645
    %v1852 = vunpack.c.l.b16 %v1646
    %v1853 = vunpack.c.l.b16 %v1647
    %v1854 = vunpack.c.l.b16 %v1648
    %v1855 = vpack.c.b16 %v1754, %v1753
    %v1856 = vpack.c.b16 %v1756, %v1755
    %v1857 = vpack.c.b16 %v1758, %v1757
    %v1858 = vpack.c.b16 %v1760, %v1759
    %v1859 = vpack.c.b16 %v1762, %v1761
    %v1860 = vpack.c.b16 %v1764, %v1763
    %v1861 = vpack.c.b16 %v1766, %v1765
    %v1862 = vpack.c.b16 %v1768, %v1767
    %v1863 = vpack.c.b16 %v1770, %v1769
    %v1864 = vpack.c.b16 %v1772, %v1771
    %v1865 = vpack.c.b16 %v1774, %v1773
    %v1866 = vpack.c.b16 %v1776, %v1775
    %v1867 = vpack.c.b16 %v1778, %v1777
    %v1868 = vpack.c.b16 %v1780, %v1779
    %v1869 = vpack.c.b16 %v1782, %v1781
    %v1870 = vpack.c.b16 %v1784, %v1783
    %v1871 = vpack.c.b16 %v1786, %v1785
    %v1872 = vpack.c.b16 %v1788, %v1787
    %v1873 = vpack.c.b16 %v1790, %v1789
    %v1874 = vpack.c.b16 %v1792, %v1791
    %v1875 = vpack.c.b16 %v1794, %v1793
    %v1876 = vpack.c.b16 %v1796, %v1795
    %v1877 = vpack.c.b16 %v1798, %v1797
    %v1878 = vpack.c.b16 %v1800, %v1799
    %v1879 = vpack.c.b16 %v1802, %v1801
    %v1880 = vpack.c.b16 %v1804, %v1803
    %v1881 = vpack.c.b16 %v1806, %v1805
    %v1882 = vpack.c.b16 %v1808, %v1807
    %v1883 = vpack.c.b16 %v1810, %v1809
    %v1884 = vpack.c.b16 %v1812, %v1811
    %v1885 = vpack.c.b16 %v1814, %v1813
    %v1886 = vpack.c.b16 %v1816, %v1815
    %v1887 = vpack.c.b16 %v1818, %v1817
    %v1888 = vpack.c.b16 %v1820, %v1819
    %v1889 = vpack.c.b16 %v1822, %v1821
    %v1890 = vpack.c.b16 %v1824, %v1823
    %v1891 = vpack.c.b16 %v1826, %v1825
    %v1892 = vpack.c.b16 %v1828, %v1827
    %v1893 = vpack.c.b16 %v1830, %v1829
    %v1894 = vpack.c.b16 %v1832, %v1831
    %v1895 = vpack.c.b16 %v1834, %v1833
    %v1896 = vpack.c.b16 %v1836, %v1835
    %v1897 = vpack.c.b16 %v1838, %v1837
    %v1898 = vpack.c.b16 %v1840, %v1839
    %v1899 = vpack.c.b16 %v1842, %v1841
    %v1900 = vpack.c.b16 %v1844, %v1843
    %v1901 = vpack.c.b16 %v1846, %v1845
    %v1902 = vpack.c.b16 %v1848, %v1847
    %v1903 = vpack.c.b16 %v1850, %v1849
    %v1904 = vpack.c.b16 %v1852, %v1851
    %v1905 = vpack.c.b16 %v1854, %v1853
    %v1907 = vsel %vm496, %v1855, 0
    %v1910 = vsel %vm496, %v1856, 0
    %v1913 = vsel %vm496, %v1857, 0
    %v1916 = vsel %vm496, %v1858, 0
    %v1919 = vsel %vm496, %v1859, 0
    %v1922 = vsel %vm496, %v1860, 0
    %v1925 = vsel %vm496, %v1861, 0
    %v1928 = vsel %vm496, %v1862, 0
    %v1931 = vsel %vm496, %v1863, 0
    %v1934 = vsel %vm496, %v1864, 0
    %v1937 = vsel %vm496, %v1865, 0
    %v1940 = vsel %vm496, %v1866, 0
    %v1943 = vsel %vm496, %v1867, 0
    %v1946 = vsel %vm496, %v1868, 0
    %v1949 = vsel %vm496, %v1869, 0
    %v1952 = vsel %vm496, %v1870, 0
    %v1955 = vsel %vm496, %v1871, 0
    %v1958 = vsel %vm496, %v1872, 0
    %v1961 = vsel %vm496, %v1873, 0
    %v1964 = vsel %vm496, %v1874, 0
    %v1967 = vsel %vm496, %v1875, 0
    %v1970 = vsel %vm496, %v1876, 0
    %v1973 = vsel %vm496, %v1877, 0
    %v1976 = vsel %vm496, %v1878, 0
    %v1979 = vsel %vm496, %v1879, 0
    %v1982 = vsel %vm496, %v1880, 0
    %v1985 = vsel %vm496, %v1881, 0
    %v1988 = vsel %vm496, %v1882, 0
    %v1991 = vsel %vm496, %v1883, 0
    %v1994 = vsel %vm496, %v1884, 0
    %v1997 = vsel %vm496, %v1885, 0
    %v2000 = vsel %vm496, %v1886, 0
    %v2003 = vsel %vm496, %v1887, 0
    %v2006 = vsel %vm496, %v1888, 0
    %v2009 = vsel %vm496, %v1889, 0
    %v2012 = vsel %vm496, %v1890, 0
    %v2015 = vsel %vm496, %v1891, 0
    %v2018 = vsel %vm496, %v1892, 0
    %v2021 = vsel %vm496, %v1893, 0
    %v2024 = vsel %vm496, %v1894, 0
    %v2027 = vsel %vm496, %v1895, 0
    %v2030 = vsel %vm496, %v1896, 0
    %v2033 = vsel %vm496, %v1897, 0
    %v2036 = vsel %vm496, %v1898, 0
    %v2039 = vsel %vm496, %v1899, 0
    %v2042 = vsel %vm496, %v1900, 0
    %v2045 = vsel %vm496, %v1901, 0
    %v2048 = vsel %vm496, %v1902, 0
    %v2051 = vsel %vm496, %v1903, 0
    %v2054 = vsel %vm496, %v1904, 0
    %v2057 = vsel %vm496, %v1905, 0
    %v2060 = vsel %vm650, %v1650, 0
    %2062 = vmatprep.subr.bf16.mxu0 0
    %2063 = vmatpush1.bf16.msra.mxu0 %v2060
    %2064 = vmatprep.subr.bf16.mxu0 0
    %2065 = vmatpush1.bf16.msra.mxu0 0
    %2066 = vmatprep.subr.bf16.mxu0 0
    %2067 = vmatpush1.bf16.msra.mxu0 0
    %2068 = vmatprep.subr.bf16.mxu0 0
    %2069 = vmatpush1.bf16.msra.mxu0 0
    %2070 = vmatprep.subr.bf16.mxu0 0
    %2071 = vmatpush1.bf16.msra.mxu0 0
    %2072 = vmatprep.subr.bf16.mxu0 0
    %2073 = vmatpush1.bf16.msra.mxu0 0
    %2074 = vmatprep.subr.bf16.mxu0 0
    %2075 = vmatpush1.bf16.msra.mxu0 0
    %2076 = vmatprep.subr.bf16.mxu0 0
    %2077 = vmatpush1.bf16.msra.mxu0 0
    %2078 = vmatprep.subr.bf16.mxu0 0
    %2079 = vmatpush1.bf16.msra.mxu0 0
    %2080 = vmatprep.subr.bf16.mxu0 0
    %2081 = vmatpush1.bf16.msra.mxu0 0
    %2082 = vmatprep.subr.bf16.mxu0 0
    %2083 = vmatpush1.bf16.msra.mxu0 0
    %2084 = vmatprep.subr.bf16.mxu0 0
    %2085 = vmatpush1.bf16.msra.mxu0 0
    %2086 = vmatprep.subr.bf16.mxu0 0
    %2087 = vmatpush1.bf16.msra.mxu0 0
    %2088 = vmatprep.subr.bf16.mxu0 0
    %2089 = vmatpush1.bf16.msra.mxu0 0
    %2090 = vmatprep.subr.bf16.mxu0 0
    %2091 = vmatpush1.bf16.msra.mxu0 0
    %2092 = vmatprep.subr.bf16.mxu0 0
    %2093 = vmatpush1.bf16.msra.mxu0 0
    %2094 = vmatprep.mubr.bf16.mxu0 0
    %2095 = vmatmul.mubr.bf16.gmra.mrb[0].mxu0 %v1907
    %v2096 = vpop.f32.mrb[0].mxu0
    %v2097 = vadd.f32 0.0, %v2096
    %v2098 = vpop.f32.mrb[0].mxu0
    %v2099 = vpop.f32.mrb[0].mxu0
    %v2100 = vadd.f32 0.0, %v2099
    %v2101 = vpop.f32.mrb[0].mxu0
    %2102 = vmatprep.mubr.bf16.mxu0 0
    %2103 = vmatmul.mubr.bf16.gmra.mrb[0].mxu0 %v1910
    %v2104 = vpop.f32.mrb[0].mxu0
    %v2105 = vadd.f32 0.0, %v2104
    %v2106 = vpop.f32.mrb[0].mxu0
    %v2107 = vpop.f32.mrb[0].mxu0
    %v2108 = vadd.f32 0.0, %v2107
    %v2109 = vpop.f32.mrb[0].mxu0
    %2110 = vmatprep.mubr.bf16.mxu0 0
    %2111 = vmatmul.mubr.bf16.gmra.mrb[0].mxu0 %v1913
    %v2112 = vpop.f32.mrb[0].mxu0
    %v2113 = vadd.f32 0.0, %v2112
    %v2114 = vpop.f32.mrb[0].mxu0
    %v2115 = vpop.f32.mrb[0].mxu0
    %v2116 = vadd.f32 0.0, %v2115
    %v2117 = vpop.f32.mrb[0].mxu0
    %2118 = vmatprep.mubr.bf16.mxu0 0
    %2119 = vmatmul.mubr.bf16.gmra.mrb[0].mxu0 %v1916
    %v2120 = vpop.f32.mrb[0].mxu0
    %v2121 = vadd.f32 0.0, %v2120
    %v2122 = vpop.f32.mrb[0].mxu0
    %v2123 = vpop.f32.mrb[0].mxu0
    %v2124 = vadd.f32 0.0, %v2123
    %v2125 = vpop.f32.mrb[0].mxu0
    %2126 = vmatprep.mubr.bf16.mxu0 0
    %2127 = vmatmul.mubr.bf16.gmra.mrb[0].mxu0 %v1919
    %v2128 = vpop.f32.mrb[0].mxu0
    %v2129 = vadd.f32 0.0, %v2128
    %v2130 = vpop.f32.mrb[0].mxu0
    %v2131 = vpop.f32.mrb[0].mxu0
    %v2132 = vadd.f32 0.0, %v2131
    %v2133 = vpop.f32.mrb[0].mxu0
    %2134 = vmatprep.mubr.bf16.mxu0 0
    %2135 = vmatmul.mubr.bf16.gmra.mrb[0].mxu0 %v1922
    %v2136 = vpop.f32.mrb[0].mxu0
    %v2137 = vadd.f32 0.0, %v2136
    %v2138 = vpop.f32.mrb[0].mxu0
    %v2139 = vpop.f32.mrb[0].mxu0
    %v2140 = vadd.f32 0.0, %v2139
    %v2141 = vpop.f32.mrb[0].mxu0
    %2142 = vmatprep.mubr.bf16.mxu0 0
    %2143 = vmatmul.mubr.bf16.gmra.mrb[0].mxu0 %v1925
    %v2144 = vpop.f32.mrb[0].mxu0
    %v2145 = vadd.f32 0.0, %v2144
    %v2146 = vpop.f32.mrb[0].mxu0
    %v2147 = vpop.f32.mrb[0].mxu0
    %v2148 = vadd.f32 0.0, %v2147
    %v2149 = vpop.f32.mrb[0].mxu0
    %2150 = vmatprep.mubr.bf16.mxu0 0
    %2151 = vmatmul.mubr.bf16.gmra.mrb[0].mxu0 %v1928
    %v2152 = vpop.f32.mrb[0].mxu0
    %v2153 = vadd.f32 0.0, %v2152
    %v2154 = vpop.f32.mrb[0].mxu0
    %v2155 = vpop.f32.mrb[0].mxu0
    %v2156 = vadd.f32 0.0, %v2155
    %v2157 = vpop.f32.mrb[0].mxu0
    %2158 = vmatprep.mubr.bf16.mxu0 0
    %2159 = vmatmul.mubr.bf16.gmra.mrb[0].mxu0 %v1931
    %v2160 = vpop.f32.mrb[0].mxu0
    %v2161 = vadd.f32 0.0, %v2160
    %v2162 = vpop.f32.mrb[0].mxu0
    %v2163 = vpop.f32.mrb[0].mxu0
    %v2164 = vadd.f32 0.0, %v2163
    %v2165 = vpop.f32.mrb[0].mxu0
    %2166 = vmatprep.mubr.bf16.mxu0 0
    %2167 = vmatmul.mubr.bf16.gmra.mrb[0].mxu0 %v1934
    %v2168 = vpop.f32.mrb[0].mxu0
    %v2169 = vadd.f32 0.0, %v2168
    %v2170 = vpop.f32.mrb[0].mxu0
    %v2171 = vpop.f32.mrb[0].mxu0
    %v2172 = vadd.f32 0.0, %v2171
    %v2173 = vpop.f32.mrb[0].mxu0
    %2174 = vmatprep.mubr.bf16.mxu0 0
    %2175 = vmatmul.mubr.bf16.gmra.mrb[0].mxu0 %v1937
    %v2176 = vpop.f32.mrb[0].mxu0
    %v2177 = vadd.f32 0.0, %v2176
    %v2178 = vpop.f32.mrb[0].mxu0
    %v2179 = vpop.f32.mrb[0].mxu0
    %v2180 = vadd.f32 0.0, %v2179
    %v2181 = vpop.f32.mrb[0].mxu0
    %2182 = vmatprep.mubr.bf16.mxu0 0
    %2183 = vmatmul.mubr.bf16.gmra.mrb[0].mxu0 %v1940
    %v2184 = vpop.f32.mrb[0].mxu0
    %v2185 = vadd.f32 0.0, %v2184
    %v2186 = vpop.f32.mrb[0].mxu0
    %v2187 = vpop.f32.mrb[0].mxu0
    %v2188 = vadd.f32 0.0, %v2187
    %v2189 = vpop.f32.mrb[0].mxu0
    %2190 = vmatprep.mubr.bf16.mxu0 0
    %2191 = vmatmul.mubr.bf16.gmra.mrb[0].mxu0 %v1943
    %v2192 = vpop.f32.mrb[0].mxu0
    %v2193 = vadd.f32 0.0, %v2192
    %v2194 = vpop.f32.mrb[0].mxu0
    %v2195 = vpop.f32.mrb[0].mxu0
    %v2196 = vadd.f32 0.0, %v2195
    %v2197 = vpop.f32.mrb[0].mxu0
    %2198 = vmatprep.mubr.bf16.mxu0 0
    %2199 = vmatmul.mubr.bf16.gmra.mrb[0].mxu0 %v1946
    %v2200 = vpop.f32.mrb[0].mxu0
    %v2201 = vadd.f32 0.0, %v2200
    %v2202 = vpop.f32.mrb[0].mxu0
    %v2203 = vpop.f32.mrb[0].mxu0
    %v2204 = vadd.f32 0.0, %v2203
    %v2205 = vpop.f32.mrb[0].mxu0
    %2206 = vmatprep.mubr.bf16.mxu0 0
    %2207 = vmatmul.mubr.bf16.gmra.mrb[0].mxu0 %v1949
    %v2208 = vpop.f32.mrb[0].mxu0
    %v2209 = vadd.f32 0.0, %v2208
    %v2210 = vpop.f32.mrb[0].mxu0
    %v2211 = vpop.f32.mrb[0].mxu0
    %v2212 = vadd.f32 0.0, %v2211
    %v2213 = vpop.f32.mrb[0].mxu0
    %2214 = vmatprep.mubr.bf16.mxu0 0
    %2215 = vmatmul.mubr.bf16.gmra.mrb[0].mxu0 %v1952
    %v2216 = vpop.f32.mrb[0].mxu0
    %v2217 = vadd.f32 0.0, %v2216
    %v2218 = vpop.f32.mrb[0].mxu0
    %v2219 = vpop.f32.mrb[0].mxu0
    %v2220 = vadd.f32 0.0, %v2219
    %v2221 = vpop.f32.mrb[0].mxu0
    %2222 = vmatprep.mubr.bf16.mxu0 0
    %2223 = vmatmul.mubr.bf16.gmra.mrb[0].mxu0 %v1955
    %v2224 = vpop.f32.mrb[0].mxu0
    %v2225 = vadd.f32 0.0, %v2224
    %v2226 = vpop.f32.mrb[0].mxu0
    %v2227 = vpop.f32.mrb[0].mxu0
    %v2228 = vadd.f32 0.0, %v2227
    %v2229 = vpop.f32.mrb[0].mxu0
    %2230 = vmatprep.mubr.bf16.mxu0 0
    %2231 = vmatmul.mubr.bf16.gmra.mrb[0].mxu0 %v1958
    %v2232 = vpop.f32.mrb[0].mxu0
    %v2233 = vadd.f32 0.0, %v2232
    %v2234 = vpop.f32.mrb[0].mxu0
    %v2235 = vpop.f32.mrb[0].mxu0
    %v2236 = vadd.f32 0.0, %v2235
    %v2237 = vpop.f32.mrb[0].mxu0
    %2238 = vmatprep.mubr.bf16.mxu0 0
    %2239 = vmatmul.mubr.bf16.gmra.mrb[0].mxu0 %v1961
    %v2240 = vpop.f32.mrb[0].mxu0
    %v2241 = vadd.f32 0.0, %v2240
    %v2242 = vpop.f32.mrb[0].mxu0
    %v2243 = vpop.f32.mrb[0].mxu0
    %v2244 = vadd.f32 0.0, %v2243
    %v2245 = vpop.f32.mrb[0].mxu0
    %2246 = vmatprep.mubr.bf16.mxu0 0
    %2247 = vmatmul.mubr.bf16.gmra.mrb[0].mxu0 %v1964
    %v2248 = vpop.f32.mrb[0].mxu0
    %v2249 = vadd.f32 0.0, %v2248
    %v2250 = vpop.f32.mrb[0].mxu0
    %v2251 = vpop.f32.mrb[0].mxu0
    %v2252 = vadd.f32 0.0, %v2251
    %v2253 = vpop.f32.mrb[0].mxu0
    %2254 = vmatprep.mubr.bf16.mxu0 0
    %2255 = vmatmul.mubr.bf16.gmra.mrb[0].mxu0 %v1967
    %v2256 = vpop.f32.mrb[0].mxu0
    %v2257 = vadd.f32 0.0, %v2256
    %v2258 = vpop.f32.mrb[0].mxu0
    %v2259 = vpop.f32.mrb[0].mxu0
    %v2260 = vadd.f32 0.0, %v2259
    %v2261 = vpop.f32.mrb[0].mxu0
    %2262 = vmatprep.mubr.bf16.mxu0 0
    %2263 = vmatmul.mubr.bf16.gmra.mrb[0].mxu0 %v1970
    %v2264 = vpop.f32.mrb[0].mxu0
    %v2265 = vadd.f32 0.0, %v2264
    %v2266 = vpop.f32.mrb[0].mxu0
    %v2267 = vpop.f32.mrb[0].mxu0
    %v2268 = vadd.f32 0.0, %v2267
    %v2269 = vpop.f32.mrb[0].mxu0
    %2270 = vmatprep.mubr.bf16.mxu0 0
    %2271 = vmatmul.mubr.bf16.gmra.mrb[0].mxu0 %v1973
    %v2272 = vpop.f32.mrb[0].mxu0
    %v2273 = vadd.f32 0.0, %v2272
    %v2274 = vpop.f32.mrb[0].mxu0
    %v2275 = vpop.f32.mrb[0].mxu0
    %v2276 = vadd.f32 0.0, %v2275
    %v2277 = vpop.f32.mrb[0].mxu0
    %2278 = vmatprep.mubr.bf16.mxu0 0
    %2279 = vmatmul.mubr.bf16.gmra.mrb[0].mxu0 %v1976
    %v2280 = vpop.f32.mrb[0].mxu0
    %v2281 = vadd.f32 0.0, %v2280
    %v2282 = vpop.f32.mrb[0].mxu0
    %v2283 = vpop.f32.mrb[0].mxu0
    %v2284 = vadd.f32 0.0, %v2283
    %v2285 = vpop.f32.mrb[0].mxu0
    %2286 = vmatprep.mubr.bf16.mxu0 0
    %2287 = vmatmul.mubr.bf16.gmra.mrb[0].mxu0 %v1979
    %v2288 = vpop.f32.mrb[0].mxu0
    %v2289 = vadd.f32 0.0, %v2288
    %v2290 = vpop.f32.mrb[0].mxu0
    %v2291 = vpop.f32.mrb[0].mxu0
    %v2292 = vadd.f32 0.0, %v2291
    %v2293 = vpop.f32.mrb[0].mxu0
    %2294 = vmatprep.mubr.bf16.mxu0 0
    %2295 = vmatmul.mubr.bf16.gmra.mrb[0].mxu0 %v1982
    %v2296 = vpop.f32.mrb[0].mxu0
    %v2297 = vadd.f32 0.0, %v2296
    %v2298 = vpop.f32.mrb[0].mxu0
    %v2299 = vpop.f32.mrb[0].mxu0
    %v2300 = vadd.f32 0.0, %v2299
    %v2301 = vpop.f32.mrb[0].mxu0
    %2302 = vmatprep.mubr.bf16.mxu0 0
    %2303 = vmatmul.mubr.bf16.gmra.mrb[0].mxu0 %v1985
    %v2304 = vpop.f32.mrb[0].mxu0
    %v2305 = vadd.f32 0.0, %v2304
    %v2306 = vpop.f32.mrb[0].mxu0
    %v2307 = vpop.f32.mrb[0].mxu0
    %v2308 = vadd.f32 0.0, %v2307
    %v2309 = vpop.f32.mrb[0].mxu0
    %2310 = vmatprep.mubr.bf16.mxu0 0
    %2311 = vmatmul.mubr.bf16.gmra.mrb[0].mxu0 %v1988
    %v2312 = vpop.f32.mrb[0].mxu0
    %v2313 = vadd.f32 0.0, %v2312
    %v2314 = vpop.f32.mrb[0].mxu0
    %v2315 = vpop.f32.mrb[0].mxu0
    %v2316 = vadd.f32 0.0, %v2315
    %v2317 = vpop.f32.mrb[0].mxu0
    %2318 = vmatprep.mubr.bf16.mxu0 0
    %2319 = vmatmul.mubr.bf16.gmra.mrb[0].mxu0 %v1991
    %v2320 = vpop.f32.mrb[0].mxu0
    %v2321 = vadd.f32 0.0, %v2320
    %v2322 = vpop.f32.mrb[0].mxu0
    %v2323 = vpop.f32.mrb[0].mxu0
    %v2324 = vadd.f32 0.0, %v2323
    %v2325 = vpop.f32.mrb[0].mxu0
    %2326 = vmatprep.mubr.bf16.mxu0 0
    %2327 = vmatmul.mubr.bf16.gmra.mrb[0].mxu0 %v1994
    %v2328 = vpop.f32.mrb[0].mxu0
    %v2329 = vadd.f32 0.0, %v2328
    %v2330 = vpop.f32.mrb[0].mxu0
    %v2331 = vpop.f32.mrb[0].mxu0
    %v2332 = vadd.f32 0.0, %v2331
    %v2333 = vpop.f32.mrb[0].mxu0
    %2334 = vmatprep.mubr.bf16.mxu0 0
    %2335 = vmatmul.mubr.bf16.gmra.mrb[0].mxu0 %v1997
    %v2336 = vpop.f32.mrb[0].mxu0
    %v2337 = vadd.f32 0.0, %v2336
    %v2338 = vpop.f32.mrb[0].mxu0
    %v2339 = vpop.f32.mrb[0].mxu0
    %v2340 = vadd.f32 0.0, %v2339
    %v2341 = vpop.f32.mrb[0].mxu0
    %2342 = vmatprep.mubr.bf16.mxu0 0
    %2343 = vmatmul.mubr.bf16.gmra.mrb[0].mxu0 %v2000
    %v2344 = vpop.f32.mrb[0].mxu0
    %v2345 = vadd.f32 0.0, %v2344
    %v2346 = vpop.f32.mrb[0].mxu0
    %v2347 = vpop.f32.mrb[0].mxu0
    %v2348 = vadd.f32 0.0, %v2347
    %v2349 = vpop.f32.mrb[0].mxu0
    %2350 = vmatprep.mubr.bf16.mxu0 0
    %2351 = vmatmul.mubr.bf16.gmra.mrb[0].mxu0 %v2003
    %v2352 = vpop.f32.mrb[0].mxu0
    %v2353 = vadd.f32 0.0, %v2352
    %v2354 = vpop.f32.mrb[0].mxu0
    %v2355 = vpop.f32.mrb[0].mxu0
    %v2356 = vadd.f32 0.0, %v2355
    %v2357 = vpop.f32.mrb[0].mxu0
    %2358 = vmatprep.mubr.bf16.mxu0 0
    %2359 = vmatmul.mubr.bf16.gmra.mrb[0].mxu0 %v2006
    %v2360 = vpop.f32.mrb[0].mxu0
    %v2361 = vadd.f32 0.0, %v2360
    %v2362 = vpop.f32.mrb[0].mxu0
    %v2363 = vpop.f32.mrb[0].mxu0
    %v2364 = vadd.f32 0.0, %v2363
    %v2365 = vpop.f32.mrb[0].mxu0
    %2366 = vmatprep.mubr.bf16.mxu0 0
    %2367 = vmatmul.mubr.bf16.gmra.mrb[0].mxu0 %v2009
    %v2368 = vpop.f32.mrb[0].mxu0
    %v2369 = vadd.f32 0.0, %v2368
    %v2370 = vpop.f32.mrb[0].mxu0
    %v2371 = vpop.f32.mrb[0].mxu0
    %v2372 = vadd.f32 0.0, %v2371
    %v2373 = vpop.f32.mrb[0].mxu0
    %2374 = vmatprep.mubr.bf16.mxu0 0
    %2375 = vmatmul.mubr.bf16.gmra.mrb[0].mxu0 %v2012
    %v2376 = vpop.f32.mrb[0].mxu0
    %v2377 = vadd.f32 0.0, %v2376
    %v2378 = vpop.f32.mrb[0].mxu0
    %v2379 = vpop.f32.mrb[0].mxu0
    %v2380 = vadd.f32 0.0, %v2379
    %v2381 = vpop.f32.mrb[0].mxu0
    %2382 = vmatprep.mubr.bf16.mxu0 0
    %2383 = vmatmul.mubr.bf16.gmra.mrb[0].mxu0 %v2015
    %v2384 = vpop.f32.mrb[0].mxu0
    %v2385 = vadd.f32 0.0, %v2384
    %v2386 = vpop.f32.mrb[0].mxu0
    %v2387 = vpop.f32.mrb[0].mxu0
    %v2388 = vadd.f32 0.0, %v2387
    %v2389 = vpop.f32.mrb[0].mxu0
    %2390 = vmatprep.mubr.bf16.mxu0 0
    %2391 = vmatmul.mubr.bf16.gmra.mrb[0].mxu0 %v2018
    %v2392 = vpop.f32.mrb[0].mxu0
    %v2393 = vadd.f32 0.0, %v2392
    %v2394 = vpop.f32.mrb[0].mxu0
    %v2395 = vpop.f32.mrb[0].mxu0
    %v2396 = vadd.f32 0.0, %v2395
    %v2397 = vpop.f32.mrb[0].mxu0
    %2398 = vmatprep.mubr.bf16.mxu0 0
    %2399 = vmatmul.mubr.bf16.gmra.mrb[0].mxu0 %v2021
    %v2400 = vpop.f32.mrb[0].mxu0
    %v2401 = vadd.f32 0.0, %v2400
    %v2402 = vpop.f32.mrb[0].mxu0
    %v2403 = vpop.f32.mrb[0].mxu0
    %v2404 = vadd.f32 0.0, %v2403
    %v2405 = vpop.f32.mrb[0].mxu0
    %2406 = vmatprep.mubr.bf16.mxu0 0
    %2407 = vmatmul.mubr.bf16.gmra.mrb[0].mxu0 %v2024
    %v2408 = vpop.f32.mrb[0].mxu0
    %v2409 = vadd.f32 0.0, %v2408
    %v2410 = vpop.f32.mrb[0].mxu0
    %v2411 = vpop.f32.mrb[0].mxu0
    %v2412 = vadd.f32 0.0, %v2411
    %v2413 = vpop.f32.mrb[0].mxu0
    %2414 = vmatprep.mubr.bf16.mxu0 0
    %2415 = vmatmul.mubr.bf16.gmra.mrb[0].mxu0 %v2027
    %v2416 = vpop.f32.mrb[0].mxu0
    %v2417 = vadd.f32 0.0, %v2416
    %v2418 = vpop.f32.mrb[0].mxu0
    %v2419 = vpop.f32.mrb[0].mxu0
    %v2420 = vadd.f32 0.0, %v2419
    %v2421 = vpop.f32.mrb[0].mxu0
    %2422 = vmatprep.mubr.bf16.mxu0 0
    %2423 = vmatmul.mubr.bf16.gmra.mrb[0].mxu0 %v2030
    %v2424 = vpop.f32.mrb[0].mxu0
    %v2425 = vadd.f32 0.0, %v2424
    %v2426 = vpop.f32.mrb[0].mxu0
    %v2427 = vpop.f32.mrb[0].mxu0
    %v2428 = vadd.f32 0.0, %v2427
    %v2429 = vpop.f32.mrb[0].mxu0
    %2430 = vmatprep.mubr.bf16.mxu0 0
    %2431 = vmatmul.mubr.bf16.gmra.mrb[0].mxu0 %v2033
    %v2432 = vpop.f32.mrb[0].mxu0
    %v2433 = vadd.f32 0.0, %v2432
    %v2434 = vpop.f32.mrb[0].mxu0
    %v2435 = vpop.f32.mrb[0].mxu0
    %v2436 = vadd.f32 0.0, %v2435
    %v2437 = vpop.f32.mrb[0].mxu0
    %2438 = vmatprep.mubr.bf16.mxu0 0
    %2439 = vmatmul.mubr.bf16.gmra.mrb[0].mxu0 %v2036
    %v2440 = vpop.f32.mrb[0].mxu0
    %v2441 = vadd.f32 0.0, %v2440
    %v2442 = vpop.f32.mrb[0].mxu0
    %v2443 = vpop.f32.mrb[0].mxu0
    %v2444 = vadd.f32 0.0, %v2443
    %v2445 = vpop.f32.mrb[0].mxu0
    %2446 = vmatprep.mubr.bf16.mxu0 0
    %2447 = vmatmul.mubr.bf16.gmra.mrb[0].mxu0 %v2039
    %v2448 = vpop.f32.mrb[0].mxu0
    %v2449 = vadd.f32 0.0, %v2448
    %v2450 = vpop.f32.mrb[0].mxu0
    %v2451 = vpop.f32.mrb[0].mxu0
    %v2452 = vadd.f32 0.0, %v2451
    %v2453 = vpop.f32.mrb[0].mxu0
    %2454 = vmatprep.mubr.bf16.mxu0 0
    %2455 = vmatmul.mubr.bf16.gmra.mrb[0].mxu0 %v2042
    %v2456 = vpop.f32.mrb[0].mxu0
    %v2457 = vadd.f32 0.0, %v2456
    %v2458 = vpop.f32.mrb[0].mxu0
    %v2459 = vpop.f32.mrb[0].mxu0
    %v2460 = vadd.f32 0.0, %v2459
    %v2461 = vpop.f32.mrb[0].mxu0
    %2462 = vmatprep.mubr.bf16.mxu0 0
    %2463 = vmatmul.mubr.bf16.gmra.mrb[0].mxu0 %v2045
    %v2464 = vpop.f32.mrb[0].mxu0
    %v2465 = vadd.f32 0.0, %v2464
    %v2466 = vpop.f32.mrb[0].mxu0
    %v2467 = vpop.f32.mrb[0].mxu0
    %v2468 = vadd.f32 0.0, %v2467
    %v2469 = vpop.f32.mrb[0].mxu0
    %2470 = vmatprep.mubr.bf16.mxu0 0
    %2471 = vmatmul.mubr.bf16.gmra.mrb[0].mxu0 %v2048
    %v2472 = vpop.f32.mrb[0].mxu0
    %v2473 = vadd.f32 0.0, %v2472
    %v2474 = vpop.f32.mrb[0].mxu0
    %v2475 = vpop.f32.mrb[0].mxu0
    %v2476 = vadd.f32 0.0, %v2475
    %v2477 = vpop.f32.mrb[0].mxu0
    %2478 = vmatprep.mubr.bf16.mxu0 0
    %2479 = vmatmul.mubr.bf16.gmra.mrb[0].mxu0 %v2051
    %v2480 = vpop.f32.mrb[0].mxu0
    %v2481 = vadd.f32 0.0, %v2480
    %v2482 = vpop.f32.mrb[0].mxu0
    %v2483 = vpop.f32.mrb[0].mxu0
    %v2484 = vadd.f32 0.0, %v2483
    %v2485 = vpop.f32.mrb[0].mxu0
    %2486 = vmatprep.mubr.bf16.mxu0 0
    %2487 = vmatmul.mubr.bf16.gmra.mrb[0].mxu0 %v2054
    %v2488 = vpop.f32.mrb[0].mxu0
    %v2489 = vadd.f32 0.0, %v2488
    %v2490 = vpop.f32.mrb[0].mxu0
    %v2491 = vpop.f32.mrb[0].mxu0
    %v2492 = vadd.f32 0.0, %v2491
    %v2493 = vpop.f32.mrb[0].mxu0
    %2494 = vmatprep.mubr.bf16.mxu0 0
    %2495 = vmatmul.mubr.bf16.gmra.mrb[0].mxu0 %v2057
    %v2496 = vpop.f32.mrb[0].mxu0
    %v2497 = vadd.f32 0.0, %v2496
    %v2498 = vpop.f32.mrb[0].mxu0
    %v2499 = vpop.f32.mrb[0].mxu0
    %v2500 = vadd.f32 0.0, %v2499
    %v2501 = vpop.f32.mrb[0].mxu0
    %2502 = vdwg.mxu0
    %v2503 = vadd.f32 %v1141, %v2097
    %v2504 = vadd.f32 %v1144, %v2100
    %v2505 = vadd.f32 %v1149, %v2105
    %v2506 = vadd.f32 %v1152, %v2108
    %v2507 = vadd.f32 %v1157, %v2113
    %v2508 = vadd.f32 %v1160, %v2116
    %v2509 = vadd.f32 %v1165, %v2121
    %v2510 = vadd.f32 %v1168, %v2124
    %v2511 = vadd.f32 %v1173, %v2129
    %v2512 = vadd.f32 %v1176, %v2132
    %v2513 = vadd.f32 %v1181, %v2137
    %v2514 = vadd.f32 %v1184, %v2140
    %v2515 = vadd.f32 %v1189, %v2145
    %v2516 = vadd.f32 %v1192, %v2148
    %v2517 = vadd.f32 %v1197, %v2153
    %v2518 = vadd.f32 %v1200, %v2156
    %v2519 = vadd.f32 %v1205, %v2161
    %v2520 = vadd.f32 %v1208, %v2164
    %v2521 = vadd.f32 %v1213, %v2169
    %v2522 = vadd.f32 %v1216, %v2172
    %v2523 = vadd.f32 %v1221, %v2177
    %v2524 = vadd.f32 %v1224, %v2180
    %v2525 = vadd.f32 %v1229, %v2185
    %v2526 = vadd.f32 %v1232, %v2188
    %v2527 = vadd.f32 %v1237, %v2193
    %v2528 = vadd.f32 %v1240, %v2196
    %v2529 = vadd.f32 %v1245, %v2201
    %v2530 = vadd.f32 %v1248, %v2204
    %v2531 = vadd.f32 %v1253, %v2209
    %v2532 = vadd.f32 %v1256, %v2212
    %v2533 = vadd.f32 %v1261, %v2217
    %v2534 = vadd.f32 %v1264, %v2220
    %v2535 = vadd.f32 %v1269, %v2225
    %v2536 = vadd.f32 %v1272, %v2228
    %v2537 = vadd.f32 %v1277, %v2233
    %v2538 = vadd.f32 %v1280, %v2236
    %v2539 = vadd.f32 %v1285, %v2241
    %v2540 = vadd.f32 %v1288, %v2244
    %v2541 = vadd.f32 %v1293, %v2249
    %v2542 = vadd.f32 %v1296, %v2252
    %v2543 = vadd.f32 %v1301, %v2257
    %v2544 = vadd.f32 %v1304, %v2260
    %v2545 = vadd.f32 %v1309, %v2265
    %v2546 = vadd.f32 %v1312, %v2268
    %v2547 = vadd.f32 %v1317, %v2273
    %v2548 = vadd.f32 %v1320, %v2276
    %v2549 = vadd.f32 %v1325, %v2281
    %v2550 = vadd.f32 %v1328, %v2284
    %v2551 = vadd.f32 %v1333, %v2289
    %v2552 = vadd.f32 %v1336, %v2292
    %v2553 = vadd.f32 %v1341, %v2297
    %v2554 = vadd.f32 %v1344, %v2300
    %v2555 = vadd.f32 %v1349, %v2305
    %v2556 = vadd.f32 %v1352, %v2308
    %v2557 = vadd.f32 %v1357, %v2313
    %v2558 = vadd.f32 %v1360, %v2316
    %v2559 = vadd.f32 %v1365, %v2321
    %v2560 = vadd.f32 %v1368, %v2324
    %v2561 = vadd.f32 %v1373, %v2329
    %v2562 = vadd.f32 %v1376, %v2332
    %v2563 = vadd.f32 %v1381, %v2337
    %v2564 = vadd.f32 %v1384, %v2340
    %v2565 = vadd.f32 %v1389, %v2345
    %v2566 = vadd.f32 %v1392, %v2348
    %v2567 = vadd.f32 %v1397, %v2353
    %v2568 = vadd.f32 %v1400, %v2356
    %v2569 = vadd.f32 %v1405, %v2361
    %v2570 = vadd.f32 %v1408, %v2364
    %v2571 = vadd.f32 %v1413, %v2369
    %v2572 = vadd.f32 %v1416, %v2372
    %v2573 = vadd.f32 %v1421, %v2377
    %v2574 = vadd.f32 %v1424, %v2380
    %v2575 = vadd.f32 %v1429, %v2385
    %v2576 = vadd.f32 %v1432, %v2388
    %v2577 = vadd.f32 %v1437, %v2393
    %v2578 = vadd.f32 %v1440, %v2396
    %v2579 = vadd.f32 %v1445, %v2401
    %v2580 = vadd.f32 %v1448, %v2404
    %v2581 = vadd.f32 %v1453, %v2409
    %v2582 = vadd.f32 %v1456, %v2412
    %v2583 = vadd.f32 %v1461, %v2417
    %v2584 = vadd.f32 %v1464, %v2420
    %v2585 = vadd.f32 %v1469, %v2425
    %v2586 = vadd.f32 %v1472, %v2428
    %v2587 = vadd.f32 %v1477, %v2433
    %v2588 = vadd.f32 %v1480, %v2436
    %v2589 = vadd.f32 %v1485, %v2441
    %v2590 = vadd.f32 %v1488, %v2444
    %v2591 = vadd.f32 %v1493, %v2449
    %v2592 = vadd.f32 %v1496, %v2452
    %v2593 = vadd.f32 %v1501, %v2457
    %v2594 = vadd.f32 %v1504, %v2460
    %v2595 = vadd.f32 %v1509, %v2465
    %v2596 = vadd.f32 %v1512, %v2468
    %v2597 = vadd.f32 %v1517, %v2473
    %v2598 = vadd.f32 %v1520, %v2476
    %v2599 = vadd.f32 %v1525, %v2481
    %v2600 = vadd.f32 %v1528, %v2484
    %v2601 = vadd.f32 %v1533, %v2489
    %v2602 = vadd.f32 %v1536, %v2492
    %v2603 = vadd.f32 %v1541, %v2497
    %v2604 = vadd.f32 %v1544, %v2500
    %v2605 = vld [vmem:[#allocation6] sm:$0x1]
    %v2607 = vlaneseq
    %v2608 = vshrl.u32 %v2607, 7
    %v2609 = vsub.s32 0, %v2608
    %v2610 = vrot.slane %v2605, %v2609
    %v2612 = vadd.f32 %v2503, %v2610
    %v2613 = vadd.f32 %v2504, %v2610
    %v2614 = vadd.f32 %v2505, %v2610
    %v2615 = vadd.f32 %v2506, %v2610
    %v2616 = vadd.f32 %v2507, %v2610
    %v2617 = vadd.f32 %v2508, %v2610
    %v2618 = vadd.f32 %v2509, %v2610
    %v2619 = vadd.f32 %v2510, %v2610
    %v2620 = vadd.f32 %v2511, %v2610
    %v2621 = vadd.f32 %v2512, %v2610
    %v2622 = vadd.f32 %v2513, %v2610
    %v2623 = vadd.f32 %v2514, %v2610
    %v2624 = vadd.f32 %v2515, %v2610
    %v2625 = vadd.f32 %v2516, %v2610
    %v2626 = vadd.f32 %v2517, %v2610
    %v2627 = vadd.f32 %v2518, %v2610
    %v2628 = vadd.f32 %v2519, %v2610
    %v2629 = vadd.f32 %v2520, %v2610
    %v2630 = vadd.f32 %v2521, %v2610
    %v2631 = vadd.f32 %v2522, %v2610
    %v2632 = vadd.f32 %v2523, %v2610
    %v2633 = vadd.f32 %v2524, %v2610
    %v2634 = vadd.f32 %v2525, %v2610
    %v2635 = vadd.f32 %v2526, %v2610
    %v2636 = vadd.f32 %v2527, %v2610
    %v2637 = vadd.f32 %v2528, %v2610
    %v2638 = vadd.f32 %v2529, %v2610
    %v2639 = vadd.f32 %v2530, %v2610
    %v2640 = vadd.f32 %v2531, %v2610
    %v2641 = vadd.f32 %v2532, %v2610
    %v2642 = vadd.f32 %v2533, %v2610
    %v2643 = vadd.f32 %v2534, %v2610
    %v2644 = vadd.f32 %v2535, %v2610
    %v2645 = vadd.f32 %v2536, %v2610
    %v2646 = vadd.f32 %v2537, %v2610
    %v2647 = vadd.f32 %v2538, %v2610
    %v2648 = vadd.f32 %v2539, %v2610
    %v2649 = vadd.f32 %v2540, %v2610
    %v2650 = vadd.f32 %v2541, %v2610
    %v2651 = vadd.f32 %v2542, %v2610
    %v2652 = vadd.f32 %v2543, %v2610
    %v2653 = vadd.f32 %v2544, %v2610
    %v2654 = vadd.f32 %v2545, %v2610
    %v2655 = vadd.f32 %v2546, %v2610
    %v2656 = vadd.f32 %v2547, %v2610
    %v2657 = vadd.f32 %v2548, %v2610
    %v2658 = vadd.f32 %v2549, %v2610
    %v2659 = vadd.f32 %v2550, %v2610
    %v2660 = vadd.f32 %v2551, %v2610
    %v2661 = vadd.f32 %v2552, %v2610
    %v2662 = vadd.f32 %v2553, %v2610
    %v2663 = vadd.f32 %v2554, %v2610
    %v2664 = vadd.f32 %v2555, %v2610
    %v2665 = vadd.f32 %v2556, %v2610
    %v2666 = vadd.f32 %v2557, %v2610
    %v2667 = vadd.f32 %v2558, %v2610
    %v2668 = vadd.f32 %v2559, %v2610
    %v2669 = vadd.f32 %v2560, %v2610
    %v2670 = vadd.f32 %v2561, %v2610
    %v2671 = vadd.f32 %v2562, %v2610
    %v2672 = vadd.f32 %v2563, %v2610
    %v2673 = vadd.f32 %v2564, %v2610
    %v2674 = vadd.f32 %v2565, %v2610
    %v2675 = vadd.f32 %v2566, %v2610
    %v2676 = vadd.f32 %v2567, %v2610
    %v2677 = vadd.f32 %v2568, %v2610
    %v2678 = vadd.f32 %v2569, %v2610
    %v2679 = vadd.f32 %v2570, %v2610
    %v2680 = vadd.f32 %v2571, %v2610
    %v2681 = vadd.f32 %v2572, %v2610
    %v2682 = vadd.f32 %v2573, %v2610
    %v2683 = vadd.f32 %v2574, %v2610
    %v2684 = vadd.f32 %v2575, %v2610
    %v2685 = vadd.f32 %v2576, %v2610
    %v2686 = vadd.f32 %v2577, %v2610
    %v2687 = vadd.f32 %v2578, %v2610
    %v2688 = vadd.f32 %v2579, %v2610
    %v2689 = vadd.f32 %v2580, %v2610
    %v2690 = vadd.f32 %v2581, %v2610
    %v2691 = vadd.f32 %v2582, %v2610
    %v2692 = vadd.f32 %v2583, %v2610
    %v2693 = vadd.f32 %v2584, %v2610
    %v2694 = vadd.f32 %v2585, %v2610
    %v2695 = vadd.f32 %v2586, %v2610
    %v2696 = vadd.f32 %v2587, %v2610
    %v2697 = vadd.f32 %v2588, %v2610
    %v2698 = vadd.f32 %v2589, %v2610
    %v2699 = vadd.f32 %v2590, %v2610
    %v2700 = vadd.f32 %v2591, %v2610
    %v2701 = vadd.f32 %v2592, %v2610
    %v2702 = vadd.f32 %v2593, %v2610
    %v2703 = vadd.f32 %v2594, %v2610
    %v2704 = vadd.f32 %v2595, %v2610
    %v2705 = vadd.f32 %v2596, %v2610
    %v2706 = vadd.f32 %v2597, %v2610
    %v2707 = vadd.f32 %v2598, %v2610
    %v2708 = vadd.f32 %v2599, %v2610
    %v2709 = vadd.f32 %v2600, %v2610
    %v2710 = vadd.f32 %v2601, %v2610
    %v2711 = vadd.f32 %v2602, %v2610
    %v2712 = vadd.f32 %v2603, %v2610
    %v2713 = vadd.f32 %v2604, %v2610
    %v2714 = vmax.f32 %v2612, 0.0
    %v2715 = vmax.f32 %v2613, 0.0
    %v2716 = vmax.f32 %v2614, 0.0
    %v2717 = vmax.f32 %v2615, 0.0
    %v2718 = vmax.f32 %v2616, 0.0
    %v2719 = vmax.f32 %v2617, 0.0
    %v2720 = vmax.f32 %v2618, 0.0
    %v2721 = vmax.f32 %v2619, 0.0
    %v2722 = vmax.f32 %v2620, 0.0
    %v2723 = vmax.f32 %v2621, 0.0
    %v2724 = vmax.f32 %v2622, 0.0
    %v2725 = vmax.f32 %v2623, 0.0
    %v2726 = vmax.f32 %v2624, 0.0
    %v2727 = vmax.f32 %v2625, 0.0
    %v2728 = vmax.f32 %v2626, 0.0
    %v2729 = vmax.f32 %v2627, 0.0
    %v2730 = vmax.f32 %v2628, 0.0
    %v2731 = vmax.f32 %v2629, 0.0
    %v2732 = vmax.f32 %v2630, 0.0
    %v2733 = vmax.f32 %v2631, 0.0
    %v2734 = vmax.f32 %v2632, 0.0
    %v2735 = vmax.f32 %v2633, 0.0
    %v2736 = vmax.f32 %v2634, 0.0
    %v2737 = vmax.f32 %v2635, 0.0
    %v2738 = vmax.f32 %v2636, 0.0
    %v2739 = vmax.f32 %v2637, 0.0
    %v2740 = vmax.f32 %v2638, 0.0
    %v2741 = vmax.f32 %v2639, 0.0
    %v2742 = vmax.f32 %v2640, 0.0
    %v2743 = vmax.f32 %v2641, 0.0
    %v2744 = vmax.f32 %v2642, 0.0
    %v2745 = vmax.f32 %v2643, 0.0
    %v2746 = vmax.f32 %v2644, 0.0
    %v2747 = vmax.f32 %v2645, 0.0
    %v2748 = vmax.f32 %v2646, 0.0
    %v2749 = vmax.f32 %v2647, 0.0
    %v2750 = vmax.f32 %v2648, 0.0
    %v2751 = vmax.f32 %v2649, 0.0
    %v2752 = vmax.f32 %v2650, 0.0
    %v2753 = vmax.f32 %v2651, 0.0
    %v2754 = vmax.f32 %v2652, 0.0
    %v2755 = vmax.f32 %v2653, 0.0
    %v2756 = vmax.f32 %v2654, 0.0
    %v2757 = vmax.f32 %v2655, 0.0
    %v2758 = vmax.f32 %v2656, 0.0
    %v2759 = vmax.f32 %v2657, 0.0
    %v2760 = vmax.f32 %v2658, 0.0
    %v2761 = vmax.f32 %v2659, 0.0
    %v2762 = vmax.f32 %v2660, 0.0
    %v2763 = vmax.f32 %v2661, 0.0
    %v2764 = vmax.f32 %v2662, 0.0
    %v2765 = vmax.f32 %v2663, 0.0
    %v2766 = vmax.f32 %v2664, 0.0
    %v2767 = vmax.f32 %v2665, 0.0
    %v2768 = vmax.f32 %v2666, 0.0
    %v2769 = vmax.f32 %v2667, 0.0
    %v2770 = vmax.f32 %v2668, 0.0
    %v2771 = vmax.f32 %v2669, 0.0
    %v2772 = vmax.f32 %v2670, 0.0
    %v2773 = vmax.f32 %v2671, 0.0
    %v2774 = vmax.f32 %v2672, 0.0
    %v2775 = vmax.f32 %v2673, 0.0
    %v2776 = vmax.f32 %v2674, 0.0
    %v2777 = vmax.f32 %v2675, 0.0
    %v2778 = vmax.f32 %v2676, 0.0
    %v2779 = vmax.f32 %v2677, 0.0
    %v2780 = vmax.f32 %v2678, 0.0
    %v2781 = vmax.f32 %v2679, 0.0
    %v2782 = vmax.f32 %v2680, 0.0
    %v2783 = vmax.f32 %v2681, 0.0
    %v2784 = vmax.f32 %v2682, 0.0
    %v2785 = vmax.f32 %v2683, 0.0
    %v2786 = vmax.f32 %v2684, 0.0
    %v2787 = vmax.f32 %v2685, 0.0
    %v2788 = vmax.f32 %v2686, 0.0
    %v2789 = vmax.f32 %v2687, 0.0
    %v2790 = vmax.f32 %v2688, 0.0
    %v2791 = vmax.f32 %v2689, 0.0
    %v2792 = vmax.f32 %v2690, 0.0
    %v2793 = vmax.f32 %v2691, 0.0
    %v2794 = vmax.f32 %v2692, 0.0
    %v2795 = vmax.f32 %v2693, 0.0
    %v2796 = vmax.f32 %v2694, 0.0
    %v2797 = vmax.f32 %v2695, 0.0
    %v2798 = vmax.f32 %v2696, 0.0
    %v2799 = vmax.f32 %v2697, 0.0
    %v2800 = vmax.f32 %v2698, 0.0
    %v2801 = vmax.f32 %v2699, 0.0
    %v2802 = vmax.f32 %v2700, 0.0
    %v2803 = vmax.f32 %v2701, 0.0
    %v2804 = vmax.f32 %v2702, 0.0
    %v2805 = vmax.f32 %v2703, 0.0
    %v2806 = vmax.f32 %v2704, 0.0
    %v2807 = vmax.f32 %v2705, 0.0
    %v2808 = vmax.f32 %v2706, 0.0
    %v2809 = vmax.f32 %v2707, 0.0
    %v2810 = vmax.f32 %v2708, 0.0
    %v2811 = vmax.f32 %v2709, 0.0
    %v2812 = vmax.f32 %v2710, 0.0
    %v2813 = vmax.f32 %v2711, 0.0
    %v2814 = vmax.f32 %v2712, 0.0
    %v2815 = vmax.f32 %v2713, 0.0
    %vm2816 = vcmask 523264
    %2817 = vst.msk [vmem:[#allocation2] sm:$0xff] %vm2816, 0
    %2818 = vst.msk [vmem:[#allocation2 + $0x1a0] sm:$0xff] %vm2816, 0
    %v2819 = vpack.c.bf16 %v2715, %v2714
    %v2820 = vpack.c.bf16 %v2717, %v2716
    %v2821 = vpack.c.bf16 %v2719, %v2718
    %v2822 = vpack.c.bf16 %v2721, %v2720
    %v2823 = vpack.c.bf16 %v2723, %v2722
    %v2824 = vpack.c.bf16 %v2725, %v2724
    %v2825 = vpack.c.bf16 %v2727, %v2726
    %v2826 = vpack.c.bf16 %v2729, %v2728
    %v2827 = vpack.c.bf16 %v2731, %v2730
    %v2828 = vpack.c.bf16 %v2733, %v2732
    %v2829 = vpack.c.bf16 %v2735, %v2734
    %v2830 = vpack.c.bf16 %v2737, %v2736
    %v2831 = vpack.c.bf16 %v2739, %v2738
    %v2832 = vpack.c.bf16 %v2741, %v2740
    %v2833 = vpack.c.bf16 %v2743, %v2742
    %v2834 = vpack.c.bf16 %v2745, %v2744
    %v2835 = vpack.c.bf16 %v2747, %v2746
    %v2836 = vpack.c.bf16 %v2749, %v2748
    %v2837 = vpack.c.bf16 %v2751, %v2750
    %v2838 = vpack.c.bf16 %v2753, %v2752
    %v2839 = vpack.c.bf16 %v2755, %v2754
    %v2840 = vpack.c.bf16 %v2757, %v2756
    %v2841 = vpack.c.bf16 %v2759, %v2758
    %v2842 = vpack.c.bf16 %v2761, %v2760
    %v2843 = vpack.c.bf16 %v2763, %v2762
    %v2844 = vpack.c.bf16 %v2765, %v2764
    %v2845 = vpack.c.bf16 %v2767, %v2766
    %v2846 = vpack.c.bf16 %v2769, %v2768
    %v2847 = vpack.c.bf16 %v2771, %v2770
    %v2848 = vpack.c.bf16 %v2773, %v2772
    %v2849 = vpack.c.bf16 %v2775, %v2774
    %v2850 = vpack.c.bf16 %v2777, %v2776
    %v2851 = vpack.c.bf16 %v2779, %v2778
    %v2852 = vpack.c.bf16 %v2781, %v2780
    %v2853 = vpack.c.bf16 %v2783, %v2782
    %v2854 = vpack.c.bf16 %v2785, %v2784
    %v2855 = vpack.c.bf16 %v2787, %v2786
    %v2856 = vpack.c.bf16 %v2789, %v2788
    %v2857 = vpack.c.bf16 %v2791, %v2790
    %v2858 = vpack.c.bf16 %v2793, %v2792
    %v2859 = vpack.c.bf16 %v2795, %v2794
    %v2860 = vpack.c.bf16 %v2797, %v2796
    %v2861 = vpack.c.bf16 %v2799, %v2798
    %v2862 = vpack.c.bf16 %v2801, %v2800
    %v2863 = vpack.c.bf16 %v2803, %v2802
    %v2864 = vpack.c.bf16 %v2805, %v2804
    %v2865 = vpack.c.bf16 %v2807, %v2806
    %v2866 = vpack.c.bf16 %v2809, %v2808
    %v2867 = vpack.c.bf16 %v2811, %v2810
    %v2868 = vpack.c.bf16 %v2813, %v2812
    %v2869 = vpack.c.bf16 %v2815, %v2814
    %2870 = vst.msk [vmem:[#allocation2 + $0x8] sm:$0xff] %vm2816, %v2819
    %2871 = vst.msk [vmem:[#allocation2 + $0x10] sm:$0xff] %vm2816, %v2820
    %2872 = vst.msk [vmem:[#allocation2 + $0x18] sm:$0xff] %vm2816, %v2821
    %2873 = vst.msk [vmem:[#allocation2 + $0x20] sm:$0xff] %vm2816, %v2822
    %2874 = vst.msk [vmem:[#allocation2 + $0x28] sm:$0xff] %vm2816, %v2823
    %2875 = vst.msk [vmem:[#allocation2 + $0x30] sm:$0xff] %vm2816, %v2824
    %2876 = vst.msk [vmem:[#allocation2 + $0x38] sm:$0xff] %vm2816, %v2825
    %2877 = vst.msk [vmem:[#allocation2 + $0x40] sm:$0xff] %vm2816, %v2826
    %2878 = vst.msk [vmem:[#allocation2 + $0x48] sm:$0xff] %vm2816, %v2827
    %2879 = vst.msk [vmem:[#allocation2 + $0x50] sm:$0xff] %vm2816, %v2828
    %2880 = vst.msk [vmem:[#allocation2 + $0x58] sm:$0xff] %vm2816, %v2829
    %2881 = vst.msk [vmem:[#allocation2 + $0x60] sm:$0xff] %vm2816, %v2830
    %2882 = vst.msk [vmem:[#allocation2 + $0x68] sm:$0xff] %vm2816, %v2831
    %2883 = vst.msk [vmem:[#allocation2 + $0x70] sm:$0xff] %vm2816, %v2832
    %2884 = vst.msk [vmem:[#allocation2 + $0x78] sm:$0xff] %vm2816, %v2833
    %2885 = vst.msk [vmem:[#allocation2 + $0x80] sm:$0xff] %vm2816, %v2834
    %2886 = vst.msk [vmem:[#allocation2 + $0x88] sm:$0xff] %vm2816, %v2835
    %2887 = vst.msk [vmem:[#allocation2 + $0x90] sm:$0xff] %vm2816, %v2836
    %2888 = vst.msk [vmem:[#allocation2 + $0x98] sm:$0xff] %vm2816, %v2837
    %2889 = vst.msk [vmem:[#allocation2 + $0xa0] sm:$0xff] %vm2816, %v2838
    %2890 = vst.msk [vmem:[#allocation2 + $0xa8] sm:$0xff] %vm2816, %v2839
    %2891 = vst.msk [vmem:[#allocation2 + $0xb0] sm:$0xff] %vm2816, %v2840
    %2892 = vst.msk [vmem:[#allocation2 + $0xb8] sm:$0xff] %vm2816, %v2841
    %2893 = vst.msk [vmem:[#allocation2 + $0xc0] sm:$0xff] %vm2816, %v2842
    %2894 = vst.msk [vmem:[#allocation2 + $0xc8] sm:$0xff] %vm2816, %v2843
    %2895 = vst.msk [vmem:[#allocation2 + $0xd0] sm:$0xff] %vm2816, %v2844
    %2896 = vst.msk [vmem:[#allocation2 + $0xd8] sm:$0xff] %vm2816, %v2845
    %2897 = vst.msk [vmem:[#allocation2 + $0xe0] sm:$0xff] %vm2816, %v2846
    %2898 = vst.msk [vmem:[#allocation2 + $0xe8] sm:$0xff] %vm2816, %v2847
    %2899 = vst.msk [vmem:[#allocation2 + $0xf0] sm:$0xff] %vm2816, %v2848
    %2900 = vst.msk [vmem:[#allocation2 + $0xf8] sm:$0xff] %vm2816, %v2849
    %2901 = vst.msk [vmem:[#allocation2 + $0x100] sm:$0xff] %vm2816, %v2850
    %2902 = vst.msk [vmem:[#allocation2 + $0x108] sm:$0xff] %vm2816, %v2851
    %2903 = vst.msk [vmem:[#allocation2 + $0x110] sm:$0xff] %vm2816, %v2852
    %2904 = vst.msk [vmem:[#allocation2 + $0x118] sm:$0xff] %vm2816, %v2853
    %2905 = vst.msk [vmem:[#allocation2 + $0x120] sm:$0xff] %vm2816, %v2854
    %2906 = vst.msk [vmem:[#allocation2 + $0x128] sm:$0xff] %vm2816, %v2855
    %2907 = vst.msk [vmem:[#allocation2 + $0x130] sm:$0xff] %vm2816, %v2856
    %2908 = vst.msk [vmem:[#allocation2 + $0x138] sm:$0xff] %vm2816, %v2857
    %2909 = vst.msk [vmem:[#allocation2 + $0x140] sm:$0xff] %vm2816, %v2858
    %2910 = vst.msk [vmem:[#allocation2 + $0x148] sm:$0xff] %vm2816, %v2859
    %2911 = vst.msk [vmem:[#allocation2 + $0x150] sm:$0xff] %vm2816, %v2860
    %2912 = vst.msk [vmem:[#allocation2 + $0x158] sm:$0xff] %vm2816, %v2861
    %2913 = vst.msk [vmem:[#allocation2 + $0x160] sm:$0xff] %vm2816, %v2862
    %2914 = vst.msk [vmem:[#allocation2 + $0x168] sm:$0xff] %vm2816, %v2863
    %2915 = vst.msk [vmem:[#allocation2 + $0x170] sm:$0xff] %vm2816, %v2864
    %2916 = vst.msk [vmem:[#allocation2 + $0x178] sm:$0xff] %vm2816, %v2865
    %2917 = vst.msk [vmem:[#allocation2 + $0x180] sm:$0xff] %vm2816, %v2866
    %2918 = vst.msk [vmem:[#allocation2 + $0x188] sm:$0xff] %vm2816, %v2867
    %2919 = vst.msk [vmem:[#allocation2 + $0x190] sm:$0xff] %vm2816, %v2868
    %2920 = vst.msk [vmem:[#allocation2 + $0x198] sm:$0xff] %vm2816, %v2869
    %v2921 = vld [vmem:[#allocation2] sm:$0xff]
    %v2922 = vld [vmem:[#allocation2 + $0x8] sm:$0xff]
    %v2923 = vld [vmem:[#allocation2 + $0x10] sm:$0xff]
    %v2924 = vld [vmem:[#allocation2 + $0x18] sm:$0xff]
    %v2925 = vld [vmem:[#allocation2 + $0x20] sm:$0xff]
    %v2926 = vld [vmem:[#allocation2 + $0x28] sm:$0xff]
    %v2927 = vld [vmem:[#allocation2 + $0x30] sm:$0xff]
    %v2928 = vld [vmem:[#allocation2 + $0x38] sm:$0xff]
    %v2929 = vld [vmem:[#allocation2 + $0x40] sm:$0xff]
    %v2930 = vld [vmem:[#allocation2 + $0x48] sm:$0xff]
    %v2931 = vld [vmem:[#allocation2 + $0x50] sm:$0xff]
    %v2932 = vld [vmem:[#allocation2 + $0x58] sm:$0xff]
    %v2933 = vld [vmem:[#allocation2 + $0x60] sm:$0xff]
    %v2934 = vld [vmem:[#allocation2 + $0x68] sm:$0xff]
    %v2935 = vld [vmem:[#allocation2 + $0x70] sm:$0xff]
    %v2936 = vld [vmem:[#allocation2 + $0x78] sm:$0xff]
    %v2937 = vld [vmem:[#allocation2 + $0x80] sm:$0xff]
    %v2938 = vld [vmem:[#allocation2 + $0x88] sm:$0xff]
    %v2939 = vld [vmem:[#allocation2 + $0x90] sm:$0xff]
    %v2940 = vld [vmem:[#allocation2 + $0x98] sm:$0xff]
    %v2941 = vld [vmem:[#allocation2 + $0xa0] sm:$0xff]
    %v2942 = vld [vmem:[#allocation2 + $0xa8] sm:$0xff]
    %v2943 = vld [vmem:[#allocation2 + $0xb0] sm:$0xff]
    %v2944 = vld [vmem:[#allocation2 + $0xb8] sm:$0xff]
    %v2945 = vld [vmem:[#allocation2 + $0xc0] sm:$0xff]
    %v2946 = vld [vmem:[#allocation2 + $0xc8] sm:$0xff]
    %v2947 = vld [vmem:[#allocation2 + $0xd0] sm:$0xff]
    %v2948 = vld [vmem:[#allocation2 + $0xd8] sm:$0xff]
    %v2949 = vld [vmem:[#allocation2 + $0xe0] sm:$0xff]
    %v2950 = vld [vmem:[#allocation2 + $0xe8] sm:$0xff]
    %v2951 = vld [vmem:[#allocation2 + $0xf0] sm:$0xff]
    %v2952 = vld [vmem:[#allocation2 + $0xf8] sm:$0xff]
    %v2953 = vld [vmem:[#allocation2 + $0x100] sm:$0xff]
    %v2954 = vld [vmem:[#allocation2 + $0x108] sm:$0xff]
    %v2955 = vld [vmem:[#allocation2 + $0x110] sm:$0xff]
    %v2956 = vld [vmem:[#allocation2 + $0x118] sm:$0xff]
    %v2957 = vld [vmem:[#allocation2 + $0x120] sm:$0xff]
    %v2958 = vld [vmem:[#allocation2 + $0x128] sm:$0xff]
    %v2959 = vld [vmem:[#allocation2 + $0x130] sm:$0xff]
    %v2960 = vld [vmem:[#allocation2 + $0x138] sm:$0xff]
    %v2961 = vld [vmem:[#allocation2 + $0x140] sm:$0xff]
    %v2962 = vld [vmem:[#allocation2 + $0x148] sm:$0xff]
    %v2963 = vld [vmem:[#allocation2 + $0x150] sm:$0xff]
    %v2964 = vld [vmem:[#allocation2 + $0x158] sm:$0xff]
    %v2965 = vld [vmem:[#allocation2 + $0x160] sm:$0xff]
    %v2966 = vld [vmem:[#allocation2 + $0x168] sm:$0xff]
    %v2967 = vld [vmem:[#allocation2 + $0x170] sm:$0xff]
    %v2968 = vld [vmem:[#allocation2 + $0x178] sm:$0xff]
    %v2969 = vld [vmem:[#allocation2 + $0x180] sm:$0xff]
    %v2970 = vld [vmem:[#allocation2 + $0x188] sm:$0xff]
    %v2971 = vld [vmem:[#allocation2 + $0x190] sm:$0xff]
    %v2972 = vld [vmem:[#allocation8] sm:$0xf]
    %v2973 = vld [vmem:[#allocation8 + $0x4] sm:$0xf]
    %v2974 = vld [vmem:[#allocation8 + $0x8] sm:$0xf]
    %v2975 = vld [vmem:[#allocation8 + $0xc] sm:$0xf]
    %v2976 = vld [vmem:[#allocation8 + $0x10] sm:$0xf]
    %v2977 = vld [vmem:[#allocation8 + $0x14] sm:$0xf]
    %v2978 = vld [vmem:[#allocation8 + $0x18] sm:$0xf]
    %v2979 = vld [vmem:[#allocation8 + $0x1c] sm:$0xf]
    %v2980 = vld [vmem:[#allocation2 + $0x198] sm:$0xff]
    %s2981 = scalar_lea.vmem [#allocation8], 32
    %v2982 = vld [vmem:[%s2981] sm:$0xf]
    %v2983 = vld [vmem:[%s2981 + $0x4] sm:$0xf]
    %v2984 = vld [vmem:[%s2981 + $0x8] sm:$0xf]
    %v2985 = vld [vmem:[%s2981 + $0xc] sm:$0xf]
    %v2986 = vld [vmem:[%s2981 + $0x10] sm:$0xf]
    %v2987 = vld [vmem:[%s2981 + $0x14] sm:$0xf]
    %v2988 = vld [vmem:[%s2981 + $0x18] sm:$0xf]
    %v2989 = vld [vmem:[%s2981 + $0x1c] sm:$0xf]
    %v2998 = vunpack.c.l.b16 %v2982
    %v2999 = vunpack.c.l.b16 %v2983
    %v3000 = vunpack.c.l.b16 %v2984
    %v3001 = vunpack.c.l.b16 %v2985
    %v3002 = vunpack.c.l.b16 %v2986
    %v3003 = vunpack.c.l.b16 %v2987
    %v3004 = vunpack.c.l.b16 %v2988
    %v3005 = vunpack.c.l.b16 %v2989
    %v3006 = vpack.c.b16 %v2999, %v2998
    %v3007 = vpack.c.b16 %v3001, %v3000
    %v3008 = vpack.c.b16 %v3003, %v3002
    %v3009 = vpack.c.b16 %v3005, %v3004
    %v3015 = vsel %vm2816, %v2922, 0
    %v3018 = vsel %vm2816, %v2923, 0
    %v3021 = vsel %vm2816, %v2924, 0
    %v3024 = vsel %vm2816, %v2925, 0
    %v3027 = vsel %vm2816, %v2926, 0
    %v3030 = vsel %vm2816, %v2927, 0
    %v3033 = vsel %vm2816, %v2928, 0
    %v3036 = vsel %vm2816, %v2929, 0
    %v3039 = vsel %vm2816, %v2930, 0
    %v3042 = vsel %vm2816, %v2931, 0
    %v3045 = vsel %vm2816, %v2932, 0
    %v3048 = vsel %vm2816, %v2933, 0
    %v3051 = vsel %vm2816, %v2934, 0
    %v3054 = vsel %vm2816, %v2935, 0
    %v3057 = vsel %vm2816, %v2936, 0
    %v3060 = vsel %vm2816, %v2937, 0
    %v3063 = vsel %vm2816, %v2938, 0
    %v3066 = vsel %vm2816, %v2939, 0
    %v3069 = vsel %vm2816, %v2940, 0
    %v3072 = vsel %vm2816, %v2941, 0
    %v3075 = vsel %vm2816, %v2942, 0
    %v3078 = vsel %vm2816, %v2943, 0
    %v3081 = vsel %vm2816, %v2944, 0
    %v3084 = vsel %vm2816, %v2945, 0
    %v3087 = vsel %vm2816, %v2946, 0
    %v3090 = vsel %vm2816, %v2947, 0
    %v3093 = vsel %vm2816, %v2948, 0
    %v3096 = vsel %vm2816, %v2949, 0
    %v3099 = vsel %vm2816, %v2950, 0
    %v3102 = vsel %vm2816, %v2951, 0
    %v3105 = vsel %vm2816, %v2952, 0
    %v3108 = vsel %vm2816, %v2953, 0
    %v3111 = vsel %vm2816, %v2954, 0
    %v3114 = vsel %vm2816, %v2955, 0
    %v3117 = vsel %vm2816, %v2956, 0
    %v3120 = vsel %vm2816, %v2957, 0
    %v3123 = vsel %vm2816, %v2958, 0
    %v3126 = vsel %vm2816, %v2959, 0
    %v3129 = vsel %vm2816, %v2960, 0
    %v3132 = vsel %vm2816, %v2961, 0
    %v3135 = vsel %vm2816, %v2962, 0
    %v3138 = vsel %vm2816, %v2963, 0
    %v3141 = vsel %vm2816, %v2964, 0
    %v3144 = vsel %vm2816, %v2965, 0
    %v3147 = vsel %vm2816, %v2966, 0
    %v3150 = vsel %vm2816, %v2967, 0
    %v3153 = vsel %vm2816, %v2968, 0
    %v3156 = vsel %vm2816, %v2969, 0
    %v3159 = vsel %vm2816, %v2970, 0
    %v3162 = vsel %vm2816, %v2971, 0
    %v3165 = vsel %vm2816, %v2980, 0
    %3167 = vmatprep.subr.bf16.mxu0 0
    %3168 = vmatpush1.bf16.msra.mxu0 %v3006
    %3169 = vmatprep.subr.bf16.mxu0 0
    %3170 = vmatpush1.bf16.msra.mxu0 %v3007
    %3171 = vmatprep.subr.bf16.mxu0 0
    %3172 = vmatpush1.bf16.msra.mxu0 %v3008
    %3173 = vmatprep.subr.bf16.mxu0 0
    %3174 = vmatpush1.bf16.msra.mxu0 %v3009
    %3175 = vmatprep.subr.bf16.mxu0 0
    %3176 = vmatpush1.bf16.msra.mxu0 0
    %3177 = vmatprep.subr.bf16.mxu0 0
    %3178 = vmatpush1.bf16.msra.mxu0 0
    %3179 = vmatprep.subr.bf16.mxu0 0
    %3180 = vmatpush1.bf16.msra.mxu0 0
    %3181 = vmatprep.subr.bf16.mxu0 0
    %3182 = vmatpush1.bf16.msra.mxu0 0
    %3183 = vmatprep.subr.bf16.mxu0 0
    %3184 = vmatpush1.bf16.msra.mxu0 0
    %3185 = vmatprep.subr.bf16.mxu0 0
    %3186 = vmatpush1.bf16.msra.mxu0 0
    %3187 = vmatprep.subr.bf16.mxu0 0
    %3188 = vmatpush1.bf16.msra.mxu0 0
    %3189 = vmatprep.subr.bf16.mxu0 0
    %3190 = vmatpush1.bf16.msra.mxu0 0
    %3191 = vmatprep.subr.bf16.mxu0 0
    %3192 = vmatpush1.bf16.msra.mxu0 0
    %3193 = vmatprep.subr.bf16.mxu0 0
    %3194 = vmatpush1.bf16.msra.mxu0 0
    %3195 = vmatprep.subr.bf16.mxu0 0
    %3196 = vmatpush1.bf16.msra.mxu0 0
    %3197 = vmatprep.subr.bf16.mxu0 0
    %3198 = vmatpush1.bf16.msra.mxu0 0
    %3199 = vmatprep.mubr.bf16.mxu0 0
    %3200 = vmatmul.mubr.bf16.gmra.mrb[0].mxu0 %v3015
    %v3201 = vpop.f32.mrb[0].mxu0
    %v3202 = vadd.f32 0.0, %v3201
    %v3203 = vpop.f32.mrb[0].mxu0
    %v3204 = vpop.f32.mrb[0].mxu0
    %v3205 = vadd.f32 0.0, %v3204
    %v3206 = vpop.f32.mrb[0].mxu0
    %3207 = vmatprep.mubr.bf16.mxu0 0
    %3208 = vmatmul.mubr.bf16.gmra.mrb[0].mxu0 %v3018
    %v3209 = vpop.f32.mrb[0].mxu0
    %v3210 = vadd.f32 0.0, %v3209
    %v3211 = vpop.f32.mrb[0].mxu0
    %v3212 = vpop.f32.mrb[0].mxu0
    %v3213 = vadd.f32 0.0, %v3212
    %v3214 = vpop.f32.mrb[0].mxu0
    %3215 = vmatprep.mubr.bf16.mxu0 0
    %3216 = vmatmul.mubr.bf16.gmra.mrb[0].mxu0 %v3021
    %v3217 = vpop.f32.mrb[0].mxu0
    %v3218 = vadd.f32 0.0, %v3217
    %v3219 = vpop.f32.mrb[0].mxu0
    %v3220 = vpop.f32.mrb[0].mxu0
    %v3221 = vadd.f32 0.0, %v3220
    %v3222 = vpop.f32.mrb[0].mxu0
    %3223 = vmatprep.mubr.bf16.mxu0 0
    %3224 = vmatmul.mubr.bf16.gmra.mrb[0].mxu0 %v3024
    %v3225 = vpop.f32.mrb[0].mxu0
    %v3226 = vadd.f32 0.0, %v3225
    %v3227 = vpop.f32.mrb[0].mxu0
    %v3228 = vpop.f32.mrb[0].mxu0
    %v3229 = vadd.f32 0.0, %v3228
    %v3230 = vpop.f32.mrb[0].mxu0
    %3231 = vmatprep.mubr.bf16.mxu0 0
    %3232 = vmatmul.mubr.bf16.gmra.mrb[0].mxu0 %v3027
    %v3233 = vpop.f32.mrb[0].mxu0
    %v3234 = vadd.f32 0.0, %v3233
    %v3235 = vpop.f32.mrb[0].mxu0
    %v3236 = vpop.f32.mrb[0].mxu0
    %v3237 = vadd.f32 0.0, %v3236
    %v3238 = vpop.f32.mrb[0].mxu0
    %3239 = vmatprep.mubr.bf16.mxu0 0
    %3240 = vmatmul.mubr.bf16.gmra.mrb[0].mxu0 %v3030
    %v3241 = vpop.f32.mrb[0].mxu0
    %v3242 = vadd.f32 0.0, %v3241
    %v3243 = vpop.f32.mrb[0].mxu0
    %v3244 = vpop.f32.mrb[0].mxu0
    %v3245 = vadd.f32 0.0, %v3244
    %v3246 = vpop.f32.mrb[0].mxu0
    %3247 = vmatprep.mubr.bf16.mxu0 0
    %3248 = vmatmul.mubr.bf16.gmra.mrb[0].mxu0 %v3033
    %v3249 = vpop.f32.mrb[0].mxu0
    %v3250 = vadd.f32 0.0, %v3249
    %v3251 = vpop.f32.mrb[0].mxu0
    %v3252 = vpop.f32.mrb[0].mxu0
    %v3253 = vadd.f32 0.0, %v3252
    %v3254 = vpop.f32.mrb[0].mxu0
    %3255 = vmatprep.mubr.bf16.mxu0 0
    %3256 = vmatmul.mubr.bf16.gmra.mrb[0].mxu0 %v3036
    %v3257 = vpop.f32.mrb[0].mxu0
    %v3258 = vadd.f32 0.0, %v3257
    %v3259 = vpop.f32.mrb[0].mxu0
    %v3260 = vpop.f32.mrb[0].mxu0
    %v3261 = vadd.f32 0.0, %v3260
    %v3262 = vpop.f32.mrb[0].mxu0
    %3263 = vmatprep.mubr.bf16.mxu0 0
    %3264 = vmatmul.mubr.bf16.gmra.mrb[0].mxu0 %v3039
    %v3265 = vpop.f32.mrb[0].mxu0
    %v3266 = vadd.f32 0.0, %v3265
    %v3267 = vpop.f32.mrb[0].mxu0
    %v3268 = vpop.f32.mrb[0].mxu0
    %v3269 = vadd.f32 0.0, %v3268
    %v3270 = vpop.f32.mrb[0].mxu0
    %3271 = vmatprep.mubr.bf16.mxu0 0
    %3272 = vmatmul.mubr.bf16.gmra.mrb[0].mxu0 %v3042
    %v3273 = vpop.f32.mrb[0].mxu0
    %v3274 = vadd.f32 0.0, %v3273
    %v3275 = vpop.f32.mrb[0].mxu0
    %v3276 = vpop.f32.mrb[0].mxu0
    %v3277 = vadd.f32 0.0, %v3276
    %v3278 = vpop.f32.mrb[0].mxu0
    %3279 = vmatprep.mubr.bf16.mxu0 0
    %3280 = vmatmul.mubr.bf16.gmra.mrb[0].mxu0 %v3045
    %v3281 = vpop.f32.mrb[0].mxu0
    %v3282 = vadd.f32 0.0, %v3281
    %v3283 = vpop.f32.mrb[0].mxu0
    %v3284 = vpop.f32.mrb[0].mxu0
    %v3285 = vadd.f32 0.0, %v3284
    %v3286 = vpop.f32.mrb[0].mxu0
    %3287 = vmatprep.mubr.bf16.mxu0 0
    %3288 = vmatmul.mubr.bf16.gmra.mrb[0].mxu0 %v3048
    %v3289 = vpop.f32.mrb[0].mxu0
    %v3290 = vadd.f32 0.0, %v3289
    %v3291 = vpop.f32.mrb[0].mxu0
    %v3292 = vpop.f32.mrb[0].mxu0
    %v3293 = vadd.f32 0.0, %v3292
    %v3294 = vpop.f32.mrb[0].mxu0
    %3295 = vmatprep.mubr.bf16.mxu0 0
    %3296 = vmatmul.mubr.bf16.gmra.mrb[0].mxu0 %v3051
    %v3297 = vpop.f32.mrb[0].mxu0
    %v3298 = vadd.f32 0.0, %v3297
    %v3299 = vpop.f32.mrb[0].mxu0
    %v3300 = vpop.f32.mrb[0].mxu0
    %v3301 = vadd.f32 0.0, %v3300
    %v3302 = vpop.f32.mrb[0].mxu0
    %3303 = vmatprep.mubr.bf16.mxu0 0
    %3304 = vmatmul.mubr.bf16.gmra.mrb[0].mxu0 %v3054
    %v3305 = vpop.f32.mrb[0].mxu0
    %v3306 = vadd.f32 0.0, %v3305
    %v3307 = vpop.f32.mrb[0].mxu0
    %v3308 = vpop.f32.mrb[0].mxu0
    %v3309 = vadd.f32 0.0, %v3308
    %v3310 = vpop.f32.mrb[0].mxu0
    %3311 = vmatprep.mubr.bf16.mxu0 0
    %3312 = vmatmul.mubr.bf16.gmra.mrb[0].mxu0 %v3057
    %v3313 = vpop.f32.mrb[0].mxu0
    %v3314 = vadd.f32 0.0, %v3313
    %v3315 = vpop.f32.mrb[0].mxu0
    %v3316 = vpop.f32.mrb[0].mxu0
    %v3317 = vadd.f32 0.0, %v3316
    %v3318 = vpop.f32.mrb[0].mxu0
    %3319 = vmatprep.mubr.bf16.mxu0 0
    %3320 = vmatmul.mubr.bf16.gmra.mrb[0].mxu0 %v3060
    %v3321 = vpop.f32.mrb[0].mxu0
    %v3322 = vadd.f32 0.0, %v3321
    %v3323 = vpop.f32.mrb[0].mxu0
    %v3324 = vpop.f32.mrb[0].mxu0
    %v3325 = vadd.f32 0.0, %v3324
    %v3326 = vpop.f32.mrb[0].mxu0
    %3327 = vmatprep.mubr.bf16.mxu0 0
    %3328 = vmatmul.mubr.bf16.gmra.mrb[0].mxu0 %v3063
    %v3329 = vpop.f32.mrb[0].mxu0
    %v3330 = vadd.f32 0.0, %v3329
    %v3331 = vpop.f32.mrb[0].mxu0
    %v3332 = vpop.f32.mrb[0].mxu0
    %v3333 = vadd.f32 0.0, %v3332
    %v3334 = vpop.f32.mrb[0].mxu0
    %3335 = vmatprep.mubr.bf16.mxu0 0
    %3336 = vmatmul.mubr.bf16.gmra.mrb[0].mxu0 %v3066
    %v3337 = vpop.f32.mrb[0].mxu0
    %v3338 = vadd.f32 0.0, %v3337
    %v3339 = vpop.f32.mrb[0].mxu0
    %v3340 = vpop.f32.mrb[0].mxu0
    %v3341 = vadd.f32 0.0, %v3340
    %v3342 = vpop.f32.mrb[0].mxu0
    %3343 = vmatprep.mubr.bf16.mxu0 0
    %3344 = vmatmul.mubr.bf16.gmra.mrb[0].mxu0 %v3069
    %v3345 = vpop.f32.mrb[0].mxu0
    %v3346 = vadd.f32 0.0, %v3345
    %v3347 = vpop.f32.mrb[0].mxu0
    %v3348 = vpop.f32.mrb[0].mxu0
    %v3349 = vadd.f32 0.0, %v3348
    %v3350 = vpop.f32.mrb[0].mxu0
    %3351 = vmatprep.mubr.bf16.mxu0 0
    %3352 = vmatmul.mubr.bf16.gmra.mrb[0].mxu0 %v3072
    %v3353 = vpop.f32.mrb[0].mxu0
    %v3354 = vadd.f32 0.0, %v3353
    %v3355 = vpop.f32.mrb[0].mxu0
    %v3356 = vpop.f32.mrb[0].mxu0
    %v3357 = vadd.f32 0.0, %v3356
    %v3358 = vpop.f32.mrb[0].mxu0
    %3359 = vmatprep.mubr.bf16.mxu0 0
    %3360 = vmatmul.mubr.bf16.gmra.mrb[0].mxu0 %v3075
    %v3361 = vpop.f32.mrb[0].mxu0
    %v3362 = vadd.f32 0.0, %v3361
    %v3363 = vpop.f32.mrb[0].mxu0
    %v3364 = vpop.f32.mrb[0].mxu0
    %v3365 = vadd.f32 0.0, %v3364
    %v3366 = vpop.f32.mrb[0].mxu0
    %3367 = vmatprep.mubr.bf16.mxu0 0
    %3368 = vmatmul.mubr.bf16.gmra.mrb[0].mxu0 %v3078
    %v3369 = vpop.f32.mrb[0].mxu0
    %v3370 = vadd.f32 0.0, %v3369
    %v3371 = vpop.f32.mrb[0].mxu0
    %v3372 = vpop.f32.mrb[0].mxu0
    %v3373 = vadd.f32 0.0, %v3372
    %v3374 = vpop.f32.mrb[0].mxu0
    %3375 = vmatprep.mubr.bf16.mxu0 0
    %3376 = vmatmul.mubr.bf16.gmra.mrb[0].mxu0 %v3081
    %v3377 = vpop.f32.mrb[0].mxu0
    %v3378 = vadd.f32 0.0, %v3377
    %v3379 = vpop.f32.mrb[0].mxu0
    %v3380 = vpop.f32.mrb[0].mxu0
    %v3381 = vadd.f32 0.0, %v3380
    %v3382 = vpop.f32.mrb[0].mxu0
    %3383 = vmatprep.mubr.bf16.mxu0 0
    %3384 = vmatmul.mubr.bf16.gmra.mrb[0].mxu0 %v3084
    %v3385 = vpop.f32.mrb[0].mxu0
    %v3386 = vadd.f32 0.0, %v3385
    %v3387 = vpop.f32.mrb[0].mxu0
    %v3388 = vpop.f32.mrb[0].mxu0
    %v3389 = vadd.f32 0.0, %v3388
    %v3390 = vpop.f32.mrb[0].mxu0
    %3391 = vmatprep.mubr.bf16.mxu0 0
    %3392 = vmatmul.mubr.bf16.gmra.mrb[0].mxu0 %v3087
    %v3393 = vpop.f32.mrb[0].mxu0
    %v3394 = vadd.f32 0.0, %v3393
    %v3395 = vpop.f32.mrb[0].mxu0
    %v3396 = vpop.f32.mrb[0].mxu0
    %v3397 = vadd.f32 0.0, %v3396
    %v3398 = vpop.f32.mrb[0].mxu0
    %3399 = vmatprep.mubr.bf16.mxu0 0
    %3400 = vmatmul.mubr.bf16.gmra.mrb[0].mxu0 %v3090
    %v3401 = vpop.f32.mrb[0].mxu0
    %v3402 = vadd.f32 0.0, %v3401
    %v3403 = vpop.f32.mrb[0].mxu0
    %v3404 = vpop.f32.mrb[0].mxu0
    %v3405 = vadd.f32 0.0, %v3404
    %v3406 = vpop.f32.mrb[0].mxu0
    %3407 = vmatprep.mubr.bf16.mxu0 0
    %3408 = vmatmul.mubr.bf16.gmra.mrb[0].mxu0 %v3093
    %v3409 = vpop.f32.mrb[0].mxu0
    %v3410 = vadd.f32 0.0, %v3409
    %v3411 = vpop.f32.mrb[0].mxu0
    %v3412 = vpop.f32.mrb[0].mxu0
    %v3413 = vadd.f32 0.0, %v3412
    %v3414 = vpop.f32.mrb[0].mxu0
    %3415 = vmatprep.mubr.bf16.mxu0 0
    %3416 = vmatmul.mubr.bf16.gmra.mrb[0].mxu0 %v3096
    %v3417 = vpop.f32.mrb[0].mxu0
    %v3418 = vadd.f32 0.0, %v3417
    %v3419 = vpop.f32.mrb[0].mxu0
    %v3420 = vpop.f32.mrb[0].mxu0
    %v3421 = vadd.f32 0.0, %v3420
    %v3422 = vpop.f32.mrb[0].mxu0
    %3423 = vmatprep.mubr.bf16.mxu0 0
    %3424 = vmatmul.mubr.bf16.gmra.mrb[0].mxu0 %v3099
    %v3425 = vpop.f32.mrb[0].mxu0
    %v3426 = vadd.f32 0.0, %v3425
    %v3427 = vpop.f32.mrb[0].mxu0
    %v3428 = vpop.f32.mrb[0].mxu0
    %v3429 = vadd.f32 0.0, %v3428
    %v3430 = vpop.f32.mrb[0].mxu0
    %3431 = vmatprep.mubr.bf16.mxu0 0
    %3432 = vmatmul.mubr.bf16.gmra.mrb[0].mxu0 %v3102
    %v3433 = vpop.f32.mrb[0].mxu0
    %v3434 = vadd.f32 0.0, %v3433
    %v3435 = vpop.f32.mrb[0].mxu0
    %v3436 = vpop.f32.mrb[0].mxu0
    %v3437 = vadd.f32 0.0, %v3436
    %v3438 = vpop.f32.mrb[0].mxu0
    %3439 = vmatprep.mubr.bf16.mxu0 0
    %3440 = vmatmul.mubr.bf16.gmra.mrb[0].mxu0 %v3105
    %v3441 = vpop.f32.mrb[0].mxu0
    %v3442 = vadd.f32 0.0, %v3441
    %v3443 = vpop.f32.mrb[0].mxu0
    %v3444 = vpop.f32.mrb[0].mxu0
    %v3445 = vadd.f32 0.0, %v3444
    %v3446 = vpop.f32.mrb[0].mxu0
    %3447 = vmatprep.mubr.bf16.mxu0 0
    %3448 = vmatmul.mubr.bf16.gmra.mrb[0].mxu0 %v3108
    %v3449 = vpop.f32.mrb[0].mxu0
    %v3450 = vadd.f32 0.0, %v3449
    %v3451 = vpop.f32.mrb[0].mxu0
    %v3452 = vpop.f32.mrb[0].mxu0
    %v3453 = vadd.f32 0.0, %v3452
    %v3454 = vpop.f32.mrb[0].mxu0
    %3455 = vmatprep.mubr.bf16.mxu0 0
    %3456 = vmatmul.mubr.bf16.gmra.mrb[0].mxu0 %v3111
    %v3457 = vpop.f32.mrb[0].mxu0
    %v3458 = vadd.f32 0.0, %v3457
    %v3459 = vpop.f32.mrb[0].mxu0
    %v3460 = vpop.f32.mrb[0].mxu0
    %v3461 = vadd.f32 0.0, %v3460
    %v3462 = vpop.f32.mrb[0].mxu0
    %3463 = vmatprep.mubr.bf16.mxu0 0
    %3464 = vmatmul.mubr.bf16.gmra.mrb[0].mxu0 %v3114
    %v3465 = vpop.f32.mrb[0].mxu0
    %v3466 = vadd.f32 0.0, %v3465
    %v3467 = vpop.f32.mrb[0].mxu0
    %v3468 = vpop.f32.mrb[0].mxu0
    %v3469 = vadd.f32 0.0, %v3468
    %v3470 = vpop.f32.mrb[0].mxu0
    %3471 = vmatprep.mubr.bf16.mxu0 0
    %3472 = vmatmul.mubr.bf16.gmra.mrb[0].mxu0 %v3117
    %v3473 = vpop.f32.mrb[0].mxu0
    %v3474 = vadd.f32 0.0, %v3473
    %v3475 = vpop.f32.mrb[0].mxu0
    %v3476 = vpop.f32.mrb[0].mxu0
    %v3477 = vadd.f32 0.0, %v3476
    %v3478 = vpop.f32.mrb[0].mxu0
    %3479 = vmatprep.mubr.bf16.mxu0 0
    %3480 = vmatmul.mubr.bf16.gmra.mrb[0].mxu0 %v3120
    %v3481 = vpop.f32.mrb[0].mxu0
    %v3482 = vadd.f32 0.0, %v3481
    %v3483 = vpop.f32.mrb[0].mxu0
    %v3484 = vpop.f32.mrb[0].mxu0
    %v3485 = vadd.f32 0.0, %v3484
    %v3486 = vpop.f32.mrb[0].mxu0
    %3487 = vmatprep.mubr.bf16.mxu0 0
    %3488 = vmatmul.mubr.bf16.gmra.mrb[0].mxu0 %v3123
    %v3489 = vpop.f32.mrb[0].mxu0
    %v3490 = vadd.f32 0.0, %v3489
    %v3491 = vpop.f32.mrb[0].mxu0
    %v3492 = vpop.f32.mrb[0].mxu0
    %v3493 = vadd.f32 0.0, %v3492
    %v3494 = vpop.f32.mrb[0].mxu0
    %3495 = vmatprep.mubr.bf16.mxu0 0
    %3496 = vmatmul.mubr.bf16.gmra.mrb[0].mxu0 %v3126
    %v3497 = vpop.f32.mrb[0].mxu0
    %v3498 = vadd.f32 0.0, %v3497
    %v3499 = vpop.f32.mrb[0].mxu0
    %v3500 = vpop.f32.mrb[0].mxu0
    %v3501 = vadd.f32 0.0, %v3500
    %v3502 = vpop.f32.mrb[0].mxu0
    %3503 = vmatprep.mubr.bf16.mxu0 0
    %3504 = vmatmul.mubr.bf16.gmra.mrb[0].mxu0 %v3129
    %v3505 = vpop.f32.mrb[0].mxu0
    %v3506 = vadd.f32 0.0, %v3505
    %v3507 = vpop.f32.mrb[0].mxu0
    %v3508 = vpop.f32.mrb[0].mxu0
    %v3509 = vadd.f32 0.0, %v3508
    %v3510 = vpop.f32.mrb[0].mxu0
    %3511 = vmatprep.mubr.bf16.mxu0 0
    %3512 = vmatmul.mubr.bf16.gmra.mrb[0].mxu0 %v3132
    %v3513 = vpop.f32.mrb[0].mxu0
    %v3514 = vadd.f32 0.0, %v3513
    %v3515 = vpop.f32.mrb[0].mxu0
    %v3516 = vpop.f32.mrb[0].mxu0
    %v3517 = vadd.f32 0.0, %v3516
    %v3518 = vpop.f32.mrb[0].mxu0
    %3519 = vmatprep.mubr.bf16.mxu0 0
    %3520 = vmatmul.mubr.bf16.gmra.mrb[0].mxu0 %v3135
    %v3521 = vpop.f32.mrb[0].mxu0
    %v3522 = vadd.f32 0.0, %v3521
    %v3523 = vpop.f32.mrb[0].mxu0
    %v3524 = vpop.f32.mrb[0].mxu0
    %v3525 = vadd.f32 0.0, %v3524
    %v3526 = vpop.f32.mrb[0].mxu0
    %3527 = vmatprep.mubr.bf16.mxu0 0
    %3528 = vmatmul.mubr.bf16.gmra.mrb[0].mxu0 %v3138
    %v3529 = vpop.f32.mrb[0].mxu0
    %v3530 = vadd.f32 0.0, %v3529
    %v3531 = vpop.f32.mrb[0].mxu0
    %v3532 = vpop.f32.mrb[0].mxu0
    %v3533 = vadd.f32 0.0, %v3532
    %v3534 = vpop.f32.mrb[0].mxu0
    %3535 = vmatprep.mubr.bf16.mxu0 0
    %3536 = vmatmul.mubr.bf16.gmra.mrb[0].mxu0 %v3141
    %v3537 = vpop.f32.mrb[0].mxu0
    %v3538 = vadd.f32 0.0, %v3537
    %v3539 = vpop.f32.mrb[0].mxu0
    %v3540 = vpop.f32.mrb[0].mxu0
    %v3541 = vadd.f32 0.0, %v3540
    %v3542 = vpop.f32.mrb[0].mxu0
    %3543 = vmatprep.mubr.bf16.mxu0 0
    %3544 = vmatmul.mubr.bf16.gmra.mrb[0].mxu0 %v3144
    %v3545 = vpop.f32.mrb[0].mxu0
    %v3546 = vadd.f32 0.0, %v3545
    %v3547 = vpop.f32.mrb[0].mxu0
    %v3548 = vpop.f32.mrb[0].mxu0
    %v3549 = vadd.f32 0.0, %v3548
    %v3550 = vpop.f32.mrb[0].mxu0
    %3551 = vmatprep.mubr.bf16.mxu0 0
    %3552 = vmatmul.mubr.bf16.gmra.mrb[0].mxu0 %v3147
    %v3553 = vpop.f32.mrb[0].mxu0
    %v3554 = vadd.f32 0.0, %v3553
    %v3555 = vpop.f32.mrb[0].mxu0
    %v3556 = vpop.f32.mrb[0].mxu0
    %v3557 = vadd.f32 0.0, %v3556
    %v3558 = vpop.f32.mrb[0].mxu0
    %3559 = vmatprep.mubr.bf16.mxu0 0
    %3560 = vmatmul.mubr.bf16.gmra.mrb[0].mxu0 %v3150
    %v3561 = vpop.f32.mrb[0].mxu0
    %v3562 = vadd.f32 0.0, %v3561
    %v3563 = vpop.f32.mrb[0].mxu0
    %v3564 = vpop.f32.mrb[0].mxu0
    %v3565 = vadd.f32 0.0, %v3564
    %v3566 = vpop.f32.mrb[0].mxu0
    %3567 = vmatprep.mubr.bf16.mxu0 0
    %3568 = vmatmul.mubr.bf16.gmra.mrb[0].mxu0 %v3153
    %v3569 = vpop.f32.mrb[0].mxu0
    %v3570 = vadd.f32 0.0, %v3569
    %v3571 = vpop.f32.mrb[0].mxu0
    %v3572 = vpop.f32.mrb[0].mxu0
    %v3573 = vadd.f32 0.0, %v3572
    %v3574 = vpop.f32.mrb[0].mxu0
    %3575 = vmatprep.mubr.bf16.mxu0 0
    %3576 = vmatmul.mubr.bf16.gmra.mrb[0].mxu0 %v3156
    %v3577 = vpop.f32.mrb[0].mxu0
    %v3578 = vadd.f32 0.0, %v3577
    %v3579 = vpop.f32.mrb[0].mxu0
    %v3580 = vpop.f32.mrb[0].mxu0
    %v3581 = vadd.f32 0.0, %v3580
    %v3582 = vpop.f32.mrb[0].mxu0
    %3583 = vmatprep.mubr.bf16.mxu0 0
    %3584 = vmatmul.mubr.bf16.gmra.mrb[0].mxu0 %v3159
    %v3585 = vpop.f32.mrb[0].mxu0
    %v3586 = vadd.f32 0.0, %v3585
    %v3587 = vpop.f32.mrb[0].mxu0
    %v3588 = vpop.f32.mrb[0].mxu0
    %v3589 = vadd.f32 0.0, %v3588
    %v3590 = vpop.f32.mrb[0].mxu0
    %3591 = vmatprep.mubr.bf16.mxu0 0
    %3592 = vmatmul.mubr.bf16.gmra.mrb[0].mxu0 %v3162
    %v3593 = vpop.f32.mrb[0].mxu0
    %v3594 = vadd.f32 0.0, %v3593
    %v3595 = vpop.f32.mrb[0].mxu0
    %v3596 = vpop.f32.mrb[0].mxu0
    %v3597 = vadd.f32 0.0, %v3596
    %v3598 = vpop.f32.mrb[0].mxu0
    %3599 = vmatprep.mubr.bf16.mxu0 0
    %3600 = vmatmul.mubr.bf16.gmra.mrb[0].mxu0 %v3165
    %v3601 = vpop.f32.mrb[0].mxu0
    %v3602 = vadd.f32 0.0, %v3601
    %v3603 = vpop.f32.mrb[0].mxu0
    %v3604 = vpop.f32.mrb[0].mxu0
    %v3605 = vadd.f32 0.0, %v3604
    %v3606 = vpop.f32.mrb[0].mxu0
    %3607 = vdwg.mxu0
    %v3616 = vunpack.c.l.b16 %v2972
    %v3617 = vunpack.c.l.b16 %v2973
    %v3618 = vunpack.c.l.b16 %v2974
    %v3619 = vunpack.c.l.b16 %v2975
    %v3620 = vunpack.c.l.b16 %v2976
    %v3621 = vunpack.c.l.b16 %v2977
    %v3622 = vunpack.c.l.b16 %v2978
    %v3623 = vunpack.c.l.b16 %v2979
    %v3624 = vpack.c.b16 %v3617, %v3616
    %v3625 = vpack.c.b16 %v3619, %v3618
    %v3626 = vpack.c.b16 %v3621, %v3620
    %v3627 = vpack.c.b16 %v3623, %v3622
    %v3633 = vsel %vm2816, %v2921, 0
    %3635 = vmatprep.subr.bf16.mxu0 0
    %3636 = vmatpush1.bf16.msra.mxu0 %v3624
    %3637 = vmatprep.subr.bf16.mxu0 0
    %3638 = vmatpush1.bf16.msra.mxu0 %v3625
    %3639 = vmatprep.subr.bf16.mxu0 0
    %3640 = vmatpush1.bf16.msra.mxu0 %v3626
    %3641 = vmatprep.subr.bf16.mxu0 0
    %3642 = vmatpush1.bf16.msra.mxu0 %v3627
    %3643 = vmatprep.subr.bf16.mxu0 0
    %3644 = vmatpush1.bf16.msra.mxu0 0
    %3645 = vmatprep.subr.bf16.mxu0 0
    %3646 = vmatpush1.bf16.msra.mxu0 0
    %3647 = vmatprep.subr.bf16.mxu0 0
    %3648 = vmatpush1.bf16.msra.mxu0 0
    %3649 = vmatprep.subr.bf16.mxu0 0
    %3650 = vmatpush1.bf16.msra.mxu0 0
    %3651 = vmatprep.subr.bf16.mxu0 0
    %3652 = vmatpush1.bf16.msra.mxu0 0
    %3653 = vmatprep.subr.bf16.mxu0 0
    %3654 = vmatpush1.bf16.msra.mxu0 0
    %3655 = vmatprep.subr.bf16.mxu0 0
    %3656 = vmatpush1.bf16.msra.mxu0 0
    %3657 = vmatprep.subr.bf16.mxu0 0
    %3658 = vmatpush1.bf16.msra.mxu0 0
    %3659 = vmatprep.subr.bf16.mxu0 0
    %3660 = vmatpush1.bf16.msra.mxu0 0
    %3661 = vmatprep.subr.bf16.mxu0 0
    %3662 = vmatpush1.bf16.msra.mxu0 0
    %3663 = vmatprep.subr.bf16.mxu0 0
    %3664 = vmatpush1.bf16.msra.mxu0 0
    %3665 = vmatprep.subr.bf16.mxu0 0
    %3666 = vmatpush1.bf16.msra.mxu0 0
    %3667 = vmatprep.mubr.bf16.mxu0 0
    %3668 = vmatmul.mubr.bf16.gmra.mrb[0].mxu0 %v3633
    %v3669 = vpop.f32.mrb[0].mxu0
    %v3670 = vadd.f32 %v3202, %v3669
    %v3671 = vpop.f32.mrb[0].mxu0
    %v3672 = vpop.f32.mrb[0].mxu0
    %v3673 = vadd.f32 %v3205, %v3672
    %v3674 = vpop.f32.mrb[0].mxu0
    %3675 = vmatprep.mubr.bf16.mxu0 0
    %3676 = vmatmul.mubr.bf16.gmra.mrb[0].mxu0 %v3015
    %v3677 = vpop.f32.mrb[0].mxu0
    %v3678 = vadd.f32 %v3210, %v3677
    %v3679 = vpop.f32.mrb[0].mxu0
    %v3680 = vpop.f32.mrb[0].mxu0
    %v3681 = vadd.f32 %v3213, %v3680
    %v3682 = vpop.f32.mrb[0].mxu0
    %3683 = vmatprep.mubr.bf16.mxu0 0
    %3684 = vmatmul.mubr.bf16.gmra.mrb[0].mxu0 %v3018
    %v3685 = vpop.f32.mrb[0].mxu0
    %v3686 = vadd.f32 %v3218, %v3685
    %v3687 = vpop.f32.mrb[0].mxu0
    %v3688 = vpop.f32.mrb[0].mxu0
    %v3689 = vadd.f32 %v3221, %v3688
    %v3690 = vpop.f32.mrb[0].mxu0
    %3691 = vmatprep.mubr.bf16.mxu0 0
    %3692 = vmatmul.mubr.bf16.gmra.mrb[0].mxu0 %v3021
    %v3693 = vpop.f32.mrb[0].mxu0
    %v3694 = vadd.f32 %v3226, %v3693
    %v3695 = vpop.f32.mrb[0].mxu0
    %v3696 = vpop.f32.mrb[0].mxu0
    %v3697 = vadd.f32 %v3229, %v3696
    %v3698 = vpop.f32.mrb[0].mxu0
    %3699 = vmatprep.mubr.bf16.mxu0 0
    %3700 = vmatmul.mubr.bf16.gmra.mrb[0].mxu0 %v3024
    %v3701 = vpop.f32.mrb[0].mxu0
    %v3702 = vadd.f32 %v3234, %v3701
    %v3703 = vpop.f32.mrb[0].mxu0
    %v3704 = vpop.f32.mrb[0].mxu0
    %v3705 = vadd.f32 %v3237, %v3704
    %v3706 = vpop.f32.mrb[0].mxu0
    %3707 = vmatprep.mubr.bf16.mxu0 0
    %3708 = vmatmul.mubr.bf16.gmra.mrb[0].mxu0 %v3027
    %v3709 = vpop.f32.mrb[0].mxu0
    %v3710 = vadd.f32 %v3242, %v3709
    %v3711 = vpop.f32.mrb[0].mxu0
    %v3712 = vpop.f32.mrb[0].mxu0
    %v3713 = vadd.f32 %v3245, %v3712
    %v3714 = vpop.f32.mrb[0].mxu0
    %3715 = vmatprep.mubr.bf16.mxu0 0
    %3716 = vmatmul.mubr.bf16.gmra.mrb[0].mxu0 %v3030
    %v3717 = vpop.f32.mrb[0].mxu0
    %v3718 = vadd.f32 %v3250, %v3717
    %v3719 = vpop.f32.mrb[0].mxu0
    %v3720 = vpop.f32.mrb[0].mxu0
    %v3721 = vadd.f32 %v3253, %v3720
    %v3722 = vpop.f32.mrb[0].mxu0
    %3723 = vmatprep.mubr.bf16.mxu0 0
    %3724 = vmatmul.mubr.bf16.gmra.mrb[0].mxu0 %v3033
    %v3725 = vpop.f32.mrb[0].mxu0
    %v3726 = vadd.f32 %v3258, %v3725
    %v3727 = vpop.f32.mrb[0].mxu0
    %v3728 = vpop.f32.mrb[0].mxu0
    %v3729 = vadd.f32 %v3261, %v3728
    %v3730 = vpop.f32.mrb[0].mxu0
    %3731 = vmatprep.mubr.bf16.mxu0 0
    %3732 = vmatmul.mubr.bf16.gmra.mrb[0].mxu0 %v3036
    %v3733 = vpop.f32.mrb[0].mxu0
    %v3734 = vadd.f32 %v3266, %v3733
    %v3735 = vpop.f32.mrb[0].mxu0
    %v3736 = vpop.f32.mrb[0].mxu0
    %v3737 = vadd.f32 %v3269, %v3736
    %v3738 = vpop.f32.mrb[0].mxu0
    %3739 = vmatprep.mubr.bf16.mxu0 0
    %3740 = vmatmul.mubr.bf16.gmra.mrb[0].mxu0 %v3039
    %v3741 = vpop.f32.mrb[0].mxu0
    %v3742 = vadd.f32 %v3274, %v3741
    %v3743 = vpop.f32.mrb[0].mxu0
    %v3744 = vpop.f32.mrb[0].mxu0
    %v3745 = vadd.f32 %v3277, %v3744
    %v3746 = vpop.f32.mrb[0].mxu0
    %3747 = vmatprep.mubr.bf16.mxu0 0
    %3748 = vmatmul.mubr.bf16.gmra.mrb[0].mxu0 %v3042
    %v3749 = vpop.f32.mrb[0].mxu0
    %v3750 = vadd.f32 %v3282, %v3749
    %v3751 = vpop.f32.mrb[0].mxu0
    %v3752 = vpop.f32.mrb[0].mxu0
    %v3753 = vadd.f32 %v3285, %v3752
    %v3754 = vpop.f32.mrb[0].mxu0
    %3755 = vmatprep.mubr.bf16.mxu0 0
    %3756 = vmatmul.mubr.bf16.gmra.mrb[0].mxu0 %v3045
    %v3757 = vpop.f32.mrb[0].mxu0
    %v3758 = vadd.f32 %v3290, %v3757
    %v3759 = vpop.f32.mrb[0].mxu0
    %v3760 = vpop.f32.mrb[0].mxu0
    %v3761 = vadd.f32 %v3293, %v3760
    %v3762 = vpop.f32.mrb[0].mxu0
    %3763 = vmatprep.mubr.bf16.mxu0 0
    %3764 = vmatmul.mubr.bf16.gmra.mrb[0].mxu0 %v3048
    %v3765 = vpop.f32.mrb[0].mxu0
    %v3766 = vadd.f32 %v3298, %v3765
    %v3767 = vpop.f32.mrb[0].mxu0
    %v3768 = vpop.f32.mrb[0].mxu0
    %v3769 = vadd.f32 %v3301, %v3768
    %v3770 = vpop.f32.mrb[0].mxu0
    %3771 = vmatprep.mubr.bf16.mxu0 0
    %3772 = vmatmul.mubr.bf16.gmra.mrb[0].mxu0 %v3051
    %v3773 = vpop.f32.mrb[0].mxu0
    %v3774 = vadd.f32 %v3306, %v3773
    %v3775 = vpop.f32.mrb[0].mxu0
    %v3776 = vpop.f32.mrb[0].mxu0
    %v3777 = vadd.f32 %v3309, %v3776
    %v3778 = vpop.f32.mrb[0].mxu0
    %3779 = vmatprep.mubr.bf16.mxu0 0
    %3780 = vmatmul.mubr.bf16.gmra.mrb[0].mxu0 %v3054
    %v3781 = vpop.f32.mrb[0].mxu0
    %v3782 = vadd.f32 %v3314, %v3781
    %v3783 = vpop.f32.mrb[0].mxu0
    %v3784 = vpop.f32.mrb[0].mxu0
    %v3785 = vadd.f32 %v3317, %v3784
    %v3786 = vpop.f32.mrb[0].mxu0
    %3787 = vmatprep.mubr.bf16.mxu0 0
    %3788 = vmatmul.mubr.bf16.gmra.mrb[0].mxu0 %v3057
    %v3789 = vpop.f32.mrb[0].mxu0
    %v3790 = vadd.f32 %v3322, %v3789
    %v3791 = vpop.f32.mrb[0].mxu0
    %v3792 = vpop.f32.mrb[0].mxu0
    %v3793 = vadd.f32 %v3325, %v3792
    %v3794 = vpop.f32.mrb[0].mxu0
    %3795 = vmatprep.mubr.bf16.mxu0 0
    %3796 = vmatmul.mubr.bf16.gmra.mrb[0].mxu0 %v3060
    %v3797 = vpop.f32.mrb[0].mxu0
    %v3798 = vadd.f32 %v3330, %v3797
    %v3799 = vpop.f32.mrb[0].mxu0
    %v3800 = vpop.f32.mrb[0].mxu0
    %v3801 = vadd.f32 %v3333, %v3800
    %v3802 = vpop.f32.mrb[0].mxu0
    %3803 = vmatprep.mubr.bf16.mxu0 0
    %3804 = vmatmul.mubr.bf16.gmra.mrb[0].mxu0 %v3063
    %v3805 = vpop.f32.mrb[0].mxu0
    %v3806 = vadd.f32 %v3338, %v3805
    %v3807 = vpop.f32.mrb[0].mxu0
    %v3808 = vpop.f32.mrb[0].mxu0
    %v3809 = vadd.f32 %v3341, %v3808
    %v3810 = vpop.f32.mrb[0].mxu0
    %3811 = vmatprep.mubr.bf16.mxu0 0
    %3812 = vmatmul.mubr.bf16.gmra.mrb[0].mxu0 %v3066
    %v3813 = vpop.f32.mrb[0].mxu0
    %v3814 = vadd.f32 %v3346, %v3813
    %v3815 = vpop.f32.mrb[0].mxu0
    %v3816 = vpop.f32.mrb[0].mxu0
    %v3817 = vadd.f32 %v3349, %v3816
    %v3818 = vpop.f32.mrb[0].mxu0
    %3819 = vmatprep.mubr.bf16.mxu0 0
    %3820 = vmatmul.mubr.bf16.gmra.mrb[0].mxu0 %v3069
    %v3821 = vpop.f32.mrb[0].mxu0
    %v3822 = vadd.f32 %v3354, %v3821
    %v3823 = vpop.f32.mrb[0].mxu0
    %v3824 = vpop.f32.mrb[0].mxu0
    %v3825 = vadd.f32 %v3357, %v3824
    %v3826 = vpop.f32.mrb[0].mxu0
    %3827 = vmatprep.mubr.bf16.mxu0 0
    %3828 = vmatmul.mubr.bf16.gmra.mrb[0].mxu0 %v3072
    %v3829 = vpop.f32.mrb[0].mxu0
    %v3830 = vadd.f32 %v3362, %v3829
    %v3831 = vpop.f32.mrb[0].mxu0
    %v3832 = vpop.f32.mrb[0].mxu0
    %v3833 = vadd.f32 %v3365, %v3832
    %v3834 = vpop.f32.mrb[0].mxu0
    %3835 = vmatprep.mubr.bf16.mxu0 0
    %3836 = vmatmul.mubr.bf16.gmra.mrb[0].mxu0 %v3075
    %v3837 = vpop.f32.mrb[0].mxu0
    %v3838 = vadd.f32 %v3370, %v3837
    %v3839 = vpop.f32.mrb[0].mxu0
    %v3840 = vpop.f32.mrb[0].mxu0
    %v3841 = vadd.f32 %v3373, %v3840
    %v3842 = vpop.f32.mrb[0].mxu0
    %3843 = vmatprep.mubr.bf16.mxu0 0
    %3844 = vmatmul.mubr.bf16.gmra.mrb[0].mxu0 %v3078
    %v3845 = vpop.f32.mrb[0].mxu0
    %v3846 = vadd.f32 %v3378, %v3845
    %v3847 = vpop.f32.mrb[0].mxu0
    %v3848 = vpop.f32.mrb[0].mxu0
    %v3849 = vadd.f32 %v3381, %v3848
    %v3850 = vpop.f32.mrb[0].mxu0
    %3851 = vmatprep.mubr.bf16.mxu0 0
    %3852 = vmatmul.mubr.bf16.gmra.mrb[0].mxu0 %v3081
    %v3853 = vpop.f32.mrb[0].mxu0
    %v3854 = vadd.f32 %v3386, %v3853
    %v3855 = vpop.f32.mrb[0].mxu0
    %v3856 = vpop.f32.mrb[0].mxu0
    %v3857 = vadd.f32 %v3389, %v3856
    %v3858 = vpop.f32.mrb[0].mxu0
    %3859 = vmatprep.mubr.bf16.mxu0 0
    %3860 = vmatmul.mubr.bf16.gmra.mrb[0].mxu0 %v3084
    %v3861 = vpop.f32.mrb[0].mxu0
    %v3862 = vadd.f32 %v3394, %v3861
    %v3863 = vpop.f32.mrb[0].mxu0
    %v3864 = vpop.f32.mrb[0].mxu0
    %v3865 = vadd.f32 %v3397, %v3864
    %v3866 = vpop.f32.mrb[0].mxu0
    %3867 = vmatprep.mubr.bf16.mxu0 0
    %3868 = vmatmul.mubr.bf16.gmra.mrb[0].mxu0 %v3087
    %v3869 = vpop.f32.mrb[0].mxu0
    %v3870 = vadd.f32 %v3402, %v3869
    %v3871 = vpop.f32.mrb[0].mxu0
    %v3872 = vpop.f32.mrb[0].mxu0
    %v3873 = vadd.f32 %v3405, %v3872
    %v3874 = vpop.f32.mrb[0].mxu0
    %3875 = vmatprep.mubr.bf16.mxu0 0
    %3876 = vmatmul.mubr.bf16.gmra.mrb[0].mxu0 %v3090
    %v3877 = vpop.f32.mrb[0].mxu0
    %v3878 = vadd.f32 %v3410, %v3877
    %v3879 = vpop.f32.mrb[0].mxu0
    %v3880 = vpop.f32.mrb[0].mxu0
    %v3881 = vadd.f32 %v3413, %v3880
    %v3882 = vpop.f32.mrb[0].mxu0
    %3883 = vmatprep.mubr.bf16.mxu0 0
    %3884 = vmatmul.mubr.bf16.gmra.mrb[0].mxu0 %v3093
    %v3885 = vpop.f32.mrb[0].mxu0
    %v3886 = vadd.f32 %v3418, %v3885
    %v3887 = vpop.f32.mrb[0].mxu0
    %v3888 = vpop.f32.mrb[0].mxu0
    %v3889 = vadd.f32 %v3421, %v3888
    %v3890 = vpop.f32.mrb[0].mxu0
    %3891 = vmatprep.mubr.bf16.mxu0 0
    %3892 = vmatmul.mubr.bf16.gmra.mrb[0].mxu0 %v3096
    %v3893 = vpop.f32.mrb[0].mxu0
    %v3894 = vadd.f32 %v3426, %v3893
    %v3895 = vpop.f32.mrb[0].mxu0
    %v3896 = vpop.f32.mrb[0].mxu0
    %v3897 = vadd.f32 %v3429, %v3896
    %v3898 = vpop.f32.mrb[0].mxu0
    %3899 = vmatprep.mubr.bf16.mxu0 0
    %3900 = vmatmul.mubr.bf16.gmra.mrb[0].mxu0 %v3099
    %v3901 = vpop.f32.mrb[0].mxu0
    %v3902 = vadd.f32 %v3434, %v3901
    %v3903 = vpop.f32.mrb[0].mxu0
    %v3904 = vpop.f32.mrb[0].mxu0
    %v3905 = vadd.f32 %v3437, %v3904
    %v3906 = vpop.f32.mrb[0].mxu0
    %3907 = vmatprep.mubr.bf16.mxu0 0
    %3908 = vmatmul.mubr.bf16.gmra.mrb[0].mxu0 %v3102
    %v3909 = vpop.f32.mrb[0].mxu0
    %v3910 = vadd.f32 %v3442, %v3909
    %v3911 = vpop.f32.mrb[0].mxu0
    %v3912 = vpop.f32.mrb[0].mxu0
    %v3913 = vadd.f32 %v3445, %v3912
    %v3914 = vpop.f32.mrb[0].mxu0
    %3915 = vmatprep.mubr.bf16.mxu0 0
    %3916 = vmatmul.mubr.bf16.gmra.mrb[0].mxu0 %v3105
    %v3917 = vpop.f32.mrb[0].mxu0
    %v3918 = vadd.f32 %v3450, %v3917
    %v3919 = vpop.f32.mrb[0].mxu0
    %v3920 = vpop.f32.mrb[0].mxu0
    %v3921 = vadd.f32 %v3453, %v3920
    %v3922 = vpop.f32.mrb[0].mxu0
    %3923 = vmatprep.mubr.bf16.mxu0 0
    %3924 = vmatmul.mubr.bf16.gmra.mrb[0].mxu0 %v3108
    %v3925 = vpop.f32.mrb[0].mxu0
    %v3926 = vadd.f32 %v3458, %v3925
    %v3927 = vpop.f32.mrb[0].mxu0
    %v3928 = vpop.f32.mrb[0].mxu0
    %v3929 = vadd.f32 %v3461, %v3928
    %v3930 = vpop.f32.mrb[0].mxu0
    %3931 = vmatprep.mubr.bf16.mxu0 0
    %3932 = vmatmul.mubr.bf16.gmra.mrb[0].mxu0 %v3111
    %v3933 = vpop.f32.mrb[0].mxu0
    %v3934 = vadd.f32 %v3466, %v3933
    %v3935 = vpop.f32.mrb[0].mxu0
    %v3936 = vpop.f32.mrb[0].mxu0
    %v3937 = vadd.f32 %v3469, %v3936
    %v3938 = vpop.f32.mrb[0].mxu0
    %3939 = vmatprep.mubr.bf16.mxu0 0
    %3940 = vmatmul.mubr.bf16.gmra.mrb[0].mxu0 %v3114
    %v3941 = vpop.f32.mrb[0].mxu0
    %v3942 = vadd.f32 %v3474, %v3941
    %v3943 = vpop.f32.mrb[0].mxu0
    %v3944 = vpop.f32.mrb[0].mxu0
    %v3945 = vadd.f32 %v3477, %v3944
    %v3946 = vpop.f32.mrb[0].mxu0
    %3947 = vmatprep.mubr.bf16.mxu0 0
    %3948 = vmatmul.mubr.bf16.gmra.mrb[0].mxu0 %v3117
    %v3949 = vpop.f32.mrb[0].mxu0
    %v3950 = vadd.f32 %v3482, %v3949
    %v3951 = vpop.f32.mrb[0].mxu0
    %v3952 = vpop.f32.mrb[0].mxu0
    %v3953 = vadd.f32 %v3485, %v3952
    %v3954 = vpop.f32.mrb[0].mxu0
    %3955 = vmatprep.mubr.bf16.mxu0 0
    %3956 = vmatmul.mubr.bf16.gmra.mrb[0].mxu0 %v3120
    %v3957 = vpop.f32.mrb[0].mxu0
    %v3958 = vadd.f32 %v3490, %v3957
    %v3959 = vpop.f32.mrb[0].mxu0
    %v3960 = vpop.f32.mrb[0].mxu0
    %v3961 = vadd.f32 %v3493, %v3960
    %v3962 = vpop.f32.mrb[0].mxu0
    %3963 = vmatprep.mubr.bf16.mxu0 0
    %3964 = vmatmul.mubr.bf16.gmra.mrb[0].mxu0 %v3123
    %v3965 = vpop.f32.mrb[0].mxu0
    %v3966 = vadd.f32 %v3498, %v3965
    %v3967 = vpop.f32.mrb[0].mxu0
    %v3968 = vpop.f32.mrb[0].mxu0
    %v3969 = vadd.f32 %v3501, %v3968
    %v3970 = vpop.f32.mrb[0].mxu0
    %3971 = vmatprep.mubr.bf16.mxu0 0
    %3972 = vmatmul.mubr.bf16.gmra.mrb[0].mxu0 %v3126
    %v3973 = vpop.f32.mrb[0].mxu0
    %v3974 = vadd.f32 %v3506, %v3973
    %v3975 = vpop.f32.mrb[0].mxu0
    %v3976 = vpop.f32.mrb[0].mxu0
    %v3977 = vadd.f32 %v3509, %v3976
    %v3978 = vpop.f32.mrb[0].mxu0
    %3979 = vmatprep.mubr.bf16.mxu0 0
    %3980 = vmatmul.mubr.bf16.gmra.mrb[0].mxu0 %v3129
    %v3981 = vpop.f32.mrb[0].mxu0
    %v3982 = vadd.f32 %v3514, %v3981
    %v3983 = vpop.f32.mrb[0].mxu0
    %v3984 = vpop.f32.mrb[0].mxu0
    %v3985 = vadd.f32 %v3517, %v3984
    %v3986 = vpop.f32.mrb[0].mxu0
    %3987 = vmatprep.mubr.bf16.mxu0 0
    %3988 = vmatmul.mubr.bf16.gmra.mrb[0].mxu0 %v3132
    %v3989 = vpop.f32.mrb[0].mxu0
    %v3990 = vadd.f32 %v3522, %v3989
    %v3991 = vpop.f32.mrb[0].mxu0
    %v3992 = vpop.f32.mrb[0].mxu0
    %v3993 = vadd.f32 %v3525, %v3992
    %v3994 = vpop.f32.mrb[0].mxu0
    %3995 = vmatprep.mubr.bf16.mxu0 0
    %3996 = vmatmul.mubr.bf16.gmra.mrb[0].mxu0 %v3135
    %v3997 = vpop.f32.mrb[0].mxu0
    %v3998 = vadd.f32 %v3530, %v3997
    %v3999 = vpop.f32.mrb[0].mxu0
    %v4000 = vpop.f32.mrb[0].mxu0
    %v4001 = vadd.f32 %v3533, %v4000
    %v4002 = vpop.f32.mrb[0].mxu0
    %4003 = vmatprep.mubr.bf16.mxu0 0
    %4004 = vmatmul.mubr.bf16.gmra.mrb[0].mxu0 %v3138
    %v4005 = vpop.f32.mrb[0].mxu0
    %v4006 = vadd.f32 %v3538, %v4005
    %v4007 = vpop.f32.mrb[0].mxu0
    %v4008 = vpop.f32.mrb[0].mxu0
    %v4009 = vadd.f32 %v3541, %v4008
    %v4010 = vpop.f32.mrb[0].mxu0
    %4011 = vmatprep.mubr.bf16.mxu0 0
    %4012 = vmatmul.mubr.bf16.gmra.mrb[0].mxu0 %v3141
    %v4013 = vpop.f32.mrb[0].mxu0
    %v4014 = vadd.f32 %v3546, %v4013
    %v4015 = vpop.f32.mrb[0].mxu0
    %v4016 = vpop.f32.mrb[0].mxu0
    %v4017 = vadd.f32 %v3549, %v4016
    %v4018 = vpop.f32.mrb[0].mxu0
    %4019 = vmatprep.mubr.bf16.mxu0 0
    %4020 = vmatmul.mubr.bf16.gmra.mrb[0].mxu0 %v3144
    %v4021 = vpop.f32.mrb[0].mxu0
    %v4022 = vadd.f32 %v3554, %v4021
    %v4023 = vpop.f32.mrb[0].mxu0
    %v4024 = vpop.f32.mrb[0].mxu0
    %v4025 = vadd.f32 %v3557, %v4024
    %v4026 = vpop.f32.mrb[0].mxu0
    %4027 = vmatprep.mubr.bf16.mxu0 0
    %4028 = vmatmul.mubr.bf16.gmra.mrb[0].mxu0 %v3147
    %v4029 = vpop.f32.mrb[0].mxu0
    %v4030 = vadd.f32 %v3562, %v4029
    %v4031 = vpop.f32.mrb[0].mxu0
    %v4032 = vpop.f32.mrb[0].mxu0
    %v4033 = vadd.f32 %v3565, %v4032
    %v4034 = vpop.f32.mrb[0].mxu0
    %4035 = vmatprep.mubr.bf16.mxu0 0
    %4036 = vmatmul.mubr.bf16.gmra.mrb[0].mxu0 %v3150
    %v4037 = vpop.f32.mrb[0].mxu0
    %v4038 = vadd.f32 %v3570, %v4037
    %v4039 = vpop.f32.mrb[0].mxu0
    %v4040 = vpop.f32.mrb[0].mxu0
    %v4041 = vadd.f32 %v3573, %v4040
    %v4042 = vpop.f32.mrb[0].mxu0
    %4043 = vmatprep.mubr.bf16.mxu0 0
    %4044 = vmatmul.mubr.bf16.gmra.mrb[0].mxu0 %v3153
    %v4045 = vpop.f32.mrb[0].mxu0
    %v4046 = vadd.f32 %v3578, %v4045
    %v4047 = vpop.f32.mrb[0].mxu0
    %v4048 = vpop.f32.mrb[0].mxu0
    %v4049 = vadd.f32 %v3581, %v4048
    %v4050 = vpop.f32.mrb[0].mxu0
    %4051 = vmatprep.mubr.bf16.mxu0 0
    %4052 = vmatmul.mubr.bf16.gmra.mrb[0].mxu0 %v3156
    %v4053 = vpop.f32.mrb[0].mxu0
    %v4054 = vadd.f32 %v3586, %v4053
    %v4055 = vpop.f32.mrb[0].mxu0
    %v4056 = vpop.f32.mrb[0].mxu0
    %v4057 = vadd.f32 %v3589, %v4056
    %v4058 = vpop.f32.mrb[0].mxu0
    %4059 = vmatprep.mubr.bf16.mxu0 0
    %4060 = vmatmul.mubr.bf16.gmra.mrb[0].mxu0 %v3159
    %v4061 = vpop.f32.mrb[0].mxu0
    %v4062 = vadd.f32 %v3594, %v4061
    %v4063 = vpop.f32.mrb[0].mxu0
    %v4064 = vpop.f32.mrb[0].mxu0
    %v4065 = vadd.f32 %v3597, %v4064
    %v4066 = vpop.f32.mrb[0].mxu0
    %4067 = vmatprep.mubr.bf16.mxu0 0
    %4068 = vmatmul.mubr.bf16.gmra.mrb[0].mxu0 %v3162
    %v4069 = vpop.f32.mrb[0].mxu0
    %v4070 = vadd.f32 %v3602, %v4069
    %v4071 = vpop.f32.mrb[0].mxu0
    %v4072 = vpop.f32.mrb[0].mxu0
    %v4073 = vadd.f32 %v3605, %v4072
    %v4074 = vpop.f32.mrb[0].mxu0
    %4075 = vdwg.mxu0
    %v4076 = vld [vmem:[#allocation2 + $0x10] sm:$0xff]
    %v4077 = vld [vmem:[#allocation2 + $0x18] sm:$0xff]
    %v4078 = vld [vmem:[#allocation2 + $0x20] sm:$0xff]
    %v4079 = vld [vmem:[#allocation2 + $0x28] sm:$0xff]
    %v4080 = vld [vmem:[#allocation2 + $0x30] sm:$0xff]
    %v4081 = vld [vmem:[#allocation2 + $0x38] sm:$0xff]
    %v4082 = vld [vmem:[#allocation2 + $0x40] sm:$0xff]
    %v4083 = vld [vmem:[#allocation2 + $0x48] sm:$0xff]
    %v4084 = vld [vmem:[#allocation2 + $0x50] sm:$0xff]
    %v4085 = vld [vmem:[#allocation2 + $0x58] sm:$0xff]
    %v4086 = vld [vmem:[#allocation2 + $0x60] sm:$0xff]
    %v4087 = vld [vmem:[#allocation2 + $0x68] sm:$0xff]
    %v4088 = vld [vmem:[#allocation2 + $0x70] sm:$0xff]
    %v4089 = vld [vmem:[#allocation2 + $0x78] sm:$0xff]
    %v4090 = vld [vmem:[#allocation2 + $0x80] sm:$0xff]
    %v4091 = vld [vmem:[#allocation2 + $0x88] sm:$0xff]
    %v4092 = vld [vmem:[#allocation2 + $0x90] sm:$0xff]
    %v4093 = vld [vmem:[#allocation2 + $0x98] sm:$0xff]
    %v4094 = vld [vmem:[#allocation2 + $0xa0] sm:$0xff]
    %v4095 = vld [vmem:[#allocation2 + $0xa8] sm:$0xff]
    %v4096 = vld [vmem:[#allocation2 + $0xb0] sm:$0xff]
    %v4097 = vld [vmem:[#allocation2 + $0xb8] sm:$0xff]
    %v4098 = vld [vmem:[#allocation2 + $0xc0] sm:$0xff]
    %v4099 = vld [vmem:[#allocation2 + $0xc8] sm:$0xff]
    %v4100 = vld [vmem:[#allocation2 + $0xd0] sm:$0xff]
    %v4101 = vld [vmem:[#allocation2 + $0xd8] sm:$0xff]
    %v4102 = vld [vmem:[#allocation2 + $0xe0] sm:$0xff]
    %v4103 = vld [vmem:[#allocation2 + $0xe8] sm:$0xff]
    %v4104 = vld [vmem:[#allocation2 + $0xf0] sm:$0xff]
    %v4105 = vld [vmem:[#allocation2 + $0xf8] sm:$0xff]
    %v4106 = vld [vmem:[#allocation2 + $0x100] sm:$0xff]
    %v4107 = vld [vmem:[#allocation2 + $0x108] sm:$0xff]
    %v4108 = vld [vmem:[#allocation2 + $0x110] sm:$0xff]
    %v4109 = vld [vmem:[#allocation2 + $0x118] sm:$0xff]
    %v4110 = vld [vmem:[#allocation2 + $0x120] sm:$0xff]
    %v4111 = vld [vmem:[#allocation2 + $0x128] sm:$0xff]
    %v4112 = vld [vmem:[#allocation2 + $0x130] sm:$0xff]
    %v4113 = vld [vmem:[#allocation2 + $0x138] sm:$0xff]
    %v4114 = vld [vmem:[#allocation2 + $0x140] sm:$0xff]
    %v4115 = vld [vmem:[#allocation2 + $0x148] sm:$0xff]
    %v4116 = vld [vmem:[#allocation2 + $0x150] sm:$0xff]
    %v4117 = vld [vmem:[#allocation2 + $0x158] sm:$0xff]
    %v4118 = vld [vmem:[#allocation2 + $0x160] sm:$0xff]
    %v4119 = vld [vmem:[#allocation2 + $0x168] sm:$0xff]
    %v4120 = vld [vmem:[#allocation2 + $0x170] sm:$0xff]
    %v4121 = vld [vmem:[#allocation2 + $0x178] sm:$0xff]
    %v4122 = vld [vmem:[#allocation2 + $0x180] sm:$0xff]
    %v4123 = vld [vmem:[#allocation2 + $0x188] sm:$0xff]
    %v4124 = vld [vmem:[#allocation2 + $0x190] sm:$0xff]
    %v4125 = vld [vmem:[#allocation2 + $0x198] sm:$0xff]
    %v4126 = vld [vmem:[#allocation2 + $0x1a0] sm:$0xff]
    %s4127 = scalar_lea.vmem [#allocation8], 64
    %v4128 = vld [vmem:[%s4127] sm:$0xf]
    %v4129 = vld [vmem:[%s4127 + $0x4] sm:$0xf]
    %v4130 = vld [vmem:[%s4127 + $0x8] sm:$0xf]
    %v4131 = vld [vmem:[%s4127 + $0xc] sm:$0xf]
    %v4132 = vld [vmem:[%s4127 + $0x10] sm:$0xf]
    %v4133 = vld [vmem:[%s4127 + $0x14] sm:$0xf]
    %v4134 = vld [vmem:[%s4127 + $0x18] sm:$0xf]
    %v4135 = vld [vmem:[%s4127 + $0x1c] sm:$0xf]
    %v4144 = vunpack.c.l.b16 %v4128
    %v4145 = vunpack.c.l.b16 %v4129
    %v4146 = vunpack.c.l.b16 %v4130
    %v4147 = vunpack.c.l.b16 %v4131
    %v4148 = vunpack.c.l.b16 %v4132
    %v4149 = vunpack.c.l.b16 %v4133
    %v4150 = vunpack.c.l.b16 %v4134
    %v4151 = vunpack.c.l.b16 %v4135
    %v4152 = vpack.c.b16 %v4145, %v4144
    %v4153 = vpack.c.b16 %v4147, %v4146
    %v4154 = vpack.c.b16 %v4149, %v4148
    %v4155 = vpack.c.b16 %v4151, %v4150
    %v4161 = vsel %vm2816, %v4076, 0
    %v4164 = vsel %vm2816, %v4077, 0
    %v4167 = vsel %vm2816, %v4078, 0
    %v4170 = vsel %vm2816, %v4079, 0
    %v4173 = vsel %vm2816, %v4080, 0
    %v4176 = vsel %vm2816, %v4081, 0
    %v4179 = vsel %vm2816, %v4082, 0
    %v4182 = vsel %vm2816, %v4083, 0
    %v4185 = vsel %vm2816, %v4084, 0
    %v4188 = vsel %vm2816, %v4085, 0
    %v4191 = vsel %vm2816, %v4086, 0
    %v4194 = vsel %vm2816, %v4087, 0
    %v4197 = vsel %vm2816, %v4088, 0
    %v4200 = vsel %vm2816, %v4089, 0
    %v4203 = vsel %vm2816, %v4090, 0
    %v4206 = vsel %vm2816, %v4091, 0
    %v4209 = vsel %vm2816, %v4092, 0
    %v4212 = vsel %vm2816, %v4093, 0
    %v4215 = vsel %vm2816, %v4094, 0
    %v4218 = vsel %vm2816, %v4095, 0
    %v4221 = vsel %vm2816, %v4096, 0
    %v4224 = vsel %vm2816, %v4097, 0
    %v4227 = vsel %vm2816, %v4098, 0
    %v4230 = vsel %vm2816, %v4099, 0
    %v4233 = vsel %vm2816, %v4100, 0
    %v4236 = vsel %vm2816, %v4101, 0
    %v4239 = vsel %vm2816, %v4102, 0
    %v4242 = vsel %vm2816, %v4103, 0
    %v4245 = vsel %vm2816, %v4104, 0
    %v4248 = vsel %vm2816, %v4105, 0
    %v4251 = vsel %vm2816, %v4106, 0
    %v4254 = vsel %vm2816, %v4107, 0
    %v4257 = vsel %vm2816, %v4108, 0
    %v4260 = vsel %vm2816, %v4109, 0
    %v4263 = vsel %vm2816, %v4110, 0
    %v4266 = vsel %vm2816, %v4111, 0
    %v4269 = vsel %vm2816, %v4112, 0
    %v4272 = vsel %vm2816, %v4113, 0
    %v4275 = vsel %vm2816, %v4114, 0
    %v4278 = vsel %vm2816, %v4115, 0
    %v4281 = vsel %vm2816, %v4116, 0
    %v4284 = vsel %vm2816, %v4117, 0
    %v4287 = vsel %vm2816, %v4118, 0
    %v4290 = vsel %vm2816, %v4119, 0
    %v4293 = vsel %vm2816, %v4120, 0
    %v4296 = vsel %vm2816, %v4121, 0
    %v4299 = vsel %vm2816, %v4122, 0
    %v4302 = vsel %vm2816, %v4123, 0
    %v4305 = vsel %vm2816, %v4124, 0
    %v4308 = vsel %vm2816, %v4125, 0
    %v4311 = vsel %vm2816, %v4126, 0
    %4313 = vmatprep.subr.bf16.mxu0 0
    %4314 = vmatpush1.bf16.msra.mxu0 %v4152
    %4315 = vmatprep.subr.bf16.mxu0 0
    %4316 = vmatpush1.bf16.msra.mxu0 %v4153
    %4317 = vmatprep.subr.bf16.mxu0 0
    %4318 = vmatpush1.bf16.msra.mxu0 %v4154
    %4319 = vmatprep.subr.bf16.mxu0 0
    %4320 = vmatpush1.bf16.msra.mxu0 %v4155
    %4321 = vmatprep.subr.bf16.mxu0 0
    %4322 = vmatpush1.bf16.msra.mxu0 0
    %4323 = vmatprep.subr.bf16.mxu0 0
    %4324 = vmatpush1.bf16.msra.mxu0 0
    %4325 = vmatprep.subr.bf16.mxu0 0
    %4326 = vmatpush1.bf16.msra.mxu0 0
    %4327 = vmatprep.subr.bf16.mxu0 0
    %4328 = vmatpush1.bf16.msra.mxu0 0
    %4329 = vmatprep.subr.bf16.mxu0 0
    %4330 = vmatpush1.bf16.msra.mxu0 0
    %4331 = vmatprep.subr.bf16.mxu0 0
    %4332 = vmatpush1.bf16.msra.mxu0 0
    %4333 = vmatprep.subr.bf16.mxu0 0
    %4334 = vmatpush1.bf16.msra.mxu0 0
    %4335 = vmatprep.subr.bf16.mxu0 0
    %4336 = vmatpush1.bf16.msra.mxu0 0
    %4337 = vmatprep.subr.bf16.mxu0 0
    %4338 = vmatpush1.bf16.msra.mxu0 0
    %4339 = vmatprep.subr.bf16.mxu0 0
    %4340 = vmatpush1.bf16.msra.mxu0 0
    %4341 = vmatprep.subr.bf16.mxu0 0
    %4342 = vmatpush1.bf16.msra.mxu0 0
    %4343 = vmatprep.subr.bf16.mxu0 0
    %4344 = vmatpush1.bf16.msra.mxu0 0
    %4345 = vmatprep.mubr.bf16.mxu0 0
    %4346 = vmatmul.mubr.bf16.gmra.mrb[0].mxu0 %v4161
    %v4347 = vpop.f32.mrb[0].mxu0
    %v4348 = vadd.f32 0.0, %v4347
    %v4349 = vpop.f32.mrb[0].mxu0
    %v4350 = vpop.f32.mrb[0].mxu0
    %v4351 = vadd.f32 0.0, %v4350
    %v4352 = vpop.f32.mrb[0].mxu0
    %4353 = vmatprep.mubr.bf16.mxu0 0
    %4354 = vmatmul.mubr.bf16.gmra.mrb[0].mxu0 %v4164
    %v4355 = vpop.f32.mrb[0].mxu0
    %v4356 = vadd.f32 0.0, %v4355
    %v4357 = vpop.f32.mrb[0].mxu0
    %v4358 = vpop.f32.mrb[0].mxu0
    %v4359 = vadd.f32 0.0, %v4358
    %v4360 = vpop.f32.mrb[0].mxu0
    %4361 = vmatprep.mubr.bf16.mxu0 0
    %4362 = vmatmul.mubr.bf16.gmra.mrb[0].mxu0 %v4167
    %v4363 = vpop.f32.mrb[0].mxu0
    %v4364 = vadd.f32 0.0, %v4363
    %v4365 = vpop.f32.mrb[0].mxu0
    %v4366 = vpop.f32.mrb[0].mxu0
    %v4367 = vadd.f32 0.0, %v4366
    %v4368 = vpop.f32.mrb[0].mxu0
    %4369 = vmatprep.mubr.bf16.mxu0 0
    %4370 = vmatmul.mubr.bf16.gmra.mrb[0].mxu0 %v4170
    %v4371 = vpop.f32.mrb[0].mxu0
    %v4372 = vadd.f32 0.0, %v4371
    %v4373 = vpop.f32.mrb[0].mxu0
    %v4374 = vpop.f32.mrb[0].mxu0
    %v4375 = vadd.f32 0.0, %v4374
    %v4376 = vpop.f32.mrb[0].mxu0
    %4377 = vmatprep.mubr.bf16.mxu0 0
    %4378 = vmatmul.mubr.bf16.gmra.mrb[0].mxu0 %v4173
    %v4379 = vpop.f32.mrb[0].mxu0
    %v4380 = vadd.f32 0.0, %v4379
    %v4381 = vpop.f32.mrb[0].mxu0
    %v4382 = vpop.f32.mrb[0].mxu0
    %v4383 = vadd.f32 0.0, %v4382
    %v4384 = vpop.f32.mrb[0].mxu0
    %4385 = vmatprep.mubr.bf16.mxu0 0
    %4386 = vmatmul.mubr.bf16.gmra.mrb[0].mxu0 %v4176
    %v4387 = vpop.f32.mrb[0].mxu0
    %v4388 = vadd.f32 0.0, %v4387
    %v4389 = vpop.f32.mrb[0].mxu0
    %v4390 = vpop.f32.mrb[0].mxu0
    %v4391 = vadd.f32 0.0, %v4390
    %v4392 = vpop.f32.mrb[0].mxu0
    %4393 = vmatprep.mubr.bf16.mxu0 0
    %4394 = vmatmul.mubr.bf16.gmra.mrb[0].mxu0 %v4179
    %v4395 = vpop.f32.mrb[0].mxu0
    %v4396 = vadd.f32 0.0, %v4395
    %v4397 = vpop.f32.mrb[0].mxu0
    %v4398 = vpop.f32.mrb[0].mxu0
    %v4399 = vadd.f32 0.0, %v4398
    %v4400 = vpop.f32.mrb[0].mxu0
    %4401 = vmatprep.mubr.bf16.mxu0 0
    %4402 = vmatmul.mubr.bf16.gmra.mrb[0].mxu0 %v4182
    %v4403 = vpop.f32.mrb[0].mxu0
    %v4404 = vadd.f32 0.0, %v4403
    %v4405 = vpop.f32.mrb[0].mxu0
    %v4406 = vpop.f32.mrb[0].mxu0
    %v4407 = vadd.f32 0.0, %v4406
    %v4408 = vpop.f32.mrb[0].mxu0
    %4409 = vmatprep.mubr.bf16.mxu0 0
    %4410 = vmatmul.mubr.bf16.gmra.mrb[0].mxu0 %v4185
    %v4411 = vpop.f32.mrb[0].mxu0
    %v4412 = vadd.f32 0.0, %v4411
    %v4413 = vpop.f32.mrb[0].mxu0
    %v4414 = vpop.f32.mrb[0].mxu0
    %v4415 = vadd.f32 0.0, %v4414
    %v4416 = vpop.f32.mrb[0].mxu0
    %4417 = vmatprep.mubr.bf16.mxu0 0
    %4418 = vmatmul.mubr.bf16.gmra.mrb[0].mxu0 %v4188
    %v4419 = vpop.f32.mrb[0].mxu0
    %v4420 = vadd.f32 0.0, %v4419
    %v4421 = vpop.f32.mrb[0].mxu0
    %v4422 = vpop.f32.mrb[0].mxu0
    %v4423 = vadd.f32 0.0, %v4422
    %v4424 = vpop.f32.mrb[0].mxu0
    %4425 = vmatprep.mubr.bf16.mxu0 0
    %4426 = vmatmul.mubr.bf16.gmra.mrb[0].mxu0 %v4191
    %v4427 = vpop.f32.mrb[0].mxu0
    %v4428 = vadd.f32 0.0, %v4427
    %v4429 = vpop.f32.mrb[0].mxu0
    %v4430 = vpop.f32.mrb[0].mxu0
    %v4431 = vadd.f32 0.0, %v4430
    %v4432 = vpop.f32.mrb[0].mxu0
    %4433 = vmatprep.mubr.bf16.mxu0 0
    %4434 = vmatmul.mubr.bf16.gmra.mrb[0].mxu0 %v4194
    %v4435 = vpop.f32.mrb[0].mxu0
    %v4436 = vadd.f32 0.0, %v4435
    %v4437 = vpop.f32.mrb[0].mxu0
    %v4438 = vpop.f32.mrb[0].mxu0
    %v4439 = vadd.f32 0.0, %v4438
    %v4440 = vpop.f32.mrb[0].mxu0
    %4441 = vmatprep.mubr.bf16.mxu0 0
    %4442 = vmatmul.mubr.bf16.gmra.mrb[0].mxu0 %v4197
    %v4443 = vpop.f32.mrb[0].mxu0
    %v4444 = vadd.f32 0.0, %v4443
    %v4445 = vpop.f32.mrb[0].mxu0
    %v4446 = vpop.f32.mrb[0].mxu0
    %v4447 = vadd.f32 0.0, %v4446
    %v4448 = vpop.f32.mrb[0].mxu0
    %4449 = vmatprep.mubr.bf16.mxu0 0
    %4450 = vmatmul.mubr.bf16.gmra.mrb[0].mxu0 %v4200
    %v4451 = vpop.f32.mrb[0].mxu0
    %v4452 = vadd.f32 0.0, %v4451
    %v4453 = vpop.f32.mrb[0].mxu0
    %v4454 = vpop.f32.mrb[0].mxu0
    %v4455 = vadd.f32 0.0, %v4454
    %v4456 = vpop.f32.mrb[0].mxu0
    %4457 = vmatprep.mubr.bf16.mxu0 0
    %4458 = vmatmul.mubr.bf16.gmra.mrb[0].mxu0 %v4203
    %v4459 = vpop.f32.mrb[0].mxu0
    %v4460 = vadd.f32 0.0, %v4459
    %v4461 = vpop.f32.mrb[0].mxu0
    %v4462 = vpop.f32.mrb[0].mxu0
    %v4463 = vadd.f32 0.0, %v4462
    %v4464 = vpop.f32.mrb[0].mxu0
    %4465 = vmatprep.mubr.bf16.mxu0 0
    %4466 = vmatmul.mubr.bf16.gmra.mrb[0].mxu0 %v4206
    %v4467 = vpop.f32.mrb[0].mxu0
    %v4468 = vadd.f32 0.0, %v4467
    %v4469 = vpop.f32.mrb[0].mxu0
    %v4470 = vpop.f32.mrb[0].mxu0
    %v4471 = vadd.f32 0.0, %v4470
    %v4472 = vpop.f32.mrb[0].mxu0
    %4473 = vmatprep.mubr.bf16.mxu0 0
    %4474 = vmatmul.mubr.bf16.gmra.mrb[0].mxu0 %v4209
    %v4475 = vpop.f32.mrb[0].mxu0
    %v4476 = vadd.f32 0.0, %v4475
    %v4477 = vpop.f32.mrb[0].mxu0
    %v4478 = vpop.f32.mrb[0].mxu0
    %v4479 = vadd.f32 0.0, %v4478
    %v4480 = vpop.f32.mrb[0].mxu0
    %4481 = vmatprep.mubr.bf16.mxu0 0
    %4482 = vmatmul.mubr.bf16.gmra.mrb[0].mxu0 %v4212
    %v4483 = vpop.f32.mrb[0].mxu0
    %v4484 = vadd.f32 0.0, %v4483
    %v4485 = vpop.f32.mrb[0].mxu0
    %v4486 = vpop.f32.mrb[0].mxu0
    %v4487 = vadd.f32 0.0, %v4486
    %v4488 = vpop.f32.mrb[0].mxu0
    %4489 = vmatprep.mubr.bf16.mxu0 0
    %4490 = vmatmul.mubr.bf16.gmra.mrb[0].mxu0 %v4215
    %v4491 = vpop.f32.mrb[0].mxu0
    %v4492 = vadd.f32 0.0, %v4491
    %v4493 = vpop.f32.mrb[0].mxu0
    %v4494 = vpop.f32.mrb[0].mxu0
    %v4495 = vadd.f32 0.0, %v4494
    %v4496 = vpop.f32.mrb[0].mxu0
    %4497 = vmatprep.mubr.bf16.mxu0 0
    %4498 = vmatmul.mubr.bf16.gmra.mrb[0].mxu0 %v4218
    %v4499 = vpop.f32.mrb[0].mxu0
    %v4500 = vadd.f32 0.0, %v4499
    %v4501 = vpop.f32.mrb[0].mxu0
    %v4502 = vpop.f32.mrb[0].mxu0
    %v4503 = vadd.f32 0.0, %v4502
    %v4504 = vpop.f32.mrb[0].mxu0
    %4505 = vmatprep.mubr.bf16.mxu0 0
    %4506 = vmatmul.mubr.bf16.gmra.mrb[0].mxu0 %v4221
    %v4507 = vpop.f32.mrb[0].mxu0
    %v4508 = vadd.f32 0.0, %v4507
    %v4509 = vpop.f32.mrb[0].mxu0
    %v4510 = vpop.f32.mrb[0].mxu0
    %v4511 = vadd.f32 0.0, %v4510
    %v4512 = vpop.f32.mrb[0].mxu0
    %4513 = vmatprep.mubr.bf16.mxu0 0
    %4514 = vmatmul.mubr.bf16.gmra.mrb[0].mxu0 %v4224
    %v4515 = vpop.f32.mrb[0].mxu0
    %v4516 = vadd.f32 0.0, %v4515
    %v4517 = vpop.f32.mrb[0].mxu0
    %v4518 = vpop.f32.mrb[0].mxu0
    %v4519 = vadd.f32 0.0, %v4518
    %v4520 = vpop.f32.mrb[0].mxu0
    %4521 = vmatprep.mubr.bf16.mxu0 0
    %4522 = vmatmul.mubr.bf16.gmra.mrb[0].mxu0 %v4227
    %v4523 = vpop.f32.mrb[0].mxu0
    %v4524 = vadd.f32 0.0, %v4523
    %v4525 = vpop.f32.mrb[0].mxu0
    %v4526 = vpop.f32.mrb[0].mxu0
    %v4527 = vadd.f32 0.0, %v4526
    %v4528 = vpop.f32.mrb[0].mxu0
    %4529 = vmatprep.mubr.bf16.mxu0 0
    %4530 = vmatmul.mubr.bf16.gmra.mrb[0].mxu0 %v4230
    %v4531 = vpop.f32.mrb[0].mxu0
    %v4532 = vadd.f32 0.0, %v4531
    %v4533 = vpop.f32.mrb[0].mxu0
    %v4534 = vpop.f32.mrb[0].mxu0
    %v4535 = vadd.f32 0.0, %v4534
    %v4536 = vpop.f32.mrb[0].mxu0
    %4537 = vmatprep.mubr.bf16.mxu0 0
    %4538 = vmatmul.mubr.bf16.gmra.mrb[0].mxu0 %v4233
    %v4539 = vpop.f32.mrb[0].mxu0
    %v4540 = vadd.f32 0.0, %v4539
    %v4541 = vpop.f32.mrb[0].mxu0
    %v4542 = vpop.f32.mrb[0].mxu0
    %v4543 = vadd.f32 0.0, %v4542
    %v4544 = vpop.f32.mrb[0].mxu0
    %4545 = vmatprep.mubr.bf16.mxu0 0
    %4546 = vmatmul.mubr.bf16.gmra.mrb[0].mxu0 %v4236
    %v4547 = vpop.f32.mrb[0].mxu0
    %v4548 = vadd.f32 0.0, %v4547
    %v4549 = vpop.f32.mrb[0].mxu0
    %v4550 = vpop.f32.mrb[0].mxu0
    %v4551 = vadd.f32 0.0, %v4550
    %v4552 = vpop.f32.mrb[0].mxu0
    %4553 = vmatprep.mubr.bf16.mxu0 0
    %4554 = vmatmul.mubr.bf16.gmra.mrb[0].mxu0 %v4239
    %v4555 = vpop.f32.mrb[0].mxu0
    %v4556 = vadd.f32 0.0, %v4555
    %v4557 = vpop.f32.mrb[0].mxu0
    %v4558 = vpop.f32.mrb[0].mxu0
    %v4559 = vadd.f32 0.0, %v4558
    %v4560 = vpop.f32.mrb[0].mxu0
    %4561 = vmatprep.mubr.bf16.mxu0 0
    %4562 = vmatmul.mubr.bf16.gmra.mrb[0].mxu0 %v4242
    %v4563 = vpop.f32.mrb[0].mxu0
    %v4564 = vadd.f32 0.0, %v4563
    %v4565 = vpop.f32.mrb[0].mxu0
    %v4566 = vpop.f32.mrb[0].mxu0
    %v4567 = vadd.f32 0.0, %v4566
    %v4568 = vpop.f32.mrb[0].mxu0
    %4569 = vmatprep.mubr.bf16.mxu0 0
    %4570 = vmatmul.mubr.bf16.gmra.mrb[0].mxu0 %v4245
    %v4571 = vpop.f32.mrb[0].mxu0
    %v4572 = vadd.f32 0.0, %v4571
    %v4573 = vpop.f32.mrb[0].mxu0
    %v4574 = vpop.f32.mrb[0].mxu0
    %v4575 = vadd.f32 0.0, %v4574
    %v4576 = vpop.f32.mrb[0].mxu0
    %4577 = vmatprep.mubr.bf16.mxu0 0
    %4578 = vmatmul.mubr.bf16.gmra.mrb[0].mxu0 %v4248
    %v4579 = vpop.f32.mrb[0].mxu0
    %v4580 = vadd.f32 0.0, %v4579
    %v4581 = vpop.f32.mrb[0].mxu0
    %v4582 = vpop.f32.mrb[0].mxu0
    %v4583 = vadd.f32 0.0, %v4582
    %v4584 = vpop.f32.mrb[0].mxu0
    %4585 = vmatprep.mubr.bf16.mxu0 0
    %4586 = vmatmul.mubr.bf16.gmra.mrb[0].mxu0 %v4251
    %v4587 = vpop.f32.mrb[0].mxu0
    %v4588 = vadd.f32 0.0, %v4587
    %v4589 = vpop.f32.mrb[0].mxu0
    %v4590 = vpop.f32.mrb[0].mxu0
    %v4591 = vadd.f32 0.0, %v4590
    %v4592 = vpop.f32.mrb[0].mxu0
    %4593 = vmatprep.mubr.bf16.mxu0 0
    %4594 = vmatmul.mubr.bf16.gmra.mrb[0].mxu0 %v4254
    %v4595 = vpop.f32.mrb[0].mxu0
    %v4596 = vadd.f32 0.0, %v4595
    %v4597 = vpop.f32.mrb[0].mxu0
    %v4598 = vpop.f32.mrb[0].mxu0
    %v4599 = vadd.f32 0.0, %v4598
    %v4600 = vpop.f32.mrb[0].mxu0
    %4601 = vmatprep.mubr.bf16.mxu0 0
    %4602 = vmatmul.mubr.bf16.gmra.mrb[0].mxu0 %v4257
    %v4603 = vpop.f32.mrb[0].mxu0
    %v4604 = vadd.f32 0.0, %v4603
    %v4605 = vpop.f32.mrb[0].mxu0
    %v4606 = vpop.f32.mrb[0].mxu0
    %v4607 = vadd.f32 0.0, %v4606
    %v4608 = vpop.f32.mrb[0].mxu0
    %4609 = vmatprep.mubr.bf16.mxu0 0
    %4610 = vmatmul.mubr.bf16.gmra.mrb[0].mxu0 %v4260
    %v4611 = vpop.f32.mrb[0].mxu0
    %v4612 = vadd.f32 0.0, %v4611
    %v4613 = vpop.f32.mrb[0].mxu0
    %v4614 = vpop.f32.mrb[0].mxu0
    %v4615 = vadd.f32 0.0, %v4614
    %v4616 = vpop.f32.mrb[0].mxu0
    %4617 = vmatprep.mubr.bf16.mxu0 0
    %4618 = vmatmul.mubr.bf16.gmra.mrb[0].mxu0 %v4263
    %v4619 = vpop.f32.mrb[0].mxu0
    %v4620 = vadd.f32 0.0, %v4619
    %v4621 = vpop.f32.mrb[0].mxu0
    %v4622 = vpop.f32.mrb[0].mxu0
    %v4623 = vadd.f32 0.0, %v4622
    %v4624 = vpop.f32.mrb[0].mxu0
    %4625 = vmatprep.mubr.bf16.mxu0 0
    %4626 = vmatmul.mubr.bf16.gmra.mrb[0].mxu0 %v4266
    %v4627 = vpop.f32.mrb[0].mxu0
    %v4628 = vadd.f32 0.0, %v4627
    %v4629 = vpop.f32.mrb[0].mxu0
    %v4630 = vpop.f32.mrb[0].mxu0
    %v4631 = vadd.f32 0.0, %v4630
    %v4632 = vpop.f32.mrb[0].mxu0
    %4633 = vmatprep.mubr.bf16.mxu0 0
    %4634 = vmatmul.mubr.bf16.gmra.mrb[0].mxu0 %v4269
    %v4635 = vpop.f32.mrb[0].mxu0
    %v4636 = vadd.f32 0.0, %v4635
    %v4637 = vpop.f32.mrb[0].mxu0
    %v4638 = vpop.f32.mrb[0].mxu0
    %v4639 = vadd.f32 0.0, %v4638
    %v4640 = vpop.f32.mrb[0].mxu0
    %4641 = vmatprep.mubr.bf16.mxu0 0
    %4642 = vmatmul.mubr.bf16.gmra.mrb[0].mxu0 %v4272
    %v4643 = vpop.f32.mrb[0].mxu0
    %v4644 = vadd.f32 0.0, %v4643
    %v4645 = vpop.f32.mrb[0].mxu0
    %v4646 = vpop.f32.mrb[0].mxu0
    %v4647 = vadd.f32 0.0, %v4646
    %v4648 = vpop.f32.mrb[0].mxu0
    %4649 = vmatprep.mubr.bf16.mxu0 0
    %4650 = vmatmul.mubr.bf16.gmra.mrb[0].mxu0 %v4275
    %v4651 = vpop.f32.mrb[0].mxu0
    %v4652 = vadd.f32 0.0, %v4651
    %v4653 = vpop.f32.mrb[0].mxu0
    %v4654 = vpop.f32.mrb[0].mxu0
    %v4655 = vadd.f32 0.0, %v4654
    %v4656 = vpop.f32.mrb[0].mxu0
    %4657 = vmatprep.mubr.bf16.mxu0 0
    %4658 = vmatmul.mubr.bf16.gmra.mrb[0].mxu0 %v4278
    %v4659 = vpop.f32.mrb[0].mxu0
    %v4660 = vadd.f32 0.0, %v4659
    %v4661 = vpop.f32.mrb[0].mxu0
    %v4662 = vpop.f32.mrb[0].mxu0
    %v4663 = vadd.f32 0.0, %v4662
    %v4664 = vpop.f32.mrb[0].mxu0
    %4665 = vmatprep.mubr.bf16.mxu0 0
    %4666 = vmatmul.mubr.bf16.gmra.mrb[0].mxu0 %v4281
    %v4667 = vpop.f32.mrb[0].mxu0
    %v4668 = vadd.f32 0.0, %v4667
    %v4669 = vpop.f32.mrb[0].mxu0
    %v4670 = vpop.f32.mrb[0].mxu0
    %v4671 = vadd.f32 0.0, %v4670
    %v4672 = vpop.f32.mrb[0].mxu0
    %4673 = vmatprep.mubr.bf16.mxu0 0
    %4674 = vmatmul.mubr.bf16.gmra.mrb[0].mxu0 %v4284
    %v4675 = vpop.f32.mrb[0].mxu0
    %v4676 = vadd.f32 0.0, %v4675
    %v4677 = vpop.f32.mrb[0].mxu0
    %v4678 = vpop.f32.mrb[0].mxu0
    %v4679 = vadd.f32 0.0, %v4678
    %v4680 = vpop.f32.mrb[0].mxu0
    %4681 = vmatprep.mubr.bf16.mxu0 0
    %4682 = vmatmul.mubr.bf16.gmra.mrb[0].mxu0 %v4287
    %v4683 = vpop.f32.mrb[0].mxu0
    %v4684 = vadd.f32 0.0, %v4683
    %v4685 = vpop.f32.mrb[0].mxu0
    %v4686 = vpop.f32.mrb[0].mxu0
    %v4687 = vadd.f32 0.0, %v4686
    %v4688 = vpop.f32.mrb[0].mxu0
    %4689 = vmatprep.mubr.bf16.mxu0 0
    %4690 = vmatmul.mubr.bf16.gmra.mrb[0].mxu0 %v4290
    %v4691 = vpop.f32.mrb[0].mxu0
    %v4692 = vadd.f32 0.0, %v4691
    %v4693 = vpop.f32.mrb[0].mxu0
    %v4694 = vpop.f32.mrb[0].mxu0
    %v4695 = vadd.f32 0.0, %v4694
    %v4696 = vpop.f32.mrb[0].mxu0
    %4697 = vmatprep.mubr.bf16.mxu0 0
    %4698 = vmatmul.mubr.bf16.gmra.mrb[0].mxu0 %v4293
    %v4699 = vpop.f32.mrb[0].mxu0
    %v4700 = vadd.f32 0.0, %v4699
    %v4701 = vpop.f32.mrb[0].mxu0
    %v4702 = vpop.f32.mrb[0].mxu0
    %v4703 = vadd.f32 0.0, %v4702
    %v4704 = vpop.f32.mrb[0].mxu0
    %4705 = vmatprep.mubr.bf16.mxu0 0
    %4706 = vmatmul.mubr.bf16.gmra.mrb[0].mxu0 %v4296
    %v4707 = vpop.f32.mrb[0].mxu0
    %v4708 = vadd.f32 0.0, %v4707
    %v4709 = vpop.f32.mrb[0].mxu0
    %v4710 = vpop.f32.mrb[0].mxu0
    %v4711 = vadd.f32 0.0, %v4710
    %v4712 = vpop.f32.mrb[0].mxu0
    %4713 = vmatprep.mubr.bf16.mxu0 0
    %4714 = vmatmul.mubr.bf16.gmra.mrb[0].mxu0 %v4299
    %v4715 = vpop.f32.mrb[0].mxu0
    %v4716 = vadd.f32 0.0, %v4715
    %v4717 = vpop.f32.mrb[0].mxu0
    %v4718 = vpop.f32.mrb[0].mxu0
    %v4719 = vadd.f32 0.0, %v4718
    %v4720 = vpop.f32.mrb[0].mxu0
    %4721 = vmatprep.mubr.bf16.mxu0 0
    %4722 = vmatmul.mubr.bf16.gmra.mrb[0].mxu0 %v4302
    %v4723 = vpop.f32.mrb[0].mxu0
    %v4724 = vadd.f32 0.0, %v4723
    %v4725 = vpop.f32.mrb[0].mxu0
    %v4726 = vpop.f32.mrb[0].mxu0
    %v4727 = vadd.f32 0.0, %v4726
    %v4728 = vpop.f32.mrb[0].mxu0
    %4729 = vmatprep.mubr.bf16.mxu0 0
    %4730 = vmatmul.mubr.bf16.gmra.mrb[0].mxu0 %v4305
    %v4731 = vpop.f32.mrb[0].mxu0
    %v4732 = vadd.f32 0.0, %v4731
    %v4733 = vpop.f32.mrb[0].mxu0
    %v4734 = vpop.f32.mrb[0].mxu0
    %v4735 = vadd.f32 0.0, %v4734
    %v4736 = vpop.f32.mrb[0].mxu0
    %4737 = vmatprep.mubr.bf16.mxu0 0
    %4738 = vmatmul.mubr.bf16.gmra.mrb[0].mxu0 %v4308
    %v4739 = vpop.f32.mrb[0].mxu0
    %v4740 = vadd.f32 0.0, %v4739
    %v4741 = vpop.f32.mrb[0].mxu0
    %v4742 = vpop.f32.mrb[0].mxu0
    %v4743 = vadd.f32 0.0, %v4742
    %v4744 = vpop.f32.mrb[0].mxu0
    %4745 = vmatprep.mubr.bf16.mxu0 0
    %4746 = vmatmul.mubr.bf16.gmra.mrb[0].mxu0 %v4311
    %v4747 = vpop.f32.mrb[0].mxu0
    %v4748 = vadd.f32 0.0, %v4747
    %v4749 = vpop.f32.mrb[0].mxu0
    %v4750 = vpop.f32.mrb[0].mxu0
    %v4751 = vadd.f32 0.0, %v4750
    %v4752 = vpop.f32.mrb[0].mxu0
    %4753 = vdwg.mxu0
    %v4754 = vadd.f32 %v3670, %v4348
    %v4755 = vadd.f32 %v3673, %v4351
    %v4756 = vadd.f32 %v3678, %v4356
    %v4757 = vadd.f32 %v3681, %v4359
    %v4758 = vadd.f32 %v3686, %v4364
    %v4759 = vadd.f32 %v3689, %v4367
    %v4760 = vadd.f32 %v3694, %v4372
    %v4761 = vadd.f32 %v3697, %v4375
    %v4762 = vadd.f32 %v3702, %v4380
    %v4763 = vadd.f32 %v3705, %v4383
    %v4764 = vadd.f32 %v3710, %v4388
    %v4765 = vadd.f32 %v3713, %v4391
    %v4766 = vadd.f32 %v3718, %v4396
    %v4767 = vadd.f32 %v3721, %v4399
    %v4768 = vadd.f32 %v3726, %v4404
    %v4769 = vadd.f32 %v3729, %v4407
    %v4770 = vadd.f32 %v3734, %v4412
    %v4771 = vadd.f32 %v3737, %v4415
    %v4772 = vadd.f32 %v3742, %v4420
    %v4773 = vadd.f32 %v3745, %v4423
    %v4774 = vadd.f32 %v3750, %v4428
    %v4775 = vadd.f32 %v3753, %v4431
    %v4776 = vadd.f32 %v3758, %v4436
    %v4777 = vadd.f32 %v3761, %v4439
    %v4778 = vadd.f32 %v3766, %v4444
    %v4779 = vadd.f32 %v3769, %v4447
    %v4780 = vadd.f32 %v3774, %v4452
    %v4781 = vadd.f32 %v3777, %v4455
    %v4782 = vadd.f32 %v3782, %v4460
    %v4783 = vadd.f32 %v3785, %v4463
    %v4784 = vadd.f32 %v3790, %v4468
    %v4785 = vadd.f32 %v3793, %v4471
    %v4786 = vadd.f32 %v3798, %v4476
    %v4787 = vadd.f32 %v3801, %v4479
    %v4788 = vadd.f32 %v3806, %v4484
    %v4789 = vadd.f32 %v3809, %v4487
    %v4790 = vadd.f32 %v3814, %v4492
    %v4791 = vadd.f32 %v3817, %v4495
    %v4792 = vadd.f32 %v3822, %v4500
    %v4793 = vadd.f32 %v3825, %v4503
    %v4794 = vadd.f32 %v3830, %v4508
    %v4795 = vadd.f32 %v3833, %v4511
    %v4796 = vadd.f32 %v3838, %v4516
    %v4797 = vadd.f32 %v3841, %v4519
    %v4798 = vadd.f32 %v3846, %v4524
    %v4799 = vadd.f32 %v3849, %v4527
    %v4800 = vadd.f32 %v3854, %v4532
    %v4801 = vadd.f32 %v3857, %v4535
    %v4802 = vadd.f32 %v3862, %v4540
    %v4803 = vadd.f32 %v3865, %v4543
    %v4804 = vadd.f32 %v3870, %v4548
    %v4805 = vadd.f32 %v3873, %v4551
    %v4806 = vadd.f32 %v3878, %v4556
    %v4807 = vadd.f32 %v3881, %v4559
    %v4808 = vadd.f32 %v3886, %v4564
    %v4809 = vadd.f32 %v3889, %v4567
    %v4810 = vadd.f32 %v3894, %v4572
    %v4811 = vadd.f32 %v3897, %v4575
    %v4812 = vadd.f32 %v3902, %v4580
    %v4813 = vadd.f32 %v3905, %v4583
    %v4814 = vadd.f32 %v3910, %v4588
    %v4815 = vadd.f32 %v3913, %v4591
    %v4816 = vadd.f32 %v3918, %v4596
    %v4817 = vadd.f32 %v3921, %v4599
    %v4818 = vadd.f32 %v3926, %v4604
    %v4819 = vadd.f32 %v3929, %v4607
    %v4820 = vadd.f32 %v3934, %v4612
    %v4821 = vadd.f32 %v3937, %v4615
    %v4822 = vadd.f32 %v3942, %v4620
    %v4823 = vadd.f32 %v3945, %v4623
    %v4824 = vadd.f32 %v3950, %v4628
    %v4825 = vadd.f32 %v3953, %v4631
    %v4826 = vadd.f32 %v3958, %v4636
    %v4827 = vadd.f32 %v3961, %v4639
    %v4828 = vadd.f32 %v3966, %v4644
    %v4829 = vadd.f32 %v3969, %v4647
    %v4830 = vadd.f32 %v3974, %v4652
    %v4831 = vadd.f32 %v3977, %v4655
    %v4832 = vadd.f32 %v3982, %v4660
    %v4833 = vadd.f32 %v3985, %v4663
    %v4834 = vadd.f32 %v3990, %v4668
    %v4835 = vadd.f32 %v3993, %v4671
    %v4836 = vadd.f32 %v3998, %v4676
    %v4837 = vadd.f32 %v4001, %v4679
    %v4838 = vadd.f32 %v4006, %v4684
    %v4839 = vadd.f32 %v4009, %v4687
    %v4840 = vadd.f32 %v4014, %v4692
    %v4841 = vadd.f32 %v4017, %v4695
    %v4842 = vadd.f32 %v4022, %v4700
    %v4843 = vadd.f32 %v4025, %v4703
    %v4844 = vadd.f32 %v4030, %v4708
    %v4845 = vadd.f32 %v4033, %v4711
    %v4846 = vadd.f32 %v4038, %v4716
    %v4847 = vadd.f32 %v4041, %v4719
    %v4848 = vadd.f32 %v4046, %v4724
    %v4849 = vadd.f32 %v4049, %v4727
    %v4850 = vadd.f32 %v4054, %v4732
    %v4851 = vadd.f32 %v4057, %v4735
    %v4852 = vadd.f32 %v4062, %v4740
    %v4853 = vadd.f32 %v4065, %v4743
    %v4854 = vadd.f32 %v4070, %v4748
    %v4855 = vadd.f32 %v4073, %v4751
    %v4856 = vld [vmem:[#allocation9] sm:$0x1]
    %v4858 = vlaneseq
    %v4859 = vshrl.u32 %v4858, 7
    %v4860 = vsub.s32 0, %v4859
    %v4861 = vrot.slane %v4856, %v4860
    %v4863 = vadd.f32 %v4754, %v4861
    %v4864 = vadd.f32 %v4755, %v4861
    %v4865 = vadd.f32 %v4756, %v4861
    %v4866 = vadd.f32 %v4757, %v4861
    %v4867 = vadd.f32 %v4758, %v4861
    %v4868 = vadd.f32 %v4759, %v4861
    %v4869 = vadd.f32 %v4760, %v4861
    %v4870 = vadd.f32 %v4761, %v4861
    %v4871 = vadd.f32 %v4762, %v4861
    %v4872 = vadd.f32 %v4763, %v4861
    %v4873 = vadd.f32 %v4764, %v4861
    %v4874 = vadd.f32 %v4765, %v4861
    %v4875 = vadd.f32 %v4766, %v4861
    %v4876 = vadd.f32 %v4767, %v4861
    %v4877 = vadd.f32 %v4768, %v4861
    %v4878 = vadd.f32 %v4769, %v4861
    %v4879 = vadd.f32 %v4770, %v4861
    %v4880 = vadd.f32 %v4771, %v4861
    %v4881 = vadd.f32 %v4772, %v4861
    %v4882 = vadd.f32 %v4773, %v4861
    %v4883 = vadd.f32 %v4774, %v4861
    %v4884 = vadd.f32 %v4775, %v4861
    %v4885 = vadd.f32 %v4776, %v4861
    %v4886 = vadd.f32 %v4777, %v4861
    %v4887 = vadd.f32 %v4778, %v4861
    %v4888 = vadd.f32 %v4779, %v4861
    %v4889 = vadd.f32 %v4780, %v4861
    %v4890 = vadd.f32 %v4781, %v4861
    %v4891 = vadd.f32 %v4782, %v4861
    %v4892 = vadd.f32 %v4783, %v4861
    %v4893 = vadd.f32 %v4784, %v4861
    %v4894 = vadd.f32 %v4785, %v4861
    %v4895 = vadd.f32 %v4786, %v4861
    %v4896 = vadd.f32 %v4787, %v4861
    %v4897 = vadd.f32 %v4788, %v4861
    %v4898 = vadd.f32 %v4789, %v4861
    %v4899 = vadd.f32 %v4790, %v4861
    %v4900 = vadd.f32 %v4791, %v4861
    %v4901 = vadd.f32 %v4792, %v4861
    %v4902 = vadd.f32 %v4793, %v4861
    %v4903 = vadd.f32 %v4794, %v4861
    %v4904 = vadd.f32 %v4795, %v4861
    %v4905 = vadd.f32 %v4796, %v4861
    %v4906 = vadd.f32 %v4797, %v4861
    %v4907 = vadd.f32 %v4798, %v4861
    %v4908 = vadd.f32 %v4799, %v4861
    %v4909 = vadd.f32 %v4800, %v4861
    %v4910 = vadd.f32 %v4801, %v4861
    %v4911 = vadd.f32 %v4802, %v4861
    %v4912 = vadd.f32 %v4803, %v4861
    %v4913 = vadd.f32 %v4804, %v4861
    %v4914 = vadd.f32 %v4805, %v4861
    %v4915 = vadd.f32 %v4806, %v4861
    %v4916 = vadd.f32 %v4807, %v4861
    %v4917 = vadd.f32 %v4808, %v4861
    %v4918 = vadd.f32 %v4809, %v4861
    %v4919 = vadd.f32 %v4810, %v4861
    %v4920 = vadd.f32 %v4811, %v4861
    %v4921 = vadd.f32 %v4812, %v4861
    %v4922 = vadd.f32 %v4813, %v4861
    %v4923 = vadd.f32 %v4814, %v4861
    %v4924 = vadd.f32 %v4815, %v4861
    %v4925 = vadd.f32 %v4816, %v4861
    %v4926 = vadd.f32 %v4817, %v4861
    %v4927 = vadd.f32 %v4818, %v4861
    %v4928 = vadd.f32 %v4819, %v4861
    %v4929 = vadd.f32 %v4820, %v4861
    %v4930 = vadd.f32 %v4821, %v4861
    %v4931 = vadd.f32 %v4822, %v4861
    %v4932 = vadd.f32 %v4823, %v4861
    %v4933 = vadd.f32 %v4824, %v4861
    %v4934 = vadd.f32 %v4825, %v4861
    %v4935 = vadd.f32 %v4826, %v4861
    %v4936 = vadd.f32 %v4827, %v4861
    %v4937 = vadd.f32 %v4828, %v4861
    %v4938 = vadd.f32 %v4829, %v4861
    %v4939 = vadd.f32 %v4830, %v4861
    %v4940 = vadd.f32 %v4831, %v4861
    %v4941 = vadd.f32 %v4832, %v4861
    %v4942 = vadd.f32 %v4833, %v4861
    %v4943 = vadd.f32 %v4834, %v4861
    %v4944 = vadd.f32 %v4835, %v4861
    %v4945 = vadd.f32 %v4836, %v4861
    %v4946 = vadd.f32 %v4837, %v4861
    %v4947 = vadd.f32 %v4838, %v4861
    %v4948 = vadd.f32 %v4839, %v4861
    %v4949 = vadd.f32 %v4840, %v4861
    %v4950 = vadd.f32 %v4841, %v4861
    %v4951 = vadd.f32 %v4842, %v4861
    %v4952 = vadd.f32 %v4843, %v4861
    %v4953 = vadd.f32 %v4844, %v4861
    %v4954 = vadd.f32 %v4845, %v4861
    %v4955 = vadd.f32 %v4846, %v4861
    %v4956 = vadd.f32 %v4847, %v4861
    %v4957 = vadd.f32 %v4848, %v4861
    %v4958 = vadd.f32 %v4849, %v4861
    %v4959 = vadd.f32 %v4850, %v4861
    %v4960 = vadd.f32 %v4851, %v4861
    %v4961 = vadd.f32 %v4852, %v4861
    %v4962 = vadd.f32 %v4853, %v4861
    %v4963 = vadd.f32 %v4854, %v4861
    %v4964 = vadd.f32 %v4855, %v4861
    %v4965 = vmax.f32 %v4863, 0.0
    %v4966 = vmax.f32 %v4864, 0.0
    %v4967 = vmax.f32 %v4865, 0.0
    %v4968 = vmax.f32 %v4866, 0.0
    %v4969 = vmax.f32 %v4867, 0.0
    %v4970 = vmax.f32 %v4868, 0.0
    %v4971 = vmax.f32 %v4869, 0.0
    %v4972 = vmax.f32 %v4870, 0.0
    %v4973 = vmax.f32 %v4871, 0.0
    %v4974 = vmax.f32 %v4872, 0.0
    %v4975 = vmax.f32 %v4873, 0.0
    %v4976 = vmax.f32 %v4874, 0.0
    %v4977 = vmax.f32 %v4875, 0.0
    %v4978 = vmax.f32 %v4876, 0.0
    %v4979 = vmax.f32 %v4877, 0.0
    %v4980 = vmax.f32 %v4878, 0.0
    %v4981 = vmax.f32 %v4879, 0.0
    %v4982 = vmax.f32 %v4880, 0.0
    %v4983 = vmax.f32 %v4881, 0.0
    %v4984 = vmax.f32 %v4882, 0.0
    %v4985 = vmax.f32 %v4883, 0.0
    %v4986 = vmax.f32 %v4884, 0.0
    %v4987 = vmax.f32 %v4885, 0.0
    %v4988 = vmax.f32 %v4886, 0.0
    %v4989 = vmax.f32 %v4887, 0.0
    %v4990 = vmax.f32 %v4888, 0.0
    %v4991 = vmax.f32 %v4889, 0.0
    %v4992 = vmax.f32 %v4890, 0.0
    %v4993 = vmax.f32 %v4891, 0.0
    %v4994 = vmax.f32 %v4892, 0.0
    %v4995 = vmax.f32 %v4893, 0.0
    %v4996 = vmax.f32 %v4894, 0.0
    %v4997 = vmax.f32 %v4895, 0.0
    %v4998 = vmax.f32 %v4896, 0.0
    %v4999 = vmax.f32 %v4897, 0.0
    %v5000 = vmax.f32 %v4898, 0.0
    %v5001 = vmax.f32 %v4899, 0.0
    %v5002 = vmax.f32 %v4900, 0.0
    %v5003 = vmax.f32 %v4901, 0.0
    %v5004 = vmax.f32 %v4902, 0.0
    %v5005 = vmax.f32 %v4903, 0.0
    %v5006 = vmax.f32 %v4904, 0.0
    %v5007 = vmax.f32 %v4905, 0.0
    %v5008 = vmax.f32 %v4906, 0.0
    %v5009 = vmax.f32 %v4907, 0.0
    %v5010 = vmax.f32 %v4908, 0.0
    %v5011 = vmax.f32 %v4909, 0.0
    %v5012 = vmax.f32 %v4910, 0.0
    %v5013 = vmax.f32 %v4911, 0.0
    %v5014 = vmax.f32 %v4912, 0.0
    %v5015 = vmax.f32 %v4913, 0.0
    %v5016 = vmax.f32 %v4914, 0.0
    %v5017 = vmax.f32 %v4915, 0.0
    %v5018 = vmax.f32 %v4916, 0.0
    %v5019 = vmax.f32 %v4917, 0.0
    %v5020 = vmax.f32 %v4918, 0.0
    %v5021 = vmax.f32 %v4919, 0.0
    %v5022 = vmax.f32 %v4920, 0.0
    %v5023 = vmax.f32 %v4921, 0.0
    %v5024 = vmax.f32 %v4922, 0.0
    %v5025 = vmax.f32 %v4923, 0.0
    %v5026 = vmax.f32 %v4924, 0.0
    %v5027 = vmax.f32 %v4925, 0.0
    %v5028 = vmax.f32 %v4926, 0.0
    %v5029 = vmax.f32 %v4927, 0.0
    %v5030 = vmax.f32 %v4928, 0.0
    %v5031 = vmax.f32 %v4929, 0.0
    %v5032 = vmax.f32 %v4930, 0.0
    %v5033 = vmax.f32 %v4931, 0.0
    %v5034 = vmax.f32 %v4932, 0.0
    %v5035 = vmax.f32 %v4933, 0.0
    %v5036 = vmax.f32 %v4934, 0.0
    %v5037 = vmax.f32 %v4935, 0.0
    %v5038 = vmax.f32 %v4936, 0.0
    %v5039 = vmax.f32 %v4937, 0.0
    %v5040 = vmax.f32 %v4938, 0.0
    %v5041 = vmax.f32 %v4939, 0.0
    %v5042 = vmax.f32 %v4940, 0.0
    %v5043 = vmax.f32 %v4941, 0.0
    %v5044 = vmax.f32 %v4942, 0.0
    %v5045 = vmax.f32 %v4943, 0.0
    %v5046 = vmax.f32 %v4944, 0.0
    %v5047 = vmax.f32 %v4945, 0.0
    %v5048 = vmax.f32 %v4946, 0.0
    %v5049 = vmax.f32 %v4947, 0.0
    %v5050 = vmax.f32 %v4948, 0.0
    %v5051 = vmax.f32 %v4949, 0.0
    %v5052 = vmax.f32 %v4950, 0.0
    %v5053 = vmax.f32 %v4951, 0.0
    %v5054 = vmax.f32 %v4952, 0.0
    %v5055 = vmax.f32 %v4953, 0.0
    %v5056 = vmax.f32 %v4954, 0.0
    %v5057 = vmax.f32 %v4955, 0.0
    %v5058 = vmax.f32 %v4956, 0.0
    %v5059 = vmax.f32 %v4957, 0.0
    %v5060 = vmax.f32 %v4958, 0.0
    %v5061 = vmax.f32 %v4959, 0.0
    %v5062 = vmax.f32 %v4960, 0.0
    %v5063 = vmax.f32 %v4961, 0.0
    %v5064 = vmax.f32 %v4962, 0.0
    %v5065 = vmax.f32 %v4963, 0.0
    %v5066 = vmax.f32 %v4964, 0.0
    %v5067 = vpack.c.bf16 %v4966, %v4965
    %v5068 = vpack.c.bf16 %v4968, %v4967
    %v5069 = vpack.c.bf16 %v4970, %v4969
    %v5070 = vpack.c.bf16 %v4972, %v4971
    %v5071 = vpack.c.bf16 %v4974, %v4973
    %v5072 = vpack.c.bf16 %v4976, %v4975
    %v5073 = vpack.c.bf16 %v4978, %v4977
    %v5074 = vpack.c.bf16 %v4980, %v4979
    %v5075 = vpack.c.bf16 %v4982, %v4981
    %v5076 = vpack.c.bf16 %v4984, %v4983
    %v5077 = vpack.c.bf16 %v4986, %v4985
    %v5078 = vpack.c.bf16 %v4988, %v4987
    %v5079 = vpack.c.bf16 %v4990, %v4989
    %v5080 = vpack.c.bf16 %v4992, %v4991
    %v5081 = vpack.c.bf16 %v4994, %v4993
    %v5082 = vpack.c.bf16 %v4996, %v4995
    %v5083 = vpack.c.bf16 %v4998, %v4997
    %v5084 = vpack.c.bf16 %v5000, %v4999
    %v5085 = vpack.c.bf16 %v5002, %v5001
    %v5086 = vpack.c.bf16 %v5004, %v5003
    %v5087 = vpack.c.bf16 %v5006, %v5005
    %v5088 = vpack.c.bf16 %v5008, %v5007
    %v5089 = vpack.c.bf16 %v5010, %v5009
    %v5090 = vpack.c.bf16 %v5012, %v5011
    %v5091 = vpack.c.bf16 %v5014, %v5013
    %v5092 = vpack.c.bf16 %v5016, %v5015
    %v5093 = vpack.c.bf16 %v5018, %v5017
    %v5094 = vpack.c.bf16 %v5020, %v5019
    %v5095 = vpack.c.bf16 %v5022, %v5021
    %v5096 = vpack.c.bf16 %v5024, %v5023
    %v5097 = vpack.c.bf16 %v5026, %v5025
    %v5098 = vpack.c.bf16 %v5028, %v5027
    %v5099 = vpack.c.bf16 %v5030, %v5029
    %v5100 = vpack.c.bf16 %v5032, %v5031
    %v5101 = vpack.c.bf16 %v5034, %v5033
    %v5102 = vpack.c.bf16 %v5036, %v5035
    %v5103 = vpack.c.bf16 %v5038, %v5037
    %v5104 = vpack.c.bf16 %v5040, %v5039
    %v5105 = vpack.c.bf16 %v5042, %v5041
    %v5106 = vpack.c.bf16 %v5044, %v5043
    %v5107 = vpack.c.bf16 %v5046, %v5045
    %v5108 = vpack.c.bf16 %v5048, %v5047
    %v5109 = vpack.c.bf16 %v5050, %v5049
    %v5110 = vpack.c.bf16 %v5052, %v5051
    %v5111 = vpack.c.bf16 %v5054, %v5053
    %v5112 = vpack.c.bf16 %v5056, %v5055
    %v5113 = vpack.c.bf16 %v5058, %v5057
    %v5114 = vpack.c.bf16 %v5060, %v5059
    %v5115 = vpack.c.bf16 %v5062, %v5061
    %v5116 = vpack.c.bf16 %v5064, %v5063
    %v5117 = vpack.c.bf16 %v5066, %v5065
    %5118 = vst [vmem:[#allocation3] sm:$0xff] %v5067
    %5119 = vst [vmem:[#allocation3 + $0x8] sm:$0xff] %v5068
    %5120 = vst [vmem:[#allocation3 + $0x10] sm:$0xff] %v5069
    %5121 = vst [vmem:[#allocation3 + $0x18] sm:$0xff] %v5070
    %5122 = vst [vmem:[#allocation3 + $0x20] sm:$0xff] %v5071
    %5123 = vst [vmem:[#allocation3 + $0x28] sm:$0xff] %v5072
    %5124 = vst [vmem:[#allocation3 + $0x30] sm:$0xff] %v5073
    %5125 = vst [vmem:[#allocation3 + $0x38] sm:$0xff] %v5074
    %5126 = vst [vmem:[#allocation3 + $0x40] sm:$0xff] %v5075
    %5127 = vst [vmem:[#allocation3 + $0x48] sm:$0xff] %v5076
    %5128 = vst [vmem:[#allocation3 + $0x50] sm:$0xff] %v5077
    %5129 = vst [vmem:[#allocation3 + $0x58] sm:$0xff] %v5078
    %5130 = vst [vmem:[#allocation3 + $0x60] sm:$0xff] %v5079
    %5131 = vst [vmem:[#allocation3 + $0x68] sm:$0xff] %v5080
    %5132 = vst [vmem:[#allocation3 + $0x70] sm:$0xff] %v5081
    %5133 = vst [vmem:[#allocation3 + $0x78] sm:$0xff] %v5082
    %5134 = vst [vmem:[#allocation3 + $0x80] sm:$0xff] %v5083
    %5135 = vst [vmem:[#allocation3 + $0x88] sm:$0xff] %v5084
    %5136 = vst [vmem:[#allocation3 + $0x90] sm:$0xff] %v5085
    %5137 = vst [vmem:[#allocation3 + $0x98] sm:$0xff] %v5086
    %5138 = vst [vmem:[#allocation3 + $0xa0] sm:$0xff] %v5087
    %5139 = vst [vmem:[#allocation3 + $0xa8] sm:$0xff] %v5088
    %5140 = vst [vmem:[#allocation3 + $0xb0] sm:$0xff] %v5089
    %5141 = vst [vmem:[#allocation3 + $0xb8] sm:$0xff] %v5090
    %5142 = vst [vmem:[#allocation3 + $0xc0] sm:$0xff] %v5091
    %5143 = vst [vmem:[#allocation3 + $0xc8] sm:$0xff] %v5092
    %5144 = vst [vmem:[#allocation3 + $0xd0] sm:$0xff] %v5093
    %5145 = vst [vmem:[#allocation3 + $0xd8] sm:$0xff] %v5094
    %5146 = vst [vmem:[#allocation3 + $0xe0] sm:$0xff] %v5095
    %5147 = vst [vmem:[#allocation3 + $0xe8] sm:$0xff] %v5096
    %5148 = vst [vmem:[#allocation3 + $0xf0] sm:$0xff] %v5097
    %5149 = vst [vmem:[#allocation3 + $0xf8] sm:$0xff] %v5098
    %5150 = vst [vmem:[#allocation3 + $0x100] sm:$0xff] %v5099
    %5151 = vst [vmem:[#allocation3 + $0x108] sm:$0xff] %v5100
    %5152 = vst [vmem:[#allocation3 + $0x110] sm:$0xff] %v5101
    %5153 = vst [vmem:[#allocation3 + $0x118] sm:$0xff] %v5102
    %5154 = vst [vmem:[#allocation3 + $0x120] sm:$0xff] %v5103
    %5155 = vst [vmem:[#allocation3 + $0x128] sm:$0xff] %v5104
    %5156 = vst [vmem:[#allocation3 + $0x130] sm:$0xff] %v5105
    %5157 = vst [vmem:[#allocation3 + $0x138] sm:$0xff] %v5106
    %5158 = vst [vmem:[#allocation3 + $0x140] sm:$0xff] %v5107
    %5159 = vst [vmem:[#allocation3 + $0x148] sm:$0xff] %v5108
    %5160 = vst [vmem:[#allocation3 + $0x150] sm:$0xff] %v5109
    %5161 = vst [vmem:[#allocation3 + $0x158] sm:$0xff] %v5110
    %5162 = vst [vmem:[#allocation3 + $0x160] sm:$0xff] %v5111
    %5163 = vst [vmem:[#allocation3 + $0x168] sm:$0xff] %v5112
    %5164 = vst [vmem:[#allocation3 + $0x170] sm:$0xff] %v5113
    %5165 = vst [vmem:[#allocation3 + $0x178] sm:$0xff] %v5114
    %5166 = vst [vmem:[#allocation3 + $0x180] sm:$0xff] %v5115
    %5167 = vst [vmem:[#allocation3 + $0x188] sm:$0xff] %v5116
    %5168 = vst [vmem:[#allocation3 + $0x190] sm:$0xff] %v5117
    %v5169 = vld [vmem:[#allocation3] sm:$0xff]
    %v5170 = vld [vmem:[#allocation11] sm:$0xf]
    %v5171 = vld [vmem:[#allocation11 + $0x4] sm:$0xf]
    %v5172 = vld [vmem:[#allocation11 + $0x8] sm:$0xf]
    %v5173 = vld [vmem:[#allocation11 + $0xc] sm:$0xf]
    %v5174 = vld [vmem:[#allocation11 + $0x10] sm:$0xf]
    %v5175 = vld [vmem:[#allocation11 + $0x14] sm:$0xf]
    %v5176 = vld [vmem:[#allocation11 + $0x18] sm:$0xf]
    %v5177 = vld [vmem:[#allocation11 + $0x1c] sm:$0xf]
    %v5178 = vld [vmem:[#allocation11 + $0x20] sm:$0xf]
    %v5179 = vld [vmem:[#allocation11 + $0x24] sm:$0xf]
    %v5180 = vld [vmem:[#allocation11 + $0x28] sm:$0xf]
    %v5181 = vld [vmem:[#allocation11 + $0x2c] sm:$0xf]
    %v5182 = vld [vmem:[#allocation11 + $0x30] sm:$0xf]
    %v5183 = vld [vmem:[#allocation11 + $0x34] sm:$0xf]
    %v5184 = vld [vmem:[#allocation11 + $0x38] sm:$0xf]
    %v5185 = vld [vmem:[#allocation11 + $0x3c] sm:$0xf]
    %v5186 = vld [vmem:[#allocation3 + $0x8] sm:$0xff]
    %s5187 = scalar_lea.vmem [#allocation11], 64
    %v5188 = vld [vmem:[%s5187] sm:$0xf]
    %v5189 = vld [vmem:[%s5187 + $0x4] sm:$0xf]
    %v5190 = vld [vmem:[%s5187 + $0x8] sm:$0xf]
    %v5191 = vld [vmem:[%s5187 + $0xc] sm:$0xf]
    %v5192 = vld [vmem:[%s5187 + $0x10] sm:$0xf]
    %v5193 = vld [vmem:[%s5187 + $0x14] sm:$0xf]
    %v5194 = vld [vmem:[%s5187 + $0x18] sm:$0xf]
    %v5195 = vld [vmem:[%s5187 + $0x1c] sm:$0xf]
    %v5196 = vld [vmem:[%s5187 + $0x20] sm:$0xf]
    %v5197 = vld [vmem:[%s5187 + $0x24] sm:$0xf]
    %v5198 = vld [vmem:[%s5187 + $0x28] sm:$0xf]
    %v5199 = vld [vmem:[%s5187 + $0x2c] sm:$0xf]
    %v5200 = vld [vmem:[%s5187 + $0x30] sm:$0xf]
    %v5201 = vld [vmem:[%s5187 + $0x34] sm:$0xf]
    %v5202 = vld [vmem:[%s5187 + $0x38] sm:$0xf]
    %v5203 = vld [vmem:[%s5187 + $0x3c] sm:$0xf]
    %v5220 = vunpack.c.l.b16 %v5188
    %v5221 = vunpack.c.l.b16 %v5189
    %v5222 = vunpack.c.l.b16 %v5190
    %v5223 = vunpack.c.l.b16 %v5191
    %v5224 = vunpack.c.l.b16 %v5192
    %v5225 = vunpack.c.l.b16 %v5193
    %v5226 = vunpack.c.l.b16 %v5194
    %v5227 = vunpack.c.l.b16 %v5195
    %v5228 = vunpack.c.l.b16 %v5196
    %v5229 = vunpack.c.l.b16 %v5197
    %v5230 = vunpack.c.l.b16 %v5198
    %v5231 = vunpack.c.l.b16 %v5199
    %v5232 = vunpack.c.l.b16 %v5200
    %v5233 = vunpack.c.l.b16 %v5201
    %v5234 = vunpack.c.l.b16 %v5202
    %v5235 = vunpack.c.l.b16 %v5203
    %v5236 = vpack.c.b16 %v5221, %v5220
    %v5237 = vpack.c.b16 %v5223, %v5222
    %v5238 = vpack.c.b16 %v5225, %v5224
    %v5239 = vpack.c.b16 %v5227, %v5226
    %v5240 = vpack.c.b16 %v5229, %v5228
    %v5241 = vpack.c.b16 %v5231, %v5230
    %v5242 = vpack.c.b16 %v5233, %v5232
    %v5243 = vpack.c.b16 %v5235, %v5234
    %5252 = vmatprep.subr.bf16.mxu0 0
    %5253 = vmatpush1.bf16.msra.mxu0 %v5236
    %5254 = vmatprep.subr.bf16.mxu0 0
    %5255 = vmatpush1.bf16.msra.mxu0 %v5237
    %5256 = vmatprep.subr.bf16.mxu0 0
    %5257 = vmatpush1.bf16.msra.mxu0 %v5238
    %5258 = vmatprep.subr.bf16.mxu0 0
    %5259 = vmatpush1.bf16.msra.mxu0 %v5239
    %5260 = vmatprep.subr.bf16.mxu0 0
    %5261 = vmatpush1.bf16.msra.mxu0 %v5240
    %5262 = vmatprep.subr.bf16.mxu0 0
    %5263 = vmatpush1.bf16.msra.mxu0 %v5241
    %5264 = vmatprep.subr.bf16.mxu0 0
    %5265 = vmatpush1.bf16.msra.mxu0 %v5242
    %5266 = vmatprep.subr.bf16.mxu0 0
    %5267 = vmatpush1.bf16.msra.mxu0 %v5243
    %5268 = vmatprep.subr.bf16.mxu0 0
    %5269 = vmatpush1.bf16.msra.mxu0 0
    %5270 = vmatprep.subr.bf16.mxu0 0
    %5271 = vmatpush1.bf16.msra.mxu0 0
    %5272 = vmatprep.subr.bf16.mxu0 0
    %5273 = vmatpush1.bf16.msra.mxu0 0
    %5274 = vmatprep.subr.bf16.mxu0 0
    %5275 = vmatpush1.bf16.msra.mxu0 0
    %5276 = vmatprep.subr.bf16.mxu0 0
    %5277 = vmatpush1.bf16.msra.mxu0 0
    %5278 = vmatprep.subr.bf16.mxu0 0
    %5279 = vmatpush1.bf16.msra.mxu0 0
    %5280 = vmatprep.subr.bf16.mxu0 0
    %5281 = vmatpush1.bf16.msra.mxu0 0
    %5282 = vmatprep.subr.bf16.mxu0 0
    %5283 = vmatpush1.bf16.msra.mxu0 0
    %5284 = vmatprep.mubr.bf16.mxu0 0
    %5285 = vmatmul.mubr.bf16.gmra.mrb[0].mxu0 %v5186
    %v5286 = vpop.f32.mrb[0].mxu0
    %v5287 = vadd.f32 0.0, %v5286
    %v5288 = vpop.f32.mrb[0].mxu0
    %v5289 = vpop.f32.mrb[0].mxu0
    %v5290 = vadd.f32 0.0, %v5289
    %v5291 = vpop.f32.mrb[0].mxu0
    %5292 = vdwg.mxu0
    %v5309 = vunpack.c.l.b16 %v5170
    %v5310 = vunpack.c.l.b16 %v5171
    %v5311 = vunpack.c.l.b16 %v5172
    %v5312 = vunpack.c.l.b16 %v5173
    %v5313 = vunpack.c.l.b16 %v5174
    %v5314 = vunpack.c.l.b16 %v5175
    %v5315 = vunpack.c.l.b16 %v5176
    %v5316 = vunpack.c.l.b16 %v5177
    %v5317 = vunpack.c.l.b16 %v5178
    %v5318 = vunpack.c.l.b16 %v5179
    %v5319 = vunpack.c.l.b16 %v5180
    %v5320 = vunpack.c.l.b16 %v5181
    %v5321 = vunpack.c.l.b16 %v5182
    %v5322 = vunpack.c.l.b16 %v5183
    %v5323 = vunpack.c.l.b16 %v5184
    %v5324 = vunpack.c.l.b16 %v5185
    %v5325 = vpack.c.b16 %v5310, %v5309
    %v5326 = vpack.c.b16 %v5312, %v5311
    %v5327 = vpack.c.b16 %v5314, %v5313
    %v5328 = vpack.c.b16 %v5316, %v5315
    %v5329 = vpack.c.b16 %v5318, %v5317
    %v5330 = vpack.c.b16 %v5320, %v5319
    %v5331 = vpack.c.b16 %v5322, %v5321
    %v5332 = vpack.c.b16 %v5324, %v5323
    %5341 = vmatprep.subr.bf16.mxu0 0
    %5342 = vmatpush1.bf16.msra.mxu0 %v5325
    %5343 = vmatprep.subr.bf16.mxu0 0
    %5344 = vmatpush1.bf16.msra.mxu0 %v5326
    %5345 = vmatprep.subr.bf16.mxu0 0
    %5346 = vmatpush1.bf16.msra.mxu0 %v5327
    %5347 = vmatprep.subr.bf16.mxu0 0
    %5348 = vmatpush1.bf16.msra.mxu0 %v5328
    %5349 = vmatprep.subr.bf16.mxu0 0
    %5350 = vmatpush1.bf16.msra.mxu0 %v5329
    %5351 = vmatprep.subr.bf16.mxu0 0
    %5352 = vmatpush1.bf16.msra.mxu0 %v5330
    %5353 = vmatprep.subr.bf16.mxu0 0
    %5354 = vmatpush1.bf16.msra.mxu0 %v5331
    %5355 = vmatprep.subr.bf16.mxu0 0
    %5356 = vmatpush1.bf16.msra.mxu0 %v5332
    %5357 = vmatprep.subr.bf16.mxu0 0
    %5358 = vmatpush1.bf16.msra.mxu0 0
    %5359 = vmatprep.subr.bf16.mxu0 0
    %5360 = vmatpush1.bf16.msra.mxu0 0
    %5361 = vmatprep.subr.bf16.mxu0 0
    %5362 = vmatpush1.bf16.msra.mxu0 0
    %5363 = vmatprep.subr.bf16.mxu0 0
    %5364 = vmatpush1.bf16.msra.mxu0 0
    %5365 = vmatprep.subr.bf16.mxu0 0
    %5366 = vmatpush1.bf16.msra.mxu0 0
    %5367 = vmatprep.subr.bf16.mxu0 0
    %5368 = vmatpush1.bf16.msra.mxu0 0
    %5369 = vmatprep.subr.bf16.mxu0 0
    %5370 = vmatpush1.bf16.msra.mxu0 0
    %5371 = vmatprep.subr.bf16.mxu0 0
    %5372 = vmatpush1.bf16.msra.mxu0 0
    %5373 = vmatprep.mubr.bf16.mxu0 0
    %5374 = vmatmul.mubr.bf16.gmra.mrb[0].mxu0 %v5169
    %v5375 = vpop.f32.mrb[0].mxu0
    %v5376 = vadd.f32 %v5287, %v5375
    %v5377 = vpop.f32.mrb[0].mxu0
    %v5378 = vpop.f32.mrb[0].mxu0
    %v5379 = vadd.f32 %v5290, %v5378
    %v5380 = vpop.f32.mrb[0].mxu0
    %5381 = vdwg.mxu0
    %v5382 = vld [vmem:[#allocation3 + $0x10] sm:$0xff]
    %s5383 = scalar_lea.vmem [#allocation11], 128
    %v5384 = vld [vmem:[%s5383] sm:$0xf]
    %v5385 = vld [vmem:[%s5383 + $0x4] sm:$0xf]
    %v5386 = vld [vmem:[%s5383 + $0x8] sm:$0xf]
    %v5387 = vld [vmem:[%s5383 + $0xc] sm:$0xf]
    %v5388 = vld [vmem:[%s5383 + $0x10] sm:$0xf]
    %v5389 = vld [vmem:[%s5383 + $0x14] sm:$0xf]
    %v5390 = vld [vmem:[%s5383 + $0x18] sm:$0xf]
    %v5391 = vld [vmem:[%s5383 + $0x1c] sm:$0xf]
    %v5392 = vld [vmem:[%s5383 + $0x20] sm:$0xf]
    %v5393 = vld [vmem:[%s5383 + $0x24] sm:$0xf]
    %v5394 = vld [vmem:[%s5383 + $0x28] sm:$0xf]
    %v5395 = vld [vmem:[%s5383 + $0x2c] sm:$0xf]
    %v5396 = vld [vmem:[%s5383 + $0x30] sm:$0xf]
    %v5397 = vld [vmem:[%s5383 + $0x34] sm:$0xf]
    %v5398 = vld [vmem:[%s5383 + $0x38] sm:$0xf]
    %v5399 = vld [vmem:[%s5383 + $0x3c] sm:$0xf]
    %v5416 = vunpack.c.l.b16 %v5384
    %v5417 = vunpack.c.l.b16 %v5385
    %v5418 = vunpack.c.l.b16 %v5386
    %v5419 = vunpack.c.l.b16 %v5387
    %v5420 = vunpack.c.l.b16 %v5388
    %v5421 = vunpack.c.l.b16 %v5389
    %v5422 = vunpack.c.l.b16 %v5390
    %v5423 = vunpack.c.l.b16 %v5391
    %v5424 = vunpack.c.l.b16 %v5392
    %v5425 = vunpack.c.l.b16 %v5393
    %v5426 = vunpack.c.l.b16 %v5394
    %v5427 = vunpack.c.l.b16 %v5395
    %v5428 = vunpack.c.l.b16 %v5396
    %v5429 = vunpack.c.l.b16 %v5397
    %v5430 = vunpack.c.l.b16 %v5398
    %v5431 = vunpack.c.l.b16 %v5399
    %v5432 = vpack.c.b16 %v5417, %v5416
    %v5433 = vpack.c.b16 %v5419, %v5418
    %v5434 = vpack.c.b16 %v5421, %v5420
    %v5435 = vpack.c.b16 %v5423, %v5422
    %v5436 = vpack.c.b16 %v5425, %v5424
    %v5437 = vpack.c.b16 %v5427, %v5426
    %v5438 = vpack.c.b16 %v5429, %v5428
    %v5439 = vpack.c.b16 %v5431, %v5430
    %5448 = vmatprep.subr.bf16.mxu0 0
    %5449 = vmatpush1.bf16.msra.mxu0 %v5432
    %5450 = vmatprep.subr.bf16.mxu0 0
    %5451 = vmatpush1.bf16.msra.mxu0 %v5433
    %5452 = vmatprep.subr.bf16.mxu0 0
    %5453 = vmatpush1.bf16.msra.mxu0 %v5434
    %5454 = vmatprep.subr.bf16.mxu0 0
    %5455 = vmatpush1.bf16.msra.mxu0 %v5435
    %5456 = vmatprep.subr.bf16.mxu0 0
    %5457 = vmatpush1.bf16.msra.mxu0 %v5436
    %5458 = vmatprep.subr.bf16.mxu0 0
    %5459 = vmatpush1.bf16.msra.mxu0 %v5437
    %5460 = vmatprep.subr.bf16.mxu0 0
    %5461 = vmatpush1.bf16.msra.mxu0 %v5438
    %5462 = vmatprep.subr.bf16.mxu0 0
    %5463 = vmatpush1.bf16.msra.mxu0 %v5439
    %5464 = vmatprep.subr.bf16.mxu0 0
    %5465 = vmatpush1.bf16.msra.mxu0 0
    %5466 = vmatprep.subr.bf16.mxu0 0
    %5467 = vmatpush1.bf16.msra.mxu0 0
    %5468 = vmatprep.subr.bf16.mxu0 0
    %5469 = vmatpush1.bf16.msra.mxu0 0
    %5470 = vmatprep.subr.bf16.mxu0 0
    %5471 = vmatpush1.bf16.msra.mxu0 0
    %5472 = vmatprep.subr.bf16.mxu0 0
    %5473 = vmatpush1.bf16.msra.mxu0 0
    %5474 = vmatprep.subr.bf16.mxu0 0
    %5475 = vmatpush1.bf16.msra.mxu0 0
    %5476 = vmatprep.subr.bf16.mxu0 0
    %5477 = vmatpush1.bf16.msra.mxu0 0
    %5478 = vmatprep.subr.bf16.mxu0 0
    %5479 = vmatpush1.bf16.msra.mxu0 0
    %5480 = vmatprep.mubr.bf16.mxu0 0
    %5481 = vmatmul.mubr.bf16.gmra.mrb[0].mxu0 %v5382
    %v5482 = vpop.f32.mrb[0].mxu0
    %v5483 = vadd.f32 0.0, %v5482
    %v5484 = vpop.f32.mrb[0].mxu0
    %v5485 = vpop.f32.mrb[0].mxu0
    %v5486 = vadd.f32 0.0, %v5485
    %v5487 = vpop.f32.mrb[0].mxu0
    %5488 = vdwg.mxu0
    %v5489 = vadd.f32 %v5376, %v5483
    %v5490 = vadd.f32 %v5379, %v5486
    %v5491 = vld [vmem:[#allocation3 + $0x18] sm:$0xff]
    %s5492 = scalar_lea.vmem [#allocation11], 192
    %v5493 = vld [vmem:[%s5492] sm:$0xf]
    %v5494 = vld [vmem:[%s5492 + $0x4] sm:$0xf]
    %v5495 = vld [vmem:[%s5492 + $0x8] sm:$0xf]
    %v5496 = vld [vmem:[%s5492 + $0xc] sm:$0xf]
    %v5497 = vld [vmem:[%s5492 + $0x10] sm:$0xf]
    %v5498 = vld [vmem:[%s5492 + $0x14] sm:$0xf]
    %v5499 = vld [vmem:[%s5492 + $0x18] sm:$0xf]
    %v5500 = vld [vmem:[%s5492 + $0x1c] sm:$0xf]
    %v5501 = vld [vmem:[%s5492 + $0x20] sm:$0xf]
    %v5502 = vld [vmem:[%s5492 + $0x24] sm:$0xf]
    %v5503 = vld [vmem:[%s5492 + $0x28] sm:$0xf]
    %v5504 = vld [vmem:[%s5492 + $0x2c] sm:$0xf]
    %v5505 = vld [vmem:[%s5492 + $0x30] sm:$0xf]
    %v5506 = vld [vmem:[%s5492 + $0x34] sm:$0xf]
    %v5507 = vld [vmem:[%s5492 + $0x38] sm:$0xf]
    %v5508 = vld [vmem:[%s5492 + $0x3c] sm:$0xf]
    %v5525 = vunpack.c.l.b16 %v5493
    %v5526 = vunpack.c.l.b16 %v5494
    %v5527 = vunpack.c.l.b16 %v5495
    %v5528 = vunpack.c.l.b16 %v5496
    %v5529 = vunpack.c.l.b16 %v5497
    %v5530 = vunpack.c.l.b16 %v5498
    %v5531 = vunpack.c.l.b16 %v5499
    %v5532 = vunpack.c.l.b16 %v5500
    %v5533 = vunpack.c.l.b16 %v5501
    %v5534 = vunpack.c.l.b16 %v5502
    %v5535 = vunpack.c.l.b16 %v5503
    %v5536 = vunpack.c.l.b16 %v5504
    %v5537 = vunpack.c.l.b16 %v5505
    %v5538 = vunpack.c.l.b16 %v5506
    %v5539 = vunpack.c.l.b16 %v5507
    %v5540 = vunpack.c.l.b16 %v5508
    %v5541 = vpack.c.b16 %v5526, %v5525
    %v5542 = vpack.c.b16 %v5528, %v5527
    %v5543 = vpack.c.b16 %v5530, %v5529
    %v5544 = vpack.c.b16 %v5532, %v5531
    %v5545 = vpack.c.b16 %v5534, %v5533
    %v5546 = vpack.c.b16 %v5536, %v5535
    %v5547 = vpack.c.b16 %v5538, %v5537
    %v5548 = vpack.c.b16 %v5540, %v5539
    %5557 = vmatprep.subr.bf16.mxu0 0
    %5558 = vmatpush1.bf16.msra.mxu0 %v5541
    %5559 = vmatprep.subr.bf16.mxu0 0
    %5560 = vmatpush1.bf16.msra.mxu0 %v5542
    %5561 = vmatprep.subr.bf16.mxu0 0
    %5562 = vmatpush1.bf16.msra.mxu0 %v5543
    %5563 = vmatprep.subr.bf16.mxu0 0
    %5564 = vmatpush1.bf16.msra.mxu0 %v5544
    %5565 = vmatprep.subr.bf16.mxu0 0
    %5566 = vmatpush1.bf16.msra.mxu0 %v5545
    %5567 = vmatprep.subr.bf16.mxu0 0
    %5568 = vmatpush1.bf16.msra.mxu0 %v5546
    %5569 = vmatprep.subr.bf16.mxu0 0
    %5570 = vmatpush1.bf16.msra.mxu0 %v5547
    %5571 = vmatprep.subr.bf16.mxu0 0
    %5572 = vmatpush1.bf16.msra.mxu0 %v5548
    %5573 = vmatprep.subr.bf16.mxu0 0
    %5574 = vmatpush1.bf16.msra.mxu0 0
    %5575 = vmatprep.subr.bf16.mxu0 0
    %5576 = vmatpush1.bf16.msra.mxu0 0
    %5577 = vmatprep.subr.bf16.mxu0 0
    %5578 = vmatpush1.bf16.msra.mxu0 0
    %5579 = vmatprep.subr.bf16.mxu0 0
    %5580 = vmatpush1.bf16.msra.mxu0 0
    %5581 = vmatprep.subr.bf16.mxu0 0
    %5582 = vmatpush1.bf16.msra.mxu0 0
    %5583 = vmatprep.subr.bf16.mxu0 0
    %5584 = vmatpush1.bf16.msra.mxu0 0
    %5585 = vmatprep.subr.bf16.mxu0 0
    %5586 = vmatpush1.bf16.msra.mxu0 0
    %5587 = vmatprep.subr.bf16.mxu0 0
    %5588 = vmatpush1.bf16.msra.mxu0 0
    %5589 = vmatprep.mubr.bf16.mxu0 0
    %5590 = vmatmul.mubr.bf16.gmra.mrb[0].mxu0 %v5491
    %v5591 = vpop.f32.mrb[0].mxu0
    %v5592 = vadd.f32 0.0, %v5591
    %v5593 = vpop.f32.mrb[0].mxu0
    %v5594 = vpop.f32.mrb[0].mxu0
    %v5595 = vadd.f32 0.0, %v5594
    %v5596 = vpop.f32.mrb[0].mxu0
    %5597 = vdwg.mxu0
    %v5598 = vadd.f32 %v5489, %v5592
    %v5599 = vadd.f32 %v5490, %v5595
    %v5600 = vld [vmem:[#allocation3 + $0x20] sm:$0xff]
    %s5601 = scalar_lea.vmem [#allocation11], 256
    %v5602 = vld [vmem:[%s5601] sm:$0xf]
    %v5603 = vld [vmem:[%s5601 + $0x4] sm:$0xf]
    %v5604 = vld [vmem:[%s5601 + $0x8] sm:$0xf]
    %v5605 = vld [vmem:[%s5601 + $0xc] sm:$0xf]
    %v5606 = vld [vmem:[%s5601 + $0x10] sm:$0xf]
    %v5607 = vld [vmem:[%s5601 + $0x14] sm:$0xf]
    %v5608 = vld [vmem:[%s5601 + $0x18] sm:$0xf]
    %v5609 = vld [vmem:[%s5601 + $0x1c] sm:$0xf]
    %v5610 = vld [vmem:[%s5601 + $0x20] sm:$0xf]
    %v5611 = vld [vmem:[%s5601 + $0x24] sm:$0xf]
    %v5612 = vld [vmem:[%s5601 + $0x28] sm:$0xf]
    %v5613 = vld [vmem:[%s5601 + $0x2c] sm:$0xf]
    %v5614 = vld [vmem:[%s5601 + $0x30] sm:$0xf]
    %v5615 = vld [vmem:[%s5601 + $0x34] sm:$0xf]
    %v5616 = vld [vmem:[%s5601 + $0x38] sm:$0xf]
    %v5617 = vld [vmem:[%s5601 + $0x3c] sm:$0xf]
    %v5634 = vunpack.c.l.b16 %v5602
    %v5635 = vunpack.c.l.b16 %v5603
    %v5636 = vunpack.c.l.b16 %v5604
    %v5637 = vunpack.c.l.b16 %v5605
    %v5638 = vunpack.c.l.b16 %v5606
    %v5639 = vunpack.c.l.b16 %v5607
    %v5640 = vunpack.c.l.b16 %v5608
    %v5641 = vunpack.c.l.b16 %v5609
    %v5642 = vunpack.c.l.b16 %v5610
    %v5643 = vunpack.c.l.b16 %v5611
    %v5644 = vunpack.c.l.b16 %v5612
    %v5645 = vunpack.c.l.b16 %v5613
    %v5646 = vunpack.c.l.b16 %v5614
    %v5647 = vunpack.c.l.b16 %v5615
    %v5648 = vunpack.c.l.b16 %v5616
    %v5649 = vunpack.c.l.b16 %v5617
    %v5650 = vpack.c.b16 %v5635, %v5634
    %v5651 = vpack.c.b16 %v5637, %v5636
    %v5652 = vpack.c.b16 %v5639, %v5638
    %v5653 = vpack.c.b16 %v5641, %v5640
    %v5654 = vpack.c.b16 %v5643, %v5642
    %v5655 = vpack.c.b16 %v5645, %v5644
    %v5656 = vpack.c.b16 %v5647, %v5646
    %v5657 = vpack.c.b16 %v5649, %v5648
    %5666 = vmatprep.subr.bf16.mxu0 0
    %5667 = vmatpush1.bf16.msra.mxu0 %v5650
    %5668 = vmatprep.subr.bf16.mxu0 0
    %5669 = vmatpush1.bf16.msra.mxu0 %v5651
    %5670 = vmatprep.subr.bf16.mxu0 0
    %5671 = vmatpush1.bf16.msra.mxu0 %v5652
    %5672 = vmatprep.subr.bf16.mxu0 0
    %5673 = vmatpush1.bf16.msra.mxu0 %v5653
    %5674 = vmatprep.subr.bf16.mxu0 0
    %5675 = vmatpush1.bf16.msra.mxu0 %v5654
    %5676 = vmatprep.subr.bf16.mxu0 0
    %5677 = vmatpush1.bf16.msra.mxu0 %v5655
    %5678 = vmatprep.subr.bf16.mxu0 0
    %5679 = vmatpush1.bf16.msra.mxu0 %v5656
    %5680 = vmatprep.subr.bf16.mxu0 0
    %5681 = vmatpush1.bf16.msra.mxu0 %v5657
    %5682 = vmatprep.subr.bf16.mxu0 0
    %5683 = vmatpush1.bf16.msra.mxu0 0
    %5684 = vmatprep.subr.bf16.mxu0 0
    %5685 = vmatpush1.bf16.msra.mxu0 0
    %5686 = vmatprep.subr.bf16.mxu0 0
    %5687 = vmatpush1.bf16.msra.mxu0 0
    %5688 = vmatprep.subr.bf16.mxu0 0
    %5689 = vmatpush1.bf16.msra.mxu0 0
    %5690 = vmatprep.subr.bf16.mxu0 0
    %5691 = vmatpush1.bf16.msra.mxu0 0
    %5692 = vmatprep.subr.bf16.mxu0 0
    %5693 = vmatpush1.bf16.msra.mxu0 0
    %5694 = vmatprep.subr.bf16.mxu0 0
    %5695 = vmatpush1.bf16.msra.mxu0 0
    %5696 = vmatprep.subr.bf16.mxu0 0
    %5697 = vmatpush1.bf16.msra.mxu0 0
    %5698 = vmatprep.mubr.bf16.mxu0 0
    %5699 = vmatmul.mubr.bf16.gmra.mrb[0].mxu0 %v5600
    %v5700 = vpop.f32.mrb[0].mxu0
    %v5701 = vadd.f32 0.0, %v5700
    %v5702 = vpop.f32.mrb[0].mxu0
    %v5703 = vpop.f32.mrb[0].mxu0
    %v5704 = vadd.f32 0.0, %v5703
    %v5705 = vpop.f32.mrb[0].mxu0
    %5706 = vdwg.mxu0
    %v5707 = vadd.f32 %v5598, %v5701
    %v5708 = vadd.f32 %v5599, %v5704
    %v5709 = vld [vmem:[#allocation3 + $0x28] sm:$0xff]
    %s5710 = scalar_lea.vmem [#allocation11], 320
    %v5711 = vld [vmem:[%s5710] sm:$0xf]
    %v5712 = vld [vmem:[%s5710 + $0x4] sm:$0xf]
    %v5713 = vld [vmem:[%s5710 + $0x8] sm:$0xf]
    %v5714 = vld [vmem:[%s5710 + $0xc] sm:$0xf]
    %v5715 = vld [vmem:[%s5710 + $0x10] sm:$0xf]
    %v5716 = vld [vmem:[%s5710 + $0x14] sm:$0xf]
    %v5717 = vld [vmem:[%s5710 + $0x18] sm:$0xf]
    %v5718 = vld [vmem:[%s5710 + $0x1c] sm:$0xf]
    %v5719 = vld [vmem:[%s5710 + $0x20] sm:$0xf]
    %v5720 = vld [vmem:[%s5710 + $0x24] sm:$0xf]
    %v5721 = vld [vmem:[%s5710 + $0x28] sm:$0xf]
    %v5722 = vld [vmem:[%s5710 + $0x2c] sm:$0xf]
    %v5723 = vld [vmem:[%s5710 + $0x30] sm:$0xf]
    %v5724 = vld [vmem:[%s5710 + $0x34] sm:$0xf]
    %v5725 = vld [vmem:[%s5710 + $0x38] sm:$0xf]
    %v5726 = vld [vmem:[%s5710 + $0x3c] sm:$0xf]
    %v5743 = vunpack.c.l.b16 %v5711
    %v5744 = vunpack.c.l.b16 %v5712
    %v5745 = vunpack.c.l.b16 %v5713
    %v5746 = vunpack.c.l.b16 %v5714
    %v5747 = vunpack.c.l.b16 %v5715
    %v5748 = vunpack.c.l.b16 %v5716
    %v5749 = vunpack.c.l.b16 %v5717
    %v5750 = vunpack.c.l.b16 %v5718
    %v5751 = vunpack.c.l.b16 %v5719
    %v5752 = vunpack.c.l.b16 %v5720
    %v5753 = vunpack.c.l.b16 %v5721
    %v5754 = vunpack.c.l.b16 %v5722
    %v5755 = vunpack.c.l.b16 %v5723
    %v5756 = vunpack.c.l.b16 %v5724
    %v5757 = vunpack.c.l.b16 %v5725
    %v5758 = vunpack.c.l.b16 %v5726
    %v5759 = vpack.c.b16 %v5744, %v5743
    %v5760 = vpack.c.b16 %v5746, %v5745
    %v5761 = vpack.c.b16 %v5748, %v5747
    %v5762 = vpack.c.b16 %v5750, %v5749
    %v5763 = vpack.c.b16 %v5752, %v5751
    %v5764 = vpack.c.b16 %v5754, %v5753
    %v5765 = vpack.c.b16 %v5756, %v5755
    %v5766 = vpack.c.b16 %v5758, %v5757
    %5775 = vmatprep.subr.bf16.mxu0 0
    %5776 = vmatpush1.bf16.msra.mxu0 %v5759
    %5777 = vmatprep.subr.bf16.mxu0 0
    %5778 = vmatpush1.bf16.msra.mxu0 %v5760
    %5779 = vmatprep.subr.bf16.mxu0 0
    %5780 = vmatpush1.bf16.msra.mxu0 %v5761
    %5781 = vmatprep.subr.bf16.mxu0 0
    %5782 = vmatpush1.bf16.msra.mxu0 %v5762
    %5783 = vmatprep.subr.bf16.mxu0 0
    %5784 = vmatpush1.bf16.msra.mxu0 %v5763
    %5785 = vmatprep.subr.bf16.mxu0 0
    %5786 = vmatpush1.bf16.msra.mxu0 %v5764
    %5787 = vmatprep.subr.bf16.mxu0 0
    %5788 = vmatpush1.bf16.msra.mxu0 %v5765
    %5789 = vmatprep.subr.bf16.mxu0 0
    %5790 = vmatpush1.bf16.msra.mxu0 %v5766
    %5791 = vmatprep.subr.bf16.mxu0 0
    %5792 = vmatpush1.bf16.msra.mxu0 0
    %5793 = vmatprep.subr.bf16.mxu0 0
    %5794 = vmatpush1.bf16.msra.mxu0 0
    %5795 = vmatprep.subr.bf16.mxu0 0
    %5796 = vmatpush1.bf16.msra.mxu0 0
    %5797 = vmatprep.subr.bf16.mxu0 0
    %5798 = vmatpush1.bf16.msra.mxu0 0
    %5799 = vmatprep.subr.bf16.mxu0 0
    %5800 = vmatpush1.bf16.msra.mxu0 0
    %5801 = vmatprep.subr.bf16.mxu0 0
    %5802 = vmatpush1.bf16.msra.mxu0 0
    %5803 = vmatprep.subr.bf16.mxu0 0
    %5804 = vmatpush1.bf16.msra.mxu0 0
    %5805 = vmatprep.subr.bf16.mxu0 0
    %5806 = vmatpush1.bf16.msra.mxu0 0
    %5807 = vmatprep.mubr.bf16.mxu0 0
    %5808 = vmatmul.mubr.bf16.gmra.mrb[0].mxu0 %v5709
    %v5809 = vpop.f32.mrb[0].mxu0
    %v5810 = vadd.f32 0.0, %v5809
    %v5811 = vpop.f32.mrb[0].mxu0
    %v5812 = vpop.f32.mrb[0].mxu0
    %v5813 = vadd.f32 0.0, %v5812
    %v5814 = vpop.f32.mrb[0].mxu0
    %5815 = vdwg.mxu0
    %v5816 = vadd.f32 %v5707, %v5810
    %v5817 = vadd.f32 %v5708, %v5813
    %v5818 = vld [vmem:[#allocation3 + $0x30] sm:$0xff]
    %s5819 = scalar_lea.vmem [#allocation11], 384
    %v5820 = vld [vmem:[%s5819] sm:$0xf]
    %v5821 = vld [vmem:[%s5819 + $0x4] sm:$0xf]
    %v5822 = vld [vmem:[%s5819 + $0x8] sm:$0xf]
    %v5823 = vld [vmem:[%s5819 + $0xc] sm:$0xf]
    %v5824 = vld [vmem:[%s5819 + $0x10] sm:$0xf]
    %v5825 = vld [vmem:[%s5819 + $0x14] sm:$0xf]
    %v5826 = vld [vmem:[%s5819 + $0x18] sm:$0xf]
    %v5827 = vld [vmem:[%s5819 + $0x1c] sm:$0xf]
    %v5828 = vld [vmem:[%s5819 + $0x20] sm:$0xf]
    %v5829 = vld [vmem:[%s5819 + $0x24] sm:$0xf]
    %v5830 = vld [vmem:[%s5819 + $0x28] sm:$0xf]
    %v5831 = vld [vmem:[%s5819 + $0x2c] sm:$0xf]
    %v5832 = vld [vmem:[%s5819 + $0x30] sm:$0xf]
    %v5833 = vld [vmem:[%s5819 + $0x34] sm:$0xf]
    %v5834 = vld [vmem:[%s5819 + $0x38] sm:$0xf]
    %v5835 = vld [vmem:[%s5819 + $0x3c] sm:$0xf]
    %v5852 = vunpack.c.l.b16 %v5820
    %v5853 = vunpack.c.l.b16 %v5821
    %v5854 = vunpack.c.l.b16 %v5822
    %v5855 = vunpack.c.l.b16 %v5823
    %v5856 = vunpack.c.l.b16 %v5824
    %v5857 = vunpack.c.l.b16 %v5825
    %v5858 = vunpack.c.l.b16 %v5826
    %v5859 = vunpack.c.l.b16 %v5827
    %v5860 = vunpack.c.l.b16 %v5828
    %v5861 = vunpack.c.l.b16 %v5829
    %v5862 = vunpack.c.l.b16 %v5830
    %v5863 = vunpack.c.l.b16 %v5831
    %v5864 = vunpack.c.l.b16 %v5832
    %v5865 = vunpack.c.l.b16 %v5833
    %v5866 = vunpack.c.l.b16 %v5834
    %v5867 = vunpack.c.l.b16 %v5835
    %v5868 = vpack.c.b16 %v5853, %v5852
    %v5869 = vpack.c.b16 %v5855, %v5854
    %v5870 = vpack.c.b16 %v5857, %v5856
    %v5871 = vpack.c.b16 %v5859, %v5858
    %v5872 = vpack.c.b16 %v5861, %v5860
    %v5873 = vpack.c.b16 %v5863, %v5862
    %v5874 = vpack.c.b16 %v5865, %v5864
    %v5875 = vpack.c.b16 %v5867, %v5866
    %5884 = vmatprep.subr.bf16.mxu0 0
    %5885 = vmatpush1.bf16.msra.mxu0 %v5868
    %5886 = vmatprep.subr.bf16.mxu0 0
    %5887 = vmatpush1.bf16.msra.mxu0 %v5869
    %5888 = vmatprep.subr.bf16.mxu0 0
    %5889 = vmatpush1.bf16.msra.mxu0 %v5870
    %5890 = vmatprep.subr.bf16.mxu0 0
    %5891 = vmatpush1.bf16.msra.mxu0 %v5871
    %5892 = vmatprep.subr.bf16.mxu0 0
    %5893 = vmatpush1.bf16.msra.mxu0 %v5872
    %5894 = vmatprep.subr.bf16.mxu0 0
    %5895 = vmatpush1.bf16.msra.mxu0 %v5873
    %5896 = vmatprep.subr.bf16.mxu0 0
    %5897 = vmatpush1.bf16.msra.mxu0 %v5874
    %5898 = vmatprep.subr.bf16.mxu0 0
    %5899 = vmatpush1.bf16.msra.mxu0 %v5875
    %5900 = vmatprep.subr.bf16.mxu0 0
    %5901 = vmatpush1.bf16.msra.mxu0 0
    %5902 = vmatprep.subr.bf16.mxu0 0
    %5903 = vmatpush1.bf16.msra.mxu0 0
    %5904 = vmatprep.subr.bf16.mxu0 0
    %5905 = vmatpush1.bf16.msra.mxu0 0
    %5906 = vmatprep.subr.bf16.mxu0 0
    %5907 = vmatpush1.bf16.msra.mxu0 0
    %5908 = vmatprep.subr.bf16.mxu0 0
    %5909 = vmatpush1.bf16.msra.mxu0 0
    %5910 = vmatprep.subr.bf16.mxu0 0
    %5911 = vmatpush1.bf16.msra.mxu0 0
    %5912 = vmatprep.subr.bf16.mxu0 0
    %5913 = vmatpush1.bf16.msra.mxu0 0
    %5914 = vmatprep.subr.bf16.mxu0 0
    %5915 = vmatpush1.bf16.msra.mxu0 0
    %5916 = vmatprep.mubr.bf16.mxu0 0
    %5917 = vmatmul.mubr.bf16.gmra.mrb[0].mxu0 %v5818
    %v5918 = vpop.f32.mrb[0].mxu0
    %v5919 = vadd.f32 0.0, %v5918
    %v5920 = vpop.f32.mrb[0].mxu0
    %v5921 = vpop.f32.mrb[0].mxu0
    %v5922 = vadd.f32 0.0, %v5921
    %v5923 = vpop.f32.mrb[0].mxu0
    %5924 = vdwg.mxu0
    %v5925 = vadd.f32 %v5816, %v5919
    %v5926 = vadd.f32 %v5817, %v5922
    %v5927 = vld [vmem:[#allocation3 + $0x38] sm:$0xff]
    %s5928 = scalar_lea.vmem [#allocation11], 448
    %v5929 = vld [vmem:[%s5928] sm:$0xf]
    %v5930 = vld [vmem:[%s5928 + $0x4] sm:$0xf]
    %v5931 = vld [vmem:[%s5928 + $0x8] sm:$0xf]
    %v5932 = vld [vmem:[%s5928 + $0xc] sm:$0xf]
    %v5933 = vld [vmem:[%s5928 + $0x10] sm:$0xf]
    %v5934 = vld [vmem:[%s5928 + $0x14] sm:$0xf]
    %v5935 = vld [vmem:[%s5928 + $0x18] sm:$0xf]
    %v5936 = vld [vmem:[%s5928 + $0x1c] sm:$0xf]
    %v5937 = vld [vmem:[%s5928 + $0x20] sm:$0xf]
    %v5938 = vld [vmem:[%s5928 + $0x24] sm:$0xf]
    %v5939 = vld [vmem:[%s5928 + $0x28] sm:$0xf]
    %v5940 = vld [vmem:[%s5928 + $0x2c] sm:$0xf]
    %v5941 = vld [vmem:[%s5928 + $0x30] sm:$0xf]
    %v5942 = vld [vmem:[%s5928 + $0x34] sm:$0xf]
    %v5943 = vld [vmem:[%s5928 + $0x38] sm:$0xf]
    %v5944 = vld [vmem:[%s5928 + $0x3c] sm:$0xf]
    %v5961 = vunpack.c.l.b16 %v5929
    %v5962 = vunpack.c.l.b16 %v5930
    %v5963 = vunpack.c.l.b16 %v5931
    %v5964 = vunpack.c.l.b16 %v5932
    %v5965 = vunpack.c.l.b16 %v5933
    %v5966 = vunpack.c.l.b16 %v5934
    %v5967 = vunpack.c.l.b16 %v5935
    %v5968 = vunpack.c.l.b16 %v5936
    %v5969 = vunpack.c.l.b16 %v5937
    %v5970 = vunpack.c.l.b16 %v5938
    %v5971 = vunpack.c.l.b16 %v5939
    %v5972 = vunpack.c.l.b16 %v5940
    %v5973 = vunpack.c.l.b16 %v5941
    %v5974 = vunpack.c.l.b16 %v5942
    %v5975 = vunpack.c.l.b16 %v5943
    %v5976 = vunpack.c.l.b16 %v5944
    %v5977 = vpack.c.b16 %v5962, %v5961
    %v5978 = vpack.c.b16 %v5964, %v5963
    %v5979 = vpack.c.b16 %v5966, %v5965
    %v5980 = vpack.c.b16 %v5968, %v5967
    %v5981 = vpack.c.b16 %v5970, %v5969
    %v5982 = vpack.c.b16 %v5972, %v5971
    %v5983 = vpack.c.b16 %v5974, %v5973
    %v5984 = vpack.c.b16 %v5976, %v5975
    %5993 = vmatprep.subr.bf16.mxu0 0
    %5994 = vmatpush1.bf16.msra.mxu0 %v5977
    %5995 = vmatprep.subr.bf16.mxu0 0
    %5996 = vmatpush1.bf16.msra.mxu0 %v5978
    %5997 = vmatprep.subr.bf16.mxu0 0
    %5998 = vmatpush1.bf16.msra.mxu0 %v5979
    %5999 = vmatprep.subr.bf16.mxu0 0
    %6000 = vmatpush1.bf16.msra.mxu0 %v5980
    %6001 = vmatprep.subr.bf16.mxu0 0
    %6002 = vmatpush1.bf16.msra.mxu0 %v5981
    %6003 = vmatprep.subr.bf16.mxu0 0
    %6004 = vmatpush1.bf16.msra.mxu0 %v5982
    %6005 = vmatprep.subr.bf16.mxu0 0
    %6006 = vmatpush1.bf16.msra.mxu0 %v5983
    %6007 = vmatprep.subr.bf16.mxu0 0
    %6008 = vmatpush1.bf16.msra.mxu0 %v5984
    %6009 = vmatprep.subr.bf16.mxu0 0
    %6010 = vmatpush1.bf16.msra.mxu0 0
    %6011 = vmatprep.subr.bf16.mxu0 0
    %6012 = vmatpush1.bf16.msra.mxu0 0
    %6013 = vmatprep.subr.bf16.mxu0 0
    %6014 = vmatpush1.bf16.msra.mxu0 0
    %6015 = vmatprep.subr.bf16.mxu0 0
    %6016 = vmatpush1.bf16.msra.mxu0 0
    %6017 = vmatprep.subr.bf16.mxu0 0
    %6018 = vmatpush1.bf16.msra.mxu0 0
    %6019 = vmatprep.subr.bf16.mxu0 0
    %6020 = vmatpush1.bf16.msra.mxu0 0
    %6021 = vmatprep.subr.bf16.mxu0 0
    %6022 = vmatpush1.bf16.msra.mxu0 0
    %6023 = vmatprep.subr.bf16.mxu0 0
    %6024 = vmatpush1.bf16.msra.mxu0 0
    %6025 = vmatprep.mubr.bf16.mxu0 0
    %6026 = vmatmul.mubr.bf16.gmra.mrb[0].mxu0 %v5927
    %v6027 = vpop.f32.mrb[0].mxu0
    %v6028 = vadd.f32 0.0, %v6027
    %v6029 = vpop.f32.mrb[0].mxu0
    %v6030 = vpop.f32.mrb[0].mxu0
    %v6031 = vadd.f32 0.0, %v6030
    %v6032 = vpop.f32.mrb[0].mxu0
    %6033 = vdwg.mxu0
    %v6034 = vadd.f32 %v5925, %v6028
    %v6035 = vadd.f32 %v5926, %v6031
    %v6036 = vld [vmem:[#allocation3 + $0x40] sm:$0xff]
    %s6037 = scalar_lea.vmem [#allocation11], 512
    %v6038 = vld [vmem:[%s6037] sm:$0xf]
    %v6039 = vld [vmem:[%s6037 + $0x4] sm:$0xf]
    %v6040 = vld [vmem:[%s6037 + $0x8] sm:$0xf]
    %v6041 = vld [vmem:[%s6037 + $0xc] sm:$0xf]
    %v6042 = vld [vmem:[%s6037 + $0x10] sm:$0xf]
    %v6043 = vld [vmem:[%s6037 + $0x14] sm:$0xf]
    %v6044 = vld [vmem:[%s6037 + $0x18] sm:$0xf]
    %v6045 = vld [vmem:[%s6037 + $0x1c] sm:$0xf]
    %v6046 = vld [vmem:[%s6037 + $0x20] sm:$0xf]
    %v6047 = vld [vmem:[%s6037 + $0x24] sm:$0xf]
    %v6048 = vld [vmem:[%s6037 + $0x28] sm:$0xf]
    %v6049 = vld [vmem:[%s6037 + $0x2c] sm:$0xf]
    %v6050 = vld [vmem:[%s6037 + $0x30] sm:$0xf]
    %v6051 = vld [vmem:[%s6037 + $0x34] sm:$0xf]
    %v6052 = vld [vmem:[%s6037 + $0x38] sm:$0xf]
    %v6053 = vld [vmem:[%s6037 + $0x3c] sm:$0xf]
    %v6070 = vunpack.c.l.b16 %v6038
    %v6071 = vunpack.c.l.b16 %v6039
    %v6072 = vunpack.c.l.b16 %v6040
    %v6073 = vunpack.c.l.b16 %v6041
    %v6074 = vunpack.c.l.b16 %v6042
    %v6075 = vunpack.c.l.b16 %v6043
    %v6076 = vunpack.c.l.b16 %v6044
    %v6077 = vunpack.c.l.b16 %v6045
    %v6078 = vunpack.c.l.b16 %v6046
    %v6079 = vunpack.c.l.b16 %v6047
    %v6080 = vunpack.c.l.b16 %v6048
    %v6081 = vunpack.c.l.b16 %v6049
    %v6082 = vunpack.c.l.b16 %v6050
    %v6083 = vunpack.c.l.b16 %v6051
    %v6084 = vunpack.c.l.b16 %v6052
    %v6085 = vunpack.c.l.b16 %v6053
    %v6086 = vpack.c.b16 %v6071, %v6070
    %v6087 = vpack.c.b16 %v6073, %v6072
    %v6088 = vpack.c.b16 %v6075, %v6074
    %v6089 = vpack.c.b16 %v6077, %v6076
    %v6090 = vpack.c.b16 %v6079, %v6078
    %v6091 = vpack.c.b16 %v6081, %v6080
    %v6092 = vpack.c.b16 %v6083, %v6082
    %v6093 = vpack.c.b16 %v6085, %v6084
    %6102 = vmatprep.subr.bf16.mxu0 0
    %6103 = vmatpush1.bf16.msra.mxu0 %v6086
    %6104 = vmatprep.subr.bf16.mxu0 0
    %6105 = vmatpush1.bf16.msra.mxu0 %v6087
    %6106 = vmatprep.subr.bf16.mxu0 0
    %6107 = vmatpush1.bf16.msra.mxu0 %v6088
    %6108 = vmatprep.subr.bf16.mxu0 0
    %6109 = vmatpush1.bf16.msra.mxu0 %v6089
    %6110 = vmatprep.subr.bf16.mxu0 0
    %6111 = vmatpush1.bf16.msra.mxu0 %v6090
    %6112 = vmatprep.subr.bf16.mxu0 0
    %6113 = vmatpush1.bf16.msra.mxu0 %v6091
    %6114 = vmatprep.subr.bf16.mxu0 0
    %6115 = vmatpush1.bf16.msra.mxu0 %v6092
    %6116 = vmatprep.subr.bf16.mxu0 0
    %6117 = vmatpush1.bf16.msra.mxu0 %v6093
    %6118 = vmatprep.subr.bf16.mxu0 0
    %6119 = vmatpush1.bf16.msra.mxu0 0
    %6120 = vmatprep.subr.bf16.mxu0 0
    %6121 = vmatpush1.bf16.msra.mxu0 0
    %6122 = vmatprep.subr.bf16.mxu0 0
    %6123 = vmatpush1.bf16.msra.mxu0 0
    %6124 = vmatprep.subr.bf16.mxu0 0
    %6125 = vmatpush1.bf16.msra.mxu0 0
    %6126 = vmatprep.subr.bf16.mxu0 0
    %6127 = vmatpush1.bf16.msra.mxu0 0
    %6128 = vmatprep.subr.bf16.mxu0 0
    %6129 = vmatpush1.bf16.msra.mxu0 0
    %6130 = vmatprep.subr.bf16.mxu0 0
    %6131 = vmatpush1.bf16.msra.mxu0 0
    %6132 = vmatprep.subr.bf16.mxu0 0
    %6133 = vmatpush1.bf16.msra.mxu0 0
    %6134 = vmatprep.mubr.bf16.mxu0 0
    %6135 = vmatmul.mubr.bf16.gmra.mrb[0].mxu0 %v6036
    %v6136 = vpop.f32.mrb[0].mxu0
    %v6137 = vadd.f32 0.0, %v6136
    %v6138 = vpop.f32.mrb[0].mxu0
    %v6139 = vpop.f32.mrb[0].mxu0
    %v6140 = vadd.f32 0.0, %v6139
    %v6141 = vpop.f32.mrb[0].mxu0
    %6142 = vdwg.mxu0
    %v6143 = vadd.f32 %v6034, %v6137
    %v6144 = vadd.f32 %v6035, %v6140
    %v6145 = vld [vmem:[#allocation3 + $0x48] sm:$0xff]
    %s6146 = scalar_lea.vmem [#allocation11], 576
    %v6147 = vld [vmem:[%s6146] sm:$0xf]
    %v6148 = vld [vmem:[%s6146 + $0x4] sm:$0xf]
    %v6149 = vld [vmem:[%s6146 + $0x8] sm:$0xf]
    %v6150 = vld [vmem:[%s6146 + $0xc] sm:$0xf]
    %v6151 = vld [vmem:[%s6146 + $0x10] sm:$0xf]
    %v6152 = vld [vmem:[%s6146 + $0x14] sm:$0xf]
    %v6153 = vld [vmem:[%s6146 + $0x18] sm:$0xf]
    %v6154 = vld [vmem:[%s6146 + $0x1c] sm:$0xf]
    %v6155 = vld [vmem:[%s6146 + $0x20] sm:$0xf]
    %v6156 = vld [vmem:[%s6146 + $0x24] sm:$0xf]
    %v6157 = vld [vmem:[%s6146 + $0x28] sm:$0xf]
    %v6158 = vld [vmem:[%s6146 + $0x2c] sm:$0xf]
    %v6159 = vld [vmem:[%s6146 + $0x30] sm:$0xf]
    %v6160 = vld [vmem:[%s6146 + $0x34] sm:$0xf]
    %v6161 = vld [vmem:[%s6146 + $0x38] sm:$0xf]
    %v6162 = vld [vmem:[%s6146 + $0x3c] sm:$0xf]
    %v6179 = vunpack.c.l.b16 %v6147
    %v6180 = vunpack.c.l.b16 %v6148
    %v6181 = vunpack.c.l.b16 %v6149
    %v6182 = vunpack.c.l.b16 %v6150
    %v6183 = vunpack.c.l.b16 %v6151
    %v6184 = vunpack.c.l.b16 %v6152
    %v6185 = vunpack.c.l.b16 %v6153
    %v6186 = vunpack.c.l.b16 %v6154
    %v6187 = vunpack.c.l.b16 %v6155
    %v6188 = vunpack.c.l.b16 %v6156
    %v6189 = vunpack.c.l.b16 %v6157
    %v6190 = vunpack.c.l.b16 %v6158
    %v6191 = vunpack.c.l.b16 %v6159
    %v6192 = vunpack.c.l.b16 %v6160
    %v6193 = vunpack.c.l.b16 %v6161
    %v6194 = vunpack.c.l.b16 %v6162
    %v6195 = vpack.c.b16 %v6180, %v6179
    %v6196 = vpack.c.b16 %v6182, %v6181
    %v6197 = vpack.c.b16 %v6184, %v6183
    %v6198 = vpack.c.b16 %v6186, %v6185
    %v6199 = vpack.c.b16 %v6188, %v6187
    %v6200 = vpack.c.b16 %v6190, %v6189
    %v6201 = vpack.c.b16 %v6192, %v6191
    %v6202 = vpack.c.b16 %v6194, %v6193
    %6211 = vmatprep.subr.bf16.mxu0 0
    %6212 = vmatpush1.bf16.msra.mxu0 %v6195
    %6213 = vmatprep.subr.bf16.mxu0 0
    %6214 = vmatpush1.bf16.msra.mxu0 %v6196
    %6215 = vmatprep.subr.bf16.mxu0 0
    %6216 = vmatpush1.bf16.msra.mxu0 %v6197
    %6217 = vmatprep.subr.bf16.mxu0 0
    %6218 = vmatpush1.bf16.msra.mxu0 %v6198
    %6219 = vmatprep.subr.bf16.mxu0 0
    %6220 = vmatpush1.bf16.msra.mxu0 %v6199
    %6221 = vmatprep.subr.bf16.mxu0 0
    %6222 = vmatpush1.bf16.msra.mxu0 %v6200
    %6223 = vmatprep.subr.bf16.mxu0 0
    %6224 = vmatpush1.bf16.msra.mxu0 %v6201
    %6225 = vmatprep.subr.bf16.mxu0 0
    %6226 = vmatpush1.bf16.msra.mxu0 %v6202
    %6227 = vmatprep.subr.bf16.mxu0 0
    %6228 = vmatpush1.bf16.msra.mxu0 0
    %6229 = vmatprep.subr.bf16.mxu0 0
    %6230 = vmatpush1.bf16.msra.mxu0 0
    %6231 = vmatprep.subr.bf16.mxu0 0
    %6232 = vmatpush1.bf16.msra.mxu0 0
    %6233 = vmatprep.subr.bf16.mxu0 0
    %6234 = vmatpush1.bf16.msra.mxu0 0
    %6235 = vmatprep.subr.bf16.mxu0 0
    %6236 = vmatpush1.bf16.msra.mxu0 0
    %6237 = vmatprep.subr.bf16.mxu0 0
    %6238 = vmatpush1.bf16.msra.mxu0 0
    %6239 = vmatprep.subr.bf16.mxu0 0
    %6240 = vmatpush1.bf16.msra.mxu0 0
    %6241 = vmatprep.subr.bf16.mxu0 0
    %6242 = vmatpush1.bf16.msra.mxu0 0
    %6243 = vmatprep.mubr.bf16.mxu0 0
    %6244 = vmatmul.mubr.bf16.gmra.mrb[0].mxu0 %v6145
    %v6245 = vpop.f32.mrb[0].mxu0
    %v6246 = vadd.f32 0.0, %v6245
    %v6247 = vpop.f32.mrb[0].mxu0
    %v6248 = vpop.f32.mrb[0].mxu0
    %v6249 = vadd.f32 0.0, %v6248
    %v6250 = vpop.f32.mrb[0].mxu0
    %6251 = vdwg.mxu0
    %v6252 = vadd.f32 %v6143, %v6246
    %v6253 = vadd.f32 %v6144, %v6249
    %v6254 = vld [vmem:[#allocation3 + $0x50] sm:$0xff]
    %s6255 = scalar_lea.vmem [#allocation11], 640
    %v6256 = vld [vmem:[%s6255] sm:$0xf]
    %v6257 = vld [vmem:[%s6255 + $0x4] sm:$0xf]
    %v6258 = vld [vmem:[%s6255 + $0x8] sm:$0xf]
    %v6259 = vld [vmem:[%s6255 + $0xc] sm:$0xf]
    %v6260 = vld [vmem:[%s6255 + $0x10] sm:$0xf]
    %v6261 = vld [vmem:[%s6255 + $0x14] sm:$0xf]
    %v6262 = vld [vmem:[%s6255 + $0x18] sm:$0xf]
    %v6263 = vld [vmem:[%s6255 + $0x1c] sm:$0xf]
    %v6264 = vld [vmem:[%s6255 + $0x20] sm:$0xf]
    %v6265 = vld [vmem:[%s6255 + $0x24] sm:$0xf]
    %v6266 = vld [vmem:[%s6255 + $0x28] sm:$0xf]
    %v6267 = vld [vmem:[%s6255 + $0x2c] sm:$0xf]
    %v6268 = vld [vmem:[%s6255 + $0x30] sm:$0xf]
    %v6269 = vld [vmem:[%s6255 + $0x34] sm:$0xf]
    %v6270 = vld [vmem:[%s6255 + $0x38] sm:$0xf]
    %v6271 = vld [vmem:[%s6255 + $0x3c] sm:$0xf]
    %v6288 = vunpack.c.l.b16 %v6256
    %v6289 = vunpack.c.l.b16 %v6257
    %v6290 = vunpack.c.l.b16 %v6258
    %v6291 = vunpack.c.l.b16 %v6259
    %v6292 = vunpack.c.l.b16 %v6260
    %v6293 = vunpack.c.l.b16 %v6261
    %v6294 = vunpack.c.l.b16 %v6262
    %v6295 = vunpack.c.l.b16 %v6263
    %v6296 = vunpack.c.l.b16 %v6264
    %v6297 = vunpack.c.l.b16 %v6265
    %v6298 = vunpack.c.l.b16 %v6266
    %v6299 = vunpack.c.l.b16 %v6267
    %v6300 = vunpack.c.l.b16 %v6268
    %v6301 = vunpack.c.l.b16 %v6269
    %v6302 = vunpack.c.l.b16 %v6270
    %v6303 = vunpack.c.l.b16 %v6271
    %v6304 = vpack.c.b16 %v6289, %v6288
    %v6305 = vpack.c.b16 %v6291, %v6290
    %v6306 = vpack.c.b16 %v6293, %v6292
    %v6307 = vpack.c.b16 %v6295, %v6294
    %v6308 = vpack.c.b16 %v6297, %v6296
    %v6309 = vpack.c.b16 %v6299, %v6298
    %v6310 = vpack.c.b16 %v6301, %v6300
    %v6311 = vpack.c.b16 %v6303, %v6302
    %6320 = vmatprep.subr.bf16.mxu0 0
    %6321 = vmatpush1.bf16.msra.mxu0 %v6304
    %6322 = vmatprep.subr.bf16.mxu0 0
    %6323 = vmatpush1.bf16.msra.mxu0 %v6305
    %6324 = vmatprep.subr.bf16.mxu0 0
    %6325 = vmatpush1.bf16.msra.mxu0 %v6306
    %6326 = vmatprep.subr.bf16.mxu0 0
    %6327 = vmatpush1.bf16.msra.mxu0 %v6307
    %6328 = vmatprep.subr.bf16.mxu0 0
    %6329 = vmatpush1.bf16.msra.mxu0 %v6308
    %6330 = vmatprep.subr.bf16.mxu0 0
    %6331 = vmatpush1.bf16.msra.mxu0 %v6309
    %6332 = vmatprep.subr.bf16.mxu0 0
    %6333 = vmatpush1.bf16.msra.mxu0 %v6310
    %6334 = vmatprep.subr.bf16.mxu0 0
    %6335 = vmatpush1.bf16.msra.mxu0 %v6311
    %6336 = vmatprep.subr.bf16.mxu0 0
    %6337 = vmatpush1.bf16.msra.mxu0 0
    %6338 = vmatprep.subr.bf16.mxu0 0
    %6339 = vmatpush1.bf16.msra.mxu0 0
    %6340 = vmatprep.subr.bf16.mxu0 0
    %6341 = vmatpush1.bf16.msra.mxu0 0
    %6342 = vmatprep.subr.bf16.mxu0 0
    %6343 = vmatpush1.bf16.msra.mxu0 0
    %6344 = vmatprep.subr.bf16.mxu0 0
    %6345 = vmatpush1.bf16.msra.mxu0 0
    %6346 = vmatprep.subr.bf16.mxu0 0
    %6347 = vmatpush1.bf16.msra.mxu0 0
    %6348 = vmatprep.subr.bf16.mxu0 0
    %6349 = vmatpush1.bf16.msra.mxu0 0
    %6350 = vmatprep.subr.bf16.mxu0 0
    %6351 = vmatpush1.bf16.msra.mxu0 0
    %6352 = vmatprep.mubr.bf16.mxu0 0
    %6353 = vmatmul.mubr.bf16.gmra.mrb[0].mxu0 %v6254
    %v6354 = vpop.f32.mrb[0].mxu0
    %v6355 = vadd.f32 0.0, %v6354
    %v6356 = vpop.f32.mrb[0].mxu0
    %v6357 = vpop.f32.mrb[0].mxu0
    %v6358 = vadd.f32 0.0, %v6357
    %v6359 = vpop.f32.mrb[0].mxu0
    %6360 = vdwg.mxu0
    %v6361 = vadd.f32 %v6252, %v6355
    %v6362 = vadd.f32 %v6253, %v6358
    %v6363 = vld [vmem:[#allocation3 + $0x58] sm:$0xff]
    %s6364 = scalar_lea.vmem [#allocation11], 704
    %v6365 = vld [vmem:[%s6364] sm:$0xf]
    %v6366 = vld [vmem:[%s6364 + $0x4] sm:$0xf]
    %v6367 = vld [vmem:[%s6364 + $0x8] sm:$0xf]
    %v6368 = vld [vmem:[%s6364 + $0xc] sm:$0xf]
    %v6369 = vld [vmem:[%s6364 + $0x10] sm:$0xf]
    %v6370 = vld [vmem:[%s6364 + $0x14] sm:$0xf]
    %v6371 = vld [vmem:[%s6364 + $0x18] sm:$0xf]
    %v6372 = vld [vmem:[%s6364 + $0x1c] sm:$0xf]
    %v6373 = vld [vmem:[%s6364 + $0x20] sm:$0xf]
    %v6374 = vld [vmem:[%s6364 + $0x24] sm:$0xf]
    %v6375 = vld [vmem:[%s6364 + $0x28] sm:$0xf]
    %v6376 = vld [vmem:[%s6364 + $0x2c] sm:$0xf]
    %v6377 = vld [vmem:[%s6364 + $0x30] sm:$0xf]
    %v6378 = vld [vmem:[%s6364 + $0x34] sm:$0xf]
    %v6379 = vld [vmem:[%s6364 + $0x38] sm:$0xf]
    %v6380 = vld [vmem:[%s6364 + $0x3c] sm:$0xf]
    %v6397 = vunpack.c.l.b16 %v6365
    %v6398 = vunpack.c.l.b16 %v6366
    %v6399 = vunpack.c.l.b16 %v6367
    %v6400 = vunpack.c.l.b16 %v6368
    %v6401 = vunpack.c.l.b16 %v6369
    %v6402 = vunpack.c.l.b16 %v6370
    %v6403 = vunpack.c.l.b16 %v6371
    %v6404 = vunpack.c.l.b16 %v6372
    %v6405 = vunpack.c.l.b16 %v6373
    %v6406 = vunpack.c.l.b16 %v6374
    %v6407 = vunpack.c.l.b16 %v6375
    %v6408 = vunpack.c.l.b16 %v6376
    %v6409 = vunpack.c.l.b16 %v6377
    %v6410 = vunpack.c.l.b16 %v6378
    %v6411 = vunpack.c.l.b16 %v6379
    %v6412 = vunpack.c.l.b16 %v6380
    %v6413 = vpack.c.b16 %v6398, %v6397
    %v6414 = vpack.c.b16 %v6400, %v6399
    %v6415 = vpack.c.b16 %v6402, %v6401
    %v6416 = vpack.c.b16 %v6404, %v6403
    %v6417 = vpack.c.b16 %v6406, %v6405
    %v6418 = vpack.c.b16 %v6408, %v6407
    %v6419 = vpack.c.b16 %v6410, %v6409
    %v6420 = vpack.c.b16 %v6412, %v6411
    %6429 = vmatprep.subr.bf16.mxu0 0
    %6430 = vmatpush1.bf16.msra.mxu0 %v6413
    %6431 = vmatprep.subr.bf16.mxu0 0
    %6432 = vmatpush1.bf16.msra.mxu0 %v6414
    %6433 = vmatprep.subr.bf16.mxu0 0
    %6434 = vmatpush1.bf16.msra.mxu0 %v6415
    %6435 = vmatprep.subr.bf16.mxu0 0
    %6436 = vmatpush1.bf16.msra.mxu0 %v6416
    %6437 = vmatprep.subr.bf16.mxu0 0
    %6438 = vmatpush1.bf16.msra.mxu0 %v6417
    %6439 = vmatprep.subr.bf16.mxu0 0
    %6440 = vmatpush1.bf16.msra.mxu0 %v6418
    %6441 = vmatprep.subr.bf16.mxu0 0
    %6442 = vmatpush1.bf16.msra.mxu0 %v6419
    %6443 = vmatprep.subr.bf16.mxu0 0
    %6444 = vmatpush1.bf16.msra.mxu0 %v6420
    %6445 = vmatprep.subr.bf16.mxu0 0
    %6446 = vmatpush1.bf16.msra.mxu0 0
    %6447 = vmatprep.subr.bf16.mxu0 0
    %6448 = vmatpush1.bf16.msra.mxu0 0
    %6449 = vmatprep.subr.bf16.mxu0 0
    %6450 = vmatpush1.bf16.msra.mxu0 0
    %6451 = vmatprep.subr.bf16.mxu0 0
    %6452 = vmatpush1.bf16.msra.mxu0 0
    %6453 = vmatprep.subr.bf16.mxu0 0
    %6454 = vmatpush1.bf16.msra.mxu0 0
    %6455 = vmatprep.subr.bf16.mxu0 0
    %6456 = vmatpush1.bf16.msra.mxu0 0
    %6457 = vmatprep.subr.bf16.mxu0 0
    %6458 = vmatpush1.bf16.msra.mxu0 0
    %6459 = vmatprep.subr.bf16.mxu0 0
    %6460 = vmatpush1.bf16.msra.mxu0 0
    %6461 = vmatprep.mubr.bf16.mxu0 0
    %6462 = vmatmul.mubr.bf16.gmra.mrb[0].mxu0 %v6363
    %v6463 = vpop.f32.mrb[0].mxu0
    %v6464 = vadd.f32 0.0, %v6463
    %v6465 = vpop.f32.mrb[0].mxu0
    %v6466 = vpop.f32.mrb[0].mxu0
    %v6467 = vadd.f32 0.0, %v6466
    %v6468 = vpop.f32.mrb[0].mxu0
    %6469 = vdwg.mxu0
    %v6470 = vadd.f32 %v6361, %v6464
    %v6471 = vadd.f32 %v6362, %v6467
    %v6472 = vld [vmem:[#allocation3 + $0x60] sm:$0xff]
    %s6473 = scalar_lea.vmem [#allocation11], 768
    %v6474 = vld [vmem:[%s6473] sm:$0xf]
    %v6475 = vld [vmem:[%s6473 + $0x4] sm:$0xf]
    %v6476 = vld [vmem:[%s6473 + $0x8] sm:$0xf]
    %v6477 = vld [vmem:[%s6473 + $0xc] sm:$0xf]
    %v6478 = vld [vmem:[%s6473 + $0x10] sm:$0xf]
    %v6479 = vld [vmem:[%s6473 + $0x14] sm:$0xf]
    %v6480 = vld [vmem:[%s6473 + $0x18] sm:$0xf]
    %v6481 = vld [vmem:[%s6473 + $0x1c] sm:$0xf]
    %v6482 = vld [vmem:[%s6473 + $0x20] sm:$0xf]
    %v6483 = vld [vmem:[%s6473 + $0x24] sm:$0xf]
    %v6484 = vld [vmem:[%s6473 + $0x28] sm:$0xf]
    %v6485 = vld [vmem:[%s6473 + $0x2c] sm:$0xf]
    %v6486 = vld [vmem:[%s6473 + $0x30] sm:$0xf]
    %v6487 = vld [vmem:[%s6473 + $0x34] sm:$0xf]
    %v6488 = vld [vmem:[%s6473 + $0x38] sm:$0xf]
    %v6489 = vld [vmem:[%s6473 + $0x3c] sm:$0xf]
    %v6506 = vunpack.c.l.b16 %v6474
    %v6507 = vunpack.c.l.b16 %v6475
    %v6508 = vunpack.c.l.b16 %v6476
    %v6509 = vunpack.c.l.b16 %v6477
    %v6510 = vunpack.c.l.b16 %v6478
    %v6511 = vunpack.c.l.b16 %v6479
    %v6512 = vunpack.c.l.b16 %v6480
    %v6513 = vunpack.c.l.b16 %v6481
    %v6514 = vunpack.c.l.b16 %v6482
    %v6515 = vunpack.c.l.b16 %v6483
    %v6516 = vunpack.c.l.b16 %v6484
    %v6517 = vunpack.c.l.b16 %v6485
    %v6518 = vunpack.c.l.b16 %v6486
    %v6519 = vunpack.c.l.b16 %v6487
    %v6520 = vunpack.c.l.b16 %v6488
    %v6521 = vunpack.c.l.b16 %v6489
    %v6522 = vpack.c.b16 %v6507, %v6506
    %v6523 = vpack.c.b16 %v6509, %v6508
    %v6524 = vpack.c.b16 %v6511, %v6510
    %v6525 = vpack.c.b16 %v6513, %v6512
    %v6526 = vpack.c.b16 %v6515, %v6514
    %v6527 = vpack.c.b16 %v6517, %v6516
    %v6528 = vpack.c.b16 %v6519, %v6518
    %v6529 = vpack.c.b16 %v6521, %v6520
    %6538 = vmatprep.subr.bf16.mxu0 0
    %6539 = vmatpush1.bf16.msra.mxu0 %v6522
    %6540 = vmatprep.subr.bf16.mxu0 0
    %6541 = vmatpush1.bf16.msra.mxu0 %v6523
    %6542 = vmatprep.subr.bf16.mxu0 0
    %6543 = vmatpush1.bf16.msra.mxu0 %v6524
    %6544 = vmatprep.subr.bf16.mxu0 0
    %6545 = vmatpush1.bf16.msra.mxu0 %v6525
    %6546 = vmatprep.subr.bf16.mxu0 0
    %6547 = vmatpush1.bf16.msra.mxu0 %v6526
    %6548 = vmatprep.subr.bf16.mxu0 0
    %6549 = vmatpush1.bf16.msra.mxu0 %v6527
    %6550 = vmatprep.subr.bf16.mxu0 0
    %6551 = vmatpush1.bf16.msra.mxu0 %v6528
    %6552 = vmatprep.subr.bf16.mxu0 0
    %6553 = vmatpush1.bf16.msra.mxu0 %v6529
    %6554 = vmatprep.subr.bf16.mxu0 0
    %6555 = vmatpush1.bf16.msra.mxu0 0
    %6556 = vmatprep.subr.bf16.mxu0 0
    %6557 = vmatpush1.bf16.msra.mxu0 0
    %6558 = vmatprep.subr.bf16.mxu0 0
    %6559 = vmatpush1.bf16.msra.mxu0 0
    %6560 = vmatprep.subr.bf16.mxu0 0
    %6561 = vmatpush1.bf16.msra.mxu0 0
    %6562 = vmatprep.subr.bf16.mxu0 0
    %6563 = vmatpush1.bf16.msra.mxu0 0
    %6564 = vmatprep.subr.bf16.mxu0 0
    %6565 = vmatpush1.bf16.msra.mxu0 0
    %6566 = vmatprep.subr.bf16.mxu0 0
    %6567 = vmatpush1.bf16.msra.mxu0 0
    %6568 = vmatprep.subr.bf16.mxu0 0
    %6569 = vmatpush1.bf16.msra.mxu0 0
    %6570 = vmatprep.mubr.bf16.mxu0 0
    %6571 = vmatmul.mubr.bf16.gmra.mrb[0].mxu0 %v6472
    %v6572 = vpop.f32.mrb[0].mxu0
    %v6573 = vadd.f32 0.0, %v6572
    %v6574 = vpop.f32.mrb[0].mxu0
    %v6575 = vpop.f32.mrb[0].mxu0
    %v6576 = vadd.f32 0.0, %v6575
    %v6577 = vpop.f32.mrb[0].mxu0
    %6578 = vdwg.mxu0
    %v6579 = vadd.f32 %v6470, %v6573
    %v6580 = vadd.f32 %v6471, %v6576
    %v6581 = vld [vmem:[#allocation3 + $0x68] sm:$0xff]
    %s6582 = scalar_lea.vmem [#allocation11], 832
    %v6583 = vld [vmem:[%s6582] sm:$0xf]
    %v6584 = vld [vmem:[%s6582 + $0x4] sm:$0xf]
    %v6585 = vld [vmem:[%s6582 + $0x8] sm:$0xf]
    %v6586 = vld [vmem:[%s6582 + $0xc] sm:$0xf]
    %v6587 = vld [vmem:[%s6582 + $0x10] sm:$0xf]
    %v6588 = vld [vmem:[%s6582 + $0x14] sm:$0xf]
    %v6589 = vld [vmem:[%s6582 + $0x18] sm:$0xf]
    %v6590 = vld [vmem:[%s6582 + $0x1c] sm:$0xf]
    %v6591 = vld [vmem:[%s6582 + $0x20] sm:$0xf]
    %v6592 = vld [vmem:[%s6582 + $0x24] sm:$0xf]
    %v6593 = vld [vmem:[%s6582 + $0x28] sm:$0xf]
    %v6594 = vld [vmem:[%s6582 + $0x2c] sm:$0xf]
    %v6595 = vld [vmem:[%s6582 + $0x30] sm:$0xf]
    %v6596 = vld [vmem:[%s6582 + $0x34] sm:$0xf]
    %v6597 = vld [vmem:[%s6582 + $0x38] sm:$0xf]
    %v6598 = vld [vmem:[%s6582 + $0x3c] sm:$0xf]
    %v6615 = vunpack.c.l.b16 %v6583
    %v6616 = vunpack.c.l.b16 %v6584
    %v6617 = vunpack.c.l.b16 %v6585
    %v6618 = vunpack.c.l.b16 %v6586
    %v6619 = vunpack.c.l.b16 %v6587
    %v6620 = vunpack.c.l.b16 %v6588
    %v6621 = vunpack.c.l.b16 %v6589
    %v6622 = vunpack.c.l.b16 %v6590
    %v6623 = vunpack.c.l.b16 %v6591
    %v6624 = vunpack.c.l.b16 %v6592
    %v6625 = vunpack.c.l.b16 %v6593
    %v6626 = vunpack.c.l.b16 %v6594
    %v6627 = vunpack.c.l.b16 %v6595
    %v6628 = vunpack.c.l.b16 %v6596
    %v6629 = vunpack.c.l.b16 %v6597
    %v6630 = vunpack.c.l.b16 %v6598
    %v6631 = vpack.c.b16 %v6616, %v6615
    %v6632 = vpack.c.b16 %v6618, %v6617
    %v6633 = vpack.c.b16 %v6620, %v6619
    %v6634 = vpack.c.b16 %v6622, %v6621
    %v6635 = vpack.c.b16 %v6624, %v6623
    %v6636 = vpack.c.b16 %v6626, %v6625
    %v6637 = vpack.c.b16 %v6628, %v6627
    %v6638 = vpack.c.b16 %v6630, %v6629
    %6647 = vmatprep.subr.bf16.mxu0 0
    %6648 = vmatpush1.bf16.msra.mxu0 %v6631
    %6649 = vmatprep.subr.bf16.mxu0 0
    %6650 = vmatpush1.bf16.msra.mxu0 %v6632
    %6651 = vmatprep.subr.bf16.mxu0 0
    %6652 = vmatpush1.bf16.msra.mxu0 %v6633
    %6653 = vmatprep.subr.bf16.mxu0 0
    %6654 = vmatpush1.bf16.msra.mxu0 %v6634
    %6655 = vmatprep.subr.bf16.mxu0 0
    %6656 = vmatpush1.bf16.msra.mxu0 %v6635
    %6657 = vmatprep.subr.bf16.mxu0 0
    %6658 = vmatpush1.bf16.msra.mxu0 %v6636
    %6659 = vmatprep.subr.bf16.mxu0 0
    %6660 = vmatpush1.bf16.msra.mxu0 %v6637
    %6661 = vmatprep.subr.bf16.mxu0 0
    %6662 = vmatpush1.bf16.msra.mxu0 %v6638
    %6663 = vmatprep.subr.bf16.mxu0 0
    %6664 = vmatpush1.bf16.msra.mxu0 0
    %6665 = vmatprep.subr.bf16.mxu0 0
    %6666 = vmatpush1.bf16.msra.mxu0 0
    %6667 = vmatprep.subr.bf16.mxu0 0
    %6668 = vmatpush1.bf16.msra.mxu0 0
    %6669 = vmatprep.subr.bf16.mxu0 0
    %6670 = vmatpush1.bf16.msra.mxu0 0
    %6671 = vmatprep.subr.bf16.mxu0 0
    %6672 = vmatpush1.bf16.msra.mxu0 0
    %6673 = vmatprep.subr.bf16.mxu0 0
    %6674 = vmatpush1.bf16.msra.mxu0 0
    %6675 = vmatprep.subr.bf16.mxu0 0
    %6676 = vmatpush1.bf16.msra.mxu0 0
    %6677 = vmatprep.subr.bf16.mxu0 0
    %6678 = vmatpush1.bf16.msra.mxu0 0
    %6679 = vmatprep.mubr.bf16.mxu0 0
    %6680 = vmatmul.mubr.bf16.gmra.mrb[0].mxu0 %v6581
    %v6681 = vpop.f32.mrb[0].mxu0
    %v6682 = vadd.f32 0.0, %v6681
    %v6683 = vpop.f32.mrb[0].mxu0
    %v6684 = vpop.f32.mrb[0].mxu0
    %v6685 = vadd.f32 0.0, %v6684
    %v6686 = vpop.f32.mrb[0].mxu0
    %6687 = vdwg.mxu0
    %v6688 = vadd.f32 %v6579, %v6682
    %v6689 = vadd.f32 %v6580, %v6685
    %v6690 = vld [vmem:[#allocation3 + $0x70] sm:$0xff]
    %s6691 = scalar_lea.vmem [#allocation11], 896
    %v6692 = vld [vmem:[%s6691] sm:$0xf]
    %v6693 = vld [vmem:[%s6691 + $0x4] sm:$0xf]
    %v6694 = vld [vmem:[%s6691 + $0x8] sm:$0xf]
    %v6695 = vld [vmem:[%s6691 + $0xc] sm:$0xf]
    %v6696 = vld [vmem:[%s6691 + $0x10] sm:$0xf]
    %v6697 = vld [vmem:[%s6691 + $0x14] sm:$0xf]
    %v6698 = vld [vmem:[%s6691 + $0x18] sm:$0xf]
    %v6699 = vld [vmem:[%s6691 + $0x1c] sm:$0xf]
    %v6700 = vld [vmem:[%s6691 + $0x20] sm:$0xf]
    %v6701 = vld [vmem:[%s6691 + $0x24] sm:$0xf]
    %v6702 = vld [vmem:[%s6691 + $0x28] sm:$0xf]
    %v6703 = vld [vmem:[%s6691 + $0x2c] sm:$0xf]
    %v6704 = vld [vmem:[%s6691 + $0x30] sm:$0xf]
    %v6705 = vld [vmem:[%s6691 + $0x34] sm:$0xf]
    %v6706 = vld [vmem:[%s6691 + $0x38] sm:$0xf]
    %v6707 = vld [vmem:[%s6691 + $0x3c] sm:$0xf]
    %v6724 = vunpack.c.l.b16 %v6692
    %v6725 = vunpack.c.l.b16 %v6693
    %v6726 = vunpack.c.l.b16 %v6694
    %v6727 = vunpack.c.l.b16 %v6695
    %v6728 = vunpack.c.l.b16 %v6696
    %v6729 = vunpack.c.l.b16 %v6697
    %v6730 = vunpack.c.l.b16 %v6698
    %v6731 = vunpack.c.l.b16 %v6699
    %v6732 = vunpack.c.l.b16 %v6700
    %v6733 = vunpack.c.l.b16 %v6701
    %v6734 = vunpack.c.l.b16 %v6702
    %v6735 = vunpack.c.l.b16 %v6703
    %v6736 = vunpack.c.l.b16 %v6704
    %v6737 = vunpack.c.l.b16 %v6705
    %v6738 = vunpack.c.l.b16 %v6706
    %v6739 = vunpack.c.l.b16 %v6707
    %v6740 = vpack.c.b16 %v6725, %v6724
    %v6741 = vpack.c.b16 %v6727, %v6726
    %v6742 = vpack.c.b16 %v6729, %v6728
    %v6743 = vpack.c.b16 %v6731, %v6730
    %v6744 = vpack.c.b16 %v6733, %v6732
    %v6745 = vpack.c.b16 %v6735, %v6734
    %v6746 = vpack.c.b16 %v6737, %v6736
    %v6747 = vpack.c.b16 %v6739, %v6738
    %6756 = vmatprep.subr.bf16.mxu0 0
    %6757 = vmatpush1.bf16.msra.mxu0 %v6740
    %6758 = vmatprep.subr.bf16.mxu0 0
    %6759 = vmatpush1.bf16.msra.mxu0 %v6741
    %6760 = vmatprep.subr.bf16.mxu0 0
    %6761 = vmatpush1.bf16.msra.mxu0 %v6742
    %6762 = vmatprep.subr.bf16.mxu0 0
    %6763 = vmatpush1.bf16.msra.mxu0 %v6743
    %6764 = vmatprep.subr.bf16.mxu0 0
    %6765 = vmatpush1.bf16.msra.mxu0 %v6744
    %6766 = vmatprep.subr.bf16.mxu0 0
    %6767 = vmatpush1.bf16.msra.mxu0 %v6745
    %6768 = vmatprep.subr.bf16.mxu0 0
    %6769 = vmatpush1.bf16.msra.mxu0 %v6746
    %6770 = vmatprep.subr.bf16.mxu0 0
    %6771 = vmatpush1.bf16.msra.mxu0 %v6747
    %6772 = vmatprep.subr.bf16.mxu0 0
    %6773 = vmatpush1.bf16.msra.mxu0 0
    %6774 = vmatprep.subr.bf16.mxu0 0
    %6775 = vmatpush1.bf16.msra.mxu0 0
    %6776 = vmatprep.subr.bf16.mxu0 0
    %6777 = vmatpush1.bf16.msra.mxu0 0
    %6778 = vmatprep.subr.bf16.mxu0 0
    %6779 = vmatpush1.bf16.msra.mxu0 0
    %6780 = vmatprep.subr.bf16.mxu0 0
    %6781 = vmatpush1.bf16.msra.mxu0 0
    %6782 = vmatprep.subr.bf16.mxu0 0
    %6783 = vmatpush1.bf16.msra.mxu0 0
    %6784 = vmatprep.subr.bf16.mxu0 0
    %6785 = vmatpush1.bf16.msra.mxu0 0
    %6786 = vmatprep.subr.bf16.mxu0 0
    %6787 = vmatpush1.bf16.msra.mxu0 0
    %6788 = vmatprep.mubr.bf16.mxu0 0
    %6789 = vmatmul.mubr.bf16.gmra.mrb[0].mxu0 %v6690
    %v6790 = vpop.f32.mrb[0].mxu0
    %v6791 = vadd.f32 0.0, %v6790
    %v6792 = vpop.f32.mrb[0].mxu0
    %v6793 = vpop.f32.mrb[0].mxu0
    %v6794 = vadd.f32 0.0, %v6793
    %v6795 = vpop.f32.mrb[0].mxu0
    %6796 = vdwg.mxu0
    %v6797 = vadd.f32 %v6688, %v6791
    %v6798 = vadd.f32 %v6689, %v6794
    %v6799 = vld [vmem:[#allocation3 + $0x78] sm:$0xff]
    %s6800 = scalar_lea.vmem [#allocation11], 960
    %v6801 = vld [vmem:[%s6800] sm:$0xf]
    %v6802 = vld [vmem:[%s6800 + $0x4] sm:$0xf]
    %v6803 = vld [vmem:[%s6800 + $0x8] sm:$0xf]
    %v6804 = vld [vmem:[%s6800 + $0xc] sm:$0xf]
    %v6805 = vld [vmem:[%s6800 + $0x10] sm:$0xf]
    %v6806 = vld [vmem:[%s6800 + $0x14] sm:$0xf]
    %v6807 = vld [vmem:[%s6800 + $0x18] sm:$0xf]
    %v6808 = vld [vmem:[%s6800 + $0x1c] sm:$0xf]
    %v6809 = vld [vmem:[%s6800 + $0x20] sm:$0xf]
    %v6810 = vld [vmem:[%s6800 + $0x24] sm:$0xf]
    %v6811 = vld [vmem:[%s6800 + $0x28] sm:$0xf]
    %v6812 = vld [vmem:[%s6800 + $0x2c] sm:$0xf]
    %v6813 = vld [vmem:[%s6800 + $0x30] sm:$0xf]
    %v6814 = vld [vmem:[%s6800 + $0x34] sm:$0xf]
    %v6815 = vld [vmem:[%s6800 + $0x38] sm:$0xf]
    %v6816 = vld [vmem:[%s6800 + $0x3c] sm:$0xf]
    %v6833 = vunpack.c.l.b16 %v6801
    %v6834 = vunpack.c.l.b16 %v6802
    %v6835 = vunpack.c.l.b16 %v6803
    %v6836 = vunpack.c.l.b16 %v6804
    %v6837 = vunpack.c.l.b16 %v6805
    %v6838 = vunpack.c.l.b16 %v6806
    %v6839 = vunpack.c.l.b16 %v6807
    %v6840 = vunpack.c.l.b16 %v6808
    %v6841 = vunpack.c.l.b16 %v6809
    %v6842 = vunpack.c.l.b16 %v6810
    %v6843 = vunpack.c.l.b16 %v6811
    %v6844 = vunpack.c.l.b16 %v6812
    %v6845 = vunpack.c.l.b16 %v6813
    %v6846 = vunpack.c.l.b16 %v6814
    %v6847 = vunpack.c.l.b16 %v6815
    %v6848 = vunpack.c.l.b16 %v6816
    %v6849 = vpack.c.b16 %v6834, %v6833
    %v6850 = vpack.c.b16 %v6836, %v6835
    %v6851 = vpack.c.b16 %v6838, %v6837
    %v6852 = vpack.c.b16 %v6840, %v6839
    %v6853 = vpack.c.b16 %v6842, %v6841
    %v6854 = vpack.c.b16 %v6844, %v6843
    %v6855 = vpack.c.b16 %v6846, %v6845
    %v6856 = vpack.c.b16 %v6848, %v6847
    %6865 = vmatprep.subr.bf16.mxu0 0
    %6866 = vmatpush1.bf16.msra.mxu0 %v6849
    %6867 = vmatprep.subr.bf16.mxu0 0
    %6868 = vmatpush1.bf16.msra.mxu0 %v6850
    %6869 = vmatprep.subr.bf16.mxu0 0
    %6870 = vmatpush1.bf16.msra.mxu0 %v6851
    %6871 = vmatprep.subr.bf16.mxu0 0
    %6872 = vmatpush1.bf16.msra.mxu0 %v6852
    %6873 = vmatprep.subr.bf16.mxu0 0
    %6874 = vmatpush1.bf16.msra.mxu0 %v6853
    %6875 = vmatprep.subr.bf16.mxu0 0
    %6876 = vmatpush1.bf16.msra.mxu0 %v6854
    %6877 = vmatprep.subr.bf16.mxu0 0
    %6878 = vmatpush1.bf16.msra.mxu0 %v6855
    %6879 = vmatprep.subr.bf16.mxu0 0
    %6880 = vmatpush1.bf16.msra.mxu0 %v6856
    %6881 = vmatprep.subr.bf16.mxu0 0
    %6882 = vmatpush1.bf16.msra.mxu0 0
    %6883 = vmatprep.subr.bf16.mxu0 0
    %6884 = vmatpush1.bf16.msra.mxu0 0
    %6885 = vmatprep.subr.bf16.mxu0 0
    %6886 = vmatpush1.bf16.msra.mxu0 0
    %6887 = vmatprep.subr.bf16.mxu0 0
    %6888 = vmatpush1.bf16.msra.mxu0 0
    %6889 = vmatprep.subr.bf16.mxu0 0
    %6890 = vmatpush1.bf16.msra.mxu0 0
    %6891 = vmatprep.subr.bf16.mxu0 0
    %6892 = vmatpush1.bf16.msra.mxu0 0
    %6893 = vmatprep.subr.bf16.mxu0 0
    %6894 = vmatpush1.bf16.msra.mxu0 0
    %6895 = vmatprep.subr.bf16.mxu0 0
    %6896 = vmatpush1.bf16.msra.mxu0 0
    %6897 = vmatprep.mubr.bf16.mxu0 0
    %6898 = vmatmul.mubr.bf16.gmra.mrb[0].mxu0 %v6799
    %v6899 = vpop.f32.mrb[0].mxu0
    %v6900 = vadd.f32 0.0, %v6899
    %v6901 = vpop.f32.mrb[0].mxu0
    %v6902 = vpop.f32.mrb[0].mxu0
    %v6903 = vadd.f32 0.0, %v6902
    %v6904 = vpop.f32.mrb[0].mxu0
    %6905 = vdwg.mxu0
    %v6906 = vadd.f32 %v6797, %v6900
    %v6907 = vadd.f32 %v6798, %v6903
    %v6908 = vld [vmem:[#allocation3 + $0x80] sm:$0xff]
    %s6909 = scalar_lea.vmem [#allocation11], 1024
    %v6910 = vld [vmem:[%s6909] sm:$0xf]
    %v6911 = vld [vmem:[%s6909 + $0x4] sm:$0xf]
    %v6912 = vld [vmem:[%s6909 + $0x8] sm:$0xf]
    %v6913 = vld [vmem:[%s6909 + $0xc] sm:$0xf]
    %v6914 = vld [vmem:[%s6909 + $0x10] sm:$0xf]
    %v6915 = vld [vmem:[%s6909 + $0x14] sm:$0xf]
    %v6916 = vld [vmem:[%s6909 + $0x18] sm:$0xf]
    %v6917 = vld [vmem:[%s6909 + $0x1c] sm:$0xf]
    %v6918 = vld [vmem:[%s6909 + $0x20] sm:$0xf]
    %v6919 = vld [vmem:[%s6909 + $0x24] sm:$0xf]
    %v6920 = vld [vmem:[%s6909 + $0x28] sm:$0xf]
    %v6921 = vld [vmem:[%s6909 + $0x2c] sm:$0xf]
    %v6922 = vld [vmem:[%s6909 + $0x30] sm:$0xf]
    %v6923 = vld [vmem:[%s6909 + $0x34] sm:$0xf]
    %v6924 = vld [vmem:[%s6909 + $0x38] sm:$0xf]
    %v6925 = vld [vmem:[%s6909 + $0x3c] sm:$0xf]
    %v6942 = vunpack.c.l.b16 %v6910
    %v6943 = vunpack.c.l.b16 %v6911
    %v6944 = vunpack.c.l.b16 %v6912
    %v6945 = vunpack.c.l.b16 %v6913
    %v6946 = vunpack.c.l.b16 %v6914
    %v6947 = vunpack.c.l.b16 %v6915
    %v6948 = vunpack.c.l.b16 %v6916
    %v6949 = vunpack.c.l.b16 %v6917
    %v6950 = vunpack.c.l.b16 %v6918
    %v6951 = vunpack.c.l.b16 %v6919
    %v6952 = vunpack.c.l.b16 %v6920
    %v6953 = vunpack.c.l.b16 %v6921
    %v6954 = vunpack.c.l.b16 %v6922
    %v6955 = vunpack.c.l.b16 %v6923
    %v6956 = vunpack.c.l.b16 %v6924
    %v6957 = vunpack.c.l.b16 %v6925
    %v6958 = vpack.c.b16 %v6943, %v6942
    %v6959 = vpack.c.b16 %v6945, %v6944
    %v6960 = vpack.c.b16 %v6947, %v6946
    %v6961 = vpack.c.b16 %v6949, %v6948
    %v6962 = vpack.c.b16 %v6951, %v6950
    %v6963 = vpack.c.b16 %v6953, %v6952
    %v6964 = vpack.c.b16 %v6955, %v6954
    %v6965 = vpack.c.b16 %v6957, %v6956
    %6974 = vmatprep.subr.bf16.mxu0 0
    %6975 = vmatpush1.bf16.msra.mxu0 %v6958
    %6976 = vmatprep.subr.bf16.mxu0 0
    %6977 = vmatpush1.bf16.msra.mxu0 %v6959
    %6978 = vmatprep.subr.bf16.mxu0 0
    %6979 = vmatpush1.bf16.msra.mxu0 %v6960
    %6980 = vmatprep.subr.bf16.mxu0 0
    %6981 = vmatpush1.bf16.msra.mxu0 %v6961
    %6982 = vmatprep.subr.bf16.mxu0 0
    %6983 = vmatpush1.bf16.msra.mxu0 %v6962
    %6984 = vmatprep.subr.bf16.mxu0 0
    %6985 = vmatpush1.bf16.msra.mxu0 %v6963
    %6986 = vmatprep.subr.bf16.mxu0 0
    %6987 = vmatpush1.bf16.msra.mxu0 %v6964
    %6988 = vmatprep.subr.bf16.mxu0 0
    %6989 = vmatpush1.bf16.msra.mxu0 %v6965
    %6990 = vmatprep.subr.bf16.mxu0 0
    %6991 = vmatpush1.bf16.msra.mxu0 0
    %6992 = vmatprep.subr.bf16.mxu0 0
    %6993 = vmatpush1.bf16.msra.mxu0 0
    %6994 = vmatprep.subr.bf16.mxu0 0
    %6995 = vmatpush1.bf16.msra.mxu0 0
    %6996 = vmatprep.subr.bf16.mxu0 0
    %6997 = vmatpush1.bf16.msra.mxu0 0
    %6998 = vmatprep.subr.bf16.mxu0 0
    %6999 = vmatpush1.bf16.msra.mxu0 0
    %7000 = vmatprep.subr.bf16.mxu0 0
    %7001 = vmatpush1.bf16.msra.mxu0 0
    %7002 = vmatprep.subr.bf16.mxu0 0
    %7003 = vmatpush1.bf16.msra.mxu0 0
    %7004 = vmatprep.subr.bf16.mxu0 0
    %7005 = vmatpush1.bf16.msra.mxu0 0
    %7006 = vmatprep.mubr.bf16.mxu0 0
    %7007 = vmatmul.mubr.bf16.gmra.mrb[0].mxu0 %v6908
    %v7008 = vpop.f32.mrb[0].mxu0
    %v7009 = vadd.f32 0.0, %v7008
    %v7010 = vpop.f32.mrb[0].mxu0
    %v7011 = vpop.f32.mrb[0].mxu0
    %v7012 = vadd.f32 0.0, %v7011
    %v7013 = vpop.f32.mrb[0].mxu0
    %7014 = vdwg.mxu0
    %v7015 = vadd.f32 %v6906, %v7009
    %v7016 = vadd.f32 %v6907, %v7012
    %v7017 = vld [vmem:[#allocation3 + $0x88] sm:$0xff]
    %s7018 = scalar_lea.vmem [#allocation11], 1088
    %v7019 = vld [vmem:[%s7018] sm:$0xf]
    %v7020 = vld [vmem:[%s7018 + $0x4] sm:$0xf]
    %v7021 = vld [vmem:[%s7018 + $0x8] sm:$0xf]
    %v7022 = vld [vmem:[%s7018 + $0xc] sm:$0xf]
    %v7023 = vld [vmem:[%s7018 + $0x10] sm:$0xf]
    %v7024 = vld [vmem:[%s7018 + $0x14] sm:$0xf]
    %v7025 = vld [vmem:[%s7018 + $0x18] sm:$0xf]
    %v7026 = vld [vmem:[%s7018 + $0x1c] sm:$0xf]
    %v7027 = vld [vmem:[%s7018 + $0x20] sm:$0xf]
    %v7028 = vld [vmem:[%s7018 + $0x24] sm:$0xf]
    %v7029 = vld [vmem:[%s7018 + $0x28] sm:$0xf]
    %v7030 = vld [vmem:[%s7018 + $0x2c] sm:$0xf]
    %v7031 = vld [vmem:[%s7018 + $0x30] sm:$0xf]
    %v7032 = vld [vmem:[%s7018 + $0x34] sm:$0xf]
    %v7033 = vld [vmem:[%s7018 + $0x38] sm:$0xf]
    %v7034 = vld [vmem:[%s7018 + $0x3c] sm:$0xf]
    %v7051 = vunpack.c.l.b16 %v7019
    %v7052 = vunpack.c.l.b16 %v7020
    %v7053 = vunpack.c.l.b16 %v7021
    %v7054 = vunpack.c.l.b16 %v7022
    %v7055 = vunpack.c.l.b16 %v7023
    %v7056 = vunpack.c.l.b16 %v7024
    %v7057 = vunpack.c.l.b16 %v7025
    %v7058 = vunpack.c.l.b16 %v7026
    %v7059 = vunpack.c.l.b16 %v7027
    %v7060 = vunpack.c.l.b16 %v7028
    %v7061 = vunpack.c.l.b16 %v7029
    %v7062 = vunpack.c.l.b16 %v7030
    %v7063 = vunpack.c.l.b16 %v7031
    %v7064 = vunpack.c.l.b16 %v7032
    %v7065 = vunpack.c.l.b16 %v7033
    %v7066 = vunpack.c.l.b16 %v7034
    %v7067 = vpack.c.b16 %v7052, %v7051
    %v7068 = vpack.c.b16 %v7054, %v7053
    %v7069 = vpack.c.b16 %v7056, %v7055
    %v7070 = vpack.c.b16 %v7058, %v7057
    %v7071 = vpack.c.b16 %v7060, %v7059
    %v7072 = vpack.c.b16 %v7062, %v7061
    %v7073 = vpack.c.b16 %v7064, %v7063
    %v7074 = vpack.c.b16 %v7066, %v7065
    %7083 = vmatprep.subr.bf16.mxu0 0
    %7084 = vmatpush1.bf16.msra.mxu0 %v7067
    %7085 = vmatprep.subr.bf16.mxu0 0
    %7086 = vmatpush1.bf16.msra.mxu0 %v7068
    %7087 = vmatprep.subr.bf16.mxu0 0
    %7088 = vmatpush1.bf16.msra.mxu0 %v7069
    %7089 = vmatprep.subr.bf16.mxu0 0
    %7090 = vmatpush1.bf16.msra.mxu0 %v7070
    %7091 = vmatprep.subr.bf16.mxu0 0
    %7092 = vmatpush1.bf16.msra.mxu0 %v7071
    %7093 = vmatprep.subr.bf16.mxu0 0
    %7094 = vmatpush1.bf16.msra.mxu0 %v7072
    %7095 = vmatprep.subr.bf16.mxu0 0
    %7096 = vmatpush1.bf16.msra.mxu0 %v7073
    %7097 = vmatprep.subr.bf16.mxu0 0
    %7098 = vmatpush1.bf16.msra.mxu0 %v7074
    %7099 = vmatprep.subr.bf16.mxu0 0
    %7100 = vmatpush1.bf16.msra.mxu0 0
    %7101 = vmatprep.subr.bf16.mxu0 0
    %7102 = vmatpush1.bf16.msra.mxu0 0
    %7103 = vmatprep.subr.bf16.mxu0 0
    %7104 = vmatpush1.bf16.msra.mxu0 0
    %7105 = vmatprep.subr.bf16.mxu0 0
    %7106 = vmatpush1.bf16.msra.mxu0 0
    %7107 = vmatprep.subr.bf16.mxu0 0
    %7108 = vmatpush1.bf16.msra.mxu0 0
    %7109 = vmatprep.subr.bf16.mxu0 0
    %7110 = vmatpush1.bf16.msra.mxu0 0
    %7111 = vmatprep.subr.bf16.mxu0 0
    %7112 = vmatpush1.bf16.msra.mxu0 0
    %7113 = vmatprep.subr.bf16.mxu0 0
    %7114 = vmatpush1.bf16.msra.mxu0 0
    %7115 = vmatprep.mubr.bf16.mxu0 0
    %7116 = vmatmul.mubr.bf16.gmra.mrb[0].mxu0 %v7017
    %v7117 = vpop.f32.mrb[0].mxu0
    %v7118 = vadd.f32 0.0, %v7117
    %v7119 = vpop.f32.mrb[0].mxu0
    %v7120 = vpop.f32.mrb[0].mxu0
    %v7121 = vadd.f32 0.0, %v7120
    %v7122 = vpop.f32.mrb[0].mxu0
    %7123 = vdwg.mxu0
    %v7124 = vadd.f32 %v7015, %v7118
    %v7125 = vadd.f32 %v7016, %v7121
    %v7126 = vld [vmem:[#allocation3 + $0x90] sm:$0xff]
    %s7127 = scalar_lea.vmem [#allocation11], 1152
    %v7128 = vld [vmem:[%s7127] sm:$0xf]
    %v7129 = vld [vmem:[%s7127 + $0x4] sm:$0xf]
    %v7130 = vld [vmem:[%s7127 + $0x8] sm:$0xf]
    %v7131 = vld [vmem:[%s7127 + $0xc] sm:$0xf]
    %v7132 = vld [vmem:[%s7127 + $0x10] sm:$0xf]
    %v7133 = vld [vmem:[%s7127 + $0x14] sm:$0xf]
    %v7134 = vld [vmem:[%s7127 + $0x18] sm:$0xf]
    %v7135 = vld [vmem:[%s7127 + $0x1c] sm:$0xf]
    %v7136 = vld [vmem:[%s7127 + $0x20] sm:$0xf]
    %v7137 = vld [vmem:[%s7127 + $0x24] sm:$0xf]
    %v7138 = vld [vmem:[%s7127 + $0x28] sm:$0xf]
    %v7139 = vld [vmem:[%s7127 + $0x2c] sm:$0xf]
    %v7140 = vld [vmem:[%s7127 + $0x30] sm:$0xf]
    %v7141 = vld [vmem:[%s7127 + $0x34] sm:$0xf]
    %v7142 = vld [vmem:[%s7127 + $0x38] sm:$0xf]
    %v7143 = vld [vmem:[%s7127 + $0x3c] sm:$0xf]
    %v7160 = vunpack.c.l.b16 %v7128
    %v7161 = vunpack.c.l.b16 %v7129
    %v7162 = vunpack.c.l.b16 %v7130
    %v7163 = vunpack.c.l.b16 %v7131
    %v7164 = vunpack.c.l.b16 %v7132
    %v7165 = vunpack.c.l.b16 %v7133
    %v7166 = vunpack.c.l.b16 %v7134
    %v7167 = vunpack.c.l.b16 %v7135
    %v7168 = vunpack.c.l.b16 %v7136
    %v7169 = vunpack.c.l.b16 %v7137
    %v7170 = vunpack.c.l.b16 %v7138
    %v7171 = vunpack.c.l.b16 %v7139
    %v7172 = vunpack.c.l.b16 %v7140
    %v7173 = vunpack.c.l.b16 %v7141
    %v7174 = vunpack.c.l.b16 %v7142
    %v7175 = vunpack.c.l.b16 %v7143
    %v7176 = vpack.c.b16 %v7161, %v7160
    %v7177 = vpack.c.b16 %v7163, %v7162
    %v7178 = vpack.c.b16 %v7165, %v7164
    %v7179 = vpack.c.b16 %v7167, %v7166
    %v7180 = vpack.c.b16 %v7169, %v7168
    %v7181 = vpack.c.b16 %v7171, %v7170
    %v7182 = vpack.c.b16 %v7173, %v7172
    %v7183 = vpack.c.b16 %v7175, %v7174
    %7192 = vmatprep.subr.bf16.mxu0 0
    %7193 = vmatpush1.bf16.msra.mxu0 %v7176
    %7194 = vmatprep.subr.bf16.mxu0 0
    %7195 = vmatpush1.bf16.msra.mxu0 %v7177
    %7196 = vmatprep.subr.bf16.mxu0 0
    %7197 = vmatpush1.bf16.msra.mxu0 %v7178
    %7198 = vmatprep.subr.bf16.mxu0 0
    %7199 = vmatpush1.bf16.msra.mxu0 %v7179
    %7200 = vmatprep.subr.bf16.mxu0 0
    %7201 = vmatpush1.bf16.msra.mxu0 %v7180
    %7202 = vmatprep.subr.bf16.mxu0 0
    %7203 = vmatpush1.bf16.msra.mxu0 %v7181
    %7204 = vmatprep.subr.bf16.mxu0 0
    %7205 = vmatpush1.bf16.msra.mxu0 %v7182
    %7206 = vmatprep.subr.bf16.mxu0 0
    %7207 = vmatpush1.bf16.msra.mxu0 %v7183
    %7208 = vmatprep.subr.bf16.mxu0 0
    %7209 = vmatpush1.bf16.msra.mxu0 0
    %7210 = vmatprep.subr.bf16.mxu0 0
    %7211 = vmatpush1.bf16.msra.mxu0 0
    %7212 = vmatprep.subr.bf16.mxu0 0
    %7213 = vmatpush1.bf16.msra.mxu0 0
    %7214 = vmatprep.subr.bf16.mxu0 0
    %7215 = vmatpush1.bf16.msra.mxu0 0
    %7216 = vmatprep.subr.bf16.mxu0 0
    %7217 = vmatpush1.bf16.msra.mxu0 0
    %7218 = vmatprep.subr.bf16.mxu0 0
    %7219 = vmatpush1.bf16.msra.mxu0 0
    %7220 = vmatprep.subr.bf16.mxu0 0
    %7221 = vmatpush1.bf16.msra.mxu0 0
    %7222 = vmatprep.subr.bf16.mxu0 0
    %7223 = vmatpush1.bf16.msra.mxu0 0
    %7224 = vmatprep.mubr.bf16.mxu0 0
    %7225 = vmatmul.mubr.bf16.gmra.mrb[0].mxu0 %v7126
    %v7226 = vpop.f32.mrb[0].mxu0
    %v7227 = vadd.f32 0.0, %v7226
    %v7228 = vpop.f32.mrb[0].mxu0
    %v7229 = vpop.f32.mrb[0].mxu0
    %v7230 = vadd.f32 0.0, %v7229
    %v7231 = vpop.f32.mrb[0].mxu0
    %7232 = vdwg.mxu0
    %v7233 = vadd.f32 %v7124, %v7227
    %v7234 = vadd.f32 %v7125, %v7230
    %v7235 = vld [vmem:[#allocation3 + $0x98] sm:$0xff]
    %s7236 = scalar_lea.vmem [#allocation11], 1216
    %v7237 = vld [vmem:[%s7236] sm:$0xf]
    %v7238 = vld [vmem:[%s7236 + $0x4] sm:$0xf]
    %v7239 = vld [vmem:[%s7236 + $0x8] sm:$0xf]
    %v7240 = vld [vmem:[%s7236 + $0xc] sm:$0xf]
    %v7241 = vld [vmem:[%s7236 + $0x10] sm:$0xf]
    %v7242 = vld [vmem:[%s7236 + $0x14] sm:$0xf]
    %v7243 = vld [vmem:[%s7236 + $0x18] sm:$0xf]
    %v7244 = vld [vmem:[%s7236 + $0x1c] sm:$0xf]
    %v7245 = vld [vmem:[%s7236 + $0x20] sm:$0xf]
    %v7246 = vld [vmem:[%s7236 + $0x24] sm:$0xf]
    %v7247 = vld [vmem:[%s7236 + $0x28] sm:$0xf]
    %v7248 = vld [vmem:[%s7236 + $0x2c] sm:$0xf]
    %v7249 = vld [vmem:[%s7236 + $0x30] sm:$0xf]
    %v7250 = vld [vmem:[%s7236 + $0x34] sm:$0xf]
    %v7251 = vld [vmem:[%s7236 + $0x38] sm:$0xf]
    %v7252 = vld [vmem:[%s7236 + $0x3c] sm:$0xf]
    %v7269 = vunpack.c.l.b16 %v7237
    %v7270 = vunpack.c.l.b16 %v7238
    %v7271 = vunpack.c.l.b16 %v7239
    %v7272 = vunpack.c.l.b16 %v7240
    %v7273 = vunpack.c.l.b16 %v7241
    %v7274 = vunpack.c.l.b16 %v7242
    %v7275 = vunpack.c.l.b16 %v7243
    %v7276 = vunpack.c.l.b16 %v7244
    %v7277 = vunpack.c.l.b16 %v7245
    %v7278 = vunpack.c.l.b16 %v7246
    %v7279 = vunpack.c.l.b16 %v7247
    %v7280 = vunpack.c.l.b16 %v7248
    %v7281 = vunpack.c.l.b16 %v7249
    %v7282 = vunpack.c.l.b16 %v7250
    %v7283 = vunpack.c.l.b16 %v7251
    %v7284 = vunpack.c.l.b16 %v7252
    %v7285 = vpack.c.b16 %v7270, %v7269
    %v7286 = vpack.c.b16 %v7272, %v7271
    %v7287 = vpack.c.b16 %v7274, %v7273
    %v7288 = vpack.c.b16 %v7276, %v7275
    %v7289 = vpack.c.b16 %v7278, %v7277
    %v7290 = vpack.c.b16 %v7280, %v7279
    %v7291 = vpack.c.b16 %v7282, %v7281
    %v7292 = vpack.c.b16 %v7284, %v7283
    %7301 = vmatprep.subr.bf16.mxu0 0
    %7302 = vmatpush1.bf16.msra.mxu0 %v7285
    %7303 = vmatprep.subr.bf16.mxu0 0
    %7304 = vmatpush1.bf16.msra.mxu0 %v7286
    %7305 = vmatprep.subr.bf16.mxu0 0
    %7306 = vmatpush1.bf16.msra.mxu0 %v7287
    %7307 = vmatprep.subr.bf16.mxu0 0
    %7308 = vmatpush1.bf16.msra.mxu0 %v7288
    %7309 = vmatprep.subr.bf16.mxu0 0
    %7310 = vmatpush1.bf16.msra.mxu0 %v7289
    %7311 = vmatprep.subr.bf16.mxu0 0
    %7312 = vmatpush1.bf16.msra.mxu0 %v7290
    %7313 = vmatprep.subr.bf16.mxu0 0
    %7314 = vmatpush1.bf16.msra.mxu0 %v7291
    %7315 = vmatprep.subr.bf16.mxu0 0
    %7316 = vmatpush1.bf16.msra.mxu0 %v7292
    %7317 = vmatprep.subr.bf16.mxu0 0
    %7318 = vmatpush1.bf16.msra.mxu0 0
    %7319 = vmatprep.subr.bf16.mxu0 0
    %7320 = vmatpush1.bf16.msra.mxu0 0
    %7321 = vmatprep.subr.bf16.mxu0 0
    %7322 = vmatpush1.bf16.msra.mxu0 0
    %7323 = vmatprep.subr.bf16.mxu0 0
    %7324 = vmatpush1.bf16.msra.mxu0 0
    %7325 = vmatprep.subr.bf16.mxu0 0
    %7326 = vmatpush1.bf16.msra.mxu0 0
    %7327 = vmatprep.subr.bf16.mxu0 0
    %7328 = vmatpush1.bf16.msra.mxu0 0
    %7329 = vmatprep.subr.bf16.mxu0 0
    %7330 = vmatpush1.bf16.msra.mxu0 0
    %7331 = vmatprep.subr.bf16.mxu0 0
    %7332 = vmatpush1.bf16.msra.mxu0 0
    %7333 = vmatprep.mubr.bf16.mxu0 0
    %7334 = vmatmul.mubr.bf16.gmra.mrb[0].mxu0 %v7235
    %v7335 = vpop.f32.mrb[0].mxu0
    %v7336 = vadd.f32 0.0, %v7335
    %v7337 = vpop.f32.mrb[0].mxu0
    %v7338 = vpop.f32.mrb[0].mxu0
    %v7339 = vadd.f32 0.0, %v7338
    %v7340 = vpop.f32.mrb[0].mxu0
    %7341 = vdwg.mxu0
    %v7342 = vadd.f32 %v7233, %v7336
    %v7343 = vadd.f32 %v7234, %v7339
    %v7344 = vld [vmem:[#allocation3 + $0xa0] sm:$0xff]
    %s7345 = scalar_lea.vmem [#allocation11], 1280
    %v7346 = vld [vmem:[%s7345] sm:$0xf]
    %v7347 = vld [vmem:[%s7345 + $0x4] sm:$0xf]
    %v7348 = vld [vmem:[%s7345 + $0x8] sm:$0xf]
    %v7349 = vld [vmem:[%s7345 + $0xc] sm:$0xf]
    %v7350 = vld [vmem:[%s7345 + $0x10] sm:$0xf]
    %v7351 = vld [vmem:[%s7345 + $0x14] sm:$0xf]
    %v7352 = vld [vmem:[%s7345 + $0x18] sm:$0xf]
    %v7353 = vld [vmem:[%s7345 + $0x1c] sm:$0xf]
    %v7354 = vld [vmem:[%s7345 + $0x20] sm:$0xf]
    %v7355 = vld [vmem:[%s7345 + $0x24] sm:$0xf]
    %v7356 = vld [vmem:[%s7345 + $0x28] sm:$0xf]
    %v7357 = vld [vmem:[%s7345 + $0x2c] sm:$0xf]
    %v7358 = vld [vmem:[%s7345 + $0x30] sm:$0xf]
    %v7359 = vld [vmem:[%s7345 + $0x34] sm:$0xf]
    %v7360 = vld [vmem:[%s7345 + $0x38] sm:$0xf]
    %v7361 = vld [vmem:[%s7345 + $0x3c] sm:$0xf]
    %v7378 = vunpack.c.l.b16 %v7346
    %v7379 = vunpack.c.l.b16 %v7347
    %v7380 = vunpack.c.l.b16 %v7348
    %v7381 = vunpack.c.l.b16 %v7349
    %v7382 = vunpack.c.l.b16 %v7350
    %v7383 = vunpack.c.l.b16 %v7351
    %v7384 = vunpack.c.l.b16 %v7352
    %v7385 = vunpack.c.l.b16 %v7353
    %v7386 = vunpack.c.l.b16 %v7354
    %v7387 = vunpack.c.l.b16 %v7355
    %v7388 = vunpack.c.l.b16 %v7356
    %v7389 = vunpack.c.l.b16 %v7357
    %v7390 = vunpack.c.l.b16 %v7358
    %v7391 = vunpack.c.l.b16 %v7359
    %v7392 = vunpack.c.l.b16 %v7360
    %v7393 = vunpack.c.l.b16 %v7361
    %v7394 = vpack.c.b16 %v7379, %v7378
    %v7395 = vpack.c.b16 %v7381, %v7380
    %v7396 = vpack.c.b16 %v7383, %v7382
    %v7397 = vpack.c.b16 %v7385, %v7384
    %v7398 = vpack.c.b16 %v7387, %v7386
    %v7399 = vpack.c.b16 %v7389, %v7388
    %v7400 = vpack.c.b16 %v7391, %v7390
    %v7401 = vpack.c.b16 %v7393, %v7392
    %7410 = vmatprep.subr.bf16.mxu0 0
    %7411 = vmatpush1.bf16.msra.mxu0 %v7394
    %7412 = vmatprep.subr.bf16.mxu0 0
    %7413 = vmatpush1.bf16.msra.mxu0 %v7395
    %7414 = vmatprep.subr.bf16.mxu0 0
    %7415 = vmatpush1.bf16.msra.mxu0 %v7396
    %7416 = vmatprep.subr.bf16.mxu0 0
    %7417 = vmatpush1.bf16.msra.mxu0 %v7397
    %7418 = vmatprep.subr.bf16.mxu0 0
    %7419 = vmatpush1.bf16.msra.mxu0 %v7398
    %7420 = vmatprep.subr.bf16.mxu0 0
    %7421 = vmatpush1.bf16.msra.mxu0 %v7399
    %7422 = vmatprep.subr.bf16.mxu0 0
    %7423 = vmatpush1.bf16.msra.mxu0 %v7400
    %7424 = vmatprep.subr.bf16.mxu0 0
    %7425 = vmatpush1.bf16.msra.mxu0 %v7401
    %7426 = vmatprep.subr.bf16.mxu0 0
    %7427 = vmatpush1.bf16.msra.mxu0 0
    %7428 = vmatprep.subr.bf16.mxu0 0
    %7429 = vmatpush1.bf16.msra.mxu0 0
    %7430 = vmatprep.subr.bf16.mxu0 0
    %7431 = vmatpush1.bf16.msra.mxu0 0
    %7432 = vmatprep.subr.bf16.mxu0 0
    %7433 = vmatpush1.bf16.msra.mxu0 0
    %7434 = vmatprep.subr.bf16.mxu0 0
    %7435 = vmatpush1.bf16.msra.mxu0 0
    %7436 = vmatprep.subr.bf16.mxu0 0
    %7437 = vmatpush1.bf16.msra.mxu0 0
    %7438 = vmatprep.subr.bf16.mxu0 0
    %7439 = vmatpush1.bf16.msra.mxu0 0
    %7440 = vmatprep.subr.bf16.mxu0 0
    %7441 = vmatpush1.bf16.msra.mxu0 0
    %7442 = vmatprep.mubr.bf16.mxu0 0
    %7443 = vmatmul.mubr.bf16.gmra.mrb[0].mxu0 %v7344
    %v7444 = vpop.f32.mrb[0].mxu0
    %v7445 = vadd.f32 0.0, %v7444
    %v7446 = vpop.f32.mrb[0].mxu0
    %v7447 = vpop.f32.mrb[0].mxu0
    %v7448 = vadd.f32 0.0, %v7447
    %v7449 = vpop.f32.mrb[0].mxu0
    %7450 = vdwg.mxu0
    %v7451 = vadd.f32 %v7342, %v7445
    %v7452 = vadd.f32 %v7343, %v7448
    %v7453 = vld [vmem:[#allocation3 + $0xa8] sm:$0xff]
    %s7454 = scalar_lea.vmem [#allocation11], 1344
    %v7455 = vld [vmem:[%s7454] sm:$0xf]
    %v7456 = vld [vmem:[%s7454 + $0x4] sm:$0xf]
    %v7457 = vld [vmem:[%s7454 + $0x8] sm:$0xf]
    %v7458 = vld [vmem:[%s7454 + $0xc] sm:$0xf]
    %v7459 = vld [vmem:[%s7454 + $0x10] sm:$0xf]
    %v7460 = vld [vmem:[%s7454 + $0x14] sm:$0xf]
    %v7461 = vld [vmem:[%s7454 + $0x18] sm:$0xf]
    %v7462 = vld [vmem:[%s7454 + $0x1c] sm:$0xf]
    %v7463 = vld [vmem:[%s7454 + $0x20] sm:$0xf]
    %v7464 = vld [vmem:[%s7454 + $0x24] sm:$0xf]
    %v7465 = vld [vmem:[%s7454 + $0x28] sm:$0xf]
    %v7466 = vld [vmem:[%s7454 + $0x2c] sm:$0xf]
    %v7467 = vld [vmem:[%s7454 + $0x30] sm:$0xf]
    %v7468 = vld [vmem:[%s7454 + $0x34] sm:$0xf]
    %v7469 = vld [vmem:[%s7454 + $0x38] sm:$0xf]
    %v7470 = vld [vmem:[%s7454 + $0x3c] sm:$0xf]
    %v7487 = vunpack.c.l.b16 %v7455
    %v7488 = vunpack.c.l.b16 %v7456
    %v7489 = vunpack.c.l.b16 %v7457
    %v7490 = vunpack.c.l.b16 %v7458
    %v7491 = vunpack.c.l.b16 %v7459
    %v7492 = vunpack.c.l.b16 %v7460
    %v7493 = vunpack.c.l.b16 %v7461
    %v7494 = vunpack.c.l.b16 %v7462
    %v7495 = vunpack.c.l.b16 %v7463
    %v7496 = vunpack.c.l.b16 %v7464
    %v7497 = vunpack.c.l.b16 %v7465
    %v7498 = vunpack.c.l.b16 %v7466
    %v7499 = vunpack.c.l.b16 %v7467
    %v7500 = vunpack.c.l.b16 %v7468
    %v7501 = vunpack.c.l.b16 %v7469
    %v7502 = vunpack.c.l.b16 %v7470
    %v7503 = vpack.c.b16 %v7488, %v7487
    %v7504 = vpack.c.b16 %v7490, %v7489
    %v7505 = vpack.c.b16 %v7492, %v7491
    %v7506 = vpack.c.b16 %v7494, %v7493
    %v7507 = vpack.c.b16 %v7496, %v7495
    %v7508 = vpack.c.b16 %v7498, %v7497
    %v7509 = vpack.c.b16 %v7500, %v7499
    %v7510 = vpack.c.b16 %v7502, %v7501
    %7519 = vmatprep.subr.bf16.mxu0 0
    %7520 = vmatpush1.bf16.msra.mxu0 %v7503
    %7521 = vmatprep.subr.bf16.mxu0 0
    %7522 = vmatpush1.bf16.msra.mxu0 %v7504
    %7523 = vmatprep.subr.bf16.mxu0 0
    %7524 = vmatpush1.bf16.msra.mxu0 %v7505
    %7525 = vmatprep.subr.bf16.mxu0 0
    %7526 = vmatpush1.bf16.msra.mxu0 %v7506
    %7527 = vmatprep.subr.bf16.mxu0 0
    %7528 = vmatpush1.bf16.msra.mxu0 %v7507
    %7529 = vmatprep.subr.bf16.mxu0 0
    %7530 = vmatpush1.bf16.msra.mxu0 %v7508
    %7531 = vmatprep.subr.bf16.mxu0 0
    %7532 = vmatpush1.bf16.msra.mxu0 %v7509
    %7533 = vmatprep.subr.bf16.mxu0 0
    %7534 = vmatpush1.bf16.msra.mxu0 %v7510
    %7535 = vmatprep.subr.bf16.mxu0 0
    %7536 = vmatpush1.bf16.msra.mxu0 0
    %7537 = vmatprep.subr.bf16.mxu0 0
    %7538 = vmatpush1.bf16.msra.mxu0 0
    %7539 = vmatprep.subr.bf16.mxu0 0
    %7540 = vmatpush1.bf16.msra.mxu0 0
    %7541 = vmatprep.subr.bf16.mxu0 0
    %7542 = vmatpush1.bf16.msra.mxu0 0
    %7543 = vmatprep.subr.bf16.mxu0 0
    %7544 = vmatpush1.bf16.msra.mxu0 0
    %7545 = vmatprep.subr.bf16.mxu0 0
    %7546 = vmatpush1.bf16.msra.mxu0 0
    %7547 = vmatprep.subr.bf16.mxu0 0
    %7548 = vmatpush1.bf16.msra.mxu0 0
    %7549 = vmatprep.subr.bf16.mxu0 0
    %7550 = vmatpush1.bf16.msra.mxu0 0
    %7551 = vmatprep.mubr.bf16.mxu0 0
    %7552 = vmatmul.mubr.bf16.gmra.mrb[0].mxu0 %v7453
    %v7553 = vpop.f32.mrb[0].mxu0
    %v7554 = vadd.f32 0.0, %v7553
    %v7555 = vpop.f32.mrb[0].mxu0
    %v7556 = vpop.f32.mrb[0].mxu0
    %v7557 = vadd.f32 0.0, %v7556
    %v7558 = vpop.f32.mrb[0].mxu0
    %7559 = vdwg.mxu0
    %v7560 = vadd.f32 %v7451, %v7554
    %v7561 = vadd.f32 %v7452, %v7557
    %v7562 = vld [vmem:[#allocation3 + $0xb0] sm:$0xff]
    %s7563 = scalar_lea.vmem [#allocation11], 1408
    %v7564 = vld [vmem:[%s7563] sm:$0xf]
    %v7565 = vld [vmem:[%s7563 + $0x4] sm:$0xf]
    %v7566 = vld [vmem:[%s7563 + $0x8] sm:$0xf]
    %v7567 = vld [vmem:[%s7563 + $0xc] sm:$0xf]
    %v7568 = vld [vmem:[%s7563 + $0x10] sm:$0xf]
    %v7569 = vld [vmem:[%s7563 + $0x14] sm:$0xf]
    %v7570 = vld [vmem:[%s7563 + $0x18] sm:$0xf]
    %v7571 = vld [vmem:[%s7563 + $0x1c] sm:$0xf]
    %v7572 = vld [vmem:[%s7563 + $0x20] sm:$0xf]
    %v7573 = vld [vmem:[%s7563 + $0x24] sm:$0xf]
    %v7574 = vld [vmem:[%s7563 + $0x28] sm:$0xf]
    %v7575 = vld [vmem:[%s7563 + $0x2c] sm:$0xf]
    %v7576 = vld [vmem:[%s7563 + $0x30] sm:$0xf]
    %v7577 = vld [vmem:[%s7563 + $0x34] sm:$0xf]
    %v7578 = vld [vmem:[%s7563 + $0x38] sm:$0xf]
    %v7579 = vld [vmem:[%s7563 + $0x3c] sm:$0xf]
    %v7596 = vunpack.c.l.b16 %v7564
    %v7597 = vunpack.c.l.b16 %v7565
    %v7598 = vunpack.c.l.b16 %v7566
    %v7599 = vunpack.c.l.b16 %v7567
    %v7600 = vunpack.c.l.b16 %v7568
    %v7601 = vunpack.c.l.b16 %v7569
    %v7602 = vunpack.c.l.b16 %v7570
    %v7603 = vunpack.c.l.b16 %v7571
    %v7604 = vunpack.c.l.b16 %v7572
    %v7605 = vunpack.c.l.b16 %v7573
    %v7606 = vunpack.c.l.b16 %v7574
    %v7607 = vunpack.c.l.b16 %v7575
    %v7608 = vunpack.c.l.b16 %v7576
    %v7609 = vunpack.c.l.b16 %v7577
    %v7610 = vunpack.c.l.b16 %v7578
    %v7611 = vunpack.c.l.b16 %v7579
    %v7612 = vpack.c.b16 %v7597, %v7596
    %v7613 = vpack.c.b16 %v7599, %v7598
    %v7614 = vpack.c.b16 %v7601, %v7600
    %v7615 = vpack.c.b16 %v7603, %v7602
    %v7616 = vpack.c.b16 %v7605, %v7604
    %v7617 = vpack.c.b16 %v7607, %v7606
    %v7618 = vpack.c.b16 %v7609, %v7608
    %v7619 = vpack.c.b16 %v7611, %v7610
    %7628 = vmatprep.subr.bf16.mxu0 0
    %7629 = vmatpush1.bf16.msra.mxu0 %v7612
    %7630 = vmatprep.subr.bf16.mxu0 0
    %7631 = vmatpush1.bf16.msra.mxu0 %v7613
    %7632 = vmatprep.subr.bf16.mxu0 0
    %7633 = vmatpush1.bf16.msra.mxu0 %v7614
    %7634 = vmatprep.subr.bf16.mxu0 0
    %7635 = vmatpush1.bf16.msra.mxu0 %v7615
    %7636 = vmatprep.subr.bf16.mxu0 0
    %7637 = vmatpush1.bf16.msra.mxu0 %v7616
    %7638 = vmatprep.subr.bf16.mxu0 0
    %7639 = vmatpush1.bf16.msra.mxu0 %v7617
    %7640 = vmatprep.subr.bf16.mxu0 0
    %7641 = vmatpush1.bf16.msra.mxu0 %v7618
    %7642 = vmatprep.subr.bf16.mxu0 0
    %7643 = vmatpush1.bf16.msra.mxu0 %v7619
    %7644 = vmatprep.subr.bf16.mxu0 0
    %7645 = vmatpush1.bf16.msra.mxu0 0
    %7646 = vmatprep.subr.bf16.mxu0 0
    %7647 = vmatpush1.bf16.msra.mxu0 0
    %7648 = vmatprep.subr.bf16.mxu0 0
    %7649 = vmatpush1.bf16.msra.mxu0 0
    %7650 = vmatprep.subr.bf16.mxu0 0
    %7651 = vmatpush1.bf16.msra.mxu0 0
    %7652 = vmatprep.subr.bf16.mxu0 0
    %7653 = vmatpush1.bf16.msra.mxu0 0
    %7654 = vmatprep.subr.bf16.mxu0 0
    %7655 = vmatpush1.bf16.msra.mxu0 0
    %7656 = vmatprep.subr.bf16.mxu0 0
    %7657 = vmatpush1.bf16.msra.mxu0 0
    %7658 = vmatprep.subr.bf16.mxu0 0
    %7659 = vmatpush1.bf16.msra.mxu0 0
    %7660 = vmatprep.mubr.bf16.mxu0 0
    %7661 = vmatmul.mubr.bf16.gmra.mrb[0].mxu0 %v7562
    %v7662 = vpop.f32.mrb[0].mxu0
    %v7663 = vadd.f32 0.0, %v7662
    %v7664 = vpop.f32.mrb[0].mxu0
    %v7665 = vpop.f32.mrb[0].mxu0
    %v7666 = vadd.f32 0.0, %v7665
    %v7667 = vpop.f32.mrb[0].mxu0
    %7668 = vdwg.mxu0
    %v7669 = vadd.f32 %v7560, %v7663
    %v7670 = vadd.f32 %v7561, %v7666
    %v7671 = vld [vmem:[#allocation3 + $0xb8] sm:$0xff]
    %s7672 = scalar_lea.vmem [#allocation11], 1472
    %v7673 = vld [vmem:[%s7672] sm:$0xf]
    %v7674 = vld [vmem:[%s7672 + $0x4] sm:$0xf]
    %v7675 = vld [vmem:[%s7672 + $0x8] sm:$0xf]
    %v7676 = vld [vmem:[%s7672 + $0xc] sm:$0xf]
    %v7677 = vld [vmem:[%s7672 + $0x10] sm:$0xf]
    %v7678 = vld [vmem:[%s7672 + $0x14] sm:$0xf]
    %v7679 = vld [vmem:[%s7672 + $0x18] sm:$0xf]
    %v7680 = vld [vmem:[%s7672 + $0x1c] sm:$0xf]
    %v7681 = vld [vmem:[%s7672 + $0x20] sm:$0xf]
    %v7682 = vld [vmem:[%s7672 + $0x24] sm:$0xf]
    %v7683 = vld [vmem:[%s7672 + $0x28] sm:$0xf]
    %v7684 = vld [vmem:[%s7672 + $0x2c] sm:$0xf]
    %v7685 = vld [vmem:[%s7672 + $0x30] sm:$0xf]
    %v7686 = vld [vmem:[%s7672 + $0x34] sm:$0xf]
    %v7687 = vld [vmem:[%s7672 + $0x38] sm:$0xf]
    %v7688 = vld [vmem:[%s7672 + $0x3c] sm:$0xf]
    %v7705 = vunpack.c.l.b16 %v7673
    %v7706 = vunpack.c.l.b16 %v7674
    %v7707 = vunpack.c.l.b16 %v7675
    %v7708 = vunpack.c.l.b16 %v7676
    %v7709 = vunpack.c.l.b16 %v7677
    %v7710 = vunpack.c.l.b16 %v7678
    %v7711 = vunpack.c.l.b16 %v7679
    %v7712 = vunpack.c.l.b16 %v7680
    %v7713 = vunpack.c.l.b16 %v7681
    %v7714 = vunpack.c.l.b16 %v7682
    %v7715 = vunpack.c.l.b16 %v7683
    %v7716 = vunpack.c.l.b16 %v7684
    %v7717 = vunpack.c.l.b16 %v7685
    %v7718 = vunpack.c.l.b16 %v7686
    %v7719 = vunpack.c.l.b16 %v7687
    %v7720 = vunpack.c.l.b16 %v7688
    %v7721 = vpack.c.b16 %v7706, %v7705
    %v7722 = vpack.c.b16 %v7708, %v7707
    %v7723 = vpack.c.b16 %v7710, %v7709
    %v7724 = vpack.c.b16 %v7712, %v7711
    %v7725 = vpack.c.b16 %v7714, %v7713
    %v7726 = vpack.c.b16 %v7716, %v7715
    %v7727 = vpack.c.b16 %v7718, %v7717
    %v7728 = vpack.c.b16 %v7720, %v7719
    %7737 = vmatprep.subr.bf16.mxu0 0
    %7738 = vmatpush1.bf16.msra.mxu0 %v7721
    %7739 = vmatprep.subr.bf16.mxu0 0
    %7740 = vmatpush1.bf16.msra.mxu0 %v7722
    %7741 = vmatprep.subr.bf16.mxu0 0
    %7742 = vmatpush1.bf16.msra.mxu0 %v7723
    %7743 = vmatprep.subr.bf16.mxu0 0
    %7744 = vmatpush1.bf16.msra.mxu0 %v7724
    %7745 = vmatprep.subr.bf16.mxu0 0
    %7746 = vmatpush1.bf16.msra.mxu0 %v7725
    %7747 = vmatprep.subr.bf16.mxu0 0
    %7748 = vmatpush1.bf16.msra.mxu0 %v7726
    %7749 = vmatprep.subr.bf16.mxu0 0
    %7750 = vmatpush1.bf16.msra.mxu0 %v7727
    %7751 = vmatprep.subr.bf16.mxu0 0
    %7752 = vmatpush1.bf16.msra.mxu0 %v7728
    %7753 = vmatprep.subr.bf16.mxu0 0
    %7754 = vmatpush1.bf16.msra.mxu0 0
    %7755 = vmatprep.subr.bf16.mxu0 0
    %7756 = vmatpush1.bf16.msra.mxu0 0
    %7757 = vmatprep.subr.bf16.mxu0 0
    %7758 = vmatpush1.bf16.msra.mxu0 0
    %7759 = vmatprep.subr.bf16.mxu0 0
    %7760 = vmatpush1.bf16.msra.mxu0 0
    %7761 = vmatprep.subr.bf16.mxu0 0
    %7762 = vmatpush1.bf16.msra.mxu0 0
    %7763 = vmatprep.subr.bf16.mxu0 0
    %7764 = vmatpush1.bf16.msra.mxu0 0
    %7765 = vmatprep.subr.bf16.mxu0 0
    %7766 = vmatpush1.bf16.msra.mxu0 0
    %7767 = vmatprep.subr.bf16.mxu0 0
    %7768 = vmatpush1.bf16.msra.mxu0 0
    %7769 = vmatprep.mubr.bf16.mxu0 0
    %7770 = vmatmul.mubr.bf16.gmra.mrb[0].mxu0 %v7671
    %v7771 = vpop.f32.mrb[0].mxu0
    %v7772 = vadd.f32 0.0, %v7771
    %v7773 = vpop.f32.mrb[0].mxu0
    %v7774 = vpop.f32.mrb[0].mxu0
    %v7775 = vadd.f32 0.0, %v7774
    %v7776 = vpop.f32.mrb[0].mxu0
    %7777 = vdwg.mxu0
    %v7778 = vadd.f32 %v7669, %v7772
    %v7779 = vadd.f32 %v7670, %v7775
    %v7780 = vld [vmem:[#allocation3 + $0xc0] sm:$0xff]
    %s7781 = scalar_lea.vmem [#allocation11], 1536
    %v7782 = vld [vmem:[%s7781] sm:$0xf]
    %v7783 = vld [vmem:[%s7781 + $0x4] sm:$0xf]
    %v7784 = vld [vmem:[%s7781 + $0x8] sm:$0xf]
    %v7785 = vld [vmem:[%s7781 + $0xc] sm:$0xf]
    %v7786 = vld [vmem:[%s7781 + $0x10] sm:$0xf]
    %v7787 = vld [vmem:[%s7781 + $0x14] sm:$0xf]
    %v7788 = vld [vmem:[%s7781 + $0x18] sm:$0xf]
    %v7789 = vld [vmem:[%s7781 + $0x1c] sm:$0xf]
    %v7790 = vld [vmem:[%s7781 + $0x20] sm:$0xf]
    %v7791 = vld [vmem:[%s7781 + $0x24] sm:$0xf]
    %v7792 = vld [vmem:[%s7781 + $0x28] sm:$0xf]
    %v7793 = vld [vmem:[%s7781 + $0x2c] sm:$0xf]
    %v7794 = vld [vmem:[%s7781 + $0x30] sm:$0xf]
    %v7795 = vld [vmem:[%s7781 + $0x34] sm:$0xf]
    %v7796 = vld [vmem:[%s7781 + $0x38] sm:$0xf]
    %v7797 = vld [vmem:[%s7781 + $0x3c] sm:$0xf]
    %v7814 = vunpack.c.l.b16 %v7782
    %v7815 = vunpack.c.l.b16 %v7783
    %v7816 = vunpack.c.l.b16 %v7784
    %v7817 = vunpack.c.l.b16 %v7785
    %v7818 = vunpack.c.l.b16 %v7786
    %v7819 = vunpack.c.l.b16 %v7787
    %v7820 = vunpack.c.l.b16 %v7788
    %v7821 = vunpack.c.l.b16 %v7789
    %v7822 = vunpack.c.l.b16 %v7790
    %v7823 = vunpack.c.l.b16 %v7791
    %v7824 = vunpack.c.l.b16 %v7792
    %v7825 = vunpack.c.l.b16 %v7793
    %v7826 = vunpack.c.l.b16 %v7794
    %v7827 = vunpack.c.l.b16 %v7795
    %v7828 = vunpack.c.l.b16 %v7796
    %v7829 = vunpack.c.l.b16 %v7797
    %v7830 = vpack.c.b16 %v7815, %v7814
    %v7831 = vpack.c.b16 %v7817, %v7816
    %v7832 = vpack.c.b16 %v7819, %v7818
    %v7833 = vpack.c.b16 %v7821, %v7820
    %v7834 = vpack.c.b16 %v7823, %v7822
    %v7835 = vpack.c.b16 %v7825, %v7824
    %v7836 = vpack.c.b16 %v7827, %v7826
    %v7837 = vpack.c.b16 %v7829, %v7828
    %7846 = vmatprep.subr.bf16.mxu0 0
    %7847 = vmatpush1.bf16.msra.mxu0 %v7830
    %7848 = vmatprep.subr.bf16.mxu0 0
    %7849 = vmatpush1.bf16.msra.mxu0 %v7831
    %7850 = vmatprep.subr.bf16.mxu0 0
    %7851 = vmatpush1.bf16.msra.mxu0 %v7832
    %7852 = vmatprep.subr.bf16.mxu0 0
    %7853 = vmatpush1.bf16.msra.mxu0 %v7833
    %7854 = vmatprep.subr.bf16.mxu0 0
    %7855 = vmatpush1.bf16.msra.mxu0 %v7834
    %7856 = vmatprep.subr.bf16.mxu0 0
    %7857 = vmatpush1.bf16.msra.mxu0 %v7835
    %7858 = vmatprep.subr.bf16.mxu0 0
    %7859 = vmatpush1.bf16.msra.mxu0 %v7836
    %7860 = vmatprep.subr.bf16.mxu0 0
    %7861 = vmatpush1.bf16.msra.mxu0 %v7837
    %7862 = vmatprep.subr.bf16.mxu0 0
    %7863 = vmatpush1.bf16.msra.mxu0 0
    %7864 = vmatprep.subr.bf16.mxu0 0
    %7865 = vmatpush1.bf16.msra.mxu0 0
    %7866 = vmatprep.subr.bf16.mxu0 0
    %7867 = vmatpush1.bf16.msra.mxu0 0
    %7868 = vmatprep.subr.bf16.mxu0 0
    %7869 = vmatpush1.bf16.msra.mxu0 0
    %7870 = vmatprep.subr.bf16.mxu0 0
    %7871 = vmatpush1.bf16.msra.mxu0 0
    %7872 = vmatprep.subr.bf16.mxu0 0
    %7873 = vmatpush1.bf16.msra.mxu0 0
    %7874 = vmatprep.subr.bf16.mxu0 0
    %7875 = vmatpush1.bf16.msra.mxu0 0
    %7876 = vmatprep.subr.bf16.mxu0 0
    %7877 = vmatpush1.bf16.msra.mxu0 0
    %7878 = vmatprep.mubr.bf16.mxu0 0
    %7879 = vmatmul.mubr.bf16.gmra.mrb[0].mxu0 %v7780
    %v7880 = vpop.f32.mrb[0].mxu0
    %v7881 = vadd.f32 0.0, %v7880
    %v7882 = vpop.f32.mrb[0].mxu0
    %v7883 = vpop.f32.mrb[0].mxu0
    %v7884 = vadd.f32 0.0, %v7883
    %v7885 = vpop.f32.mrb[0].mxu0
    %7886 = vdwg.mxu0
    %v7887 = vadd.f32 %v7778, %v7881
    %v7888 = vadd.f32 %v7779, %v7884
    %v7889 = vld [vmem:[#allocation3 + $0xc8] sm:$0xff]
    %s7890 = scalar_lea.vmem [#allocation11], 1600
    %v7891 = vld [vmem:[%s7890] sm:$0xf]
    %v7892 = vld [vmem:[%s7890 + $0x4] sm:$0xf]
    %v7893 = vld [vmem:[%s7890 + $0x8] sm:$0xf]
    %v7894 = vld [vmem:[%s7890 + $0xc] sm:$0xf]
    %v7895 = vld [vmem:[%s7890 + $0x10] sm:$0xf]
    %v7896 = vld [vmem:[%s7890 + $0x14] sm:$0xf]
    %v7897 = vld [vmem:[%s7890 + $0x18] sm:$0xf]
    %v7898 = vld [vmem:[%s7890 + $0x1c] sm:$0xf]
    %v7899 = vld [vmem:[%s7890 + $0x20] sm:$0xf]
    %v7900 = vld [vmem:[%s7890 + $0x24] sm:$0xf]
    %v7901 = vld [vmem:[%s7890 + $0x28] sm:$0xf]
    %v7902 = vld [vmem:[%s7890 + $0x2c] sm:$0xf]
    %v7903 = vld [vmem:[%s7890 + $0x30] sm:$0xf]
    %v7904 = vld [vmem:[%s7890 + $0x34] sm:$0xf]
    %v7905 = vld [vmem:[%s7890 + $0x38] sm:$0xf]
    %v7906 = vld [vmem:[%s7890 + $0x3c] sm:$0xf]
    %v7923 = vunpack.c.l.b16 %v7891
    %v7924 = vunpack.c.l.b16 %v7892
    %v7925 = vunpack.c.l.b16 %v7893
    %v7926 = vunpack.c.l.b16 %v7894
    %v7927 = vunpack.c.l.b16 %v7895
    %v7928 = vunpack.c.l.b16 %v7896
    %v7929 = vunpack.c.l.b16 %v7897
    %v7930 = vunpack.c.l.b16 %v7898
    %v7931 = vunpack.c.l.b16 %v7899
    %v7932 = vunpack.c.l.b16 %v7900
    %v7933 = vunpack.c.l.b16 %v7901
    %v7934 = vunpack.c.l.b16 %v7902
    %v7935 = vunpack.c.l.b16 %v7903
    %v7936 = vunpack.c.l.b16 %v7904
    %v7937 = vunpack.c.l.b16 %v7905
    %v7938 = vunpack.c.l.b16 %v7906
    %v7939 = vpack.c.b16 %v7924, %v7923
    %v7940 = vpack.c.b16 %v7926, %v7925
    %v7941 = vpack.c.b16 %v7928, %v7927
    %v7942 = vpack.c.b16 %v7930, %v7929
    %v7943 = vpack.c.b16 %v7932, %v7931
    %v7944 = vpack.c.b16 %v7934, %v7933
    %v7945 = vpack.c.b16 %v7936, %v7935
    %v7946 = vpack.c.b16 %v7938, %v7937
    %7955 = vmatprep.subr.bf16.mxu0 0
    %7956 = vmatpush1.bf16.msra.mxu0 %v7939
    %7957 = vmatprep.subr.bf16.mxu0 0
    %7958 = vmatpush1.bf16.msra.mxu0 %v7940
    %7959 = vmatprep.subr.bf16.mxu0 0
    %7960 = vmatpush1.bf16.msra.mxu0 %v7941
    %7961 = vmatprep.subr.bf16.mxu0 0
    %7962 = vmatpush1.bf16.msra.mxu0 %v7942
    %7963 = vmatprep.subr.bf16.mxu0 0
    %7964 = vmatpush1.bf16.msra.mxu0 %v7943
    %7965 = vmatprep.subr.bf16.mxu0 0
    %7966 = vmatpush1.bf16.msra.mxu0 %v7944
    %7967 = vmatprep.subr.bf16.mxu0 0
    %7968 = vmatpush1.bf16.msra.mxu0 %v7945
    %7969 = vmatprep.subr.bf16.mxu0 0
    %7970 = vmatpush1.bf16.msra.mxu0 %v7946
    %7971 = vmatprep.subr.bf16.mxu0 0
    %7972 = vmatpush1.bf16.msra.mxu0 0
    %7973 = vmatprep.subr.bf16.mxu0 0
    %7974 = vmatpush1.bf16.msra.mxu0 0
    %7975 = vmatprep.subr.bf16.mxu0 0
    %7976 = vmatpush1.bf16.msra.mxu0 0
    %7977 = vmatprep.subr.bf16.mxu0 0
    %7978 = vmatpush1.bf16.msra.mxu0 0
    %7979 = vmatprep.subr.bf16.mxu0 0
    %7980 = vmatpush1.bf16.msra.mxu0 0
    %7981 = vmatprep.subr.bf16.mxu0 0
    %7982 = vmatpush1.bf16.msra.mxu0 0
    %7983 = vmatprep.subr.bf16.mxu0 0
    %7984 = vmatpush1.bf16.msra.mxu0 0
    %7985 = vmatprep.subr.bf16.mxu0 0
    %7986 = vmatpush1.bf16.msra.mxu0 0
    %7987 = vmatprep.mubr.bf16.mxu0 0
    %7988 = vmatmul.mubr.bf16.gmra.mrb[0].mxu0 %v7889
    %v7989 = vpop.f32.mrb[0].mxu0
    %v7990 = vadd.f32 0.0, %v7989
    %v7991 = vpop.f32.mrb[0].mxu0
    %v7992 = vpop.f32.mrb[0].mxu0
    %v7993 = vadd.f32 0.0, %v7992
    %v7994 = vpop.f32.mrb[0].mxu0
    %7995 = vdwg.mxu0
    %v7996 = vadd.f32 %v7887, %v7990
    %v7997 = vadd.f32 %v7888, %v7993
    %v7998 = vld [vmem:[#allocation3 + $0xd0] sm:$0xff]
    %s7999 = scalar_lea.vmem [#allocation11], 1664
    %v8000 = vld [vmem:[%s7999] sm:$0xf]
    %v8001 = vld [vmem:[%s7999 + $0x4] sm:$0xf]
    %v8002 = vld [vmem:[%s7999 + $0x8] sm:$0xf]
    %v8003 = vld [vmem:[%s7999 + $0xc] sm:$0xf]
    %v8004 = vld [vmem:[%s7999 + $0x10] sm:$0xf]
    %v8005 = vld [vmem:[%s7999 + $0x14] sm:$0xf]
    %v8006 = vld [vmem:[%s7999 + $0x18] sm:$0xf]
    %v8007 = vld [vmem:[%s7999 + $0x1c] sm:$0xf]
    %v8008 = vld [vmem:[%s7999 + $0x20] sm:$0xf]
    %v8009 = vld [vmem:[%s7999 + $0x24] sm:$0xf]
    %v8010 = vld [vmem:[%s7999 + $0x28] sm:$0xf]
    %v8011 = vld [vmem:[%s7999 + $0x2c] sm:$0xf]
    %v8012 = vld [vmem:[%s7999 + $0x30] sm:$0xf]
    %v8013 = vld [vmem:[%s7999 + $0x34] sm:$0xf]
    %v8014 = vld [vmem:[%s7999 + $0x38] sm:$0xf]
    %v8015 = vld [vmem:[%s7999 + $0x3c] sm:$0xf]
    %v8032 = vunpack.c.l.b16 %v8000
    %v8033 = vunpack.c.l.b16 %v8001
    %v8034 = vunpack.c.l.b16 %v8002
    %v8035 = vunpack.c.l.b16 %v8003
    %v8036 = vunpack.c.l.b16 %v8004
    %v8037 = vunpack.c.l.b16 %v8005
    %v8038 = vunpack.c.l.b16 %v8006
    %v8039 = vunpack.c.l.b16 %v8007
    %v8040 = vunpack.c.l.b16 %v8008
    %v8041 = vunpack.c.l.b16 %v8009
    %v8042 = vunpack.c.l.b16 %v8010
    %v8043 = vunpack.c.l.b16 %v8011
    %v8044 = vunpack.c.l.b16 %v8012
    %v8045 = vunpack.c.l.b16 %v8013
    %v8046 = vunpack.c.l.b16 %v8014
    %v8047 = vunpack.c.l.b16 %v8015
    %v8048 = vpack.c.b16 %v8033, %v8032
    %v8049 = vpack.c.b16 %v8035, %v8034
    %v8050 = vpack.c.b16 %v8037, %v8036
    %v8051 = vpack.c.b16 %v8039, %v8038
    %v8052 = vpack.c.b16 %v8041, %v8040
    %v8053 = vpack.c.b16 %v8043, %v8042
    %v8054 = vpack.c.b16 %v8045, %v8044
    %v8055 = vpack.c.b16 %v8047, %v8046
    %8064 = vmatprep.subr.bf16.mxu0 0
    %8065 = vmatpush1.bf16.msra.mxu0 %v8048
    %8066 = vmatprep.subr.bf16.mxu0 0
    %8067 = vmatpush1.bf16.msra.mxu0 %v8049
    %8068 = vmatprep.subr.bf16.mxu0 0
    %8069 = vmatpush1.bf16.msra.mxu0 %v8050
    %8070 = vmatprep.subr.bf16.mxu0 0
    %8071 = vmatpush1.bf16.msra.mxu0 %v8051
    %8072 = vmatprep.subr.bf16.mxu0 0
    %8073 = vmatpush1.bf16.msra.mxu0 %v8052
    %8074 = vmatprep.subr.bf16.mxu0 0
    %8075 = vmatpush1.bf16.msra.mxu0 %v8053
    %8076 = vmatprep.subr.bf16.mxu0 0
    %8077 = vmatpush1.bf16.msra.mxu0 %v8054
    %8078 = vmatprep.subr.bf16.mxu0 0
    %8079 = vmatpush1.bf16.msra.mxu0 %v8055
    %8080 = vmatprep.subr.bf16.mxu0 0
    %8081 = vmatpush1.bf16.msra.mxu0 0
    %8082 = vmatprep.subr.bf16.mxu0 0
    %8083 = vmatpush1.bf16.msra.mxu0 0
    %8084 = vmatprep.subr.bf16.mxu0 0
    %8085 = vmatpush1.bf16.msra.mxu0 0
    %8086 = vmatprep.subr.bf16.mxu0 0
    %8087 = vmatpush1.bf16.msra.mxu0 0
    %8088 = vmatprep.subr.bf16.mxu0 0
    %8089 = vmatpush1.bf16.msra.mxu0 0
    %8090 = vmatprep.subr.bf16.mxu0 0
    %8091 = vmatpush1.bf16.msra.mxu0 0
    %8092 = vmatprep.subr.bf16.mxu0 0
    %8093 = vmatpush1.bf16.msra.mxu0 0
    %8094 = vmatprep.subr.bf16.mxu0 0
    %8095 = vmatpush1.bf16.msra.mxu0 0
    %8096 = vmatprep.mubr.bf16.mxu0 0
    %8097 = vmatmul.mubr.bf16.gmra.mrb[0].mxu0 %v7998
    %v8098 = vpop.f32.mrb[0].mxu0
    %v8099 = vadd.f32 0.0, %v8098
    %v8100 = vpop.f32.mrb[0].mxu0
    %v8101 = vpop.f32.mrb[0].mxu0
    %v8102 = vadd.f32 0.0, %v8101
    %v8103 = vpop.f32.mrb[0].mxu0
    %8104 = vdwg.mxu0
    %v8105 = vadd.f32 %v7996, %v8099
    %v8106 = vadd.f32 %v7997, %v8102
    %v8107 = vld [vmem:[#allocation3 + $0xd8] sm:$0xff]
    %s8108 = scalar_lea.vmem [#allocation11], 1728
    %v8109 = vld [vmem:[%s8108] sm:$0xf]
    %v8110 = vld [vmem:[%s8108 + $0x4] sm:$0xf]
    %v8111 = vld [vmem:[%s8108 + $0x8] sm:$0xf]
    %v8112 = vld [vmem:[%s8108 + $0xc] sm:$0xf]
    %v8113 = vld [vmem:[%s8108 + $0x10] sm:$0xf]
    %v8114 = vld [vmem:[%s8108 + $0x14] sm:$0xf]
    %v8115 = vld [vmem:[%s8108 + $0x18] sm:$0xf]
    %v8116 = vld [vmem:[%s8108 + $0x1c] sm:$0xf]
    %v8117 = vld [vmem:[%s8108 + $0x20] sm:$0xf]
    %v8118 = vld [vmem:[%s8108 + $0x24] sm:$0xf]
    %v8119 = vld [vmem:[%s8108 + $0x28] sm:$0xf]
    %v8120 = vld [vmem:[%s8108 + $0x2c] sm:$0xf]
    %v8121 = vld [vmem:[%s8108 + $0x30] sm:$0xf]
    %v8122 = vld [vmem:[%s8108 + $0x34] sm:$0xf]
    %v8123 = vld [vmem:[%s8108 + $0x38] sm:$0xf]
    %v8124 = vld [vmem:[%s8108 + $0x3c] sm:$0xf]
    %v8141 = vunpack.c.l.b16 %v8109
    %v8142 = vunpack.c.l.b16 %v8110
    %v8143 = vunpack.c.l.b16 %v8111
    %v8144 = vunpack.c.l.b16 %v8112
    %v8145 = vunpack.c.l.b16 %v8113
    %v8146 = vunpack.c.l.b16 %v8114
    %v8147 = vunpack.c.l.b16 %v8115
    %v8148 = vunpack.c.l.b16 %v8116
    %v8149 = vunpack.c.l.b16 %v8117
    %v8150 = vunpack.c.l.b16 %v8118
    %v8151 = vunpack.c.l.b16 %v8119
    %v8152 = vunpack.c.l.b16 %v8120
    %v8153 = vunpack.c.l.b16 %v8121
    %v8154 = vunpack.c.l.b16 %v8122
    %v8155 = vunpack.c.l.b16 %v8123
    %v8156 = vunpack.c.l.b16 %v8124
    %v8157 = vpack.c.b16 %v8142, %v8141
    %v8158 = vpack.c.b16 %v8144, %v8143
    %v8159 = vpack.c.b16 %v8146, %v8145
    %v8160 = vpack.c.b16 %v8148, %v8147
    %v8161 = vpack.c.b16 %v8150, %v8149
    %v8162 = vpack.c.b16 %v8152, %v8151
    %v8163 = vpack.c.b16 %v8154, %v8153
    %v8164 = vpack.c.b16 %v8156, %v8155
    %8173 = vmatprep.subr.bf16.mxu0 0
    %8174 = vmatpush1.bf16.msra.mxu0 %v8157
    %8175 = vmatprep.subr.bf16.mxu0 0
    %8176 = vmatpush1.bf16.msra.mxu0 %v8158
    %8177 = vmatprep.subr.bf16.mxu0 0
    %8178 = vmatpush1.bf16.msra.mxu0 %v8159
    %8179 = vmatprep.subr.bf16.mxu0 0
    %8180 = vmatpush1.bf16.msra.mxu0 %v8160
    %8181 = vmatprep.subr.bf16.mxu0 0
    %8182 = vmatpush1.bf16.msra.mxu0 %v8161
    %8183 = vmatprep.subr.bf16.mxu0 0
    %8184 = vmatpush1.bf16.msra.mxu0 %v8162
    %8185 = vmatprep.subr.bf16.mxu0 0
    %8186 = vmatpush1.bf16.msra.mxu0 %v8163
    %8187 = vmatprep.subr.bf16.mxu0 0
    %8188 = vmatpush1.bf16.msra.mxu0 %v8164
    %8189 = vmatprep.subr.bf16.mxu0 0
    %8190 = vmatpush1.bf16.msra.mxu0 0
    %8191 = vmatprep.subr.bf16.mxu0 0
    %8192 = vmatpush1.bf16.msra.mxu0 0
    %8193 = vmatprep.subr.bf16.mxu0 0
    %8194 = vmatpush1.bf16.msra.mxu0 0
    %8195 = vmatprep.subr.bf16.mxu0 0
    %8196 = vmatpush1.bf16.msra.mxu0 0
    %8197 = vmatprep.subr.bf16.mxu0 0
    %8198 = vmatpush1.bf16.msra.mxu0 0
    %8199 = vmatprep.subr.bf16.mxu0 0
    %8200 = vmatpush1.bf16.msra.mxu0 0
    %8201 = vmatprep.subr.bf16.mxu0 0
    %8202 = vmatpush1.bf16.msra.mxu0 0
    %8203 = vmatprep.subr.bf16.mxu0 0
    %8204 = vmatpush1.bf16.msra.mxu0 0
    %8205 = vmatprep.mubr.bf16.mxu0 0
    %8206 = vmatmul.mubr.bf16.gmra.mrb[0].mxu0 %v8107
    %v8207 = vpop.f32.mrb[0].mxu0
    %v8208 = vadd.f32 0.0, %v8207
    %v8209 = vpop.f32.mrb[0].mxu0
    %v8210 = vpop.f32.mrb[0].mxu0
    %v8211 = vadd.f32 0.0, %v8210
    %v8212 = vpop.f32.mrb[0].mxu0
    %8213 = vdwg.mxu0
    %v8214 = vadd.f32 %v8105, %v8208
    %v8215 = vadd.f32 %v8106, %v8211
    %v8216 = vld [vmem:[#allocation3 + $0xe0] sm:$0xff]
    %s8217 = scalar_lea.vmem [#allocation11], 1792
    %v8218 = vld [vmem:[%s8217] sm:$0xf]
    %v8219 = vld [vmem:[%s8217 + $0x4] sm:$0xf]
    %v8220 = vld [vmem:[%s8217 + $0x8] sm:$0xf]
    %v8221 = vld [vmem:[%s8217 + $0xc] sm:$0xf]
    %v8222 = vld [vmem:[%s8217 + $0x10] sm:$0xf]
    %v8223 = vld [vmem:[%s8217 + $0x14] sm:$0xf]
    %v8224 = vld [vmem:[%s8217 + $0x18] sm:$0xf]
    %v8225 = vld [vmem:[%s8217 + $0x1c] sm:$0xf]
    %v8226 = vld [vmem:[%s8217 + $0x20] sm:$0xf]
    %v8227 = vld [vmem:[%s8217 + $0x24] sm:$0xf]
    %v8228 = vld [vmem:[%s8217 + $0x28] sm:$0xf]
    %v8229 = vld [vmem:[%s8217 + $0x2c] sm:$0xf]
    %v8230 = vld [vmem:[%s8217 + $0x30] sm:$0xf]
    %v8231 = vld [vmem:[%s8217 + $0x34] sm:$0xf]
    %v8232 = vld [vmem:[%s8217 + $0x38] sm:$0xf]
    %v8233 = vld [vmem:[%s8217 + $0x3c] sm:$0xf]
    %v8250 = vunpack.c.l.b16 %v8218
    %v8251 = vunpack.c.l.b16 %v8219
    %v8252 = vunpack.c.l.b16 %v8220
    %v8253 = vunpack.c.l.b16 %v8221
    %v8254 = vunpack.c.l.b16 %v8222
    %v8255 = vunpack.c.l.b16 %v8223
    %v8256 = vunpack.c.l.b16 %v8224
    %v8257 = vunpack.c.l.b16 %v8225
    %v8258 = vunpack.c.l.b16 %v8226
    %v8259 = vunpack.c.l.b16 %v8227
    %v8260 = vunpack.c.l.b16 %v8228
    %v8261 = vunpack.c.l.b16 %v8229
    %v8262 = vunpack.c.l.b16 %v8230
    %v8263 = vunpack.c.l.b16 %v8231
    %v8264 = vunpack.c.l.b16 %v8232
    %v8265 = vunpack.c.l.b16 %v8233
    %v8266 = vpack.c.b16 %v8251, %v8250
    %v8267 = vpack.c.b16 %v8253, %v8252
    %v8268 = vpack.c.b16 %v8255, %v8254
    %v8269 = vpack.c.b16 %v8257, %v8256
    %v8270 = vpack.c.b16 %v8259, %v8258
    %v8271 = vpack.c.b16 %v8261, %v8260
    %v8272 = vpack.c.b16 %v8263, %v8262
    %v8273 = vpack.c.b16 %v8265, %v8264
    %8282 = vmatprep.subr.bf16.mxu0 0
    %8283 = vmatpush1.bf16.msra.mxu0 %v8266
    %8284 = vmatprep.subr.bf16.mxu0 0
    %8285 = vmatpush1.bf16.msra.mxu0 %v8267
    %8286 = vmatprep.subr.bf16.mxu0 0
    %8287 = vmatpush1.bf16.msra.mxu0 %v8268
    %8288 = vmatprep.subr.bf16.mxu0 0
    %8289 = vmatpush1.bf16.msra.mxu0 %v8269
    %8290 = vmatprep.subr.bf16.mxu0 0
    %8291 = vmatpush1.bf16.msra.mxu0 %v8270
    %8292 = vmatprep.subr.bf16.mxu0 0
    %8293 = vmatpush1.bf16.msra.mxu0 %v8271
    %8294 = vmatprep.subr.bf16.mxu0 0
    %8295 = vmatpush1.bf16.msra.mxu0 %v8272
    %8296 = vmatprep.subr.bf16.mxu0 0
    %8297 = vmatpush1.bf16.msra.mxu0 %v8273
    %8298 = vmatprep.subr.bf16.mxu0 0
    %8299 = vmatpush1.bf16.msra.mxu0 0
    %8300 = vmatprep.subr.bf16.mxu0 0
    %8301 = vmatpush1.bf16.msra.mxu0 0
    %8302 = vmatprep.subr.bf16.mxu0 0
    %8303 = vmatpush1.bf16.msra.mxu0 0
    %8304 = vmatprep.subr.bf16.mxu0 0
    %8305 = vmatpush1.bf16.msra.mxu0 0
    %8306 = vmatprep.subr.bf16.mxu0 0
    %8307 = vmatpush1.bf16.msra.mxu0 0
    %8308 = vmatprep.subr.bf16.mxu0 0
    %8309 = vmatpush1.bf16.msra.mxu0 0
    %8310 = vmatprep.subr.bf16.mxu0 0
    %8311 = vmatpush1.bf16.msra.mxu0 0
    %8312 = vmatprep.subr.bf16.mxu0 0
    %8313 = vmatpush1.bf16.msra.mxu0 0
    %8314 = vmatprep.mubr.bf16.mxu0 0
    %8315 = vmatmul.mubr.bf16.gmra.mrb[0].mxu0 %v8216
    %v8316 = vpop.f32.mrb[0].mxu0
    %v8317 = vadd.f32 0.0, %v8316
    %v8318 = vpop.f32.mrb[0].mxu0
    %v8319 = vpop.f32.mrb[0].mxu0
    %v8320 = vadd.f32 0.0, %v8319
    %v8321 = vpop.f32.mrb[0].mxu0
    %8322 = vdwg.mxu0
    %v8323 = vadd.f32 %v8214, %v8317
    %v8324 = vadd.f32 %v8215, %v8320
    %v8325 = vld [vmem:[#allocation3 + $0xe8] sm:$0xff]
    %s8326 = scalar_lea.vmem [#allocation11], 1856
    %v8327 = vld [vmem:[%s8326] sm:$0xf]
    %v8328 = vld [vmem:[%s8326 + $0x4] sm:$0xf]
    %v8329 = vld [vmem:[%s8326 + $0x8] sm:$0xf]
    %v8330 = vld [vmem:[%s8326 + $0xc] sm:$0xf]
    %v8331 = vld [vmem:[%s8326 + $0x10] sm:$0xf]
    %v8332 = vld [vmem:[%s8326 + $0x14] sm:$0xf]
    %v8333 = vld [vmem:[%s8326 + $0x18] sm:$0xf]
    %v8334 = vld [vmem:[%s8326 + $0x1c] sm:$0xf]
    %v8335 = vld [vmem:[%s8326 + $0x20] sm:$0xf]
    %v8336 = vld [vmem:[%s8326 + $0x24] sm:$0xf]
    %v8337 = vld [vmem:[%s8326 + $0x28] sm:$0xf]
    %v8338 = vld [vmem:[%s8326 + $0x2c] sm:$0xf]
    %v8339 = vld [vmem:[%s8326 + $0x30] sm:$0xf]
    %v8340 = vld [vmem:[%s8326 + $0x34] sm:$0xf]
    %v8341 = vld [vmem:[%s8326 + $0x38] sm:$0xf]
    %v8342 = vld [vmem:[%s8326 + $0x3c] sm:$0xf]
    %v8359 = vunpack.c.l.b16 %v8327
    %v8360 = vunpack.c.l.b16 %v8328
    %v8361 = vunpack.c.l.b16 %v8329
    %v8362 = vunpack.c.l.b16 %v8330
    %v8363 = vunpack.c.l.b16 %v8331
    %v8364 = vunpack.c.l.b16 %v8332
    %v8365 = vunpack.c.l.b16 %v8333
    %v8366 = vunpack.c.l.b16 %v8334
    %v8367 = vunpack.c.l.b16 %v8335
    %v8368 = vunpack.c.l.b16 %v8336
    %v8369 = vunpack.c.l.b16 %v8337
    %v8370 = vunpack.c.l.b16 %v8338
    %v8371 = vunpack.c.l.b16 %v8339
    %v8372 = vunpack.c.l.b16 %v8340
    %v8373 = vunpack.c.l.b16 %v8341
    %v8374 = vunpack.c.l.b16 %v8342
    %v8375 = vpack.c.b16 %v8360, %v8359
    %v8376 = vpack.c.b16 %v8362, %v8361
    %v8377 = vpack.c.b16 %v8364, %v8363
    %v8378 = vpack.c.b16 %v8366, %v8365
    %v8379 = vpack.c.b16 %v8368, %v8367
    %v8380 = vpack.c.b16 %v8370, %v8369
    %v8381 = vpack.c.b16 %v8372, %v8371
    %v8382 = vpack.c.b16 %v8374, %v8373
    %8391 = vmatprep.subr.bf16.mxu0 0
    %8392 = vmatpush1.bf16.msra.mxu0 %v8375
    %8393 = vmatprep.subr.bf16.mxu0 0
    %8394 = vmatpush1.bf16.msra.mxu0 %v8376
    %8395 = vmatprep.subr.bf16.mxu0 0
    %8396 = vmatpush1.bf16.msra.mxu0 %v8377
    %8397 = vmatprep.subr.bf16.mxu0 0
    %8398 = vmatpush1.bf16.msra.mxu0 %v8378
    %8399 = vmatprep.subr.bf16.mxu0 0
    %8400 = vmatpush1.bf16.msra.mxu0 %v8379
    %8401 = vmatprep.subr.bf16.mxu0 0
    %8402 = vmatpush1.bf16.msra.mxu0 %v8380
    %8403 = vmatprep.subr.bf16.mxu0 0
    %8404 = vmatpush1.bf16.msra.mxu0 %v8381
    %8405 = vmatprep.subr.bf16.mxu0 0
    %8406 = vmatpush1.bf16.msra.mxu0 %v8382
    %8407 = vmatprep.subr.bf16.mxu0 0
    %8408 = vmatpush1.bf16.msra.mxu0 0
    %8409 = vmatprep.subr.bf16.mxu0 0
    %8410 = vmatpush1.bf16.msra.mxu0 0
    %8411 = vmatprep.subr.bf16.mxu0 0
    %8412 = vmatpush1.bf16.msra.mxu0 0
    %8413 = vmatprep.subr.bf16.mxu0 0
    %8414 = vmatpush1.bf16.msra.mxu0 0
    %8415 = vmatprep.subr.bf16.mxu0 0
    %8416 = vmatpush1.bf16.msra.mxu0 0
    %8417 = vmatprep.subr.bf16.mxu0 0
    %8418 = vmatpush1.bf16.msra.mxu0 0
    %8419 = vmatprep.subr.bf16.mxu0 0
    %8420 = vmatpush1.bf16.msra.mxu0 0
    %8421 = vmatprep.subr.bf16.mxu0 0
    %8422 = vmatpush1.bf16.msra.mxu0 0
    %8423 = vmatprep.mubr.bf16.mxu0 0
    %8424 = vmatmul.mubr.bf16.gmra.mrb[0].mxu0 %v8325
    %v8425 = vpop.f32.mrb[0].mxu0
    %v8426 = vadd.f32 0.0, %v8425
    %v8427 = vpop.f32.mrb[0].mxu0
    %v8428 = vpop.f32.mrb[0].mxu0
    %v8429 = vadd.f32 0.0, %v8428
    %v8430 = vpop.f32.mrb[0].mxu0
    %8431 = vdwg.mxu0
    %v8432 = vadd.f32 %v8323, %v8426
    %v8433 = vadd.f32 %v8324, %v8429
    %v8434 = vld [vmem:[#allocation3 + $0xf0] sm:$0xff]
    %s8435 = scalar_lea.vmem [#allocation11], 1920
    %v8436 = vld [vmem:[%s8435] sm:$0xf]
    %v8437 = vld [vmem:[%s8435 + $0x4] sm:$0xf]
    %v8438 = vld [vmem:[%s8435 + $0x8] sm:$0xf]
    %v8439 = vld [vmem:[%s8435 + $0xc] sm:$0xf]
    %v8440 = vld [vmem:[%s8435 + $0x10] sm:$0xf]
    %v8441 = vld [vmem:[%s8435 + $0x14] sm:$0xf]
    %v8442 = vld [vmem:[%s8435 + $0x18] sm:$0xf]
    %v8443 = vld [vmem:[%s8435 + $0x1c] sm:$0xf]
    %v8444 = vld [vmem:[%s8435 + $0x20] sm:$0xf]
    %v8445 = vld [vmem:[%s8435 + $0x24] sm:$0xf]
    %v8446 = vld [vmem:[%s8435 + $0x28] sm:$0xf]
    %v8447 = vld [vmem:[%s8435 + $0x2c] sm:$0xf]
    %v8448 = vld [vmem:[%s8435 + $0x30] sm:$0xf]
    %v8449 = vld [vmem:[%s8435 + $0x34] sm:$0xf]
    %v8450 = vld [vmem:[%s8435 + $0x38] sm:$0xf]
    %v8451 = vld [vmem:[%s8435 + $0x3c] sm:$0xf]
    %v8468 = vunpack.c.l.b16 %v8436
    %v8469 = vunpack.c.l.b16 %v8437
    %v8470 = vunpack.c.l.b16 %v8438
    %v8471 = vunpack.c.l.b16 %v8439
    %v8472 = vunpack.c.l.b16 %v8440
    %v8473 = vunpack.c.l.b16 %v8441
    %v8474 = vunpack.c.l.b16 %v8442
    %v8475 = vunpack.c.l.b16 %v8443
    %v8476 = vunpack.c.l.b16 %v8444
    %v8477 = vunpack.c.l.b16 %v8445
    %v8478 = vunpack.c.l.b16 %v8446
    %v8479 = vunpack.c.l.b16 %v8447
    %v8480 = vunpack.c.l.b16 %v8448
    %v8481 = vunpack.c.l.b16 %v8449
    %v8482 = vunpack.c.l.b16 %v8450
    %v8483 = vunpack.c.l.b16 %v8451
    %v8484 = vpack.c.b16 %v8469, %v8468
    %v8485 = vpack.c.b16 %v8471, %v8470
    %v8486 = vpack.c.b16 %v8473, %v8472
    %v8487 = vpack.c.b16 %v8475, %v8474
    %v8488 = vpack.c.b16 %v8477, %v8476
    %v8489 = vpack.c.b16 %v8479, %v8478
    %v8490 = vpack.c.b16 %v8481, %v8480
    %v8491 = vpack.c.b16 %v8483, %v8482
    %8500 = vmatprep.subr.bf16.mxu0 0
    %8501 = vmatpush1.bf16.msra.mxu0 %v8484
    %8502 = vmatprep.subr.bf16.mxu0 0
    %8503 = vmatpush1.bf16.msra.mxu0 %v8485
    %8504 = vmatprep.subr.bf16.mxu0 0
    %8505 = vmatpush1.bf16.msra.mxu0 %v8486
    %8506 = vmatprep.subr.bf16.mxu0 0
    %8507 = vmatpush1.bf16.msra.mxu0 %v8487
    %8508 = vmatprep.subr.bf16.mxu0 0
    %8509 = vmatpush1.bf16.msra.mxu0 %v8488
    %8510 = vmatprep.subr.bf16.mxu0 0
    %8511 = vmatpush1.bf16.msra.mxu0 %v8489
    %8512 = vmatprep.subr.bf16.mxu0 0
    %8513 = vmatpush1.bf16.msra.mxu0 %v8490
    %8514 = vmatprep.subr.bf16.mxu0 0
    %8515 = vmatpush1.bf16.msra.mxu0 %v8491
    %8516 = vmatprep.subr.bf16.mxu0 0
    %8517 = vmatpush1.bf16.msra.mxu0 0
    %8518 = vmatprep.subr.bf16.mxu0 0
    %8519 = vmatpush1.bf16.msra.mxu0 0
    %8520 = vmatprep.subr.bf16.mxu0 0
    %8521 = vmatpush1.bf16.msra.mxu0 0
    %8522 = vmatprep.subr.bf16.mxu0 0
    %8523 = vmatpush1.bf16.msra.mxu0 0
    %8524 = vmatprep.subr.bf16.mxu0 0
    %8525 = vmatpush1.bf16.msra.mxu0 0
    %8526 = vmatprep.subr.bf16.mxu0 0
    %8527 = vmatpush1.bf16.msra.mxu0 0
    %8528 = vmatprep.subr.bf16.mxu0 0
    %8529 = vmatpush1.bf16.msra.mxu0 0
    %8530 = vmatprep.subr.bf16.mxu0 0
    %8531 = vmatpush1.bf16.msra.mxu0 0
    %8532 = vmatprep.mubr.bf16.mxu0 0
    %8533 = vmatmul.mubr.bf16.gmra.mrb[0].mxu0 %v8434
    %v8534 = vpop.f32.mrb[0].mxu0
    %v8535 = vadd.f32 0.0, %v8534
    %v8536 = vpop.f32.mrb[0].mxu0
    %v8537 = vpop.f32.mrb[0].mxu0
    %v8538 = vadd.f32 0.0, %v8537
    %v8539 = vpop.f32.mrb[0].mxu0
    %8540 = vdwg.mxu0
    %v8541 = vadd.f32 %v8432, %v8535
    %v8542 = vadd.f32 %v8433, %v8538
    %v8543 = vld [vmem:[#allocation3 + $0xf8] sm:$0xff]
    %s8544 = scalar_lea.vmem [#allocation11], 1984
    %v8545 = vld [vmem:[%s8544] sm:$0xf]
    %v8546 = vld [vmem:[%s8544 + $0x4] sm:$0xf]
    %v8547 = vld [vmem:[%s8544 + $0x8] sm:$0xf]
    %v8548 = vld [vmem:[%s8544 + $0xc] sm:$0xf]
    %v8549 = vld [vmem:[%s8544 + $0x10] sm:$0xf]
    %v8550 = vld [vmem:[%s8544 + $0x14] sm:$0xf]
    %v8551 = vld [vmem:[%s8544 + $0x18] sm:$0xf]
    %v8552 = vld [vmem:[%s8544 + $0x1c] sm:$0xf]
    %v8553 = vld [vmem:[%s8544 + $0x20] sm:$0xf]
    %v8554 = vld [vmem:[%s8544 + $0x24] sm:$0xf]
    %v8555 = vld [vmem:[%s8544 + $0x28] sm:$0xf]
    %v8556 = vld [vmem:[%s8544 + $0x2c] sm:$0xf]
    %v8557 = vld [vmem:[%s8544 + $0x30] sm:$0xf]
    %v8558 = vld [vmem:[%s8544 + $0x34] sm:$0xf]
    %v8559 = vld [vmem:[%s8544 + $0x38] sm:$0xf]
    %v8560 = vld [vmem:[%s8544 + $0x3c] sm:$0xf]
    %v8577 = vunpack.c.l.b16 %v8545
    %v8578 = vunpack.c.l.b16 %v8546
    %v8579 = vunpack.c.l.b16 %v8547
    %v8580 = vunpack.c.l.b16 %v8548
    %v8581 = vunpack.c.l.b16 %v8549
    %v8582 = vunpack.c.l.b16 %v8550
    %v8583 = vunpack.c.l.b16 %v8551
    %v8584 = vunpack.c.l.b16 %v8552
    %v8585 = vunpack.c.l.b16 %v8553
    %v8586 = vunpack.c.l.b16 %v8554
    %v8587 = vunpack.c.l.b16 %v8555
    %v8588 = vunpack.c.l.b16 %v8556
    %v8589 = vunpack.c.l.b16 %v8557
    %v8590 = vunpack.c.l.b16 %v8558
    %v8591 = vunpack.c.l.b16 %v8559
    %v8592 = vunpack.c.l.b16 %v8560
    %v8593 = vpack.c.b16 %v8578, %v8577
    %v8594 = vpack.c.b16 %v8580, %v8579
    %v8595 = vpack.c.b16 %v8582, %v8581
    %v8596 = vpack.c.b16 %v8584, %v8583
    %v8597 = vpack.c.b16 %v8586, %v8585
    %v8598 = vpack.c.b16 %v8588, %v8587
    %v8599 = vpack.c.b16 %v8590, %v8589
    %v8600 = vpack.c.b16 %v8592, %v8591
    %8609 = vmatprep.subr.bf16.mxu0 0
    %8610 = vmatpush1.bf16.msra.mxu0 %v8593
    %8611 = vmatprep.subr.bf16.mxu0 0
    %8612 = vmatpush1.bf16.msra.mxu0 %v8594
    %8613 = vmatprep.subr.bf16.mxu0 0
    %8614 = vmatpush1.bf16.msra.mxu0 %v8595
    %8615 = vmatprep.subr.bf16.mxu0 0
    %8616 = vmatpush1.bf16.msra.mxu0 %v8596
    %8617 = vmatprep.subr.bf16.mxu0 0
    %8618 = vmatpush1.bf16.msra.mxu0 %v8597
    %8619 = vmatprep.subr.bf16.mxu0 0
    %8620 = vmatpush1.bf16.msra.mxu0 %v8598
    %8621 = vmatprep.subr.bf16.mxu0 0
    %8622 = vmatpush1.bf16.msra.mxu0 %v8599
    %8623 = vmatprep.subr.bf16.mxu0 0
    %8624 = vmatpush1.bf16.msra.mxu0 %v8600
    %8625 = vmatprep.subr.bf16.mxu0 0
    %8626 = vmatpush1.bf16.msra.mxu0 0
    %8627 = vmatprep.subr.bf16.mxu0 0
    %8628 = vmatpush1.bf16.msra.mxu0 0
    %8629 = vmatprep.subr.bf16.mxu0 0
    %8630 = vmatpush1.bf16.msra.mxu0 0
    %8631 = vmatprep.subr.bf16.mxu0 0
    %8632 = vmatpush1.bf16.msra.mxu0 0
    %8633 = vmatprep.subr.bf16.mxu0 0
    %8634 = vmatpush1.bf16.msra.mxu0 0
    %8635 = vmatprep.subr.bf16.mxu0 0
    %8636 = vmatpush1.bf16.msra.mxu0 0
    %8637 = vmatprep.subr.bf16.mxu0 0
    %8638 = vmatpush1.bf16.msra.mxu0 0
    %8639 = vmatprep.subr.bf16.mxu0 0
    %8640 = vmatpush1.bf16.msra.mxu0 0
    %8641 = vmatprep.mubr.bf16.mxu0 0
    %8642 = vmatmul.mubr.bf16.gmra.mrb[0].mxu0 %v8543
    %v8643 = vpop.f32.mrb[0].mxu0
    %v8644 = vadd.f32 0.0, %v8643
    %v8645 = vpop.f32.mrb[0].mxu0
    %v8646 = vpop.f32.mrb[0].mxu0
    %v8647 = vadd.f32 0.0, %v8646
    %v8648 = vpop.f32.mrb[0].mxu0
    %8649 = vdwg.mxu0
    %v8650 = vadd.f32 %v8541, %v8644
    %v8651 = vadd.f32 %v8542, %v8647
    %v8652 = vld [vmem:[#allocation3 + $0x100] sm:$0xff]
    %s8653 = scalar_lea.vmem [#allocation11], 2048
    %v8654 = vld [vmem:[%s8653] sm:$0xf]
    %v8655 = vld [vmem:[%s8653 + $0x4] sm:$0xf]
    %v8656 = vld [vmem:[%s8653 + $0x8] sm:$0xf]
    %v8657 = vld [vmem:[%s8653 + $0xc] sm:$0xf]
    %v8658 = vld [vmem:[%s8653 + $0x10] sm:$0xf]
    %v8659 = vld [vmem:[%s8653 + $0x14] sm:$0xf]
    %v8660 = vld [vmem:[%s8653 + $0x18] sm:$0xf]
    %v8661 = vld [vmem:[%s8653 + $0x1c] sm:$0xf]
    %v8662 = vld [vmem:[%s8653 + $0x20] sm:$0xf]
    %v8663 = vld [vmem:[%s8653 + $0x24] sm:$0xf]
    %v8664 = vld [vmem:[%s8653 + $0x28] sm:$0xf]
    %v8665 = vld [vmem:[%s8653 + $0x2c] sm:$0xf]
    %v8666 = vld [vmem:[%s8653 + $0x30] sm:$0xf]
    %v8667 = vld [vmem:[%s8653 + $0x34] sm:$0xf]
    %v8668 = vld [vmem:[%s8653 + $0x38] sm:$0xf]
    %v8669 = vld [vmem:[%s8653 + $0x3c] sm:$0xf]
    %v8686 = vunpack.c.l.b16 %v8654
    %v8687 = vunpack.c.l.b16 %v8655
    %v8688 = vunpack.c.l.b16 %v8656
    %v8689 = vunpack.c.l.b16 %v8657
    %v8690 = vunpack.c.l.b16 %v8658
    %v8691 = vunpack.c.l.b16 %v8659
    %v8692 = vunpack.c.l.b16 %v8660
    %v8693 = vunpack.c.l.b16 %v8661
    %v8694 = vunpack.c.l.b16 %v8662
    %v8695 = vunpack.c.l.b16 %v8663
    %v8696 = vunpack.c.l.b16 %v8664
    %v8697 = vunpack.c.l.b16 %v8665
    %v8698 = vunpack.c.l.b16 %v8666
    %v8699 = vunpack.c.l.b16 %v8667
    %v8700 = vunpack.c.l.b16 %v8668
    %v8701 = vunpack.c.l.b16 %v8669
    %v8702 = vpack.c.b16 %v8687, %v8686
    %v8703 = vpack.c.b16 %v8689, %v8688
    %v8704 = vpack.c.b16 %v8691, %v8690
    %v8705 = vpack.c.b16 %v8693, %v8692
    %v8706 = vpack.c.b16 %v8695, %v8694
    %v8707 = vpack.c.b16 %v8697, %v8696
    %v8708 = vpack.c.b16 %v8699, %v8698
    %v8709 = vpack.c.b16 %v8701, %v8700
    %8718 = vmatprep.subr.bf16.mxu0 0
    %8719 = vmatpush1.bf16.msra.mxu0 %v8702
    %8720 = vmatprep.subr.bf16.mxu0 0
    %8721 = vmatpush1.bf16.msra.mxu0 %v8703
    %8722 = vmatprep.subr.bf16.mxu0 0
    %8723 = vmatpush1.bf16.msra.mxu0 %v8704
    %8724 = vmatprep.subr.bf16.mxu0 0
    %8725 = vmatpush1.bf16.msra.mxu0 %v8705
    %8726 = vmatprep.subr.bf16.mxu0 0
    %8727 = vmatpush1.bf16.msra.mxu0 %v8706
    %8728 = vmatprep.subr.bf16.mxu0 0
    %8729 = vmatpush1.bf16.msra.mxu0 %v8707
    %8730 = vmatprep.subr.bf16.mxu0 0
    %8731 = vmatpush1.bf16.msra.mxu0 %v8708
    %8732 = vmatprep.subr.bf16.mxu0 0
    %8733 = vmatpush1.bf16.msra.mxu0 %v8709
    %8734 = vmatprep.subr.bf16.mxu0 0
    %8735 = vmatpush1.bf16.msra.mxu0 0
    %8736 = vmatprep.subr.bf16.mxu0 0
    %8737 = vmatpush1.bf16.msra.mxu0 0
    %8738 = vmatprep.subr.bf16.mxu0 0
    %8739 = vmatpush1.bf16.msra.mxu0 0
    %8740 = vmatprep.subr.bf16.mxu0 0
    %8741 = vmatpush1.bf16.msra.mxu0 0
    %8742 = vmatprep.subr.bf16.mxu0 0
    %8743 = vmatpush1.bf16.msra.mxu0 0
    %8744 = vmatprep.subr.bf16.mxu0 0
    %8745 = vmatpush1.bf16.msra.mxu0 0
    %8746 = vmatprep.subr.bf16.mxu0 0
    %8747 = vmatpush1.bf16.msra.mxu0 0
    %8748 = vmatprep.subr.bf16.mxu0 0
    %8749 = vmatpush1.bf16.msra.mxu0 0
    %8750 = vmatprep.mubr.bf16.mxu0 0
    %8751 = vmatmul.mubr.bf16.gmra.mrb[0].mxu0 %v8652
    %v8752 = vpop.f32.mrb[0].mxu0
    %v8753 = vadd.f32 0.0, %v8752
    %v8754 = vpop.f32.mrb[0].mxu0
    %v8755 = vpop.f32.mrb[0].mxu0
    %v8756 = vadd.f32 0.0, %v8755
    %v8757 = vpop.f32.mrb[0].mxu0
    %8758 = vdwg.mxu0
    %v8759 = vadd.f32 %v8650, %v8753
    %v8760 = vadd.f32 %v8651, %v8756
    %v8761 = vld [vmem:[#allocation3 + $0x108] sm:$0xff]
    %s8762 = scalar_lea.vmem [#allocation11], 2112
    %v8763 = vld [vmem:[%s8762] sm:$0xf]
    %v8764 = vld [vmem:[%s8762 + $0x4] sm:$0xf]
    %v8765 = vld [vmem:[%s8762 + $0x8] sm:$0xf]
    %v8766 = vld [vmem:[%s8762 + $0xc] sm:$0xf]
    %v8767 = vld [vmem:[%s8762 + $0x10] sm:$0xf]
    %v8768 = vld [vmem:[%s8762 + $0x14] sm:$0xf]
    %v8769 = vld [vmem:[%s8762 + $0x18] sm:$0xf]
    %v8770 = vld [vmem:[%s8762 + $0x1c] sm:$0xf]
    %v8771 = vld [vmem:[%s8762 + $0x20] sm:$0xf]
    %v8772 = vld [vmem:[%s8762 + $0x24] sm:$0xf]
    %v8773 = vld [vmem:[%s8762 + $0x28] sm:$0xf]
    %v8774 = vld [vmem:[%s8762 + $0x2c] sm:$0xf]
    %v8775 = vld [vmem:[%s8762 + $0x30] sm:$0xf]
    %v8776 = vld [vmem:[%s8762 + $0x34] sm:$0xf]
    %v8777 = vld [vmem:[%s8762 + $0x38] sm:$0xf]
    %v8778 = vld [vmem:[%s8762 + $0x3c] sm:$0xf]
    %v8795 = vunpack.c.l.b16 %v8763
    %v8796 = vunpack.c.l.b16 %v8764
    %v8797 = vunpack.c.l.b16 %v8765
    %v8798 = vunpack.c.l.b16 %v8766
    %v8799 = vunpack.c.l.b16 %v8767
    %v8800 = vunpack.c.l.b16 %v8768
    %v8801 = vunpack.c.l.b16 %v8769
    %v8802 = vunpack.c.l.b16 %v8770
    %v8803 = vunpack.c.l.b16 %v8771
    %v8804 = vunpack.c.l.b16 %v8772
    %v8805 = vunpack.c.l.b16 %v8773
    %v8806 = vunpack.c.l.b16 %v8774
    %v8807 = vunpack.c.l.b16 %v8775
    %v8808 = vunpack.c.l.b16 %v8776
    %v8809 = vunpack.c.l.b16 %v8777
    %v8810 = vunpack.c.l.b16 %v8778
    %v8811 = vpack.c.b16 %v8796, %v8795
    %v8812 = vpack.c.b16 %v8798, %v8797
    %v8813 = vpack.c.b16 %v8800, %v8799
    %v8814 = vpack.c.b16 %v8802, %v8801
    %v8815 = vpack.c.b16 %v8804, %v8803
    %v8816 = vpack.c.b16 %v8806, %v8805
    %v8817 = vpack.c.b16 %v8808, %v8807
    %v8818 = vpack.c.b16 %v8810, %v8809
    %8827 = vmatprep.subr.bf16.mxu0 0
    %8828 = vmatpush1.bf16.msra.mxu0 %v8811
    %8829 = vmatprep.subr.bf16.mxu0 0
    %8830 = vmatpush1.bf16.msra.mxu0 %v8812
    %8831 = vmatprep.subr.bf16.mxu0 0
    %8832 = vmatpush1.bf16.msra.mxu0 %v8813
    %8833 = vmatprep.subr.bf16.mxu0 0
    %8834 = vmatpush1.bf16.msra.mxu0 %v8814
    %8835 = vmatprep.subr.bf16.mxu0 0
    %8836 = vmatpush1.bf16.msra.mxu0 %v8815
    %8837 = vmatprep.subr.bf16.mxu0 0
    %8838 = vmatpush1.bf16.msra.mxu0 %v8816
    %8839 = vmatprep.subr.bf16.mxu0 0
    %8840 = vmatpush1.bf16.msra.mxu0 %v8817
    %8841 = vmatprep.subr.bf16.mxu0 0
    %8842 = vmatpush1.bf16.msra.mxu0 %v8818
    %8843 = vmatprep.subr.bf16.mxu0 0
    %8844 = vmatpush1.bf16.msra.mxu0 0
    %8845 = vmatprep.subr.bf16.mxu0 0
    %8846 = vmatpush1.bf16.msra.mxu0 0
    %8847 = vmatprep.subr.bf16.mxu0 0
    %8848 = vmatpush1.bf16.msra.mxu0 0
    %8849 = vmatprep.subr.bf16.mxu0 0
    %8850 = vmatpush1.bf16.msra.mxu0 0
    %8851 = vmatprep.subr.bf16.mxu0 0
    %8852 = vmatpush1.bf16.msra.mxu0 0
    %8853 = vmatprep.subr.bf16.mxu0 0
    %8854 = vmatpush1.bf16.msra.mxu0 0
    %8855 = vmatprep.subr.bf16.mxu0 0
    %8856 = vmatpush1.bf16.msra.mxu0 0
    %8857 = vmatprep.subr.bf16.mxu0 0
    %8858 = vmatpush1.bf16.msra.mxu0 0
    %8859 = vmatprep.mubr.bf16.mxu0 0
    %8860 = vmatmul.mubr.bf16.gmra.mrb[0].mxu0 %v8761
    %v8861 = vpop.f32.mrb[0].mxu0
    %v8862 = vadd.f32 0.0, %v8861
    %v8863 = vpop.f32.mrb[0].mxu0
    %v8864 = vpop.f32.mrb[0].mxu0
    %v8865 = vadd.f32 0.0, %v8864
    %v8866 = vpop.f32.mrb[0].mxu0
    %8867 = vdwg.mxu0
    %v8868 = vadd.f32 %v8759, %v8862
    %v8869 = vadd.f32 %v8760, %v8865
    %v8870 = vld [vmem:[#allocation3 + $0x110] sm:$0xff]
    %s8871 = scalar_lea.vmem [#allocation11], 2176
    %v8872 = vld [vmem:[%s8871] sm:$0xf]
    %v8873 = vld [vmem:[%s8871 + $0x4] sm:$0xf]
    %v8874 = vld [vmem:[%s8871 + $0x8] sm:$0xf]
    %v8875 = vld [vmem:[%s8871 + $0xc] sm:$0xf]
    %v8876 = vld [vmem:[%s8871 + $0x10] sm:$0xf]
    %v8877 = vld [vmem:[%s8871 + $0x14] sm:$0xf]
    %v8878 = vld [vmem:[%s8871 + $0x18] sm:$0xf]
    %v8879 = vld [vmem:[%s8871 + $0x1c] sm:$0xf]
    %v8880 = vld [vmem:[%s8871 + $0x20] sm:$0xf]
    %v8881 = vld [vmem:[%s8871 + $0x24] sm:$0xf]
    %v8882 = vld [vmem:[%s8871 + $0x28] sm:$0xf]
    %v8883 = vld [vmem:[%s8871 + $0x2c] sm:$0xf]
    %v8884 = vld [vmem:[%s8871 + $0x30] sm:$0xf]
    %v8885 = vld [vmem:[%s8871 + $0x34] sm:$0xf]
    %v8886 = vld [vmem:[%s8871 + $0x38] sm:$0xf]
    %v8887 = vld [vmem:[%s8871 + $0x3c] sm:$0xf]
    %v8904 = vunpack.c.l.b16 %v8872
    %v8905 = vunpack.c.l.b16 %v8873
    %v8906 = vunpack.c.l.b16 %v8874
    %v8907 = vunpack.c.l.b16 %v8875
    %v8908 = vunpack.c.l.b16 %v8876
    %v8909 = vunpack.c.l.b16 %v8877
    %v8910 = vunpack.c.l.b16 %v8878
    %v8911 = vunpack.c.l.b16 %v8879
    %v8912 = vunpack.c.l.b16 %v8880
    %v8913 = vunpack.c.l.b16 %v8881
    %v8914 = vunpack.c.l.b16 %v8882
    %v8915 = vunpack.c.l.b16 %v8883
    %v8916 = vunpack.c.l.b16 %v8884
    %v8917 = vunpack.c.l.b16 %v8885
    %v8918 = vunpack.c.l.b16 %v8886
    %v8919 = vunpack.c.l.b16 %v8887
    %v8920 = vpack.c.b16 %v8905, %v8904
    %v8921 = vpack.c.b16 %v8907, %v8906
    %v8922 = vpack.c.b16 %v8909, %v8908
    %v8923 = vpack.c.b16 %v8911, %v8910
    %v8924 = vpack.c.b16 %v8913, %v8912
    %v8925 = vpack.c.b16 %v8915, %v8914
    %v8926 = vpack.c.b16 %v8917, %v8916
    %v8927 = vpack.c.b16 %v8919, %v8918
    %8936 = vmatprep.subr.bf16.mxu0 0
    %8937 = vmatpush1.bf16.msra.mxu0 %v8920
    %8938 = vmatprep.subr.bf16.mxu0 0
    %8939 = vmatpush1.bf16.msra.mxu0 %v8921
    %8940 = vmatprep.subr.bf16.mxu0 0
    %8941 = vmatpush1.bf16.msra.mxu0 %v8922
    %8942 = vmatprep.subr.bf16.mxu0 0
    %8943 = vmatpush1.bf16.msra.mxu0 %v8923
    %8944 = vmatprep.subr.bf16.mxu0 0
    %8945 = vmatpush1.bf16.msra.mxu0 %v8924
    %8946 = vmatprep.subr.bf16.mxu0 0
    %8947 = vmatpush1.bf16.msra.mxu0 %v8925
    %8948 = vmatprep.subr.bf16.mxu0 0
    %8949 = vmatpush1.bf16.msra.mxu0 %v8926
    %8950 = vmatprep.subr.bf16.mxu0 0
    %8951 = vmatpush1.bf16.msra.mxu0 %v8927
    %8952 = vmatprep.subr.bf16.mxu0 0
    %8953 = vmatpush1.bf16.msra.mxu0 0
    %8954 = vmatprep.subr.bf16.mxu0 0
    %8955 = vmatpush1.bf16.msra.mxu0 0
    %8956 = vmatprep.subr.bf16.mxu0 0
    %8957 = vmatpush1.bf16.msra.mxu0 0
    %8958 = vmatprep.subr.bf16.mxu0 0
    %8959 = vmatpush1.bf16.msra.mxu0 0
    %8960 = vmatprep.subr.bf16.mxu0 0
    %8961 = vmatpush1.bf16.msra.mxu0 0
    %8962 = vmatprep.subr.bf16.mxu0 0
    %8963 = vmatpush1.bf16.msra.mxu0 0
    %8964 = vmatprep.subr.bf16.mxu0 0
    %8965 = vmatpush1.bf16.msra.mxu0 0
    %8966 = vmatprep.subr.bf16.mxu0 0
    %8967 = vmatpush1.bf16.msra.mxu0 0
    %8968 = vmatprep.mubr.bf16.mxu0 0
    %8969 = vmatmul.mubr.bf16.gmra.mrb[0].mxu0 %v8870
    %v8970 = vpop.f32.mrb[0].mxu0
    %v8971 = vadd.f32 0.0, %v8970
    %v8972 = vpop.f32.mrb[0].mxu0
    %v8973 = vpop.f32.mrb[0].mxu0
    %v8974 = vadd.f32 0.0, %v8973
    %v8975 = vpop.f32.mrb[0].mxu0
    %8976 = vdwg.mxu0
    %v8977 = vadd.f32 %v8868, %v8971
    %v8978 = vadd.f32 %v8869, %v8974
    %v8979 = vld [vmem:[#allocation3 + $0x118] sm:$0xff]
    %s8980 = scalar_lea.vmem [#allocation11], 2240
    %v8981 = vld [vmem:[%s8980] sm:$0xf]
    %v8982 = vld [vmem:[%s8980 + $0x4] sm:$0xf]
    %v8983 = vld [vmem:[%s8980 + $0x8] sm:$0xf]
    %v8984 = vld [vmem:[%s8980 + $0xc] sm:$0xf]
    %v8985 = vld [vmem:[%s8980 + $0x10] sm:$0xf]
    %v8986 = vld [vmem:[%s8980 + $0x14] sm:$0xf]
    %v8987 = vld [vmem:[%s8980 + $0x18] sm:$0xf]
    %v8988 = vld [vmem:[%s8980 + $0x1c] sm:$0xf]
    %v8989 = vld [vmem:[%s8980 + $0x20] sm:$0xf]
    %v8990 = vld [vmem:[%s8980 + $0x24] sm:$0xf]
    %v8991 = vld [vmem:[%s8980 + $0x28] sm:$0xf]
    %v8992 = vld [vmem:[%s8980 + $0x2c] sm:$0xf]
    %v8993 = vld [vmem:[%s8980 + $0x30] sm:$0xf]
    %v8994 = vld [vmem:[%s8980 + $0x34] sm:$0xf]
    %v8995 = vld [vmem:[%s8980 + $0x38] sm:$0xf]
    %v8996 = vld [vmem:[%s8980 + $0x3c] sm:$0xf]
    %v9013 = vunpack.c.l.b16 %v8981
    %v9014 = vunpack.c.l.b16 %v8982
    %v9015 = vunpack.c.l.b16 %v8983
    %v9016 = vunpack.c.l.b16 %v8984
    %v9017 = vunpack.c.l.b16 %v8985
    %v9018 = vunpack.c.l.b16 %v8986
    %v9019 = vunpack.c.l.b16 %v8987
    %v9020 = vunpack.c.l.b16 %v8988
    %v9021 = vunpack.c.l.b16 %v8989
    %v9022 = vunpack.c.l.b16 %v8990
    %v9023 = vunpack.c.l.b16 %v8991
    %v9024 = vunpack.c.l.b16 %v8992
    %v9025 = vunpack.c.l.b16 %v8993
    %v9026 = vunpack.c.l.b16 %v8994
    %v9027 = vunpack.c.l.b16 %v8995
    %v9028 = vunpack.c.l.b16 %v8996
    %v9029 = vpack.c.b16 %v9014, %v9013
    %v9030 = vpack.c.b16 %v9016, %v9015
    %v9031 = vpack.c.b16 %v9018, %v9017
    %v9032 = vpack.c.b16 %v9020, %v9019
    %v9033 = vpack.c.b16 %v9022, %v9021
    %v9034 = vpack.c.b16 %v9024, %v9023
    %v9035 = vpack.c.b16 %v9026, %v9025
    %v9036 = vpack.c.b16 %v9028, %v9027
    %9045 = vmatprep.subr.bf16.mxu0 0
    %9046 = vmatpush1.bf16.msra.mxu0 %v9029
    %9047 = vmatprep.subr.bf16.mxu0 0
    %9048 = vmatpush1.bf16.msra.mxu0 %v9030
    %9049 = vmatprep.subr.bf16.mxu0 0
    %9050 = vmatpush1.bf16.msra.mxu0 %v9031
    %9051 = vmatprep.subr.bf16.mxu0 0
    %9052 = vmatpush1.bf16.msra.mxu0 %v9032
    %9053 = vmatprep.subr.bf16.mxu0 0
    %9054 = vmatpush1.bf16.msra.mxu0 %v9033
    %9055 = vmatprep.subr.bf16.mxu0 0
    %9056 = vmatpush1.bf16.msra.mxu0 %v9034
    %9057 = vmatprep.subr.bf16.mxu0 0
    %9058 = vmatpush1.bf16.msra.mxu0 %v9035
    %9059 = vmatprep.subr.bf16.mxu0 0
    %9060 = vmatpush1.bf16.msra.mxu0 %v9036
    %9061 = vmatprep.subr.bf16.mxu0 0
    %9062 = vmatpush1.bf16.msra.mxu0 0
    %9063 = vmatprep.subr.bf16.mxu0 0
    %9064 = vmatpush1.bf16.msra.mxu0 0
    %9065 = vmatprep.subr.bf16.mxu0 0
    %9066 = vmatpush1.bf16.msra.mxu0 0
    %9067 = vmatprep.subr.bf16.mxu0 0
    %9068 = vmatpush1.bf16.msra.mxu0 0
    %9069 = vmatprep.subr.bf16.mxu0 0
    %9070 = vmatpush1.bf16.msra.mxu0 0
    %9071 = vmatprep.subr.bf16.mxu0 0
    %9072 = vmatpush1.bf16.msra.mxu0 0
    %9073 = vmatprep.subr.bf16.mxu0 0
    %9074 = vmatpush1.bf16.msra.mxu0 0
    %9075 = vmatprep.subr.bf16.mxu0 0
    %9076 = vmatpush1.bf16.msra.mxu0 0
    %9077 = vmatprep.mubr.bf16.mxu0 0
    %9078 = vmatmul.mubr.bf16.gmra.mrb[0].mxu0 %v8979
    %v9079 = vpop.f32.mrb[0].mxu0
    %v9080 = vadd.f32 0.0, %v9079
    %v9081 = vpop.f32.mrb[0].mxu0
    %v9082 = vpop.f32.mrb[0].mxu0
    %v9083 = vadd.f32 0.0, %v9082
    %v9084 = vpop.f32.mrb[0].mxu0
    %9085 = vdwg.mxu0
    %v9086 = vadd.f32 %v8977, %v9080
    %v9087 = vadd.f32 %v8978, %v9083
    %v9088 = vld [vmem:[#allocation3 + $0x120] sm:$0xff]
    %s9089 = scalar_lea.vmem [#allocation11], 2304
    %v9090 = vld [vmem:[%s9089] sm:$0xf]
    %v9091 = vld [vmem:[%s9089 + $0x4] sm:$0xf]
    %v9092 = vld [vmem:[%s9089 + $0x8] sm:$0xf]
    %v9093 = vld [vmem:[%s9089 + $0xc] sm:$0xf]
    %v9094 = vld [vmem:[%s9089 + $0x10] sm:$0xf]
    %v9095 = vld [vmem:[%s9089 + $0x14] sm:$0xf]
    %v9096 = vld [vmem:[%s9089 + $0x18] sm:$0xf]
    %v9097 = vld [vmem:[%s9089 + $0x1c] sm:$0xf]
    %v9098 = vld [vmem:[%s9089 + $0x20] sm:$0xf]
    %v9099 = vld [vmem:[%s9089 + $0x24] sm:$0xf]
    %v9100 = vld [vmem:[%s9089 + $0x28] sm:$0xf]
    %v9101 = vld [vmem:[%s9089 + $0x2c] sm:$0xf]
    %v9102 = vld [vmem:[%s9089 + $0x30] sm:$0xf]
    %v9103 = vld [vmem:[%s9089 + $0x34] sm:$0xf]
    %v9104 = vld [vmem:[%s9089 + $0x38] sm:$0xf]
    %v9105 = vld [vmem:[%s9089 + $0x3c] sm:$0xf]
    %v9122 = vunpack.c.l.b16 %v9090
    %v9123 = vunpack.c.l.b16 %v9091
    %v9124 = vunpack.c.l.b16 %v9092
    %v9125 = vunpack.c.l.b16 %v9093
    %v9126 = vunpack.c.l.b16 %v9094
    %v9127 = vunpack.c.l.b16 %v9095
    %v9128 = vunpack.c.l.b16 %v9096
    %v9129 = vunpack.c.l.b16 %v9097
    %v9130 = vunpack.c.l.b16 %v9098
    %v9131 = vunpack.c.l.b16 %v9099
    %v9132 = vunpack.c.l.b16 %v9100
    %v9133 = vunpack.c.l.b16 %v9101
    %v9134 = vunpack.c.l.b16 %v9102
    %v9135 = vunpack.c.l.b16 %v9103
    %v9136 = vunpack.c.l.b16 %v9104
    %v9137 = vunpack.c.l.b16 %v9105
    %v9138 = vpack.c.b16 %v9123, %v9122
    %v9139 = vpack.c.b16 %v9125, %v9124
    %v9140 = vpack.c.b16 %v9127, %v9126
    %v9141 = vpack.c.b16 %v9129, %v9128
    %v9142 = vpack.c.b16 %v9131, %v9130
    %v9143 = vpack.c.b16 %v9133, %v9132
    %v9144 = vpack.c.b16 %v9135, %v9134
    %v9145 = vpack.c.b16 %v9137, %v9136
    %9154 = vmatprep.subr.bf16.mxu0 0
    %9155 = vmatpush1.bf16.msra.mxu0 %v9138
    %9156 = vmatprep.subr.bf16.mxu0 0
    %9157 = vmatpush1.bf16.msra.mxu0 %v9139
    %9158 = vmatprep.subr.bf16.mxu0 0
    %9159 = vmatpush1.bf16.msra.mxu0 %v9140
    %9160 = vmatprep.subr.bf16.mxu0 0
    %9161 = vmatpush1.bf16.msra.mxu0 %v9141
    %9162 = vmatprep.subr.bf16.mxu0 0
    %9163 = vmatpush1.bf16.msra.mxu0 %v9142
    %9164 = vmatprep.subr.bf16.mxu0 0
    %9165 = vmatpush1.bf16.msra.mxu0 %v9143
    %9166 = vmatprep.subr.bf16.mxu0 0
    %9167 = vmatpush1.bf16.msra.mxu0 %v9144
    %9168 = vmatprep.subr.bf16.mxu0 0
    %9169 = vmatpush1.bf16.msra.mxu0 %v9145
    %9170 = vmatprep.subr.bf16.mxu0 0
    %9171 = vmatpush1.bf16.msra.mxu0 0
    %9172 = vmatprep.subr.bf16.mxu0 0
    %9173 = vmatpush1.bf16.msra.mxu0 0
    %9174 = vmatprep.subr.bf16.mxu0 0
    %9175 = vmatpush1.bf16.msra.mxu0 0
    %9176 = vmatprep.subr.bf16.mxu0 0
    %9177 = vmatpush1.bf16.msra.mxu0 0
    %9178 = vmatprep.subr.bf16.mxu0 0
    %9179 = vmatpush1.bf16.msra.mxu0 0
    %9180 = vmatprep.subr.bf16.mxu0 0
    %9181 = vmatpush1.bf16.msra.mxu0 0
    %9182 = vmatprep.subr.bf16.mxu0 0
    %9183 = vmatpush1.bf16.msra.mxu0 0
    %9184 = vmatprep.subr.bf16.mxu0 0
    %9185 = vmatpush1.bf16.msra.mxu0 0
    %9186 = vmatprep.mubr.bf16.mxu0 0
    %9187 = vmatmul.mubr.bf16.gmra.mrb[0].mxu0 %v9088
    %v9188 = vpop.f32.mrb[0].mxu0
    %v9189 = vadd.f32 0.0, %v9188
    %v9190 = vpop.f32.mrb[0].mxu0
    %v9191 = vpop.f32.mrb[0].mxu0
    %v9192 = vadd.f32 0.0, %v9191
    %v9193 = vpop.f32.mrb[0].mxu0
    %9194 = vdwg.mxu0
    %v9195 = vadd.f32 %v9086, %v9189
    %v9196 = vadd.f32 %v9087, %v9192
    %v9197 = vld [vmem:[#allocation3 + $0x128] sm:$0xff]
    %s9198 = scalar_lea.vmem [#allocation11], 2368
    %v9199 = vld [vmem:[%s9198] sm:$0xf]
    %v9200 = vld [vmem:[%s9198 + $0x4] sm:$0xf]
    %v9201 = vld [vmem:[%s9198 + $0x8] sm:$0xf]
    %v9202 = vld [vmem:[%s9198 + $0xc] sm:$0xf]
    %v9203 = vld [vmem:[%s9198 + $0x10] sm:$0xf]
    %v9204 = vld [vmem:[%s9198 + $0x14] sm:$0xf]
    %v9205 = vld [vmem:[%s9198 + $0x18] sm:$0xf]
    %v9206 = vld [vmem:[%s9198 + $0x1c] sm:$0xf]
    %v9207 = vld [vmem:[%s9198 + $0x20] sm:$0xf]
    %v9208 = vld [vmem:[%s9198 + $0x24] sm:$0xf]
    %v9209 = vld [vmem:[%s9198 + $0x28] sm:$0xf]
    %v9210 = vld [vmem:[%s9198 + $0x2c] sm:$0xf]
    %v9211 = vld [vmem:[%s9198 + $0x30] sm:$0xf]
    %v9212 = vld [vmem:[%s9198 + $0x34] sm:$0xf]
    %v9213 = vld [vmem:[%s9198 + $0x38] sm:$0xf]
    %v9214 = vld [vmem:[%s9198 + $0x3c] sm:$0xf]
    %v9231 = vunpack.c.l.b16 %v9199
    %v9232 = vunpack.c.l.b16 %v9200
    %v9233 = vunpack.c.l.b16 %v9201
    %v9234 = vunpack.c.l.b16 %v9202
    %v9235 = vunpack.c.l.b16 %v9203
    %v9236 = vunpack.c.l.b16 %v9204
    %v9237 = vunpack.c.l.b16 %v9205
    %v9238 = vunpack.c.l.b16 %v9206
    %v9239 = vunpack.c.l.b16 %v9207
    %v9240 = vunpack.c.l.b16 %v9208
    %v9241 = vunpack.c.l.b16 %v9209
    %v9242 = vunpack.c.l.b16 %v9210
    %v9243 = vunpack.c.l.b16 %v9211
    %v9244 = vunpack.c.l.b16 %v9212
    %v9245 = vunpack.c.l.b16 %v9213
    %v9246 = vunpack.c.l.b16 %v9214
    %v9247 = vpack.c.b16 %v9232, %v9231
    %v9248 = vpack.c.b16 %v9234, %v9233
    %v9249 = vpack.c.b16 %v9236, %v9235
    %v9250 = vpack.c.b16 %v9238, %v9237
    %v9251 = vpack.c.b16 %v9240, %v9239
    %v9252 = vpack.c.b16 %v9242, %v9241
    %v9253 = vpack.c.b16 %v9244, %v9243
    %v9254 = vpack.c.b16 %v9246, %v9245
    %9263 = vmatprep.subr.bf16.mxu0 0
    %9264 = vmatpush1.bf16.msra.mxu0 %v9247
    %9265 = vmatprep.subr.bf16.mxu0 0
    %9266 = vmatpush1.bf16.msra.mxu0 %v9248
    %9267 = vmatprep.subr.bf16.mxu0 0
    %9268 = vmatpush1.bf16.msra.mxu0 %v9249
    %9269 = vmatprep.subr.bf16.mxu0 0
    %9270 = vmatpush1.bf16.msra.mxu0 %v9250
    %9271 = vmatprep.subr.bf16.mxu0 0
    %9272 = vmatpush1.bf16.msra.mxu0 %v9251
    %9273 = vmatprep.subr.bf16.mxu0 0
    %9274 = vmatpush1.bf16.msra.mxu0 %v9252
    %9275 = vmatprep.subr.bf16.mxu0 0
    %9276 = vmatpush1.bf16.msra.mxu0 %v9253
    %9277 = vmatprep.subr.bf16.mxu0 0
    %9278 = vmatpush1.bf16.msra.mxu0 %v9254
    %9279 = vmatprep.subr.bf16.mxu0 0
    %9280 = vmatpush1.bf16.msra.mxu0 0
    %9281 = vmatprep.subr.bf16.mxu0 0
    %9282 = vmatpush1.bf16.msra.mxu0 0
    %9283 = vmatprep.subr.bf16.mxu0 0
    %9284 = vmatpush1.bf16.msra.mxu0 0
    %9285 = vmatprep.subr.bf16.mxu0 0
    %9286 = vmatpush1.bf16.msra.mxu0 0
    %9287 = vmatprep.subr.bf16.mxu0 0
    %9288 = vmatpush1.bf16.msra.mxu0 0
    %9289 = vmatprep.subr.bf16.mxu0 0
    %9290 = vmatpush1.bf16.msra.mxu0 0
    %9291 = vmatprep.subr.bf16.mxu0 0
    %9292 = vmatpush1.bf16.msra.mxu0 0
    %9293 = vmatprep.subr.bf16.mxu0 0
    %9294 = vmatpush1.bf16.msra.mxu0 0
    %9295 = vmatprep.mubr.bf16.mxu0 0
    %9296 = vmatmul.mubr.bf16.gmra.mrb[0].mxu0 %v9197
    %v9297 = vpop.f32.mrb[0].mxu0
    %v9298 = vadd.f32 0.0, %v9297
    %v9299 = vpop.f32.mrb[0].mxu0
    %v9300 = vpop.f32.mrb[0].mxu0
    %v9301 = vadd.f32 0.0, %v9300
    %v9302 = vpop.f32.mrb[0].mxu0
    %9303 = vdwg.mxu0
    %v9304 = vadd.f32 %v9195, %v9298
    %v9305 = vadd.f32 %v9196, %v9301
    %v9306 = vld [vmem:[#allocation3 + $0x130] sm:$0xff]
    %s9307 = scalar_lea.vmem [#allocation11], 2432
    %v9308 = vld [vmem:[%s9307] sm:$0xf]
    %v9309 = vld [vmem:[%s9307 + $0x4] sm:$0xf]
    %v9310 = vld [vmem:[%s9307 + $0x8] sm:$0xf]
    %v9311 = vld [vmem:[%s9307 + $0xc] sm:$0xf]
    %v9312 = vld [vmem:[%s9307 + $0x10] sm:$0xf]
    %v9313 = vld [vmem:[%s9307 + $0x14] sm:$0xf]
    %v9314 = vld [vmem:[%s9307 + $0x18] sm:$0xf]
    %v9315 = vld [vmem:[%s9307 + $0x1c] sm:$0xf]
    %v9316 = vld [vmem:[%s9307 + $0x20] sm:$0xf]
    %v9317 = vld [vmem:[%s9307 + $0x24] sm:$0xf]
    %v9318 = vld [vmem:[%s9307 + $0x28] sm:$0xf]
    %v9319 = vld [vmem:[%s9307 + $0x2c] sm:$0xf]
    %v9320 = vld [vmem:[%s9307 + $0x30] sm:$0xf]
    %v9321 = vld [vmem:[%s9307 + $0x34] sm:$0xf]
    %v9322 = vld [vmem:[%s9307 + $0x38] sm:$0xf]
    %v9323 = vld [vmem:[%s9307 + $0x3c] sm:$0xf]
    %v9340 = vunpack.c.l.b16 %v9308
    %v9341 = vunpack.c.l.b16 %v9309
    %v9342 = vunpack.c.l.b16 %v9310
    %v9343 = vunpack.c.l.b16 %v9311
    %v9344 = vunpack.c.l.b16 %v9312
    %v9345 = vunpack.c.l.b16 %v9313
    %v9346 = vunpack.c.l.b16 %v9314
    %v9347 = vunpack.c.l.b16 %v9315
    %v9348 = vunpack.c.l.b16 %v9316
    %v9349 = vunpack.c.l.b16 %v9317
    %v9350 = vunpack.c.l.b16 %v9318
    %v9351 = vunpack.c.l.b16 %v9319
    %v9352 = vunpack.c.l.b16 %v9320
    %v9353 = vunpack.c.l.b16 %v9321
    %v9354 = vunpack.c.l.b16 %v9322
    %v9355 = vunpack.c.l.b16 %v9323
    %v9356 = vpack.c.b16 %v9341, %v9340
    %v9357 = vpack.c.b16 %v9343, %v9342
    %v9358 = vpack.c.b16 %v9345, %v9344
    %v9359 = vpack.c.b16 %v9347, %v9346
    %v9360 = vpack.c.b16 %v9349, %v9348
    %v9361 = vpack.c.b16 %v9351, %v9350
    %v9362 = vpack.c.b16 %v9353, %v9352
    %v9363 = vpack.c.b16 %v9355, %v9354
    %9372 = vmatprep.subr.bf16.mxu0 0
    %9373 = vmatpush1.bf16.msra.mxu0 %v9356
    %9374 = vmatprep.subr.bf16.mxu0 0
    %9375 = vmatpush1.bf16.msra.mxu0 %v9357
    %9376 = vmatprep.subr.bf16.mxu0 0
    %9377 = vmatpush1.bf16.msra.mxu0 %v9358
    %9378 = vmatprep.subr.bf16.mxu0 0
    %9379 = vmatpush1.bf16.msra.mxu0 %v9359
    %9380 = vmatprep.subr.bf16.mxu0 0
    %9381 = vmatpush1.bf16.msra.mxu0 %v9360
    %9382 = vmatprep.subr.bf16.mxu0 0
    %9383 = vmatpush1.bf16.msra.mxu0 %v9361
    %9384 = vmatprep.subr.bf16.mxu0 0
    %9385 = vmatpush1.bf16.msra.mxu0 %v9362
    %9386 = vmatprep.subr.bf16.mxu0 0
    %9387 = vmatpush1.bf16.msra.mxu0 %v9363
    %9388 = vmatprep.subr.bf16.mxu0 0
    %9389 = vmatpush1.bf16.msra.mxu0 0
    %9390 = vmatprep.subr.bf16.mxu0 0
    %9391 = vmatpush1.bf16.msra.mxu0 0
    %9392 = vmatprep.subr.bf16.mxu0 0
    %9393 = vmatpush1.bf16.msra.mxu0 0
    %9394 = vmatprep.subr.bf16.mxu0 0
    %9395 = vmatpush1.bf16.msra.mxu0 0
    %9396 = vmatprep.subr.bf16.mxu0 0
    %9397 = vmatpush1.bf16.msra.mxu0 0
    %9398 = vmatprep.subr.bf16.mxu0 0
    %9399 = vmatpush1.bf16.msra.mxu0 0
    %9400 = vmatprep.subr.bf16.mxu0 0
    %9401 = vmatpush1.bf16.msra.mxu0 0
    %9402 = vmatprep.subr.bf16.mxu0 0
    %9403 = vmatpush1.bf16.msra.mxu0 0
    %9404 = vmatprep.mubr.bf16.mxu0 0
    %9405 = vmatmul.mubr.bf16.gmra.mrb[0].mxu0 %v9306
    %v9406 = vpop.f32.mrb[0].mxu0
    %v9407 = vadd.f32 0.0, %v9406
    %v9408 = vpop.f32.mrb[0].mxu0
    %v9409 = vpop.f32.mrb[0].mxu0
    %v9410 = vadd.f32 0.0, %v9409
    %v9411 = vpop.f32.mrb[0].mxu0
    %9412 = vdwg.mxu0
    %v9413 = vadd.f32 %v9304, %v9407
    %v9414 = vadd.f32 %v9305, %v9410
    %v9415 = vld [vmem:[#allocation3 + $0x138] sm:$0xff]
    %s9416 = scalar_lea.vmem [#allocation11], 2496
    %v9417 = vld [vmem:[%s9416] sm:$0xf]
    %v9418 = vld [vmem:[%s9416 + $0x4] sm:$0xf]
    %v9419 = vld [vmem:[%s9416 + $0x8] sm:$0xf]
    %v9420 = vld [vmem:[%s9416 + $0xc] sm:$0xf]
    %v9421 = vld [vmem:[%s9416 + $0x10] sm:$0xf]
    %v9422 = vld [vmem:[%s9416 + $0x14] sm:$0xf]
    %v9423 = vld [vmem:[%s9416 + $0x18] sm:$0xf]
    %v9424 = vld [vmem:[%s9416 + $0x1c] sm:$0xf]
    %v9425 = vld [vmem:[%s9416 + $0x20] sm:$0xf]
    %v9426 = vld [vmem:[%s9416 + $0x24] sm:$0xf]
    %v9427 = vld [vmem:[%s9416 + $0x28] sm:$0xf]
    %v9428 = vld [vmem:[%s9416 + $0x2c] sm:$0xf]
    %v9429 = vld [vmem:[%s9416 + $0x30] sm:$0xf]
    %v9430 = vld [vmem:[%s9416 + $0x34] sm:$0xf]
    %v9431 = vld [vmem:[%s9416 + $0x38] sm:$0xf]
    %v9432 = vld [vmem:[%s9416 + $0x3c] sm:$0xf]
    %v9449 = vunpack.c.l.b16 %v9417
    %v9450 = vunpack.c.l.b16 %v9418
    %v9451 = vunpack.c.l.b16 %v9419
    %v9452 = vunpack.c.l.b16 %v9420
    %v9453 = vunpack.c.l.b16 %v9421
    %v9454 = vunpack.c.l.b16 %v9422
    %v9455 = vunpack.c.l.b16 %v9423
    %v9456 = vunpack.c.l.b16 %v9424
    %v9457 = vunpack.c.l.b16 %v9425
    %v9458 = vunpack.c.l.b16 %v9426
    %v9459 = vunpack.c.l.b16 %v9427
    %v9460 = vunpack.c.l.b16 %v9428
    %v9461 = vunpack.c.l.b16 %v9429
    %v9462 = vunpack.c.l.b16 %v9430
    %v9463 = vunpack.c.l.b16 %v9431
    %v9464 = vunpack.c.l.b16 %v9432
    %v9465 = vpack.c.b16 %v9450, %v9449
    %v9466 = vpack.c.b16 %v9452, %v9451
    %v9467 = vpack.c.b16 %v9454, %v9453
    %v9468 = vpack.c.b16 %v9456, %v9455
    %v9469 = vpack.c.b16 %v9458, %v9457
    %v9470 = vpack.c.b16 %v9460, %v9459
    %v9471 = vpack.c.b16 %v9462, %v9461
    %v9472 = vpack.c.b16 %v9464, %v9463
    %9481 = vmatprep.subr.bf16.mxu0 0
    %9482 = vmatpush1.bf16.msra.mxu0 %v9465
    %9483 = vmatprep.subr.bf16.mxu0 0
    %9484 = vmatpush1.bf16.msra.mxu0 %v9466
    %9485 = vmatprep.subr.bf16.mxu0 0
    %9486 = vmatpush1.bf16.msra.mxu0 %v9467
    %9487 = vmatprep.subr.bf16.mxu0 0
    %9488 = vmatpush1.bf16.msra.mxu0 %v9468
    %9489 = vmatprep.subr.bf16.mxu0 0
    %9490 = vmatpush1.bf16.msra.mxu0 %v9469
    %9491 = vmatprep.subr.bf16.mxu0 0
    %9492 = vmatpush1.bf16.msra.mxu0 %v9470
    %9493 = vmatprep.subr.bf16.mxu0 0
    %9494 = vmatpush1.bf16.msra.mxu0 %v9471
    %9495 = vmatprep.subr.bf16.mxu0 0
    %9496 = vmatpush1.bf16.msra.mxu0 %v9472
    %9497 = vmatprep.subr.bf16.mxu0 0
    %9498 = vmatpush1.bf16.msra.mxu0 0
    %9499 = vmatprep.subr.bf16.mxu0 0
    %9500 = vmatpush1.bf16.msra.mxu0 0
    %9501 = vmatprep.subr.bf16.mxu0 0
    %9502 = vmatpush1.bf16.msra.mxu0 0
    %9503 = vmatprep.subr.bf16.mxu0 0
    %9504 = vmatpush1.bf16.msra.mxu0 0
    %9505 = vmatprep.subr.bf16.mxu0 0
    %9506 = vmatpush1.bf16.msra.mxu0 0
    %9507 = vmatprep.subr.bf16.mxu0 0
    %9508 = vmatpush1.bf16.msra.mxu0 0
    %9509 = vmatprep.subr.bf16.mxu0 0
    %9510 = vmatpush1.bf16.msra.mxu0 0
    %9511 = vmatprep.subr.bf16.mxu0 0
    %9512 = vmatpush1.bf16.msra.mxu0 0
    %9513 = vmatprep.mubr.bf16.mxu0 0
    %9514 = vmatmul.mubr.bf16.gmra.mrb[0].mxu0 %v9415
    %v9515 = vpop.f32.mrb[0].mxu0
    %v9516 = vadd.f32 0.0, %v9515
    %v9517 = vpop.f32.mrb[0].mxu0
    %v9518 = vpop.f32.mrb[0].mxu0
    %v9519 = vadd.f32 0.0, %v9518
    %v9520 = vpop.f32.mrb[0].mxu0
    %9521 = vdwg.mxu0
    %v9522 = vadd.f32 %v9413, %v9516
    %v9523 = vadd.f32 %v9414, %v9519
    %v9524 = vld [vmem:[#allocation3 + $0x140] sm:$0xff]
    %s9525 = scalar_lea.vmem [#allocation11], 2560
    %v9526 = vld [vmem:[%s9525] sm:$0xf]
    %v9527 = vld [vmem:[%s9525 + $0x4] sm:$0xf]
    %v9528 = vld [vmem:[%s9525 + $0x8] sm:$0xf]
    %v9529 = vld [vmem:[%s9525 + $0xc] sm:$0xf]
    %v9530 = vld [vmem:[%s9525 + $0x10] sm:$0xf]
    %v9531 = vld [vmem:[%s9525 + $0x14] sm:$0xf]
    %v9532 = vld [vmem:[%s9525 + $0x18] sm:$0xf]
    %v9533 = vld [vmem:[%s9525 + $0x1c] sm:$0xf]
    %v9534 = vld [vmem:[%s9525 + $0x20] sm:$0xf]
    %v9535 = vld [vmem:[%s9525 + $0x24] sm:$0xf]
    %v9536 = vld [vmem:[%s9525 + $0x28] sm:$0xf]
    %v9537 = vld [vmem:[%s9525 + $0x2c] sm:$0xf]
    %v9538 = vld [vmem:[%s9525 + $0x30] sm:$0xf]
    %v9539 = vld [vmem:[%s9525 + $0x34] sm:$0xf]
    %v9540 = vld [vmem:[%s9525 + $0x38] sm:$0xf]
    %v9541 = vld [vmem:[%s9525 + $0x3c] sm:$0xf]
    %v9558 = vunpack.c.l.b16 %v9526
    %v9559 = vunpack.c.l.b16 %v9527
    %v9560 = vunpack.c.l.b16 %v9528
    %v9561 = vunpack.c.l.b16 %v9529
    %v9562 = vunpack.c.l.b16 %v9530
    %v9563 = vunpack.c.l.b16 %v9531
    %v9564 = vunpack.c.l.b16 %v9532
    %v9565 = vunpack.c.l.b16 %v9533
    %v9566 = vunpack.c.l.b16 %v9534
    %v9567 = vunpack.c.l.b16 %v9535
    %v9568 = vunpack.c.l.b16 %v9536
    %v9569 = vunpack.c.l.b16 %v9537
    %v9570 = vunpack.c.l.b16 %v9538
    %v9571 = vunpack.c.l.b16 %v9539
    %v9572 = vunpack.c.l.b16 %v9540
    %v9573 = vunpack.c.l.b16 %v9541
    %v9574 = vpack.c.b16 %v9559, %v9558
    %v9575 = vpack.c.b16 %v9561, %v9560
    %v9576 = vpack.c.b16 %v9563, %v9562
    %v9577 = vpack.c.b16 %v9565, %v9564
    %v9578 = vpack.c.b16 %v9567, %v9566
    %v9579 = vpack.c.b16 %v9569, %v9568
    %v9580 = vpack.c.b16 %v9571, %v9570
    %v9581 = vpack.c.b16 %v9573, %v9572
    %9590 = vmatprep.subr.bf16.mxu0 0
    %9591 = vmatpush1.bf16.msra.mxu0 %v9574
    %9592 = vmatprep.subr.bf16.mxu0 0
    %9593 = vmatpush1.bf16.msra.mxu0 %v9575
    %9594 = vmatprep.subr.bf16.mxu0 0
    %9595 = vmatpush1.bf16.msra.mxu0 %v9576
    %9596 = vmatprep.subr.bf16.mxu0 0
    %9597 = vmatpush1.bf16.msra.mxu0 %v9577
    %9598 = vmatprep.subr.bf16.mxu0 0
    %9599 = vmatpush1.bf16.msra.mxu0 %v9578
    %9600 = vmatprep.subr.bf16.mxu0 0
    %9601 = vmatpush1.bf16.msra.mxu0 %v9579
    %9602 = vmatprep.subr.bf16.mxu0 0
    %9603 = vmatpush1.bf16.msra.mxu0 %v9580
    %9604 = vmatprep.subr.bf16.mxu0 0
    %9605 = vmatpush1.bf16.msra.mxu0 %v9581
    %9606 = vmatprep.subr.bf16.mxu0 0
    %9607 = vmatpush1.bf16.msra.mxu0 0
    %9608 = vmatprep.subr.bf16.mxu0 0
    %9609 = vmatpush1.bf16.msra.mxu0 0
    %9610 = vmatprep.subr.bf16.mxu0 0
    %9611 = vmatpush1.bf16.msra.mxu0 0
    %9612 = vmatprep.subr.bf16.mxu0 0
    %9613 = vmatpush1.bf16.msra.mxu0 0
    %9614 = vmatprep.subr.bf16.mxu0 0
    %9615 = vmatpush1.bf16.msra.mxu0 0
    %9616 = vmatprep.subr.bf16.mxu0 0
    %9617 = vmatpush1.bf16.msra.mxu0 0
    %9618 = vmatprep.subr.bf16.mxu0 0
    %9619 = vmatpush1.bf16.msra.mxu0 0
    %9620 = vmatprep.subr.bf16.mxu0 0
    %9621 = vmatpush1.bf16.msra.mxu0 0
    %9622 = vmatprep.mubr.bf16.mxu0 0
    %9623 = vmatmul.mubr.bf16.gmra.mrb[0].mxu0 %v9524
    %v9624 = vpop.f32.mrb[0].mxu0
    %v9625 = vadd.f32 0.0, %v9624
    %v9626 = vpop.f32.mrb[0].mxu0
    %v9627 = vpop.f32.mrb[0].mxu0
    %v9628 = vadd.f32 0.0, %v9627
    %v9629 = vpop.f32.mrb[0].mxu0
    %9630 = vdwg.mxu0
    %v9631 = vadd.f32 %v9522, %v9625
    %v9632 = vadd.f32 %v9523, %v9628
    %v9633 = vld [vmem:[#allocation3 + $0x148] sm:$0xff]
    %s9634 = scalar_lea.vmem [#allocation11], 2624
    %v9635 = vld [vmem:[%s9634] sm:$0xf]
    %v9636 = vld [vmem:[%s9634 + $0x4] sm:$0xf]
    %v9637 = vld [vmem:[%s9634 + $0x8] sm:$0xf]
    %v9638 = vld [vmem:[%s9634 + $0xc] sm:$0xf]
    %v9639 = vld [vmem:[%s9634 + $0x10] sm:$0xf]
    %v9640 = vld [vmem:[%s9634 + $0x14] sm:$0xf]
    %v9641 = vld [vmem:[%s9634 + $0x18] sm:$0xf]
    %v9642 = vld [vmem:[%s9634 + $0x1c] sm:$0xf]
    %v9643 = vld [vmem:[%s9634 + $0x20] sm:$0xf]
    %v9644 = vld [vmem:[%s9634 + $0x24] sm:$0xf]
    %v9645 = vld [vmem:[%s9634 + $0x28] sm:$0xf]
    %v9646 = vld [vmem:[%s9634 + $0x2c] sm:$0xf]
    %v9647 = vld [vmem:[%s9634 + $0x30] sm:$0xf]
    %v9648 = vld [vmem:[%s9634 + $0x34] sm:$0xf]
    %v9649 = vld [vmem:[%s9634 + $0x38] sm:$0xf]
    %v9650 = vld [vmem:[%s9634 + $0x3c] sm:$0xf]
    %v9667 = vunpack.c.l.b16 %v9635
    %v9668 = vunpack.c.l.b16 %v9636
    %v9669 = vunpack.c.l.b16 %v9637
    %v9670 = vunpack.c.l.b16 %v9638
    %v9671 = vunpack.c.l.b16 %v9639
    %v9672 = vunpack.c.l.b16 %v9640
    %v9673 = vunpack.c.l.b16 %v9641
    %v9674 = vunpack.c.l.b16 %v9642
    %v9675 = vunpack.c.l.b16 %v9643
    %v9676 = vunpack.c.l.b16 %v9644
    %v9677 = vunpack.c.l.b16 %v9645
    %v9678 = vunpack.c.l.b16 %v9646
    %v9679 = vunpack.c.l.b16 %v9647
    %v9680 = vunpack.c.l.b16 %v9648
    %v9681 = vunpack.c.l.b16 %v9649
    %v9682 = vunpack.c.l.b16 %v9650
    %v9683 = vpack.c.b16 %v9668, %v9667
    %v9684 = vpack.c.b16 %v9670, %v9669
    %v9685 = vpack.c.b16 %v9672, %v9671
    %v9686 = vpack.c.b16 %v9674, %v9673
    %v9687 = vpack.c.b16 %v9676, %v9675
    %v9688 = vpack.c.b16 %v9678, %v9677
    %v9689 = vpack.c.b16 %v9680, %v9679
    %v9690 = vpack.c.b16 %v9682, %v9681
    %9699 = vmatprep.subr.bf16.mxu0 0
    %9700 = vmatpush1.bf16.msra.mxu0 %v9683
    %9701 = vmatprep.subr.bf16.mxu0 0
    %9702 = vmatpush1.bf16.msra.mxu0 %v9684
    %9703 = vmatprep.subr.bf16.mxu0 0
    %9704 = vmatpush1.bf16.msra.mxu0 %v9685
    %9705 = vmatprep.subr.bf16.mxu0 0
    %9706 = vmatpush1.bf16.msra.mxu0 %v9686
    %9707 = vmatprep.subr.bf16.mxu0 0
    %9708 = vmatpush1.bf16.msra.mxu0 %v9687
    %9709 = vmatprep.subr.bf16.mxu0 0
    %9710 = vmatpush1.bf16.msra.mxu0 %v9688
    %9711 = vmatprep.subr.bf16.mxu0 0
    %9712 = vmatpush1.bf16.msra.mxu0 %v9689
    %9713 = vmatprep.subr.bf16.mxu0 0
    %9714 = vmatpush1.bf16.msra.mxu0 %v9690
    %9715 = vmatprep.subr.bf16.mxu0 0
    %9716 = vmatpush1.bf16.msra.mxu0 0
    %9717 = vmatprep.subr.bf16.mxu0 0
    %9718 = vmatpush1.bf16.msra.mxu0 0
    %9719 = vmatprep.subr.bf16.mxu0 0
    %9720 = vmatpush1.bf16.msra.mxu0 0
    %9721 = vmatprep.subr.bf16.mxu0 0
    %9722 = vmatpush1.bf16.msra.mxu0 0
    %9723 = vmatprep.subr.bf16.mxu0 0
    %9724 = vmatpush1.bf16.msra.mxu0 0
    %9725 = vmatprep.subr.bf16.mxu0 0
    %9726 = vmatpush1.bf16.msra.mxu0 0
    %9727 = vmatprep.subr.bf16.mxu0 0
    %9728 = vmatpush1.bf16.msra.mxu0 0
    %9729 = vmatprep.subr.bf16.mxu0 0
    %9730 = vmatpush1.bf16.msra.mxu0 0
    %9731 = vmatprep.mubr.bf16.mxu0 0
    %9732 = vmatmul.mubr.bf16.gmra.mrb[0].mxu0 %v9633
    %v9733 = vpop.f32.mrb[0].mxu0
    %v9734 = vadd.f32 0.0, %v9733
    %v9735 = vpop.f32.mrb[0].mxu0
    %v9736 = vpop.f32.mrb[0].mxu0
    %v9737 = vadd.f32 0.0, %v9736
    %v9738 = vpop.f32.mrb[0].mxu0
    %9739 = vdwg.mxu0
    %v9740 = vadd.f32 %v9631, %v9734
    %v9741 = vadd.f32 %v9632, %v9737
    %v9742 = vld [vmem:[#allocation3 + $0x150] sm:$0xff]
    %s9743 = scalar_lea.vmem [#allocation11], 2688
    %v9744 = vld [vmem:[%s9743] sm:$0xf]
    %v9745 = vld [vmem:[%s9743 + $0x4] sm:$0xf]
    %v9746 = vld [vmem:[%s9743 + $0x8] sm:$0xf]
    %v9747 = vld [vmem:[%s9743 + $0xc] sm:$0xf]
    %v9748 = vld [vmem:[%s9743 + $0x10] sm:$0xf]
    %v9749 = vld [vmem:[%s9743 + $0x14] sm:$0xf]
    %v9750 = vld [vmem:[%s9743 + $0x18] sm:$0xf]
    %v9751 = vld [vmem:[%s9743 + $0x1c] sm:$0xf]
    %v9752 = vld [vmem:[%s9743 + $0x20] sm:$0xf]
    %v9753 = vld [vmem:[%s9743 + $0x24] sm:$0xf]
    %v9754 = vld [vmem:[%s9743 + $0x28] sm:$0xf]
    %v9755 = vld [vmem:[%s9743 + $0x2c] sm:$0xf]
    %v9756 = vld [vmem:[%s9743 + $0x30] sm:$0xf]
    %v9757 = vld [vmem:[%s9743 + $0x34] sm:$0xf]
    %v9758 = vld [vmem:[%s9743 + $0x38] sm:$0xf]
    %v9759 = vld [vmem:[%s9743 + $0x3c] sm:$0xf]
    %v9776 = vunpack.c.l.b16 %v9744
    %v9777 = vunpack.c.l.b16 %v9745
    %v9778 = vunpack.c.l.b16 %v9746
    %v9779 = vunpack.c.l.b16 %v9747
    %v9780 = vunpack.c.l.b16 %v9748
    %v9781 = vunpack.c.l.b16 %v9749
    %v9782 = vunpack.c.l.b16 %v9750
    %v9783 = vunpack.c.l.b16 %v9751
    %v9784 = vunpack.c.l.b16 %v9752
    %v9785 = vunpack.c.l.b16 %v9753
    %v9786 = vunpack.c.l.b16 %v9754
    %v9787 = vunpack.c.l.b16 %v9755
    %v9788 = vunpack.c.l.b16 %v9756
    %v9789 = vunpack.c.l.b16 %v9757
    %v9790 = vunpack.c.l.b16 %v9758
    %v9791 = vunpack.c.l.b16 %v9759
    %v9792 = vpack.c.b16 %v9777, %v9776
    %v9793 = vpack.c.b16 %v9779, %v9778
    %v9794 = vpack.c.b16 %v9781, %v9780
    %v9795 = vpack.c.b16 %v9783, %v9782
    %v9796 = vpack.c.b16 %v9785, %v9784
    %v9797 = vpack.c.b16 %v9787, %v9786
    %v9798 = vpack.c.b16 %v9789, %v9788
    %v9799 = vpack.c.b16 %v9791, %v9790
    %9808 = vmatprep.subr.bf16.mxu0 0
    %9809 = vmatpush1.bf16.msra.mxu0 %v9792
    %9810 = vmatprep.subr.bf16.mxu0 0
    %9811 = vmatpush1.bf16.msra.mxu0 %v9793
    %9812 = vmatprep.subr.bf16.mxu0 0
    %9813 = vmatpush1.bf16.msra.mxu0 %v9794
    %9814 = vmatprep.subr.bf16.mxu0 0
    %9815 = vmatpush1.bf16.msra.mxu0 %v9795
    %9816 = vmatprep.subr.bf16.mxu0 0
    %9817 = vmatpush1.bf16.msra.mxu0 %v9796
    %9818 = vmatprep.subr.bf16.mxu0 0
    %9819 = vmatpush1.bf16.msra.mxu0 %v9797
    %9820 = vmatprep.subr.bf16.mxu0 0
    %9821 = vmatpush1.bf16.msra.mxu0 %v9798
    %9822 = vmatprep.subr.bf16.mxu0 0
    %9823 = vmatpush1.bf16.msra.mxu0 %v9799
    %9824 = vmatprep.subr.bf16.mxu0 0
    %9825 = vmatpush1.bf16.msra.mxu0 0
    %9826 = vmatprep.subr.bf16.mxu0 0
    %9827 = vmatpush1.bf16.msra.mxu0 0
    %9828 = vmatprep.subr.bf16.mxu0 0
    %9829 = vmatpush1.bf16.msra.mxu0 0
    %9830 = vmatprep.subr.bf16.mxu0 0
    %9831 = vmatpush1.bf16.msra.mxu0 0
    %9832 = vmatprep.subr.bf16.mxu0 0
    %9833 = vmatpush1.bf16.msra.mxu0 0
    %9834 = vmatprep.subr.bf16.mxu0 0
    %9835 = vmatpush1.bf16.msra.mxu0 0
    %9836 = vmatprep.subr.bf16.mxu0 0
    %9837 = vmatpush1.bf16.msra.mxu0 0
    %9838 = vmatprep.subr.bf16.mxu0 0
    %9839 = vmatpush1.bf16.msra.mxu0 0
    %9840 = vmatprep.mubr.bf16.mxu0 0
    %9841 = vmatmul.mubr.bf16.gmra.mrb[0].mxu0 %v9742
    %v9842 = vpop.f32.mrb[0].mxu0
    %v9843 = vadd.f32 0.0, %v9842
    %v9844 = vpop.f32.mrb[0].mxu0
    %v9845 = vpop.f32.mrb[0].mxu0
    %v9846 = vadd.f32 0.0, %v9845
    %v9847 = vpop.f32.mrb[0].mxu0
    %9848 = vdwg.mxu0
    %v9849 = vadd.f32 %v9740, %v9843
    %v9850 = vadd.f32 %v9741, %v9846
    %v9851 = vld [vmem:[#allocation3 + $0x158] sm:$0xff]
    %s9852 = scalar_lea.vmem [#allocation11], 2752
    %v9853 = vld [vmem:[%s9852] sm:$0xf]
    %v9854 = vld [vmem:[%s9852 + $0x4] sm:$0xf]
    %v9855 = vld [vmem:[%s9852 + $0x8] sm:$0xf]
    %v9856 = vld [vmem:[%s9852 + $0xc] sm:$0xf]
    %v9857 = vld [vmem:[%s9852 + $0x10] sm:$0xf]
    %v9858 = vld [vmem:[%s9852 + $0x14] sm:$0xf]
    %v9859 = vld [vmem:[%s9852 + $0x18] sm:$0xf]
    %v9860 = vld [vmem:[%s9852 + $0x1c] sm:$0xf]
    %v9861 = vld [vmem:[%s9852 + $0x20] sm:$0xf]
    %v9862 = vld [vmem:[%s9852 + $0x24] sm:$0xf]
    %v9863 = vld [vmem:[%s9852 + $0x28] sm:$0xf]
    %v9864 = vld [vmem:[%s9852 + $0x2c] sm:$0xf]
    %v9865 = vld [vmem:[%s9852 + $0x30] sm:$0xf]
    %v9866 = vld [vmem:[%s9852 + $0x34] sm:$0xf]
    %v9867 = vld [vmem:[%s9852 + $0x38] sm:$0xf]
    %v9868 = vld [vmem:[%s9852 + $0x3c] sm:$0xf]
    %v9885 = vunpack.c.l.b16 %v9853
    %v9886 = vunpack.c.l.b16 %v9854
    %v9887 = vunpack.c.l.b16 %v9855
    %v9888 = vunpack.c.l.b16 %v9856
    %v9889 = vunpack.c.l.b16 %v9857
    %v9890 = vunpack.c.l.b16 %v9858
    %v9891 = vunpack.c.l.b16 %v9859
    %v9892 = vunpack.c.l.b16 %v9860
    %v9893 = vunpack.c.l.b16 %v9861
    %v9894 = vunpack.c.l.b16 %v9862
    %v9895 = vunpack.c.l.b16 %v9863
    %v9896 = vunpack.c.l.b16 %v9864
    %v9897 = vunpack.c.l.b16 %v9865
    %v9898 = vunpack.c.l.b16 %v9866
    %v9899 = vunpack.c.l.b16 %v9867
    %v9900 = vunpack.c.l.b16 %v9868
    %v9901 = vpack.c.b16 %v9886, %v9885
    %v9902 = vpack.c.b16 %v9888, %v9887
    %v9903 = vpack.c.b16 %v9890, %v9889
    %v9904 = vpack.c.b16 %v9892, %v9891
    %v9905 = vpack.c.b16 %v9894, %v9893
    %v9906 = vpack.c.b16 %v9896, %v9895
    %v9907 = vpack.c.b16 %v9898, %v9897
    %v9908 = vpack.c.b16 %v9900, %v9899
    %9917 = vmatprep.subr.bf16.mxu0 0
    %9918 = vmatpush1.bf16.msra.mxu0 %v9901
    %9919 = vmatprep.subr.bf16.mxu0 0
    %9920 = vmatpush1.bf16.msra.mxu0 %v9902
    %9921 = vmatprep.subr.bf16.mxu0 0
    %9922 = vmatpush1.bf16.msra.mxu0 %v9903
    %9923 = vmatprep.subr.bf16.mxu0 0
    %9924 = vmatpush1.bf16.msra.mxu0 %v9904
    %9925 = vmatprep.subr.bf16.mxu0 0
    %9926 = vmatpush1.bf16.msra.mxu0 %v9905
    %9927 = vmatprep.subr.bf16.mxu0 0
    %9928 = vmatpush1.bf16.msra.mxu0 %v9906
    %9929 = vmatprep.subr.bf16.mxu0 0
    %9930 = vmatpush1.bf16.msra.mxu0 %v9907
    %9931 = vmatprep.subr.bf16.mxu0 0
    %9932 = vmatpush1.bf16.msra.mxu0 %v9908
    %9933 = vmatprep.subr.bf16.mxu0 0
    %9934 = vmatpush1.bf16.msra.mxu0 0
    %9935 = vmatprep.subr.bf16.mxu0 0
    %9936 = vmatpush1.bf16.msra.mxu0 0
    %9937 = vmatprep.subr.bf16.mxu0 0
    %9938 = vmatpush1.bf16.msra.mxu0 0
    %9939 = vmatprep.subr.bf16.mxu0 0
    %9940 = vmatpush1.bf16.msra.mxu0 0
    %9941 = vmatprep.subr.bf16.mxu0 0
    %9942 = vmatpush1.bf16.msra.mxu0 0
    %9943 = vmatprep.subr.bf16.mxu0 0
    %9944 = vmatpush1.bf16.msra.mxu0 0
    %9945 = vmatprep.subr.bf16.mxu0 0
    %9946 = vmatpush1.bf16.msra.mxu0 0
    %9947 = vmatprep.subr.bf16.mxu0 0
    %9948 = vmatpush1.bf16.msra.mxu0 0
    %9949 = vmatprep.mubr.bf16.mxu0 0
    %9950 = vmatmul.mubr.bf16.gmra.mrb[0].mxu0 %v9851
    %v9951 = vpop.f32.mrb[0].mxu0
    %v9952 = vadd.f32 0.0, %v9951
    %v9953 = vpop.f32.mrb[0].mxu0
    %v9954 = vpop.f32.mrb[0].mxu0
    %v9955 = vadd.f32 0.0, %v9954
    %v9956 = vpop.f32.mrb[0].mxu0
    %9957 = vdwg.mxu0
    %v9958 = vadd.f32 %v9849, %v9952
    %v9959 = vadd.f32 %v9850, %v9955
    %v9960 = vld [vmem:[#allocation3 + $0x160] sm:$0xff]
    %s9961 = scalar_lea.vmem [#allocation11], 2816
    %v9962 = vld [vmem:[%s9961] sm:$0xf]
    %v9963 = vld [vmem:[%s9961 + $0x4] sm:$0xf]
    %v9964 = vld [vmem:[%s9961 + $0x8] sm:$0xf]
    %v9965 = vld [vmem:[%s9961 + $0xc] sm:$0xf]
    %v9966 = vld [vmem:[%s9961 + $0x10] sm:$0xf]
    %v9967 = vld [vmem:[%s9961 + $0x14] sm:$0xf]
    %v9968 = vld [vmem:[%s9961 + $0x18] sm:$0xf]
    %v9969 = vld [vmem:[%s9961 + $0x1c] sm:$0xf]
    %v9970 = vld [vmem:[%s9961 + $0x20] sm:$0xf]
    %v9971 = vld [vmem:[%s9961 + $0x24] sm:$0xf]
    %v9972 = vld [vmem:[%s9961 + $0x28] sm:$0xf]
    %v9973 = vld [vmem:[%s9961 + $0x2c] sm:$0xf]
    %v9974 = vld [vmem:[%s9961 + $0x30] sm:$0xf]
    %v9975 = vld [vmem:[%s9961 + $0x34] sm:$0xf]
    %v9976 = vld [vmem:[%s9961 + $0x38] sm:$0xf]
    %v9977 = vld [vmem:[%s9961 + $0x3c] sm:$0xf]
    %v9994 = vunpack.c.l.b16 %v9962
    %v9995 = vunpack.c.l.b16 %v9963
    %v9996 = vunpack.c.l.b16 %v9964
    %v9997 = vunpack.c.l.b16 %v9965
    %v9998 = vunpack.c.l.b16 %v9966
    %v9999 = vunpack.c.l.b16 %v9967
    %v10000 = vunpack.c.l.b16 %v9968
    %v10001 = vunpack.c.l.b16 %v9969
    %v10002 = vunpack.c.l.b16 %v9970
    %v10003 = vunpack.c.l.b16 %v9971
    %v10004 = vunpack.c.l.b16 %v9972
    %v10005 = vunpack.c.l.b16 %v9973
    %v10006 = vunpack.c.l.b16 %v9974
    %v10007 = vunpack.c.l.b16 %v9975
    %v10008 = vunpack.c.l.b16 %v9976
    %v10009 = vunpack.c.l.b16 %v9977
    %v10010 = vpack.c.b16 %v9995, %v9994
    %v10011 = vpack.c.b16 %v9997, %v9996
    %v10012 = vpack.c.b16 %v9999, %v9998
    %v10013 = vpack.c.b16 %v10001, %v10000
    %v10014 = vpack.c.b16 %v10003, %v10002
    %v10015 = vpack.c.b16 %v10005, %v10004
    %v10016 = vpack.c.b16 %v10007, %v10006
    %v10017 = vpack.c.b16 %v10009, %v10008
    %10026 = vmatprep.subr.bf16.mxu0 0
    %10027 = vmatpush1.bf16.msra.mxu0 %v10010
    %10028 = vmatprep.subr.bf16.mxu0 0
    %10029 = vmatpush1.bf16.msra.mxu0 %v10011
    %10030 = vmatprep.subr.bf16.mxu0 0
    %10031 = vmatpush1.bf16.msra.mxu0 %v10012
    %10032 = vmatprep.subr.bf16.mxu0 0
    %10033 = vmatpush1.bf16.msra.mxu0 %v10013
    %10034 = vmatprep.subr.bf16.mxu0 0
    %10035 = vmatpush1.bf16.msra.mxu0 %v10014
    %10036 = vmatprep.subr.bf16.mxu0 0
    %10037 = vmatpush1.bf16.msra.mxu0 %v10015
    %10038 = vmatprep.subr.bf16.mxu0 0
    %10039 = vmatpush1.bf16.msra.mxu0 %v10016
    %10040 = vmatprep.subr.bf16.mxu0 0
    %10041 = vmatpush1.bf16.msra.mxu0 %v10017
    %10042 = vmatprep.subr.bf16.mxu0 0
    %10043 = vmatpush1.bf16.msra.mxu0 0
    %10044 = vmatprep.subr.bf16.mxu0 0
    %10045 = vmatpush1.bf16.msra.mxu0 0
    %10046 = vmatprep.subr.bf16.mxu0 0
    %10047 = vmatpush1.bf16.msra.mxu0 0
    %10048 = vmatprep.subr.bf16.mxu0 0
    %10049 = vmatpush1.bf16.msra.mxu0 0
    %10050 = vmatprep.subr.bf16.mxu0 0
    %10051 = vmatpush1.bf16.msra.mxu0 0
    %10052 = vmatprep.subr.bf16.mxu0 0
    %10053 = vmatpush1.bf16.msra.mxu0 0
    %10054 = vmatprep.subr.bf16.mxu0 0
    %10055 = vmatpush1.bf16.msra.mxu0 0
    %10056 = vmatprep.subr.bf16.mxu0 0
    %10057 = vmatpush1.bf16.msra.mxu0 0
    %10058 = vmatprep.mubr.bf16.mxu0 0
    %10059 = vmatmul.mubr.bf16.gmra.mrb[0].mxu0 %v9960
    %v10060 = vpop.f32.mrb[0].mxu0
    %v10061 = vadd.f32 0.0, %v10060
    %v10062 = vpop.f32.mrb[0].mxu0
    %v10063 = vpop.f32.mrb[0].mxu0
    %v10064 = vadd.f32 0.0, %v10063
    %v10065 = vpop.f32.mrb[0].mxu0
    %10066 = vdwg.mxu0
    %v10067 = vadd.f32 %v9958, %v10061
    %v10068 = vadd.f32 %v9959, %v10064
    %v10069 = vld [vmem:[#allocation3 + $0x168] sm:$0xff]
    %s10070 = scalar_lea.vmem [#allocation11], 2880
    %v10071 = vld [vmem:[%s10070] sm:$0xf]
    %v10072 = vld [vmem:[%s10070 + $0x4] sm:$0xf]
    %v10073 = vld [vmem:[%s10070 + $0x8] sm:$0xf]
    %v10074 = vld [vmem:[%s10070 + $0xc] sm:$0xf]
    %v10075 = vld [vmem:[%s10070 + $0x10] sm:$0xf]
    %v10076 = vld [vmem:[%s10070 + $0x14] sm:$0xf]
    %v10077 = vld [vmem:[%s10070 + $0x18] sm:$0xf]
    %v10078 = vld [vmem:[%s10070 + $0x1c] sm:$0xf]
    %v10079 = vld [vmem:[%s10070 + $0x20] sm:$0xf]
    %v10080 = vld [vmem:[%s10070 + $0x24] sm:$0xf]
    %v10081 = vld [vmem:[%s10070 + $0x28] sm:$0xf]
    %v10082 = vld [vmem:[%s10070 + $0x2c] sm:$0xf]
    %v10083 = vld [vmem:[%s10070 + $0x30] sm:$0xf]
    %v10084 = vld [vmem:[%s10070 + $0x34] sm:$0xf]
    %v10085 = vld [vmem:[%s10070 + $0x38] sm:$0xf]
    %v10086 = vld [vmem:[%s10070 + $0x3c] sm:$0xf]
    %v10103 = vunpack.c.l.b16 %v10071
    %v10104 = vunpack.c.l.b16 %v10072
    %v10105 = vunpack.c.l.b16 %v10073
    %v10106 = vunpack.c.l.b16 %v10074
    %v10107 = vunpack.c.l.b16 %v10075
    %v10108 = vunpack.c.l.b16 %v10076
    %v10109 = vunpack.c.l.b16 %v10077
    %v10110 = vunpack.c.l.b16 %v10078
    %v10111 = vunpack.c.l.b16 %v10079
    %v10112 = vunpack.c.l.b16 %v10080
    %v10113 = vunpack.c.l.b16 %v10081
    %v10114 = vunpack.c.l.b16 %v10082
    %v10115 = vunpack.c.l.b16 %v10083
    %v10116 = vunpack.c.l.b16 %v10084
    %v10117 = vunpack.c.l.b16 %v10085
    %v10118 = vunpack.c.l.b16 %v10086
    %v10119 = vpack.c.b16 %v10104, %v10103
    %v10120 = vpack.c.b16 %v10106, %v10105
    %v10121 = vpack.c.b16 %v10108, %v10107
    %v10122 = vpack.c.b16 %v10110, %v10109
    %v10123 = vpack.c.b16 %v10112, %v10111
    %v10124 = vpack.c.b16 %v10114, %v10113
    %v10125 = vpack.c.b16 %v10116, %v10115
    %v10126 = vpack.c.b16 %v10118, %v10117
    %10135 = vmatprep.subr.bf16.mxu0 0
    %10136 = vmatpush1.bf16.msra.mxu0 %v10119
    %10137 = vmatprep.subr.bf16.mxu0 0
    %10138 = vmatpush1.bf16.msra.mxu0 %v10120
    %10139 = vmatprep.subr.bf16.mxu0 0
    %10140 = vmatpush1.bf16.msra.mxu0 %v10121
    %10141 = vmatprep.subr.bf16.mxu0 0
    %10142 = vmatpush1.bf16.msra.mxu0 %v10122
    %10143 = vmatprep.subr.bf16.mxu0 0
    %10144 = vmatpush1.bf16.msra.mxu0 %v10123
    %10145 = vmatprep.subr.bf16.mxu0 0
    %10146 = vmatpush1.bf16.msra.mxu0 %v10124
    %10147 = vmatprep.subr.bf16.mxu0 0
    %10148 = vmatpush1.bf16.msra.mxu0 %v10125
    %10149 = vmatprep.subr.bf16.mxu0 0
    %10150 = vmatpush1.bf16.msra.mxu0 %v10126
    %10151 = vmatprep.subr.bf16.mxu0 0
    %10152 = vmatpush1.bf16.msra.mxu0 0
    %10153 = vmatprep.subr.bf16.mxu0 0
    %10154 = vmatpush1.bf16.msra.mxu0 0
    %10155 = vmatprep.subr.bf16.mxu0 0
    %10156 = vmatpush1.bf16.msra.mxu0 0
    %10157 = vmatprep.subr.bf16.mxu0 0
    %10158 = vmatpush1.bf16.msra.mxu0 0
    %10159 = vmatprep.subr.bf16.mxu0 0
    %10160 = vmatpush1.bf16.msra.mxu0 0
    %10161 = vmatprep.subr.bf16.mxu0 0
    %10162 = vmatpush1.bf16.msra.mxu0 0
    %10163 = vmatprep.subr.bf16.mxu0 0
    %10164 = vmatpush1.bf16.msra.mxu0 0
    %10165 = vmatprep.subr.bf16.mxu0 0
    %10166 = vmatpush1.bf16.msra.mxu0 0
    %10167 = vmatprep.mubr.bf16.mxu0 0
    %10168 = vmatmul.mubr.bf16.gmra.mrb[0].mxu0 %v10069
    %v10169 = vpop.f32.mrb[0].mxu0
    %v10170 = vadd.f32 0.0, %v10169
    %v10171 = vpop.f32.mrb[0].mxu0
    %v10172 = vpop.f32.mrb[0].mxu0
    %v10173 = vadd.f32 0.0, %v10172
    %v10174 = vpop.f32.mrb[0].mxu0
    %10175 = vdwg.mxu0
    %v10176 = vadd.f32 %v10067, %v10170
    %v10177 = vadd.f32 %v10068, %v10173
    %v10178 = vld [vmem:[#allocation3 + $0x170] sm:$0xff]
    %s10179 = scalar_lea.vmem [#allocation11], 2944
    %v10180 = vld [vmem:[%s10179] sm:$0xf]
    %v10181 = vld [vmem:[%s10179 + $0x4] sm:$0xf]
    %v10182 = vld [vmem:[%s10179 + $0x8] sm:$0xf]
    %v10183 = vld [vmem:[%s10179 + $0xc] sm:$0xf]
    %v10184 = vld [vmem:[%s10179 + $0x10] sm:$0xf]
    %v10185 = vld [vmem:[%s10179 + $0x14] sm:$0xf]
    %v10186 = vld [vmem:[%s10179 + $0x18] sm:$0xf]
    %v10187 = vld [vmem:[%s10179 + $0x1c] sm:$0xf]
    %v10188 = vld [vmem:[%s10179 + $0x20] sm:$0xf]
    %v10189 = vld [vmem:[%s10179 + $0x24] sm:$0xf]
    %v10190 = vld [vmem:[%s10179 + $0x28] sm:$0xf]
    %v10191 = vld [vmem:[%s10179 + $0x2c] sm:$0xf]
    %v10192 = vld [vmem:[%s10179 + $0x30] sm:$0xf]
    %v10193 = vld [vmem:[%s10179 + $0x34] sm:$0xf]
    %v10194 = vld [vmem:[%s10179 + $0x38] sm:$0xf]
    %v10195 = vld [vmem:[%s10179 + $0x3c] sm:$0xf]
    %v10212 = vunpack.c.l.b16 %v10180
    %v10213 = vunpack.c.l.b16 %v10181
    %v10214 = vunpack.c.l.b16 %v10182
    %v10215 = vunpack.c.l.b16 %v10183
    %v10216 = vunpack.c.l.b16 %v10184
    %v10217 = vunpack.c.l.b16 %v10185
    %v10218 = vunpack.c.l.b16 %v10186
    %v10219 = vunpack.c.l.b16 %v10187
    %v10220 = vunpack.c.l.b16 %v10188
    %v10221 = vunpack.c.l.b16 %v10189
    %v10222 = vunpack.c.l.b16 %v10190
    %v10223 = vunpack.c.l.b16 %v10191
    %v10224 = vunpack.c.l.b16 %v10192
    %v10225 = vunpack.c.l.b16 %v10193
    %v10226 = vunpack.c.l.b16 %v10194
    %v10227 = vunpack.c.l.b16 %v10195
    %v10228 = vpack.c.b16 %v10213, %v10212
    %v10229 = vpack.c.b16 %v10215, %v10214
    %v10230 = vpack.c.b16 %v10217, %v10216
    %v10231 = vpack.c.b16 %v10219, %v10218
    %v10232 = vpack.c.b16 %v10221, %v10220
    %v10233 = vpack.c.b16 %v10223, %v10222
    %v10234 = vpack.c.b16 %v10225, %v10224
    %v10235 = vpack.c.b16 %v10227, %v10226
    %10244 = vmatprep.subr.bf16.mxu0 0
    %10245 = vmatpush1.bf16.msra.mxu0 %v10228
    %10246 = vmatprep.subr.bf16.mxu0 0
    %10247 = vmatpush1.bf16.msra.mxu0 %v10229
    %10248 = vmatprep.subr.bf16.mxu0 0
    %10249 = vmatpush1.bf16.msra.mxu0 %v10230
    %10250 = vmatprep.subr.bf16.mxu0 0
    %10251 = vmatpush1.bf16.msra.mxu0 %v10231
    %10252 = vmatprep.subr.bf16.mxu0 0
    %10253 = vmatpush1.bf16.msra.mxu0 %v10232
    %10254 = vmatprep.subr.bf16.mxu0 0
    %10255 = vmatpush1.bf16.msra.mxu0 %v10233
    %10256 = vmatprep.subr.bf16.mxu0 0
    %10257 = vmatpush1.bf16.msra.mxu0 %v10234
    %10258 = vmatprep.subr.bf16.mxu0 0
    %10259 = vmatpush1.bf16.msra.mxu0 %v10235
    %10260 = vmatprep.subr.bf16.mxu0 0
    %10261 = vmatpush1.bf16.msra.mxu0 0
    %10262 = vmatprep.subr.bf16.mxu0 0
    %10263 = vmatpush1.bf16.msra.mxu0 0
    %10264 = vmatprep.subr.bf16.mxu0 0
    %10265 = vmatpush1.bf16.msra.mxu0 0
    %10266 = vmatprep.subr.bf16.mxu0 0
    %10267 = vmatpush1.bf16.msra.mxu0 0
    %10268 = vmatprep.subr.bf16.mxu0 0
    %10269 = vmatpush1.bf16.msra.mxu0 0
    %10270 = vmatprep.subr.bf16.mxu0 0
    %10271 = vmatpush1.bf16.msra.mxu0 0
    %10272 = vmatprep.subr.bf16.mxu0 0
    %10273 = vmatpush1.bf16.msra.mxu0 0
    %10274 = vmatprep.subr.bf16.mxu0 0
    %10275 = vmatpush1.bf16.msra.mxu0 0
    %10276 = vmatprep.mubr.bf16.mxu0 0
    %10277 = vmatmul.mubr.bf16.gmra.mrb[0].mxu0 %v10178
    %v10278 = vpop.f32.mrb[0].mxu0
    %v10279 = vadd.f32 0.0, %v10278
    %v10280 = vpop.f32.mrb[0].mxu0
    %v10281 = vpop.f32.mrb[0].mxu0
    %v10282 = vadd.f32 0.0, %v10281
    %v10283 = vpop.f32.mrb[0].mxu0
    %10284 = vdwg.mxu0
    %v10285 = vadd.f32 %v10176, %v10279
    %v10286 = vadd.f32 %v10177, %v10282
    %v10287 = vld [vmem:[#allocation3 + $0x178] sm:$0xff]
    %s10288 = scalar_lea.vmem [#allocation11], 3008
    %v10289 = vld [vmem:[%s10288] sm:$0xf]
    %v10290 = vld [vmem:[%s10288 + $0x4] sm:$0xf]
    %v10291 = vld [vmem:[%s10288 + $0x8] sm:$0xf]
    %v10292 = vld [vmem:[%s10288 + $0xc] sm:$0xf]
    %v10293 = vld [vmem:[%s10288 + $0x10] sm:$0xf]
    %v10294 = vld [vmem:[%s10288 + $0x14] sm:$0xf]
    %v10295 = vld [vmem:[%s10288 + $0x18] sm:$0xf]
    %v10296 = vld [vmem:[%s10288 + $0x1c] sm:$0xf]
    %v10297 = vld [vmem:[%s10288 + $0x20] sm:$0xf]
    %v10298 = vld [vmem:[%s10288 + $0x24] sm:$0xf]
    %v10299 = vld [vmem:[%s10288 + $0x28] sm:$0xf]
    %v10300 = vld [vmem:[%s10288 + $0x2c] sm:$0xf]
    %v10301 = vld [vmem:[%s10288 + $0x30] sm:$0xf]
    %v10302 = vld [vmem:[%s10288 + $0x34] sm:$0xf]
    %v10303 = vld [vmem:[%s10288 + $0x38] sm:$0xf]
    %v10304 = vld [vmem:[%s10288 + $0x3c] sm:$0xf]
    %v10321 = vunpack.c.l.b16 %v10289
    %v10322 = vunpack.c.l.b16 %v10290
    %v10323 = vunpack.c.l.b16 %v10291
    %v10324 = vunpack.c.l.b16 %v10292
    %v10325 = vunpack.c.l.b16 %v10293
    %v10326 = vunpack.c.l.b16 %v10294
    %v10327 = vunpack.c.l.b16 %v10295
    %v10328 = vunpack.c.l.b16 %v10296
    %v10329 = vunpack.c.l.b16 %v10297
    %v10330 = vunpack.c.l.b16 %v10298
    %v10331 = vunpack.c.l.b16 %v10299
    %v10332 = vunpack.c.l.b16 %v10300
    %v10333 = vunpack.c.l.b16 %v10301
    %v10334 = vunpack.c.l.b16 %v10302
    %v10335 = vunpack.c.l.b16 %v10303
    %v10336 = vunpack.c.l.b16 %v10304
    %v10337 = vpack.c.b16 %v10322, %v10321
    %v10338 = vpack.c.b16 %v10324, %v10323
    %v10339 = vpack.c.b16 %v10326, %v10325
    %v10340 = vpack.c.b16 %v10328, %v10327
    %v10341 = vpack.c.b16 %v10330, %v10329
    %v10342 = vpack.c.b16 %v10332, %v10331
    %v10343 = vpack.c.b16 %v10334, %v10333
    %v10344 = vpack.c.b16 %v10336, %v10335
    %10353 = vmatprep.subr.bf16.mxu0 0
    %10354 = vmatpush1.bf16.msra.mxu0 %v10337
    %10355 = vmatprep.subr.bf16.mxu0 0
    %10356 = vmatpush1.bf16.msra.mxu0 %v10338
    %10357 = vmatprep.subr.bf16.mxu0 0
    %10358 = vmatpush1.bf16.msra.mxu0 %v10339
    %10359 = vmatprep.subr.bf16.mxu0 0
    %10360 = vmatpush1.bf16.msra.mxu0 %v10340
    %10361 = vmatprep.subr.bf16.mxu0 0
    %10362 = vmatpush1.bf16.msra.mxu0 %v10341
    %10363 = vmatprep.subr.bf16.mxu0 0
    %10364 = vmatpush1.bf16.msra.mxu0 %v10342
    %10365 = vmatprep.subr.bf16.mxu0 0
    %10366 = vmatpush1.bf16.msra.mxu0 %v10343
    %10367 = vmatprep.subr.bf16.mxu0 0
    %10368 = vmatpush1.bf16.msra.mxu0 %v10344
    %10369 = vmatprep.subr.bf16.mxu0 0
    %10370 = vmatpush1.bf16.msra.mxu0 0
    %10371 = vmatprep.subr.bf16.mxu0 0
    %10372 = vmatpush1.bf16.msra.mxu0 0
    %10373 = vmatprep.subr.bf16.mxu0 0
    %10374 = vmatpush1.bf16.msra.mxu0 0
    %10375 = vmatprep.subr.bf16.mxu0 0
    %10376 = vmatpush1.bf16.msra.mxu0 0
    %10377 = vmatprep.subr.bf16.mxu0 0
    %10378 = vmatpush1.bf16.msra.mxu0 0
    %10379 = vmatprep.subr.bf16.mxu0 0
    %10380 = vmatpush1.bf16.msra.mxu0 0
    %10381 = vmatprep.subr.bf16.mxu0 0
    %10382 = vmatpush1.bf16.msra.mxu0 0
    %10383 = vmatprep.subr.bf16.mxu0 0
    %10384 = vmatpush1.bf16.msra.mxu0 0
    %10385 = vmatprep.mubr.bf16.mxu0 0
    %10386 = vmatmul.mubr.bf16.gmra.mrb[0].mxu0 %v10287
    %v10387 = vpop.f32.mrb[0].mxu0
    %v10388 = vadd.f32 0.0, %v10387
    %v10389 = vpop.f32.mrb[0].mxu0
    %v10390 = vpop.f32.mrb[0].mxu0
    %v10391 = vadd.f32 0.0, %v10390
    %v10392 = vpop.f32.mrb[0].mxu0
    %10393 = vdwg.mxu0
    %v10394 = vadd.f32 %v10285, %v10388
    %v10395 = vadd.f32 %v10286, %v10391
    %v10396 = vld [vmem:[#allocation3 + $0x180] sm:$0xff]
    %s10397 = scalar_lea.vmem [#allocation11], 3072
    %v10398 = vld [vmem:[%s10397] sm:$0xf]
    %v10399 = vld [vmem:[%s10397 + $0x4] sm:$0xf]
    %v10400 = vld [vmem:[%s10397 + $0x8] sm:$0xf]
    %v10401 = vld [vmem:[%s10397 + $0xc] sm:$0xf]
    %v10402 = vld [vmem:[%s10397 + $0x10] sm:$0xf]
    %v10403 = vld [vmem:[%s10397 + $0x14] sm:$0xf]
    %v10404 = vld [vmem:[%s10397 + $0x18] sm:$0xf]
    %v10405 = vld [vmem:[%s10397 + $0x1c] sm:$0xf]
    %v10406 = vld [vmem:[%s10397 + $0x20] sm:$0xf]
    %v10407 = vld [vmem:[%s10397 + $0x24] sm:$0xf]
    %v10408 = vld [vmem:[%s10397 + $0x28] sm:$0xf]
    %v10409 = vld [vmem:[%s10397 + $0x2c] sm:$0xf]
    %v10410 = vld [vmem:[%s10397 + $0x30] sm:$0xf]
    %v10411 = vld [vmem:[%s10397 + $0x34] sm:$0xf]
    %v10412 = vld [vmem:[%s10397 + $0x38] sm:$0xf]
    %v10413 = vld [vmem:[%s10397 + $0x3c] sm:$0xf]
    %v10430 = vunpack.c.l.b16 %v10398
    %v10431 = vunpack.c.l.b16 %v10399
    %v10432 = vunpack.c.l.b16 %v10400
    %v10433 = vunpack.c.l.b16 %v10401
    %v10434 = vunpack.c.l.b16 %v10402
    %v10435 = vunpack.c.l.b16 %v10403
    %v10436 = vunpack.c.l.b16 %v10404
    %v10437 = vunpack.c.l.b16 %v10405
    %v10438 = vunpack.c.l.b16 %v10406
    %v10439 = vunpack.c.l.b16 %v10407
    %v10440 = vunpack.c.l.b16 %v10408
    %v10441 = vunpack.c.l.b16 %v10409
    %v10442 = vunpack.c.l.b16 %v10410
    %v10443 = vunpack.c.l.b16 %v10411
    %v10444 = vunpack.c.l.b16 %v10412
    %v10445 = vunpack.c.l.b16 %v10413
    %v10446 = vpack.c.b16 %v10431, %v10430
    %v10447 = vpack.c.b16 %v10433, %v10432
    %v10448 = vpack.c.b16 %v10435, %v10434
    %v10449 = vpack.c.b16 %v10437, %v10436
    %v10450 = vpack.c.b16 %v10439, %v10438
    %v10451 = vpack.c.b16 %v10441, %v10440
    %v10452 = vpack.c.b16 %v10443, %v10442
    %v10453 = vpack.c.b16 %v10445, %v10444
    %10462 = vmatprep.subr.bf16.mxu0 0
    %10463 = vmatpush1.bf16.msra.mxu0 %v10446
    %10464 = vmatprep.subr.bf16.mxu0 0
    %10465 = vmatpush1.bf16.msra.mxu0 %v10447
    %10466 = vmatprep.subr.bf16.mxu0 0
    %10467 = vmatpush1.bf16.msra.mxu0 %v10448
    %10468 = vmatprep.subr.bf16.mxu0 0
    %10469 = vmatpush1.bf16.msra.mxu0 %v10449
    %10470 = vmatprep.subr.bf16.mxu0 0
    %10471 = vmatpush1.bf16.msra.mxu0 %v10450
    %10472 = vmatprep.subr.bf16.mxu0 0
    %10473 = vmatpush1.bf16.msra.mxu0 %v10451
    %10474 = vmatprep.subr.bf16.mxu0 0
    %10475 = vmatpush1.bf16.msra.mxu0 %v10452
    %10476 = vmatprep.subr.bf16.mxu0 0
    %10477 = vmatpush1.bf16.msra.mxu0 %v10453
    %10478 = vmatprep.subr.bf16.mxu0 0
    %10479 = vmatpush1.bf16.msra.mxu0 0
    %10480 = vmatprep.subr.bf16.mxu0 0
    %10481 = vmatpush1.bf16.msra.mxu0 0
    %10482 = vmatprep.subr.bf16.mxu0 0
    %10483 = vmatpush1.bf16.msra.mxu0 0
    %10484 = vmatprep.subr.bf16.mxu0 0
    %10485 = vmatpush1.bf16.msra.mxu0 0
    %10486 = vmatprep.subr.bf16.mxu0 0
    %10487 = vmatpush1.bf16.msra.mxu0 0
    %10488 = vmatprep.subr.bf16.mxu0 0
    %10489 = vmatpush1.bf16.msra.mxu0 0
    %10490 = vmatprep.subr.bf16.mxu0 0
    %10491 = vmatpush1.bf16.msra.mxu0 0
    %10492 = vmatprep.subr.bf16.mxu0 0
    %10493 = vmatpush1.bf16.msra.mxu0 0
    %10494 = vmatprep.mubr.bf16.mxu0 0
    %10495 = vmatmul.mubr.bf16.gmra.mrb[0].mxu0 %v10396
    %v10496 = vpop.f32.mrb[0].mxu0
    %v10497 = vadd.f32 0.0, %v10496
    %v10498 = vpop.f32.mrb[0].mxu0
    %v10499 = vpop.f32.mrb[0].mxu0
    %v10500 = vadd.f32 0.0, %v10499
    %v10501 = vpop.f32.mrb[0].mxu0
    %10502 = vdwg.mxu0
    %v10503 = vadd.f32 %v10394, %v10497
    %v10504 = vadd.f32 %v10395, %v10500
    %v10505 = vld [vmem:[#allocation3 + $0x188] sm:$0xff]
    %s10506 = scalar_lea.vmem [#allocation11], 3136
    %v10507 = vld [vmem:[%s10506] sm:$0xf]
    %v10508 = vld [vmem:[%s10506 + $0x4] sm:$0xf]
    %v10509 = vld [vmem:[%s10506 + $0x8] sm:$0xf]
    %v10510 = vld [vmem:[%s10506 + $0xc] sm:$0xf]
    %v10511 = vld [vmem:[%s10506 + $0x10] sm:$0xf]
    %v10512 = vld [vmem:[%s10506 + $0x14] sm:$0xf]
    %v10513 = vld [vmem:[%s10506 + $0x18] sm:$0xf]
    %v10514 = vld [vmem:[%s10506 + $0x1c] sm:$0xf]
    %v10515 = vld [vmem:[%s10506 + $0x20] sm:$0xf]
    %v10516 = vld [vmem:[%s10506 + $0x24] sm:$0xf]
    %v10517 = vld [vmem:[%s10506 + $0x28] sm:$0xf]
    %v10518 = vld [vmem:[%s10506 + $0x2c] sm:$0xf]
    %v10519 = vld [vmem:[%s10506 + $0x30] sm:$0xf]
    %v10520 = vld [vmem:[%s10506 + $0x34] sm:$0xf]
    %v10521 = vld [vmem:[%s10506 + $0x38] sm:$0xf]
    %v10522 = vld [vmem:[%s10506 + $0x3c] sm:$0xf]
    %v10539 = vunpack.c.l.b16 %v10507
    %v10540 = vunpack.c.l.b16 %v10508
    %v10541 = vunpack.c.l.b16 %v10509
    %v10542 = vunpack.c.l.b16 %v10510
    %v10543 = vunpack.c.l.b16 %v10511
    %v10544 = vunpack.c.l.b16 %v10512
    %v10545 = vunpack.c.l.b16 %v10513
    %v10546 = vunpack.c.l.b16 %v10514
    %v10547 = vunpack.c.l.b16 %v10515
    %v10548 = vunpack.c.l.b16 %v10516
    %v10549 = vunpack.c.l.b16 %v10517
    %v10550 = vunpack.c.l.b16 %v10518
    %v10551 = vunpack.c.l.b16 %v10519
    %v10552 = vunpack.c.l.b16 %v10520
    %v10553 = vunpack.c.l.b16 %v10521
    %v10554 = vunpack.c.l.b16 %v10522
    %v10555 = vpack.c.b16 %v10540, %v10539
    %v10556 = vpack.c.b16 %v10542, %v10541
    %v10557 = vpack.c.b16 %v10544, %v10543
    %v10558 = vpack.c.b16 %v10546, %v10545
    %v10559 = vpack.c.b16 %v10548, %v10547
    %v10560 = vpack.c.b16 %v10550, %v10549
    %v10561 = vpack.c.b16 %v10552, %v10551
    %v10562 = vpack.c.b16 %v10554, %v10553
    %10571 = vmatprep.subr.bf16.mxu0 0
    %10572 = vmatpush1.bf16.msra.mxu0 %v10555
    %10573 = vmatprep.subr.bf16.mxu0 0
    %10574 = vmatpush1.bf16.msra.mxu0 %v10556
    %10575 = vmatprep.subr.bf16.mxu0 0
    %10576 = vmatpush1.bf16.msra.mxu0 %v10557
    %10577 = vmatprep.subr.bf16.mxu0 0
    %10578 = vmatpush1.bf16.msra.mxu0 %v10558
    %10579 = vmatprep.subr.bf16.mxu0 0
    %10580 = vmatpush1.bf16.msra.mxu0 %v10559
    %10581 = vmatprep.subr.bf16.mxu0 0
    %10582 = vmatpush1.bf16.msra.mxu0 %v10560
    %10583 = vmatprep.subr.bf16.mxu0 0
    %10584 = vmatpush1.bf16.msra.mxu0 %v10561
    %10585 = vmatprep.subr.bf16.mxu0 0
    %10586 = vmatpush1.bf16.msra.mxu0 %v10562
    %10587 = vmatprep.subr.bf16.mxu0 0
    %10588 = vmatpush1.bf16.msra.mxu0 0
    %10589 = vmatprep.subr.bf16.mxu0 0
    %10590 = vmatpush1.bf16.msra.mxu0 0
    %10591 = vmatprep.subr.bf16.mxu0 0
    %10592 = vmatpush1.bf16.msra.mxu0 0
    %10593 = vmatprep.subr.bf16.mxu0 0
    %10594 = vmatpush1.bf16.msra.mxu0 0
    %10595 = vmatprep.subr.bf16.mxu0 0
    %10596 = vmatpush1.bf16.msra.mxu0 0
    %10597 = vmatprep.subr.bf16.mxu0 0
    %10598 = vmatpush1.bf16.msra.mxu0 0
    %10599 = vmatprep.subr.bf16.mxu0 0
    %10600 = vmatpush1.bf16.msra.mxu0 0
    %10601 = vmatprep.subr.bf16.mxu0 0
    %10602 = vmatpush1.bf16.msra.mxu0 0
    %10603 = vmatprep.mubr.bf16.mxu0 0
    %10604 = vmatmul.mubr.bf16.gmra.mrb[0].mxu0 %v10505
    %v10605 = vpop.f32.mrb[0].mxu0
    %v10606 = vadd.f32 0.0, %v10605
    %v10607 = vpop.f32.mrb[0].mxu0
    %v10608 = vpop.f32.mrb[0].mxu0
    %v10609 = vadd.f32 0.0, %v10608
    %v10610 = vpop.f32.mrb[0].mxu0
    %10611 = vdwg.mxu0
    %v10612 = vadd.f32 %v10503, %v10606
    %v10613 = vadd.f32 %v10504, %v10609
    %v10614 = vld [vmem:[#allocation3 + $0x190] sm:$0xff]
    %s10615 = scalar_lea.vmem [#allocation11], 3200
    %v10616 = vld [vmem:[%s10615] sm:$0xf]
    %v10617 = vld [vmem:[%s10615 + $0x4] sm:$0xf]
    %v10618 = vld [vmem:[%s10615 + $0x8] sm:$0xf]
    %v10619 = vld [vmem:[%s10615 + $0xc] sm:$0xf]
    %v10620 = vld [vmem:[%s10615 + $0x10] sm:$0xf]
    %v10621 = vld [vmem:[%s10615 + $0x14] sm:$0xf]
    %v10622 = vld [vmem:[%s10615 + $0x18] sm:$0xf]
    %v10623 = vld [vmem:[%s10615 + $0x1c] sm:$0xf]
    %v10624 = vld [vmem:[%s10615 + $0x20] sm:$0xf]
    %v10625 = vld [vmem:[%s10615 + $0x24] sm:$0xf]
    %v10626 = vld [vmem:[%s10615 + $0x28] sm:$0xf]
    %v10627 = vld [vmem:[%s10615 + $0x2c] sm:$0xf]
    %v10628 = vld [vmem:[%s10615 + $0x30] sm:$0xf]
    %v10629 = vld [vmem:[%s10615 + $0x34] sm:$0xf]
    %v10630 = vld [vmem:[%s10615 + $0x38] sm:$0xf]
    %v10631 = vld [vmem:[%s10615 + $0x3c] sm:$0xf]
    %v10648 = vunpack.c.l.b16 %v10616
    %v10649 = vunpack.c.l.b16 %v10617
    %v10650 = vunpack.c.l.b16 %v10618
    %v10651 = vunpack.c.l.b16 %v10619
    %v10652 = vunpack.c.l.b16 %v10620
    %v10653 = vunpack.c.l.b16 %v10621
    %v10654 = vunpack.c.l.b16 %v10622
    %v10655 = vunpack.c.l.b16 %v10623
    %v10656 = vunpack.c.l.b16 %v10624
    %v10657 = vunpack.c.l.b16 %v10625
    %v10658 = vunpack.c.l.b16 %v10626
    %v10659 = vunpack.c.l.b16 %v10627
    %v10660 = vunpack.c.l.b16 %v10628
    %v10661 = vunpack.c.l.b16 %v10629
    %v10662 = vunpack.c.l.b16 %v10630
    %v10663 = vunpack.c.l.b16 %v10631
    %v10664 = vpack.c.b16 %v10649, %v10648
    %v10665 = vpack.c.b16 %v10651, %v10650
    %v10666 = vpack.c.b16 %v10653, %v10652
    %v10667 = vpack.c.b16 %v10655, %v10654
    %v10668 = vpack.c.b16 %v10657, %v10656
    %v10669 = vpack.c.b16 %v10659, %v10658
    %v10670 = vpack.c.b16 %v10661, %v10660
    %v10671 = vpack.c.b16 %v10663, %v10662
    %10680 = vmatprep.subr.bf16.mxu0 0
    %10681 = vmatpush1.bf16.msra.mxu0 %v10664
    %10682 = vmatprep.subr.bf16.mxu0 0
    %10683 = vmatpush1.bf16.msra.mxu0 %v10665
    %10684 = vmatprep.subr.bf16.mxu0 0
    %10685 = vmatpush1.bf16.msra.mxu0 %v10666
    %10686 = vmatprep.subr.bf16.mxu0 0
    %10687 = vmatpush1.bf16.msra.mxu0 %v10667
    %10688 = vmatprep.subr.bf16.mxu0 0
    %10689 = vmatpush1.bf16.msra.mxu0 %v10668
    %10690 = vmatprep.subr.bf16.mxu0 0
    %10691 = vmatpush1.bf16.msra.mxu0 %v10669
    %10692 = vmatprep.subr.bf16.mxu0 0
    %10693 = vmatpush1.bf16.msra.mxu0 %v10670
    %10694 = vmatprep.subr.bf16.mxu0 0
    %10695 = vmatpush1.bf16.msra.mxu0 %v10671
    %10696 = vmatprep.subr.bf16.mxu0 0
    %10697 = vmatpush1.bf16.msra.mxu0 0
    %10698 = vmatprep.subr.bf16.mxu0 0
    %10699 = vmatpush1.bf16.msra.mxu0 0
    %10700 = vmatprep.subr.bf16.mxu0 0
    %10701 = vmatpush1.bf16.msra.mxu0 0
    %10702 = vmatprep.subr.bf16.mxu0 0
    %10703 = vmatpush1.bf16.msra.mxu0 0
    %10704 = vmatprep.subr.bf16.mxu0 0
    %10705 = vmatpush1.bf16.msra.mxu0 0
    %10706 = vmatprep.subr.bf16.mxu0 0
    %10707 = vmatpush1.bf16.msra.mxu0 0
    %10708 = vmatprep.subr.bf16.mxu0 0
    %10709 = vmatpush1.bf16.msra.mxu0 0
    %10710 = vmatprep.subr.bf16.mxu0 0
    %10711 = vmatpush1.bf16.msra.mxu0 0
    %10712 = vmatprep.mubr.bf16.mxu0 0
    %10713 = vmatmul.mubr.bf16.gmra.mrb[0].mxu0 %v10614
    %v10714 = vpop.f32.mrb[0].mxu0
    %v10715 = vadd.f32 0.0, %v10714
    %v10716 = vpop.f32.mrb[0].mxu0
    %v10717 = vpop.f32.mrb[0].mxu0
    %v10718 = vadd.f32 0.0, %v10717
    %v10719 = vpop.f32.mrb[0].mxu0
    %10720 = vdwg.mxu0
    %v10721 = vadd.f32 %v10612, %v10715
    %v10722 = vadd.f32 %v10613, %v10718
    %v10723 = vld [vmem:[#allocation12] sm:$0x1]
    %v10725 = vlaneseq
    %v10726 = vshrl.u32 %v10725, 7
    %v10727 = vsub.s32 0, %v10726
    %v10728 = vrot.slane %v10723, %v10727
    %v10730 = vadd.f32 %v10721, %v10728
    %v10731 = vadd.f32 %v10722, %v10728
    %v10732 = vmax.f32 %v10730, 0.0
    %v10733 = vmax.f32 %v10731, 0.0
    %v10734 = vpack.c.bf16 %v10733, %v10732
    %v10735 = vld [vmem:[#allocation14] sm:$0xf]
    %v10736 = vld [vmem:[#allocation14 + $0x4] sm:$0xf]
    %v10737 = vld [vmem:[#allocation14 + $0x8] sm:$0xf]
    %v10738 = vld [vmem:[#allocation14 + $0xc] sm:$0xf]
    %v10739 = vld [vmem:[#allocation14 + $0x10] sm:$0xf]
    %v10740 = vld [vmem:[#allocation14 + $0x14] sm:$0xf]
    %v10741 = vld [vmem:[#allocation14 + $0x18] sm:$0xf]
    %v10742 = vld [vmem:[#allocation14 + $0x1c] sm:$0xf]
    %v10743 = vld [vmem:[#allocation14 + $0x20] sm:$0xf]
    %v10744 = vld [vmem:[#allocation14 + $0x24] sm:$0xf]
    %v10745 = vld [vmem:[#allocation14 + $0x28] sm:$0xf]
    %v10746 = vld [vmem:[#allocation14 + $0x2c] sm:$0xf]
    %v10747 = vld [vmem:[#allocation14 + $0x30] sm:$0xf]
    %v10748 = vld [vmem:[#allocation14 + $0x34] sm:$0xf]
    %v10749 = vld [vmem:[#allocation14 + $0x38] sm:$0xf]
    %v10750 = vld [vmem:[#allocation14 + $0x3c] sm:$0xf]
    %v10751 = vld [vmem:[#allocation15] sm:$0x1]
    %v10753 = vlaneseq
    %v10754 = vshrl.u32 %v10753, 7
    %v10755 = vsub.s32 0, %v10754
    %v10756 = vrot.slane %v10751, %v10755
    %v10774 = vunpack.c.l.b16 %v10735
    %v10775 = vunpack.c.l.b16 %v10736
    %v10776 = vunpack.c.l.b16 %v10737
    %v10777 = vunpack.c.l.b16 %v10738
    %v10778 = vunpack.c.l.b16 %v10739
    %v10779 = vunpack.c.l.b16 %v10740
    %v10780 = vunpack.c.l.b16 %v10741
    %v10781 = vunpack.c.l.b16 %v10742
    %v10782 = vunpack.c.l.b16 %v10743
    %v10783 = vunpack.c.l.b16 %v10744
    %v10784 = vunpack.c.l.b16 %v10745
    %v10785 = vunpack.c.l.b16 %v10746
    %v10786 = vunpack.c.l.b16 %v10747
    %v10787 = vunpack.c.l.b16 %v10748
    %v10788 = vunpack.c.l.b16 %v10749
    %v10789 = vunpack.c.l.b16 %v10750
    %v10790 = vpack.c.b16 %v10775, %v10774
    %v10791 = vpack.c.b16 %v10777, %v10776
    %v10792 = vpack.c.b16 %v10779, %v10778
    %v10793 = vpack.c.b16 %v10781, %v10780
    %v10794 = vpack.c.b16 %v10783, %v10782
    %v10795 = vpack.c.b16 %v10785, %v10784
    %v10796 = vpack.c.b16 %v10787, %v10786
    %v10797 = vpack.c.b16 %v10789, %v10788
    %10806 = vmatprep.subr.bf16.mxu0 0
    %10807 = vmatpush1.bf16.msra.mxu0 %v10790
    %10808 = vmatprep.subr.bf16.mxu0 0
    %10809 = vmatpush1.bf16.msra.mxu0 %v10791
    %10810 = vmatprep.subr.bf16.mxu0 0
    %10811 = vmatpush1.bf16.msra.mxu0 %v10792
    %10812 = vmatprep.subr.bf16.mxu0 0
    %10813 = vmatpush1.bf16.msra.mxu0 %v10793
    %10814 = vmatprep.subr.bf16.mxu0 0
    %10815 = vmatpush1.bf16.msra.mxu0 %v10794
    %10816 = vmatprep.subr.bf16.mxu0 0
    %10817 = vmatpush1.bf16.msra.mxu0 %v10795
    %10818 = vmatprep.subr.bf16.mxu0 0
    %10819 = vmatpush1.bf16.msra.mxu0 %v10796
    %10820 = vmatprep.subr.bf16.mxu0 0
    %10821 = vmatpush1.bf16.msra.mxu0 %v10797
    %10822 = vmatprep.subr.bf16.mxu0 0
    %10823 = vmatpush1.bf16.msra.mxu0 0
    %10824 = vmatprep.subr.bf16.mxu0 0
    %10825 = vmatpush1.bf16.msra.mxu0 0
    %10826 = vmatprep.subr.bf16.mxu0 0
    %10827 = vmatpush1.bf16.msra.mxu0 0
    %10828 = vmatprep.subr.bf16.mxu0 0
    %10829 = vmatpush1.bf16.msra.mxu0 0
    %10830 = vmatprep.subr.bf16.mxu0 0
    %10831 = vmatpush1.bf16.msra.mxu0 0
    %10832 = vmatprep.subr.bf16.mxu0 0
    %10833 = vmatpush1.bf16.msra.mxu0 0
    %10834 = vmatprep.subr.bf16.mxu0 0
    %10835 = vmatpush1.bf16.msra.mxu0 0
    %10836 = vmatprep.subr.bf16.mxu0 0
    %10837 = vmatpush1.bf16.msra.mxu0 0
    %10838 = vmatprep.mubr.bf16.mxu0 0
    %10839 = vmatmul.mubr.bf16.gmra.mrb[0].mxu0 %v10734
    %v10840 = vpop.f32.mrb[0].mxu0
    %v10841 = vadd.f32 %v10756, %v10840
    %v10842 = vpop.f32.mrb[0].mxu0
    %v10843 = vpop.f32.mrb[0].mxu0
    %v10844 = vadd.f32 %v10756, %v10843
    %v10845 = vpop.f32.mrb[0].mxu0
    %10846 = vdwg.mxu0
    %10847 = vst [vmem:[%s9] sm:$0xff] %v10841
    %10848 = vst [vmem:[%s9 + $0x8] sm:$0xff] %v10844
    // Predicated region
    $region70: #{cnn_predictor_forward.1} parent=1 // pred_check
      _
    $region71: #{cnn_predictor_forward.1} parent=1 // pred_check_branch
      %10850 = sbr.rel (0) target = $region73
    $region72: #{cnn_predictor_forward.1} parent=1 // pred_region
      _
    $region73: #{cnn_predictor_forward.1} parent=1 // pred_fallthru
      _
    // Predicated region
    $region74: #{cnn_predictor_forward.1} parent=1 // pred_check
      _
    $region75: #{cnn_predictor_forward.1} parent=1 // pred_check_branch
      %10852 = sbr.rel (0) target = $region77
    $region76: #{cnn_predictor_forward.1} parent=1 // pred_region
      _
    $region77: #{cnn_predictor_forward.1} parent=1 // pred_fallthru
      _
    %10853 = vsyncpa [#allocation5], 1
    %10854 = vsyncpa [#allocation7], 1
    %10855 = vsyncpa [#allocation10], 1
    %10856 = vsyncpa [#allocation13], 1
    %10857 = vsyncpa [#allocation16], 1

</llo_original>
